<compile_context>
chip_gen: v7x
topology: tpu7x:2x2x1
jax: 0.10.0
libtpu: 0.0.40
codegen_flags: <defaults>
</compile_context>

<pallas_src>
import numpy as np

import jax
import jax.numpy as jnp
from jax.experimental import pallas as pl
from jax.experimental.pallas import tpu as pltpu


def _round_up(x, m):
    return (x + m - 1) // m * m


def _cdiv(a, b):
    return (a + b - 1) // b


VMEM_LIMIT = 32 * 1024 * 1024   # explicit scoped-VMEM budget (fits v5e/v6e/v7x)
CONV1_TM_MAX = 2048             # conv1 im2col rows per grid step (K is only 64)
TAIL_TB_MAX = 128               # samples per grid step in the fused tail
_ALIGN = 16                     # bf16 sublane-pack alignment for row/batch tiles

# Even/odd-interleaved ordering of the 11 conv1 output positions.  With this
# ordering every stride-2 window needed by conv2 becomes a CONTIGUOUS slice of
# the conv1 feature map, so the fused tail kernel needs no strided slicing.
_PERM11 = np.array([0, 2, 4, 6, 8, 10, 1, 3, 5, 7, 9], dtype=np.int32)


def _balanced_tile(m, tmax):
    """Balanced tiling: big tiles, >=2 grid steps when possible (v7x megacore
    sharding of the 'parallel' axis), at most _ALIGN-1 wasted rows per tile."""
    steps = _cdiv(m, tmax)
    if steps == 1 and m >= 2 * _ALIGN:
        steps = 2
    if steps == 1:
        return m, 1
    tm = _round_up(_cdiv(m, steps), _ALIGN)
    return tm, _cdiv(m, tm)


# ---------------------------------------------------------------------------
# Kernel 1: conv1 as a plain MXU matmul (K = N = 64, no padding).
# ---------------------------------------------------------------------------
def _conv1_kernel(x_ref, w_ref, b_ref, o_ref):
    acc = jnp.dot(x_ref[...], w_ref[...], preferred_element_type=jnp.float32)
    o_ref[...] = jnp.maximum(acc + b_ref[...], 0.0).astype(o_ref.dtype)


def conv1_matmul(patches, w1, b1):
    """patches: (M, 64) bf16 conv1 im2col rows; returns (M, 64) bf16."""
    m, k = patches.shape
    n = w1.shape[1]
    tm, steps = _balanced_tile(m, CONV1_TM_MAX)
    cost = pl.CostEstimate(
        flops=2 * m * k * n, transcendentals=0,
        bytes_accessed=m * k * 2 + k * n * 2 + n * 4 + m * n * 2)
    return pl.pallas_call(
        _conv1_kernel,
        out_shape=jax.ShapeDtypeStruct((m, n), jnp.bfloat16),
        grid=(steps,),
        in_specs=[
            pl.BlockSpec((tm, k), lambda i: (i, 0)),    # streamed patch tiles
            pl.BlockSpec((k, n), lambda i: (0, 0)),     # resident weight
            pl.BlockSpec((1, n), lambda i: (0, 0)),     # resident bias
        ],
        out_specs=pl.BlockSpec((tm, n), lambda i: (i, 0)),
        compiler_params=pltpu.CompilerParams(
            dimension_semantics=("parallel",),
            vmem_limit_bytes=VMEM_LIMIT),
        cost_estimate=cost,
    )(patches, w1, b1)


# ---------------------------------------------------------------------------
# Kernel 2: fused conv2 -> ReLU -> conv3 -> ReLU -> view(-1,128) -> fc1.
# ---------------------------------------------------------------------------
def _tail_kernel(x_ref, w2_ref, b2_ref, w3_ref, b3_ref, wfc_ref, bfc_ref, o_ref):
    # x_ref: (11, TB, 704) bf16 conv1 feature map laid out [h_perm, b, w_perm*64+c]
    # with h/w in even/odd-interleaved order (so all windows below are contiguous).
    tb = x_ref.shape[1]

    # ---- conv2: 6x6, stride 2 -> 3x3x128, as 36 GEMMs with K = 3 taps x 64 ch.
    acc2 = [jnp.zeros((3 * tb, 128), jnp.float32) for _ in range(3)]   # per ow
    for i in range(6):                       # kernel row
        hs = i // 2 if i % 2 == 0 else 6 + i // 2
        for par in range(2):                 # kernel-column parity group
            w_k = w2_ref[2 * i + par]        # (192, 128) resident slab
            for ow in range(3):              # output column
                ls = (ow + 6 * par) * 64
                p = jnp.concatenate(
                    [x_ref[hs + oh, :, ls:ls + 192] for oh in range(3)],
                    axis=0)                  # (3*TB, 192), rows = (oh, b)
                acc2[ow] = acc2[ow] + jnp.dot(
                    p, w_k, preferred_element_type=jnp.float32)
    x2 = [jnp.maximum(a + b2_ref[...], 0.0).astype(jnp.bfloat16) for a in acc2]

    # ---- conv3: 5x5, stride 1, pad 1 on the 3x3 map -> 1x1 output.  Only the
    # 3x3 centre of the kernel ever touches non-padded input.
    acc3 = jnp.zeros((tb, 128), jnp.float32)
    for oh in range(3):
        for ow in range(3):
            acc3 = acc3 + jnp.dot(
                x2[ow][oh * tb:(oh + 1) * tb, :], w3_ref[3 * oh + ow],
                preferred_element_type=jnp.float32)
    x3 = jnp.maximum(acc3 + b3_ref[...], 0.0).astype(jnp.bfloat16)

    # ---- dropout2: identity (inference); view(-1, 128) == x3; fc1 (lane-dense,
    # padded to 128 output columns; padded columns are zero and sliced outside).
    logits = jnp.dot(x3, wfc_ref[...], preferred_element_type=jnp.float32)
    o_ref[...] = (logits + bfc_ref[...]).astype(o_ref.dtype)


def tail_fused(x1f, pp):
    """x1f: (11, N, 704) bf16 conv1 feature map; returns (N, 128) f32 logits
    (first 10 columns valid)."""
    n = x1f.shape[1]
    tb, steps = _balanced_tile(n, TAIL_TB_MAX)
    w_bytes = (pp["w2g"].size + pp["w3c"].size + pp["wfc"].size) * 2
    cost = pl.CostEstimate(
        flops=n * 2 * (9 * 2304 * 128 + 9 * 128 * 128 + 128 * 128),
        transcendentals=0,
        bytes_accessed=x1f.size * 2 + w_bytes + n * 128 * 4)
    return pl.pallas_call(
        _tail_kernel,
        out_shape=jax.ShapeDtypeStruct((n, 128), jnp.float32),
        grid=(steps,),
        in_specs=[
            pl.BlockSpec((11, tb, 704), lambda g: (0, g, 0)),   # streamed feature map
            pl.BlockSpec((12, 192, 128), lambda g: (0, 0, 0)),  # resident conv2 weights
            pl.BlockSpec((1, 128), lambda g: (0, 0)),           # conv2 bias
            pl.BlockSpec((9, 128, 128), lambda g: (0, 0, 0)),   # resident conv3 centre
            pl.BlockSpec((1, 128), lambda g: (0, 0)),           # conv3 bias
            pl.BlockSpec((128, 128), lambda g: (0, 0)),         # resident fc1 weight
            pl.BlockSpec((1, 128), lambda g: (0, 0)),           # fc1 bias
        ],
        out_specs=pl.BlockSpec((tb, 128), lambda g: (g, 0)),
        compiler_params=pltpu.CompilerParams(
            dimension_semantics=("parallel",),
            vmem_limit_bytes=VMEM_LIMIT),
        cost_estimate=cost,
    )(x1f, pp["w2g"], pp["b2"], pp["w3c"], pp["b3"], pp["wfc"], pp["bfc"])


# ---------------------------------------------------------------------------
# Parameters
# ---------------------------------------------------------------------------
def init_params():
    keys = jax.random.split(jax.random.PRNGKey(42), 8)
    scale = 0.05
    return {
        "w1": scale * jax.random.normal(keys[0], (8, 8, 1, 64), jnp.float32),
        "b1": scale * jax.random.normal(keys[1], (64,), jnp.float32),
        "w2": scale * jax.random.normal(keys[2], (6, 6, 64, 128), jnp.float32),
        "b2": scale * jax.random.normal(keys[3], (128,), jnp.float32),
        "w3": scale * jax.random.normal(keys[4], (5, 5, 128, 128), jnp.float32),
        "b3": scale * jax.random.normal(keys[5], (128,), jnp.float32),
        "wfc": scale * jax.random.normal(keys[6], (128, 10), jnp.float32),
        "bfc": scale * jax.random.normal(keys[7], (10,), jnp.float32),
    }


def prepare_params(p):
    """One-time (outside jit) repack of weights into MXU/VMEM-friendly slabs."""
    # conv1: (8,8,1,64) -> (64, 64); rows ordered (kh, kw) matching the im2col.
    w1 = p["w1"].reshape(64, 64).astype(jnp.bfloat16)
    # conv2: group the 3 same-parity kernel columns of each kernel row into one
    # K=192 slab; index k = 2*kh + parity, rows ordered (kw-in-group, cin).
    w2 = p["w2"]
    w2g = jnp.stack(
        [jnp.concatenate([w2[i, 2 * t + par] for t in range(3)], axis=0)
         for i in range(6) for par in range(2)], axis=0)          # (12, 192, 128)
    # conv3: with a 3x3 input and padding=1 only the 3x3 kernel centre contributes.
    w3c = p["w3"][1:4, 1:4].reshape(9, 128, 128)
    # fc1: pad out_features 10 -> 128 so the kernel output stays lane-dense
    # (padded columns have zero weight/bias and are sliced off outside).
    wfc = jnp.pad(p["wfc"], ((0, 0), (0, 128 - p["wfc"].shape[1])))
    bfc = jnp.pad(p["bfc"], (0, 128 - p["bfc"].shape[0]))
    return {
        "w1": w1,
        "b1": p["b1"].reshape(1, 64).astype(jnp.float32),
        "w2g": w2g.astype(jnp.bfloat16),
        "b2": p["b2"].reshape(1, 128).astype(jnp.float32),
        "w3c": w3c.astype(jnp.bfloat16),
        "b3": p["b3"].reshape(1, 128).astype(jnp.float32),
        "wfc": wfc.astype(jnp.bfloat16),
        "bfc": bfc.reshape(1, 128).astype(jnp.float32),
    }


# ---------------------------------------------------------------------------
# classifier_b forward
# ---------------------------------------------------------------------------
@jax.jit
def classifier_b_forward(x_nchw, pp):
    # dropout1: identity (inference)
    n = x_nchw.shape[0]
    assert x_nchw.shape[1:] == (1, 28, 28), (
        "classifier_b's view(-1, 128) only lines up for 1x28x28 inputs")
    # Pad the batch to a multiple of 16 (bf16 sublane pack); a few zero samples
    # are far cheaper than padding/slicing every intermediate activation.
    n_eff = max(_round_up(n, _ALIGN), _ALIGN)
    x = x_nchw.reshape(n, 28, 28).astype(jnp.bfloat16)
    if n_eff != n:
        x = jnp.pad(x, ((0, n_eff - n), (0, 0), (0, 0)))

    # conv1 im2col (cheap XLA glue on the tiny 1-channel input).  Output
    # positions are permuted to even/odd order and rows are emitted in
    # (h, b, w) order so the Pallas matmul output reshapes for free into the
    # layout consumed by the fused tail kernel.
    cols = [x[:, i:i + 22:2, j:j + 22:2] for i in range(8) for j in range(8)]
    arr = jnp.stack(cols, axis=-1)                      # (n_eff, 11, 11, 64)
    arr = jnp.take(arr, _PERM11, axis=1)
    arr = jnp.take(arr, _PERM11, axis=2)
    arr = jnp.transpose(arr, (1, 0, 2, 3))              # (11, n_eff, 11, 64)
    patches = arr.reshape(11 * n_eff * 11, 64)

    y1 = conv1_matmul(patches, pp["w1"], pp["b1"])      # (11*n_eff*11, 64) bf16
    x1f = y1.reshape(11, n_eff, 11 * 64)                # free (bitcast) reshape

    logits = tail_fused(x1f, pp)                        # (n_eff, 128) f32
    return logits[:n, :10]                              # (N, 10) f32


if __name__ == "__main__":
    key = jax.random.PRNGKey(0)
    # batch=2, 1-channel 28x28 images (the only spatial size for which the
    # module's view(-1, 128) is a clean per-sample flatten).
    x = jax.random.normal(key, (2, 1, 28, 28), jnp.float32)
    params = init_params()
    pp = prepare_params(params)

    out = classifier_b_forward(x, pp)
    out = jax.block_until_ready(out)
    assert out.shape == (2, 10), out.shape
    print("KERNEL_OK")
</pallas_src>

<mosaic_0001>
module attributes {stable_mosaic.version = 11 : i64} {
  func.func @_conv1_kernel(%arg0: i32, %arg1: memref<976x64xbf16, #tpu.memory_space<vmem>>, %arg2: memref<64x64xbf16, #tpu.memory_space<vmem>>, %arg3: memref<1x64xf32, #tpu.memory_space<vmem>>, %arg4: memref<976x64xbf16, #tpu.memory_space<vmem>>) attributes {dimension_semantics = [#tpu.dimension_semantics<parallel>], iteration_bounds = array<i64: 2>, scalar_prefetch = 0 : i64, scratch_operands = 0 : i64, tpu.core_type = #tpu.core_type<tc>, window_params = [{transform_indices = @transform_0, window_bounds = array<i64: 976, 64>}, {pipeline_mode = #tpu.pipeline_mode<synchronous>, transform_indices = @transform_1, window_bounds = array<i64: 64, 64>}, {pipeline_mode = #tpu.pipeline_mode<synchronous>, transform_indices = @transform_2, window_bounds = array<i64: 1, 64>}, {transform_indices = @transform_3, window_bounds = array<i64: 976, 64>}]} {
    %c0 = arith.constant 0 : index
    %c0_0 = arith.constant 0 : index
    %0 = vector.load %arg1[%c0, %c0_0] : memref<976x64xbf16, #tpu.memory_space<vmem>>, vector<976x64xbf16>
    %c0_1 = arith.constant 0 : index
    %c0_2 = arith.constant 0 : index
    %1 = vector.load %arg2[%c0_1, %c0_2] : memref<64x64xbf16, #tpu.memory_space<vmem>>, vector<64x64xbf16>
    %cst = arith.constant dense<0.000000e+00> : vector<976x64xf32>
    %2 = tpu.matmul %0, %1, %cst {dimension_numbers = #tpu.dot_dimension_numbers<[1], [0], [0], [1], [0, 0, 1, 1], [], []>} : vector<976x64xbf16>, vector<64x64xbf16>, vector<976x64xf32> -> vector<976x64xf32>
    %c0_3 = arith.constant 0 : index
    %c0_4 = arith.constant 0 : index
    %3 = vector.load %arg3[%c0_3, %c0_4] : memref<1x64xf32, #tpu.memory_space<vmem>>, vector<1x64xf32>
    %4 = vector.broadcast %3 : vector<1x64xf32> to vector<976x64xf32>
    %5 = arith.addf %2, %4 : vector<976x64xf32>
    %cst_5 = arith.constant 0.000000e+00 : f32
    %6 = vector.broadcast %cst_5 : f32 to vector<976x64xf32>
    %7 = arith.maximumf %5, %6 : vector<976x64xf32>
    %8 = arith.truncf %7 : vector<976x64xf32> to vector<976x64xbf16>
    %c0_6 = arith.constant 0 : index
    %c0_7 = arith.constant 0 : index
    %9 = vector.load %arg4[%c0_6, %c0_7] : memref<976x64xbf16, #tpu.memory_space<vmem>>, vector<976x64xbf16>
    tpu.vector_store %arg4[%c0_6, %c0_7], %8 {strides = array<i32>} : memref<976x64xbf16, #tpu.memory_space<vmem>>, vector<976x64xbf16>,
    return
  }
  func.func @transform_0(%arg0: i32) -> (i32, i32) {
    %c0_i32 = arith.constant 0 : i32
    %c0_i32_0 = arith.constant 0 : i32
    return %arg0, %c0_i32 : i32, i32
  }
  func.func @transform_1(%arg0: i32) -> (i32, i32) {
    %c0_i32 = arith.constant 0 : i32
    %c0_i32_0 = arith.constant 0 : i32
    %c0_i32_1 = arith.constant 0 : i32
    return %c0_i32, %c0_i32_0 : i32, i32
  }
  func.func @transform_2(%arg0: i32) -> (i32, i32) {
    %c0_i32 = arith.constant 0 : i32
    %c0_i32_0 = arith.constant 0 : i32
    %c0_i32_1 = arith.constant 0 : i32
    return %c0_i32, %c0_i32_0 : i32, i32
  }
  func.func @transform_3(%arg0: i32) -> (i32, i32) {
    %c0_i32 = arith.constant 0 : i32
    %c0_i32_0 = arith.constant 0 : i32
    return %arg0, %c0_i32 : i32, i32
  }
}

module attributes {stable_mosaic.version = 11 : i64} {
  func.func @_tail_kernel(%arg0: i32, %arg1: memref<11x16x704xbf16, #tpu.memory_space<vmem>>, %arg2: memref<12x192x128xbf16, #tpu.memory_space<vmem>>, %arg3: memref<1x128xf32, #tpu.memory_space<vmem>>, %arg4: memref<9x128x128xbf16, #tpu.memory_space<vmem>>, %arg5: memref<1x128xf32, #tpu.memory_space<vmem>>, %arg6: memref<128x128xbf16, #tpu.memory_space<vmem>>, %arg7: memref<1x128xf32, #tpu.memory_space<vmem>>, %arg8: memref<16x128xf32, #tpu.memory_space<vmem>>) attributes {dimension_semantics = [#tpu.dimension_semantics<parallel>], iteration_bounds = array<i64: 1>, scalar_prefetch = 0 : i64, scratch_operands = 0 : i64, tpu.core_type = #tpu.core_type<tc>, window_params = [{transform_indices = @transform_0, window_bounds = array<i64: 11, 16, 704>}, {pipeline_mode = #tpu.pipeline_mode<synchronous>, transform_indices = @transform_1, window_bounds = array<i64: 12, 192, 128>}, {pipeline_mode = #tpu.pipeline_mode<synchronous>, transform_indices = @transform_2, window_bounds = array<i64: 1, 128>}, {pipeline_mode = #tpu.pipeline_mode<synchronous>, transform_indices = @transform_3, window_bounds = array<i64: 9, 128, 128>}, {pipeline_mode = #tpu.pipeline_mode<synchronous>, transform_indices = @transform_4, window_bounds = array<i64: 1, 128>}, {pipeline_mode = #tpu.pipeline_mode<synchronous>, transform_indices = @transform_5, window_bounds = array<i64: 128, 128>}, {pipeline_mode = #tpu.pipeline_mode<synchronous>, transform_indices = @transform_6, window_bounds = array<i64: 1, 128>}, {transform_indices = @transform_7, window_bounds = array<i64: 16, 128>}]} {
    %cst = arith.constant 0.000000e+00 : f32
    %0 = vector.broadcast %cst : f32 to vector<48x128xf32>
    %cst_0 = arith.constant 0.000000e+00 : f32
    %1 = vector.broadcast %cst_0 : f32 to vector<48x128xf32>
    %cst_1 = arith.constant 0.000000e+00 : f32
    %2 = vector.broadcast %cst_1 : f32 to vector<48x128xf32>
    %c0 = arith.constant 0 : index
    %c0_2 = arith.constant 0 : index
    %c0_3 = arith.constant 0 : index
    %3 = vector.load %arg2[%c0, %c0_2, %c0_3] : memref<12x192x128xbf16, #tpu.memory_space<vmem>>, vector<1x192x128xbf16>
    %4 = vector.shape_cast %3 : vector<1x192x128xbf16> to vector<192x128xbf16>
    %c0_4 = arith.constant 0 : index
    %c0_5 = arith.constant 0 : index
    %c0_6 = arith.constant 0 : index
    %5 = vector.load %arg1[%c0_4, %c0_5, %c0_6] : memref<11x16x704xbf16, #tpu.memory_space<vmem>>, vector<1x16x192xbf16>
    %6 = vector.shape_cast %5 : vector<1x16x192xbf16> to vector<16x192xbf16>
    %c1 = arith.constant 1 : index
    %c0_7 = arith.constant 0 : index
    %c0_8 = arith.constant 0 : index
    %7 = vector.load %arg1[%c1, %c0_7, %c0_8] : memref<11x16x704xbf16, #tpu.memory_space<vmem>>, vector<1x16x192xbf16>
    %8 = vector.shape_cast %7 : vector<1x16x192xbf16> to vector<16x192xbf16>
    %c2 = arith.constant 2 : index
    %c0_9 = arith.constant 0 : index
    %c0_10 = arith.constant 0 : index
    %9 = vector.load %arg1[%c2, %c0_9, %c0_10] : memref<11x16x704xbf16, #tpu.memory_space<vmem>>, vector<1x16x192xbf16>
    %10 = vector.shape_cast %9 : vector<1x16x192xbf16> to vector<16x192xbf16>
    %11 = tpu.concatenate %6, %8, %10 in 0 : vector<16x192xbf16>, vector<16x192xbf16>, vector<16x192xbf16> -> vector<48x192xbf16>
    %cst_11 = arith.constant dense<0.000000e+00> : vector<48x128xf32>
    %12 = tpu.matmul %11, %4, %cst_11 {dimension_numbers = #tpu.dot_dimension_numbers<[1], [0], [0], [1], [0, 0, 1, 1], [], []>} : vector<48x192xbf16>, vector<192x128xbf16>, vector<48x128xf32> -> vector<48x128xf32>
    %13 = arith.addf %0, %12 : vector<48x128xf32>
    %c0_12 = arith.constant 0 : index
    %c0_13 = arith.constant 0 : index
    %c64 = arith.constant 64 : index
    %14 = vector.load %arg1[%c0_12, %c0_13, %c64] : memref<11x16x704xbf16, #tpu.memory_space<vmem>>, vector<1x16x192xbf16>
    %15 = vector.shape_cast %14 : vector<1x16x192xbf16> to vector<16x192xbf16>
    %c1_14 = arith.constant 1 : index
    %c0_15 = arith.constant 0 : index
    %c64_16 = arith.constant 64 : index
    %16 = vector.load %arg1[%c1_14, %c0_15, %c64_16] : memref<11x16x704xbf16, #tpu.memory_space<vmem>>, vector<1x16x192xbf16>
    %17 = vector.shape_cast %16 : vector<1x16x192xbf16> to vector<16x192xbf16>
    %c2_17 = arith.constant 2 : index
    %c0_18 = arith.constant 0 : index
    %c64_19 = arith.constant 64 : index
    %18 = vector.load %arg1[%c2_17, %c0_18, %c64_19] : memref<11x16x704xbf16, #tpu.memory_space<vmem>>, vector<1x16x192xbf16>
    %19 = vector.shape_cast %18 : vector<1x16x192xbf16> to vector<16x192xbf16>
    %20 = tpu.concatenate %15, %17, %19 in 0 : vector<16x192xbf16>, vector<16x192xbf16>, vector<16x192xbf16> -> vector<48x192xbf16>
    %cst_20 = arith.constant dense<0.000000e+00> : vector<48x128xf32>
    %21 = tpu.matmul %20, %4, %cst_20 {dimension_numbers = #tpu.dot_dimension_numbers<[1], [0], [0], [1], [0, 0, 1, 1], [], []>} : vector<48x192xbf16>, vector<192x128xbf16>, vector<48x128xf32> -> vector<48x128xf32>
    %22 = arith.addf %1, %21 : vector<48x128xf32>
    %c0_21 = arith.constant 0 : index
    %c0_22 = arith.constant 0 : index
    %c128 = arith.constant 128 : index
    %23 = vector.load %arg1[%c0_21, %c0_22, %c128] : memref<11x16x704xbf16, #tpu.memory_space<vmem>>, vector<1x16x192xbf16>
    %24 = vector.shape_cast %23 : vector<1x16x192xbf16> to vector<16x192xbf16>
    %c1_23 = arith.constant 1 : index
    %c0_24 = arith.constant 0 : index
    %c128_25 = arith.constant 128 : index
    %25 = vector.load %arg1[%c1_23, %c0_24, %c128_25] : memref<11x16x704xbf16, #tpu.memory_space<vmem>>, vector<1x16x192xbf16>
    %26 = vector.shape_cast %25 : vector<1x16x192xbf16> to vector<16x192xbf16>
    %c2_26 = arith.constant 2 : index
    %c0_27 = arith.constant 0 : index
    %c128_28 = arith.constant 128 : index
    %27 = vector.load %arg1[%c2_26, %c0_27, %c128_28] : memref<11x16x704xbf16, #tpu.memory_space<vmem>>, vector<1x16x192xbf16>
    %28 = vector.shape_cast %27 : vector<1x16x192xbf16> to vector<16x192xbf16>
    %29 = tpu.concatenate %24, %26, %28 in 0 : vector<16x192xbf16>, vector<16x192xbf16>, vector<16x192xbf16> -> vector<48x192xbf16>
    %cst_29 = arith.constant dense<0.000000e+00> : vector<48x128xf32>
    %30 = tpu.matmul %29, %4, %cst_29 {dimension_numbers = #tpu.dot_dimension_numbers<[1], [0], [0], [1], [0, 0, 1, 1], [], []>} : vector<48x192xbf16>, vector<192x128xbf16>, vector<48x128xf32> -> vector<48x128xf32>
    %31 = arith.addf %2, %30 : vector<48x128xf32>
    %c1_30 = arith.constant 1 : index
    %c0_31 = arith.constant 0 : index
    %c0_32 = arith.constant 0 : index
    %32 = vector.load %arg2[%c1_30, %c0_31, %c0_32] : memref<12x192x128xbf16, #tpu.memory_space<vmem>>, vector<1x192x128xbf16>
    %33 = vector.shape_cast %32 : vector<1x192x128xbf16> to vector<192x128xbf16>
    %c0_33 = arith.constant 0 : index
    %c0_34 = arith.constant 0 : index
    %c384 = arith.constant 384 : index
    %34 = vector.load %arg1[%c0_33, %c0_34, %c384] : memref<11x16x704xbf16, #tpu.memory_space<vmem>>, vector<1x16x192xbf16>
    %35 = vector.shape_cast %34 : vector<1x16x192xbf16> to vector<16x192xbf16>
    %c1_35 = arith.constant 1 : index
    %c0_36 = arith.constant 0 : index
    %c384_37 = arith.constant 384 : index
    %36 = vector.load %arg1[%c1_35, %c0_36, %c384_37] : memref<11x16x704xbf16, #tpu.memory_space<vmem>>, vector<1x16x192xbf16>
    %37 = vector.shape_cast %36 : vector<1x16x192xbf16> to vector<16x192xbf16>
    %c2_38 = arith.constant 2 : index
    %c0_39 = arith.constant 0 : index
    %c384_40 = arith.constant 384 : index
    %38 = vector.load %arg1[%c2_38, %c0_39, %c384_40] : memref<11x16x704xbf16, #tpu.memory_space<vmem>>, vector<1x16x192xbf16>
    %39 = vector.shape_cast %38 : vector<1x16x192xbf16> to vector<16x192xbf16>
    %40 = tpu.concatenate %35, %37, %39 in 0 : vector<16x192xbf16>, vector<16x192xbf16>, vector<16x192xbf16> -> vector<48x192xbf16>
    %cst_41 = arith.constant dense<0.000000e+00> : vector<48x128xf32>
    %41 = tpu.matmul %40, %33, %cst_41 {dimension_numbers = #tpu.dot_dimension_numbers<[1], [0], [0], [1], [0, 0, 1, 1], [], []>} : vector<48x192xbf16>, vector<192x128xbf16>, vector<48x128xf32> -> vector<48x128xf32>
    %42 = arith.addf %13, %41 : vector<48x128xf32>
    %c0_42 = arith.constant 0 : index
    %c0_43 = arith.constant 0 : index
    %c448 = arith.constant 448 : index
    %43 = vector.load %arg1[%c0_42, %c0_43, %c448] : memref<11x16x704xbf16, #tpu.memory_space<vmem>>, vector<1x16x192xbf16>
    %44 = vector.shape_cast %43 : vector<1x16x192xbf16> to vector<16x192xbf16>
    %c1_44 = arith.constant 1 : index
    %c0_45 = arith.constant 0 : index
    %c448_46 = arith.constant 448 : index
    %45 = vector.load %arg1[%c1_44, %c0_45, %c448_46] : memref<11x16x704xbf16, #tpu.memory_space<vmem>>, vector<1x16x192xbf16>
    %46 = vector.shape_cast %45 : vector<1x16x192xbf16> to vector<16x192xbf16>
    %c2_47 = arith.constant 2 : index
    %c0_48 = arith.constant 0 : index
    %c448_49 = arith.constant 448 : index
    %47 = vector.load %arg1[%c2_47, %c0_48, %c448_49] : memref<11x16x704xbf16, #tpu.memory_space<vmem>>, vector<1x16x192xbf16>
    %48 = vector.shape_cast %47 : vector<1x16x192xbf16> to vector<16x192xbf16>
    %49 = tpu.concatenate %44, %46, %48 in 0 : vector<16x192xbf16>, vector<16x192xbf16>, vector<16x192xbf16> -> vector<48x192xbf16>
    %cst_50 = arith.constant dense<0.000000e+00> : vector<48x128xf32>
    %50 = tpu.matmul %49, %33, %cst_50 {dimension_numbers = #tpu.dot_dimension_numbers<[1], [0], [0], [1], [0, 0, 1, 1], [], []>} : vector<48x192xbf16>, vector<192x128xbf16>, vector<48x128xf32> -> vector<48x128xf32>
    %51 = arith.addf %22, %50 : vector<48x128xf32>
    %c0_51 = arith.constant 0 : index
    %c0_52 = arith.constant 0 : index
    %c512 = arith.constant 512 : index
    %52 = vector.load %arg1[%c0_51, %c0_52, %c512] : memref<11x16x704xbf16, #tpu.memory_space<vmem>>, vector<1x16x192xbf16>
    %53 = vector.shape_cast %52 : vector<1x16x192xbf16> to vector<16x192xbf16>
    %c1_53 = arith.constant 1 : index
    %c0_54 = arith.constant 0 : index
    %c512_55 = arith.constant 512 : index
    %54 = vector.load %arg1[%c1_53, %c0_54, %c512_55] : memref<11x16x704xbf16, #tpu.memory_space<vmem>>, vector<1x16x192xbf16>
    %55 = vector.shape_cast %54 : vector<1x16x192xbf16> to vector<16x192xbf16>
    %c2_56 = arith.constant 2 : index
    %c0_57 = arith.constant 0 : index
    %c512_58 = arith.constant 512 : index
    %56 = vector.load %arg1[%c2_56, %c0_57, %c512_58] : memref<11x16x704xbf16, #tpu.memory_space<vmem>>, vector<1x16x192xbf16>
    %57 = vector.shape_cast %56 : vector<1x16x192xbf16> to vector<16x192xbf16>
    %58 = tpu.concatenate %53, %55, %57 in 0 : vector<16x192xbf16>, vector<16x192xbf16>, vector<16x192xbf16> -> vector<48x192xbf16>
    %cst_59 = arith.constant dense<0.000000e+00> : vector<48x128xf32>
    %59 = tpu.matmul %58, %33, %cst_59 {dimension_numbers = #tpu.dot_dimension_numbers<[1], [0], [0], [1], [0, 0, 1, 1], [], []>} : vector<48x192xbf16>, vector<192x128xbf16>, vector<48x128xf32> -> vector<48x128xf32>
    %60 = arith.addf %31, %59 : vector<48x128xf32>
    %c2_60 = arith.constant 2 : index
    %c0_61 = arith.constant 0 : index
    %c0_62 = arith.constant 0 : index
    %61 = vector.load %arg2[%c2_60, %c0_61, %c0_62] : memref<12x192x128xbf16, #tpu.memory_space<vmem>>, vector<1x192x128xbf16>
    %62 = vector.shape_cast %61 : vector<1x192x128xbf16> to vector<192x128xbf16>
    %c6 = arith.constant 6 : index
    %c0_63 = arith.constant 0 : index
    %c0_64 = arith.constant 0 : index
    %63 = vector.load %arg1[%c6, %c0_63, %c0_64] : memref<11x16x704xbf16, #tpu.memory_space<vmem>>, vector<1x16x192xbf16>
    %64 = vector.shape_cast %63 : vector<1x16x192xbf16> to vector<16x192xbf16>
    %c7 = arith.constant 7 : index
    %c0_65 = arith.constant 0 : index
    %c0_66 = arith.constant 0 : index
    %65 = vector.load %arg1[%c7, %c0_65, %c0_66] : memref<11x16x704xbf16, #tpu.memory_space<vmem>>, vector<1x16x192xbf16>
    %66 = vector.shape_cast %65 : vector<1x16x192xbf16> to vector<16x192xbf16>
    %c8 = arith.constant 8 : index
    %c0_67 = arith.constant 0 : index
    %c0_68 = arith.constant 0 : index
    %67 = vector.load %arg1[%c8, %c0_67, %c0_68] : memref<11x16x704xbf16, #tpu.memory_space<vmem>>, vector<1x16x192xbf16>
    %68 = vector.shape_cast %67 : vector<1x16x192xbf16> to vector<16x192xbf16>
    %69 = tpu.concatenate %64, %66, %68 in 0 : vector<16x192xbf16>, vector<16x192xbf16>, vector<16x192xbf16> -> vector<48x192xbf16>
    %cst_69 = arith.constant dense<0.000000e+00> : vector<48x128xf32>
    %70 = tpu.matmul %69, %62, %cst_69 {dimension_numbers = #tpu.dot_dimension_numbers<[1], [0], [0], [1], [0, 0, 1, 1], [], []>} : vector<48x192xbf16>, vector<192x128xbf16>, vector<48x128xf32> -> vector<48x128xf32>
    %71 = arith.addf %42, %70 : vector<48x128xf32>
    %c6_70 = arith.constant 6 : index
    %c0_71 = arith.constant 0 : index
    %c64_72 = arith.constant 64 : index
    %72 = vector.load %arg1[%c6_70, %c0_71, %c64_72] : memref<11x16x704xbf16, #tpu.memory_space<vmem>>, vector<1x16x192xbf16>
    %73 = vector.shape_cast %72 : vector<1x16x192xbf16> to vector<16x192xbf16>
    %c7_73 = arith.constant 7 : index
    %c0_74 = arith.constant 0 : index
    %c64_75 = arith.constant 64 : index
    %74 = vector.load %arg1[%c7_73, %c0_74, %c64_75] : memref<11x16x704xbf16, #tpu.memory_space<vmem>>, vector<1x16x192xbf16>
    %75 = vector.shape_cast %74 : vector<1x16x192xbf16> to vector<16x192xbf16>
    %c8_76 = arith.constant 8 : index
    %c0_77 = arith.constant 0 : index
    %c64_78 = arith.constant 64 : index
    %76 = vector.load %arg1[%c8_76, %c0_77, %c64_78] : memref<11x16x704xbf16, #tpu.memory_space<vmem>>, vector<1x16x192xbf16>
    %77 = vector.shape_cast %76 : vector<1x16x192xbf16> to vector<16x192xbf16>
    %78 = tpu.concatenate %73, %75, %77 in 0 : vector<16x192xbf16>, vector<16x192xbf16>, vector<16x192xbf16> -> vector<48x192xbf16>
    %cst_79 = arith.constant dense<0.000000e+00> : vector<48x128xf32>
    %79 = tpu.matmul %78, %62, %cst_79 {dimension_numbers = #tpu.dot_dimension_numbers<[1], [0], [0], [1], [0, 0, 1, 1], [], []>} : vector<48x192xbf16>, vector<192x128xbf16>, vector<48x128xf32> -> vector<48x128xf32>
    %80 = arith.addf %51, %79 : vector<48x128xf32>
    %c6_80 = arith.constant 6 : index
    %c0_81 = arith.constant 0 : index
    %c128_82 = arith.constant 128 : index
    %81 = vector.load %arg1[%c6_80, %c0_81, %c128_82] : memref<11x16x704xbf16, #tpu.memory_space<vmem>>, vector<1x16x192xbf16>
    %82 = vector.shape_cast %81 : vector<1x16x192xbf16> to vector<16x192xbf16>
    %c7_83 = arith.constant 7 : index
    %c0_84 = arith.constant 0 : index
    %c128_85 = arith.constant 128 : index
    %83 = vector.load %arg1[%c7_83, %c0_84, %c128_85] : memref<11x16x704xbf16, #tpu.memory_space<vmem>>, vector<1x16x192xbf16>
    %84 = vector.shape_cast %83 : vector<1x16x192xbf16> to vector<16x192xbf16>
    %c8_86 = arith.constant 8 : index
    %c0_87 = arith.constant 0 : index
    %c128_88 = arith.constant 128 : index
    %85 = vector.load %arg1[%c8_86, %c0_87, %c128_88] : memref<11x16x704xbf16, #tpu.memory_space<vmem>>, vector<1x16x192xbf16>
    %86 = vector.shape_cast %85 : vector<1x16x192xbf16> to vector<16x192xbf16>
    %87 = tpu.concatenate %82, %84, %86 in 0 : vector<16x192xbf16>, vector<16x192xbf16>, vector<16x192xbf16> -> vector<48x192xbf16>
    %cst_89 = arith.constant dense<0.000000e+00> : vector<48x128xf32>
    %88 = tpu.matmul %87, %62, %cst_89 {dimension_numbers = #tpu.dot_dimension_numbers<[1], [0], [0], [1], [0, 0, 1, 1], [], []>} : vector<48x192xbf16>, vector<192x128xbf16>, vector<48x128xf32> -> vector<48x128xf32>
    %89 = arith.addf %60, %88 : vector<48x128xf32>
    %c3 = arith.constant 3 : index
    %c0_90 = arith.constant 0 : index
    %c0_91 = arith.constant 0 : index
    %90 = vector.load %arg2[%c3, %c0_90, %c0_91] : memref<12x192x128xbf16, #tpu.memory_space<vmem>>, vector<1x192x128xbf16>
    %91 = vector.shape_cast %90 : vector<1x192x128xbf16> to vector<192x128xbf16>
    %c6_92 = arith.constant 6 : index
    %c0_93 = arith.constant 0 : index
    %c384_94 = arith.constant 384 : index
    %92 = vector.load %arg1[%c6_92, %c0_93, %c384_94] : memref<11x16x704xbf16, #tpu.memory_space<vmem>>, vector<1x16x192xbf16>
    %93 = vector.shape_cast %92 : vector<1x16x192xbf16> to vector<16x192xbf16>
    %c7_95 = arith.constant 7 : index
    %c0_96 = arith.constant 0 : index
    %c384_97 = arith.constant 384 : index
    %94 = vector.load %arg1[%c7_95, %c0_96, %c384_97] : memref<11x16x704xbf16, #tpu.memory_space<vmem>>, vector<1x16x192xbf16>
    %95 = vector.shape_cast %94 : vector<1x16x192xbf16> to vector<16x192xbf16>
    %c8_98 = arith.constant 8 : index
    %c0_99 = arith.constant 0 : index
    %c384_100 = arith.constant 384 : index
    %96 = vector.load %arg1[%c8_98, %c0_99, %c384_100] : memref<11x16x704xbf16, #tpu.memory_space<vmem>>, vector<1x16x192xbf16>
    %97 = vector.shape_cast %96 : vector<1x16x192xbf16> to vector<16x192xbf16>
    %98 = tpu.concatenate %93, %95, %97 in 0 : vector<16x192xbf16>, vector<16x192xbf16>, vector<16x192xbf16> -> vector<48x192xbf16>
    %cst_101 = arith.constant dense<0.000000e+00> : vector<48x128xf32>
    %99 = tpu.matmul %98, %91, %cst_101 {dimension_numbers = #tpu.dot_dimension_numbers<[1], [0], [0], [1], [0, 0, 1, 1], [], []>} : vector<48x192xbf16>, vector<192x128xbf16>, vector<48x128xf32> -> vector<48x128xf32>
    %100 = arith.addf %71, %99 : vector<48x128xf32>
    %c6_102 = arith.constant 6 : index
    %c0_103 = arith.constant 0 : index
    %c448_104 = arith.constant 448 : index
    %101 = vector.load %arg1[%c6_102, %c0_103, %c448_104] : memref<11x16x704xbf16, #tpu.memory_space<vmem>>, vector<1x16x192xbf16>
    %102 = vector.shape_cast %101 : vector<1x16x192xbf16> to vector<16x192xbf16>
    %c7_105 = arith.constant 7 : index
    %c0_106 = arith.constant 0 : index
    %c448_107 = arith.constant 448 : index
    %103 = vector.load %arg1[%c7_105, %c0_106, %c448_107] : memref<11x16x704xbf16, #tpu.memory_space<vmem>>, vector<1x16x192xbf16>
    %104 = vector.shape_cast %103 : vector<1x16x192xbf16> to vector<16x192xbf16>
    %c8_108 = arith.constant 8 : index
    %c0_109 = arith.constant 0 : index
    %c448_110 = arith.constant 448 : index
    %105 = vector.load %arg1[%c8_108, %c0_109, %c448_110] : memref<11x16x704xbf16, #tpu.memory_space<vmem>>, vector<1x16x192xbf16>
    %106 = vector.shape_cast %105 : vector<1x16x192xbf16> to vector<16x192xbf16>
    %107 = tpu.concatenate %102, %104, %106 in 0 : vector<16x192xbf16>, vector<16x192xbf16>, vector<16x192xbf16> -> vector<48x192xbf16>
    %cst_111 = arith.constant dense<0.000000e+00> : vector<48x128xf32>
    %108 = tpu.matmul %107, %91, %cst_111 {dimension_numbers = #tpu.dot_dimension_numbers<[1], [0], [0], [1], [0, 0, 1, 1], [], []>} : vector<48x192xbf16>, vector<192x128xbf16>, vector<48x128xf32> -> vector<48x128xf32>
    %109 = arith.addf %80, %108 : vector<48x128xf32>
    %c6_112 = arith.constant 6 : index
    %c0_113 = arith.constant 0 : index
    %c512_114 = arith.constant 512 : index
    %110 = vector.load %arg1[%c6_112, %c0_113, %c512_114] : memref<11x16x704xbf16, #tpu.memory_space<vmem>>, vector<1x16x192xbf16>
    %111 = vector.shape_cast %110 : vector<1x16x192xbf16> to vector<16x192xbf16>
    %c7_115 = arith.constant 7 : index
    %c0_116 = arith.constant 0 : index
    %c512_117 = arith.constant 512 : index
    %112 = vector.load %arg1[%c7_115, %c0_116, %c512_117] : memref<11x16x704xbf16, #tpu.memory_space<vmem>>, vector<1x16x192xbf16>
    %113 = vector.shape_cast %112 : vector<1x16x192xbf16> to vector<16x192xbf16>
    %c8_118 = arith.constant 8 : index
    %c0_119 = arith.constant 0 : index
    %c512_120 = arith.constant 512 : index
    %114 = vector.load %arg1[%c8_118, %c0_119, %c512_120] : memref<11x16x704xbf16, #tpu.memory_space<vmem>>, vector<1x16x192xbf16>
    %115 = vector.shape_cast %114 : vector<1x16x192xbf16> to vector<16x192xbf16>
    %116 = tpu.concatenate %111, %113, %115 in 0 : vector<16x192xbf16>, vector<16x192xbf16>, vector<16x192xbf16> -> vector<48x192xbf16>
    %cst_121 = arith.constant dense<0.000000e+00> : vector<48x128xf32>
    %117 = tpu.matmul %116, %91, %cst_121 {dimension_numbers = #tpu.dot_dimension_numbers<[1], [0], [0], [1], [0, 0, 1, 1], [], []>} : vector<48x192xbf16>, vector<192x128xbf16>, vector<48x128xf32> -> vector<48x128xf32>
    %118 = arith.addf %89, %117 : vector<48x128xf32>
    %c4 = arith.constant 4 : index
    %c0_122 = arith.constant 0 : index
    %c0_123 = arith.constant 0 : index
    %119 = vector.load %arg2[%c4, %c0_122, %c0_123] : memref<12x192x128xbf16, #tpu.memory_space<vmem>>, vector<1x192x128xbf16>
    %120 = vector.shape_cast %119 : vector<1x192x128xbf16> to vector<192x128xbf16>
    %c1_124 = arith.constant 1 : index
    %c0_125 = arith.constant 0 : index
    %c0_126 = arith.constant 0 : index
    %121 = vector.load %arg1[%c1_124, %c0_125, %c0_126] : memref<11x16x704xbf16, #tpu.memory_space<vmem>>, vector<1x16x192xbf16>
    %122 = vector.shape_cast %121 : vector<1x16x192xbf16> to vector<16x192xbf16>
    %c2_127 = arith.constant 2 : index
    %c0_128 = arith.constant 0 : index
    %c0_129 = arith.constant 0 : index
    %123 = vector.load %arg1[%c2_127, %c0_128, %c0_129] : memref<11x16x704xbf16, #tpu.memory_space<vmem>>, vector<1x16x192xbf16>
    %124 = vector.shape_cast %123 : vector<1x16x192xbf16> to vector<16x192xbf16>
    %c3_130 = arith.constant 3 : index
    %c0_131 = arith.constant 0 : index
    %c0_132 = arith.constant 0 : index
    %125 = vector.load %arg1[%c3_130, %c0_131, %c0_132] : memref<11x16x704xbf16, #tpu.memory_space<vmem>>, vector<1x16x192xbf16>
    %126 = vector.shape_cast %125 : vector<1x16x192xbf16> to vector<16x192xbf16>
    %127 = tpu.concatenate %122, %124, %126 in 0 : vector<16x192xbf16>, vector<16x192xbf16>, vector<16x192xbf16> -> vector<48x192xbf16>
    %cst_133 = arith.constant dense<0.000000e+00> : vector<48x128xf32>
    %128 = tpu.matmul %127, %120, %cst_133 {dimension_numbers = #tpu.dot_dimension_numbers<[1], [0], [0], [1], [0, 0, 1, 1], [], []>} : vector<48x192xbf16>, vector<192x128xbf16>, vector<48x128xf32> -> vector<48x128xf32>
    %129 = arith.addf %100, %128 : vector<48x128xf32>
    %c1_134 = arith.constant 1 : index
    %c0_135 = arith.constant 0 : index
    %c64_136 = arith.constant 64 : index
    %130 = vector.load %arg1[%c1_134, %c0_135, %c64_136] : memref<11x16x704xbf16, #tpu.memory_space<vmem>>, vector<1x16x192xbf16>
    %131 = vector.shape_cast %130 : vector<1x16x192xbf16> to vector<16x192xbf16>
    %c2_137 = arith.constant 2 : index
    %c0_138 = arith.constant 0 : index
    %c64_139 = arith.constant 64 : index
    %132 = vector.load %arg1[%c2_137, %c0_138, %c64_139] : memref<11x16x704xbf16, #tpu.memory_space<vmem>>, vector<1x16x192xbf16>
    %133 = vector.shape_cast %132 : vector<1x16x192xbf16> to vector<16x192xbf16>
    %c3_140 = arith.constant 3 : index
    %c0_141 = arith.constant 0 : index
    %c64_142 = arith.constant 64 : index
    %134 = vector.load %arg1[%c3_140, %c0_141, %c64_142] : memref<11x16x704xbf16, #tpu.memory_space<vmem>>, vector<1x16x192xbf16>
    %135 = vector.shape_cast %134 : vector<1x16x192xbf16> to vector<16x192xbf16>
    %136 = tpu.concatenate %131, %133, %135 in 0 : vector<16x192xbf16>, vector<16x192xbf16>, vector<16x192xbf16> -> vector<48x192xbf16>
    %cst_143 = arith.constant dense<0.000000e+00> : vector<48x128xf32>
    %137 = tpu.matmul %136, %120, %cst_143 {dimension_numbers = #tpu.dot_dimension_numbers<[1], [0], [0], [1], [0, 0, 1, 1], [], []>} : vector<48x192xbf16>, vector<192x128xbf16>, vector<48x128xf32> -> vector<48x128xf32>
    %138 = arith.addf %109, %137 : vector<48x128xf32>
    %c1_144 = arith.constant 1 : index
    %c0_145 = arith.constant 0 : index
    %c128_146 = arith.constant 128 : index
    %139 = vector.load %arg1[%c1_144, %c0_145, %c128_146] : memref<11x16x704xbf16, #tpu.memory_space<vmem>>, vector<1x16x192xbf16>
    %140 = vector.shape_cast %139 : vector<1x16x192xbf16> to vector<16x192xbf16>
    %c2_147 = arith.constant 2 : index
    %c0_148 = arith.constant 0 : index
    %c128_149 = arith.constant 128 : index
    %141 = vector.load %arg1[%c2_147, %c0_148, %c128_149] : memref<11x16x704xbf16, #tpu.memory_space<vmem>>, vector<1x16x192xbf16>
    %142 = vector.shape_cast %141 : vector<1x16x192xbf16> to vector<16x192xbf16>
    %c3_150 = arith.constant 3 : index
    %c0_151 = arith.constant 0 : index
    %c128_152 = arith.constant 128 : index
    %143 = vector.load %arg1[%c3_150, %c0_151, %c128_152] : memref<11x16x704xbf16, #tpu.memory_space<vmem>>, vector<1x16x192xbf16>
    %144 = vector.shape_cast %143 : vector<1x16x192xbf16> to vector<16x192xbf16>
    %145 = tpu.concatenate %140, %142, %144 in 0 : vector<16x192xbf16>, vector<16x192xbf16>, vector<16x192xbf16> -> vector<48x192xbf16>
    %cst_153 = arith.constant dense<0.000000e+00> : vector<48x128xf32>
    %146 = tpu.matmul %145, %120, %cst_153 {dimension_numbers = #tpu.dot_dimension_numbers<[1], [0], [0], [1], [0, 0, 1, 1], [], []>} : vector<48x192xbf16>, vector<192x128xbf16>, vector<48x128xf32> -> vector<48x128xf32>
    %147 = arith.addf %118, %146 : vector<48x128xf32>
    %c5 = arith.constant 5 : index
    %c0_154 = arith.constant 0 : index
    %c0_155 = arith.constant 0 : index
    %148 = vector.load %arg2[%c5, %c0_154, %c0_155] : memref<12x192x128xbf16, #tpu.memory_space<vmem>>, vector<1x192x128xbf16>
    %149 = vector.shape_cast %148 : vector<1x192x128xbf16> to vector<192x128xbf16>
    %c1_156 = arith.constant 1 : index
    %c0_157 = arith.constant 0 : index
    %c384_158 = arith.constant 384 : index
    %150 = vector.load %arg1[%c1_156, %c0_157, %c384_158] : memref<11x16x704xbf16, #tpu.memory_space<vmem>>, vector<1x16x192xbf16>
    %151 = vector.shape_cast %150 : vector<1x16x192xbf16> to vector<16x192xbf16>
    %c2_159 = arith.constant 2 : index
    %c0_160 = arith.constant 0 : index
    %c384_161 = arith.constant 384 : index
    %152 = vector.load %arg1[%c2_159, %c0_160, %c384_161] : memref<11x16x704xbf16, #tpu.memory_space<vmem>>, vector<1x16x192xbf16>
    %153 = vector.shape_cast %152 : vector<1x16x192xbf16> to vector<16x192xbf16>
    %c3_162 = arith.constant 3 : index
    %c0_163 = arith.constant 0 : index
    %c384_164 = arith.constant 384 : index
    %154 = vector.load %arg1[%c3_162, %c0_163, %c384_164] : memref<11x16x704xbf16, #tpu.memory_space<vmem>>, vector<1x16x192xbf16>
    %155 = vector.shape_cast %154 : vector<1x16x192xbf16> to vector<16x192xbf16>
    %156 = tpu.concatenate %151, %153, %155 in 0 : vector<16x192xbf16>, vector<16x192xbf16>, vector<16x192xbf16> -> vector<48x192xbf16>
    %cst_165 = arith.constant dense<0.000000e+00> : vector<48x128xf32>
    %157 = tpu.matmul %156, %149, %cst_165 {dimension_numbers = #tpu.dot_dimension_numbers<[1], [0], [0], [1], [0, 0, 1, 1], [], []>} : vector<48x192xbf16>, vector<192x128xbf16>, vector<48x128xf32> -> vector<48x128xf32>
    %158 = arith.addf %129, %157 : vector<48x128xf32>
    %c1_166 = arith.constant 1 : index
    %c0_167 = arith.constant 0 : index
    %c448_168 = arith.constant 448 : index
    %159 = vector.load %arg1[%c1_166, %c0_167, %c448_168] : memref<11x16x704xbf16, #tpu.memory_space<vmem>>, vector<1x16x192xbf16>
    %160 = vector.shape_cast %159 : vector<1x16x192xbf16> to vector<16x192xbf16>
    %c2_169 = arith.constant 2 : index
    %c0_170 = arith.constant 0 : index
    %c448_171 = arith.constant 448 : index
    %161 = vector.load %arg1[%c2_169, %c0_170, %c448_171] : memref<11x16x704xbf16, #tpu.memory_space<vmem>>, vector<1x16x192xbf16>
    %162 = vector.shape_cast %161 : vector<1x16x192xbf16> to vector<16x192xbf16>
    %c3_172 = arith.constant 3 : index
    %c0_173 = arith.constant 0 : index
    %c448_174 = arith.constant 448 : index
    %163 = vector.load %arg1[%c3_172, %c0_173, %c448_174] : memref<11x16x704xbf16, #tpu.memory_space<vmem>>, vector<1x16x192xbf16>
    %164 = vector.shape_cast %163 : vector<1x16x192xbf16> to vector<16x192xbf16>
    %165 = tpu.concatenate %160, %162, %164 in 0 : vector<16x192xbf16>, vector<16x192xbf16>, vector<16x192xbf16> -> vector<48x192xbf16>
    %cst_175 = arith.constant dense<0.000000e+00> : vector<48x128xf32>
    %166 = tpu.matmul %165, %149, %cst_175 {dimension_numbers = #tpu.dot_dimension_numbers<[1], [0], [0], [1], [0, 0, 1, 1], [], []>} : vector<48x192xbf16>, vector<192x128xbf16>, vector<48x128xf32> -> vector<48x128xf32>
    %167 = arith.addf %138, %166 : vector<48x128xf32>
    %c1_176 = arith.constant 1 : index
    %c0_177 = arith.constant 0 : index
    %c512_178 = arith.constant 512 : index
    %168 = vector.load %arg1[%c1_176, %c0_177, %c512_178] : memref<11x16x704xbf16, #tpu.memory_space<vmem>>, vector<1x16x192xbf16>
    %169 = vector.shape_cast %168 : vector<1x16x192xbf16> to vector<16x192xbf16>
    %c2_179 = arith.constant 2 : index
    %c0_180 = arith.constant 0 : index
    %c512_181 = arith.constant 512 : index
    %170 = vector.load %arg1[%c2_179, %c0_180, %c512_181] : memref<11x16x704xbf16, #tpu.memory_space<vmem>>, vector<1x16x192xbf16>
    %171 = vector.shape_cast %170 : vector<1x16x192xbf16> to vector<16x192xbf16>
    %c3_182 = arith.constant 3 : index
    %c0_183 = arith.constant 0 : index
    %c512_184 = arith.constant 512 : index
    %172 = vector.load %arg1[%c3_182, %c0_183, %c512_184] : memref<11x16x704xbf16, #tpu.memory_space<vmem>>, vector<1x16x192xbf16>
    %173 = vector.shape_cast %172 : vector<1x16x192xbf16> to vector<16x192xbf16>
    %174 = tpu.concatenate %169, %171, %173 in 0 : vector<16x192xbf16>, vector<16x192xbf16>, vector<16x192xbf16> -> vector<48x192xbf16>
    %cst_185 = arith.constant dense<0.000000e+00> : vector<48x128xf32>
    %175 = tpu.matmul %174, %149, %cst_185 {dimension_numbers = #tpu.dot_dimension_numbers<[1], [0], [0], [1], [0, 0, 1, 1], [], []>} : vector<48x192xbf16>, vector<192x128xbf16>, vector<48x128xf32> -> vector<48x128xf32>
    %176 = arith.addf %147, %175 : vector<48x128xf32>
    %c6_186 = arith.constant 6 : index
    %c0_187 = arith.constant 0 : index
    %c0_188 = arith.constant 0 : index
    %177 = vector.load %arg2[%c6_186, %c0_187, %c0_188] : memref<12x192x128xbf16, #tpu.memory_space<vmem>>, vector<1x192x128xbf16>
    %178 = vector.shape_cast %177 : vector<1x192x128xbf16> to vector<192x128xbf16>
    %c7_189 = arith.constant 7 : index
    %c0_190 = arith.constant 0 : index
    %c0_191 = arith.constant 0 : index
    %179 = vector.load %arg1[%c7_189, %c0_190, %c0_191] : memref<11x16x704xbf16, #tpu.memory_space<vmem>>, vector<1x16x192xbf16>
    %180 = vector.shape_cast %179 : vector<1x16x192xbf16> to vector<16x192xbf16>
    %c8_192 = arith.constant 8 : index
    %c0_193 = arith.constant 0 : index
    %c0_194 = arith.constant 0 : index
    %181 = vector.load %arg1[%c8_192, %c0_193, %c0_194] : memref<11x16x704xbf16, #tpu.memory_space<vmem>>, vector<1x16x192xbf16>
    %182 = vector.shape_cast %181 : vector<1x16x192xbf16> to vector<16x192xbf16>
    %c9 = arith.constant 9 : index
    %c0_195 = arith.constant 0 : index
    %c0_196 = arith.constant 0 : index
    %183 = vector.load %arg1[%c9, %c0_195, %c0_196] : memref<11x16x704xbf16, #tpu.memory_space<vmem>>, vector<1x16x192xbf16>
    %184 = vector.shape_cast %183 : vector<1x16x192xbf16> to vector<16x192xbf16>
    %185 = tpu.concatenate %180, %182, %184 in 0 : vector<16x192xbf16>, vector<16x192xbf16>, vector<16x192xbf16> -> vector<48x192xbf16>
    %cst_197 = arith.constant dense<0.000000e+00> : vector<48x128xf32>
    %186 = tpu.matmul %185, %178, %cst_197 {dimension_numbers = #tpu.dot_dimension_numbers<[1], [0], [0], [1], [0, 0, 1, 1], [], []>} : vector<48x192xbf16>, vector<192x128xbf16>, vector<48x128xf32> -> vector<48x128xf32>
    %187 = arith.addf %158, %186 : vector<48x128xf32>
    %c7_198 = arith.constant 7 : index
    %c0_199 = arith.constant 0 : index
    %c64_200 = arith.constant 64 : index
    %188 = vector.load %arg1[%c7_198, %c0_199, %c64_200] : memref<11x16x704xbf16, #tpu.memory_space<vmem>>, vector<1x16x192xbf16>
    %189 = vector.shape_cast %188 : vector<1x16x192xbf16> to vector<16x192xbf16>
    %c8_201 = arith.constant 8 : index
    %c0_202 = arith.constant 0 : index
    %c64_203 = arith.constant 64 : index
    %190 = vector.load %arg1[%c8_201, %c0_202, %c64_203] : memref<11x16x704xbf16, #tpu.memory_space<vmem>>, vector<1x16x192xbf16>
    %191 = vector.shape_cast %190 : vector<1x16x192xbf16> to vector<16x192xbf16>
    %c9_204 = arith.constant 9 : index
    %c0_205 = arith.constant 0 : index
    %c64_206 = arith.constant 64 : index
    %192 = vector.load %arg1[%c9_204, %c0_205, %c64_206] : memref<11x16x704xbf16, #tpu.memory_space<vmem>>, vector<1x16x192xbf16>
    %193 = vector.shape_cast %192 : vector<1x16x192xbf16> to vector<16x192xbf16>
    %194 = tpu.concatenate %189, %191, %193 in 0 : vector<16x192xbf16>, vector<16x192xbf16>, vector<16x192xbf16> -> vector<48x192xbf16>
    %cst_207 = arith.constant dense<0.000000e+00> : vector<48x128xf32>
    %195 = tpu.matmul %194, %178, %cst_207 {dimension_numbers = #tpu.dot_dimension_numbers<[1], [0], [0], [1], [0, 0, 1, 1], [], []>} : vector<48x192xbf16>, vector<192x128xbf16>, vector<48x128xf32> -> vector<48x128xf32>
    %196 = arith.addf %167, %195 : vector<48x128xf32>
    %c7_208 = arith.constant 7 : index
    %c0_209 = arith.constant 0 : index
    %c128_210 = arith.constant 128 : index
    %197 = vector.load %arg1[%c7_208, %c0_209, %c128_210] : memref<11x16x704xbf16, #tpu.memory_space<vmem>>, vector<1x16x192xbf16>
    %198 = vector.shape_cast %197 : vector<1x16x192xbf16> to vector<16x192xbf16>
    %c8_211 = arith.constant 8 : index
    %c0_212 = arith.constant 0 : index
    %c128_213 = arith.constant 128 : index
    %199 = vector.load %arg1[%c8_211, %c0_212, %c128_213] : memref<11x16x704xbf16, #tpu.memory_space<vmem>>, vector<1x16x192xbf16>
    %200 = vector.shape_cast %199 : vector<1x16x192xbf16> to vector<16x192xbf16>
    %c9_214 = arith.constant 9 : index
    %c0_215 = arith.constant 0 : index
    %c128_216 = arith.constant 128 : index
    %201 = vector.load %arg1[%c9_214, %c0_215, %c128_216] : memref<11x16x704xbf16, #tpu.memory_space<vmem>>, vector<1x16x192xbf16>
    %202 = vector.shape_cast %201 : vector<1x16x192xbf16> to vector<16x192xbf16>
    %203 = tpu.concatenate %198, %200, %202 in 0 : vector<16x192xbf16>, vector<16x192xbf16>, vector<16x192xbf16> -> vector<48x192xbf16>
    %cst_217 = arith.constant dense<0.000000e+00> : vector<48x128xf32>
    %204 = tpu.matmul %203, %178, %cst_217 {dimension_numbers = #tpu.dot_dimension_numbers<[1], [0], [0], [1], [0, 0, 1, 1], [], []>} : vector<48x192xbf16>, vector<192x128xbf16>, vector<48x128xf32> -> vector<48x128xf32>
    %205 = arith.addf %176, %204 : vector<48x128xf32>
    %c7_218 = arith.constant 7 : index
    %c0_219 = arith.constant 0 : index
    %c0_220 = arith.constant 0 : index
    %206 = vector.load %arg2[%c7_218, %c0_219, %c0_220] : memref<12x192x128xbf16, #tpu.memory_space<vmem>>, vector<1x192x128xbf16>
    %207 = vector.shape_cast %206 : vector<1x192x128xbf16> to vector<192x128xbf16>
    %c7_221 = arith.constant 7 : index
    %c0_222 = arith.constant 0 : index
    %c384_223 = arith.constant 384 : index
    %208 = vector.load %arg1[%c7_221, %c0_222, %c384_223] : memref<11x16x704xbf16, #tpu.memory_space<vmem>>, vector<1x16x192xbf16>
    %209 = vector.shape_cast %208 : vector<1x16x192xbf16> to vector<16x192xbf16>
    %c8_224 = arith.constant 8 : index
    %c0_225 = arith.constant 0 : index
    %c384_226 = arith.constant 384 : index
    %210 = vector.load %arg1[%c8_224, %c0_225, %c384_226] : memref<11x16x704xbf16, #tpu.memory_space<vmem>>, vector<1x16x192xbf16>
    %211 = vector.shape_cast %210 : vector<1x16x192xbf16> to vector<16x192xbf16>
    %c9_227 = arith.constant 9 : index
    %c0_228 = arith.constant 0 : index
    %c384_229 = arith.constant 384 : index
    %212 = vector.load %arg1[%c9_227, %c0_228, %c384_229] : memref<11x16x704xbf16, #tpu.memory_space<vmem>>, vector<1x16x192xbf16>
    %213 = vector.shape_cast %212 : vector<1x16x192xbf16> to vector<16x192xbf16>
    %214 = tpu.concatenate %209, %211, %213 in 0 : vector<16x192xbf16>, vector<16x192xbf16>, vector<16x192xbf16> -> vector<48x192xbf16>
    %cst_230 = arith.constant dense<0.000000e+00> : vector<48x128xf32>
    %215 = tpu.matmul %214, %207, %cst_230 {dimension_numbers = #tpu.dot_dimension_numbers<[1], [0], [0], [1], [0, 0, 1, 1], [], []>} : vector<48x192xbf16>, vector<192x128xbf16>, vector<48x128xf32> -> vector<48x128xf32>
    %216 = arith.addf %187, %215 : vector<48x128xf32>
    %c7_231 = arith.constant 7 : index
    %c0_232 = arith.constant 0 : index
    %c448_233 = arith.constant 448 : index
    %217 = vector.load %arg1[%c7_231, %c0_232, %c448_233] : memref<11x16x704xbf16, #tpu.memory_space<vmem>>, vector<1x16x192xbf16>
    %218 = vector.shape_cast %217 : vector<1x16x192xbf16> to vector<16x192xbf16>
    %c8_234 = arith.constant 8 : index
    %c0_235 = arith.constant 0 : index
    %c448_236 = arith.constant 448 : index
    %219 = vector.load %arg1[%c8_234, %c0_235, %c448_236] : memref<11x16x704xbf16, #tpu.memory_space<vmem>>, vector<1x16x192xbf16>
    %220 = vector.shape_cast %219 : vector<1x16x192xbf16> to vector<16x192xbf16>
    %c9_237 = arith.constant 9 : index
    %c0_238 = arith.constant 0 : index
    %c448_239 = arith.constant 448 : index
    %221 = vector.load %arg1[%c9_237, %c0_238, %c448_239] : memref<11x16x704xbf16, #tpu.memory_space<vmem>>, vector<1x16x192xbf16>
    %222 = vector.shape_cast %221 : vector<1x16x192xbf16> to vector<16x192xbf16>
    %223 = tpu.concatenate %218, %220, %222 in 0 : vector<16x192xbf16>, vector<16x192xbf16>, vector<16x192xbf16> -> vector<48x192xbf16>
    %cst_240 = arith.constant dense<0.000000e+00> : vector<48x128xf32>
    %224 = tpu.matmul %223, %207, %cst_240 {dimension_numbers = #tpu.dot_dimension_numbers<[1], [0], [0], [1], [0, 0, 1, 1], [], []>} : vector<48x192xbf16>, vector<192x128xbf16>, vector<48x128xf32> -> vector<48x128xf32>
    %225 = arith.addf %196, %224 : vector<48x128xf32>
    %c7_241 = arith.constant 7 : index
    %c0_242 = arith.constant 0 : index
    %c512_243 = arith.constant 512 : index
    %226 = vector.load %arg1[%c7_241, %c0_242, %c512_243] : memref<11x16x704xbf16, #tpu.memory_space<vmem>>, vector<1x16x192xbf16>
    %227 = vector.shape_cast %226 : vector<1x16x192xbf16> to vector<16x192xbf16>
    %c8_244 = arith.constant 8 : index
    %c0_245 = arith.constant 0 : index
    %c512_246 = arith.constant 512 : index
    %228 = vector.load %arg1[%c8_244, %c0_245, %c512_246] : memref<11x16x704xbf16, #tpu.memory_space<vmem>>, vector<1x16x192xbf16>
    %229 = vector.shape_cast %228 : vector<1x16x192xbf16> to vector<16x192xbf16>
    %c9_247 = arith.constant 9 : index
    %c0_248 = arith.constant 0 : index
    %c512_249 = arith.constant 512 : index
    %230 = vector.load %arg1[%c9_247, %c0_248, %c512_249] : memref<11x16x704xbf16, #tpu.memory_space<vmem>>, vector<1x16x192xbf16>
    %231 = vector.shape_cast %230 : vector<1x16x192xbf16> to vector<16x192xbf16>
    %232 = tpu.concatenate %227, %229, %231 in 0 : vector<16x192xbf16>, vector<16x192xbf16>, vector<16x192xbf16> -> vector<48x192xbf16>
    %cst_250 = arith.constant dense<0.000000e+00> : vector<48x128xf32>
    %233 = tpu.matmul %232, %207, %cst_250 {dimension_numbers = #tpu.dot_dimension_numbers<[1], [0], [0], [1], [0, 0, 1, 1], [], []>} : vector<48x192xbf16>, vector<192x128xbf16>, vector<48x128xf32> -> vector<48x128xf32>
    %234 = arith.addf %205, %233 : vector<48x128xf32>
    %c8_251 = arith.constant 8 : index
    %c0_252 = arith.constant 0 : index
    %c0_253 = arith.constant 0 : index
    %235 = vector.load %arg2[%c8_251, %c0_252, %c0_253] : memref<12x192x128xbf16, #tpu.memory_space<vmem>>, vector<1x192x128xbf16>
    %236 = vector.shape_cast %235 : vector<1x192x128xbf16> to vector<192x128xbf16>
    %c2_254 = arith.constant 2 : index
    %c0_255 = arith.constant 0 : index
    %c0_256 = arith.constant 0 : index
    %237 = vector.load %arg1[%c2_254, %c0_255, %c0_256] : memref<11x16x704xbf16, #tpu.memory_space<vmem>>, vector<1x16x192xbf16>
    %238 = vector.shape_cast %237 : vector<1x16x192xbf16> to vector<16x192xbf16>
    %c3_257 = arith.constant 3 : index
    %c0_258 = arith.constant 0 : index
    %c0_259 = arith.constant 0 : index
    %239 = vector.load %arg1[%c3_257, %c0_258, %c0_259] : memref<11x16x704xbf16, #tpu.memory_space<vmem>>, vector<1x16x192xbf16>
    %240 = vector.shape_cast %239 : vector<1x16x192xbf16> to vector<16x192xbf16>
    %c4_260 = arith.constant 4 : index
    %c0_261 = arith.constant 0 : index
    %c0_262 = arith.constant 0 : index
    %241 = vector.load %arg1[%c4_260, %c0_261, %c0_262] : memref<11x16x704xbf16, #tpu.memory_space<vmem>>, vector<1x16x192xbf16>
    %242 = vector.shape_cast %241 : vector<1x16x192xbf16> to vector<16x192xbf16>
    %243 = tpu.concatenate %238, %240, %242 in 0 : vector<16x192xbf16>, vector<16x192xbf16>, vector<16x192xbf16> -> vector<48x192xbf16>
    %cst_263 = arith.constant dense<0.000000e+00> : vector<48x128xf32>
    %244 = tpu.matmul %243, %236, %cst_263 {dimension_numbers = #tpu.dot_dimension_numbers<[1], [0], [0], [1], [0, 0, 1, 1], [], []>} : vector<48x192xbf16>, vector<192x128xbf16>, vector<48x128xf32> -> vector<48x128xf32>
    %245 = arith.addf %216, %244 : vector<48x128xf32>
    %c2_264 = arith.constant 2 : index
    %c0_265 = arith.constant 0 : index
    %c64_266 = arith.constant 64 : index
    %246 = vector.load %arg1[%c2_264, %c0_265, %c64_266] : memref<11x16x704xbf16, #tpu.memory_space<vmem>>, vector<1x16x192xbf16>
    %247 = vector.shape_cast %246 : vector<1x16x192xbf16> to vector<16x192xbf16>
    %c3_267 = arith.constant 3 : index
    %c0_268 = arith.constant 0 : index
    %c64_269 = arith.constant 64 : index
    %248 = vector.load %arg1[%c3_267, %c0_268, %c64_269] : memref<11x16x704xbf16, #tpu.memory_space<vmem>>, vector<1x16x192xbf16>
    %249 = vector.shape_cast %248 : vector<1x16x192xbf16> to vector<16x192xbf16>
    %c4_270 = arith.constant 4 : index
    %c0_271 = arith.constant 0 : index
    %c64_272 = arith.constant 64 : index
    %250 = vector.load %arg1[%c4_270, %c0_271, %c64_272] : memref<11x16x704xbf16, #tpu.memory_space<vmem>>, vector<1x16x192xbf16>
    %251 = vector.shape_cast %250 : vector<1x16x192xbf16> to vector<16x192xbf16>
    %252 = tpu.concatenate %247, %249, %251 in 0 : vector<16x192xbf16>, vector<16x192xbf16>, vector<16x192xbf16> -> vector<48x192xbf16>
    %cst_273 = arith.constant dense<0.000000e+00> : vector<48x128xf32>
    %253 = tpu.matmul %252, %236, %cst_273 {dimension_numbers = #tpu.dot_dimension_numbers<[1], [0], [0], [1], [0, 0, 1, 1], [], []>} : vector<48x192xbf16>, vector<192x128xbf16>, vector<48x128xf32> -> vector<48x128xf32>
    %254 = arith.addf %225, %253 : vector<48x128xf32>
    %c2_274 = arith.constant 2 : index
    %c0_275 = arith.constant 0 : index
    %c128_276 = arith.constant 128 : index
    %255 = vector.load %arg1[%c2_274, %c0_275, %c128_276] : memref<11x16x704xbf16, #tpu.memory_space<vmem>>, vector<1x16x192xbf16>
    %256 = vector.shape_cast %255 : vector<1x16x192xbf16> to vector<16x192xbf16>
    %c3_277 = arith.constant 3 : index
    %c0_278 = arith.constant 0 : index
    %c128_279 = arith.constant 128 : index
    %257 = vector.load %arg1[%c3_277, %c0_278, %c128_279] : memref<11x16x704xbf16, #tpu.memory_space<vmem>>, vector<1x16x192xbf16>
    %258 = vector.shape_cast %257 : vector<1x16x192xbf16> to vector<16x192xbf16>
    %c4_280 = arith.constant 4 : index
    %c0_281 = arith.constant 0 : index
    %c128_282 = arith.constant 128 : index
    %259 = vector.load %arg1[%c4_280, %c0_281, %c128_282] : memref<11x16x704xbf16, #tpu.memory_space<vmem>>, vector<1x16x192xbf16>
    %260 = vector.shape_cast %259 : vector<1x16x192xbf16> to vector<16x192xbf16>
    %261 = tpu.concatenate %256, %258, %260 in 0 : vector<16x192xbf16>, vector<16x192xbf16>, vector<16x192xbf16> -> vector<48x192xbf16>
    %cst_283 = arith.constant dense<0.000000e+00> : vector<48x128xf32>
    %262 = tpu.matmul %261, %236, %cst_283 {dimension_numbers = #tpu.dot_dimension_numbers<[1], [0], [0], [1], [0, 0, 1, 1], [], []>} : vector<48x192xbf16>, vector<192x128xbf16>, vector<48x128xf32> -> vector<48x128xf32>
    %263 = arith.addf %234, %262 : vector<48x128xf32>
    %c9_284 = arith.constant 9 : index
    %c0_285 = arith.constant 0 : index
    %c0_286 = arith.constant 0 : index
    %264 = vector.load %arg2[%c9_284, %c0_285, %c0_286] : memref<12x192x128xbf16, #tpu.memory_space<vmem>>, vector<1x192x128xbf16>
    %265 = vector.shape_cast %264 : vector<1x192x128xbf16> to vector<192x128xbf16>
    %c2_287 = arith.constant 2 : index
    %c0_288 = arith.constant 0 : index
    %c384_289 = arith.constant 384 : index
    %266 = vector.load %arg1[%c2_287, %c0_288, %c384_289] : memref<11x16x704xbf16, #tpu.memory_space<vmem>>, vector<1x16x192xbf16>
    %267 = vector.shape_cast %266 : vector<1x16x192xbf16> to vector<16x192xbf16>
    %c3_290 = arith.constant 3 : index
    %c0_291 = arith.constant 0 : index
    %c384_292 = arith.constant 384 : index
    %268 = vector.load %arg1[%c3_290, %c0_291, %c384_292] : memref<11x16x704xbf16, #tpu.memory_space<vmem>>, vector<1x16x192xbf16>
    %269 = vector.shape_cast %268 : vector<1x16x192xbf16> to vector<16x192xbf16>
    %c4_293 = arith.constant 4 : index
    %c0_294 = arith.constant 0 : index
    %c384_295 = arith.constant 384 : index
    %270 = vector.load %arg1[%c4_293, %c0_294, %c384_295] : memref<11x16x704xbf16, #tpu.memory_space<vmem>>, vector<1x16x192xbf16>
    %271 = vector.shape_cast %270 : vector<1x16x192xbf16> to vector<16x192xbf16>
    %272 = tpu.concatenate %267, %269, %271 in 0 : vector<16x192xbf16>, vector<16x192xbf16>, vector<16x192xbf16> -> vector<48x192xbf16>
    %cst_296 = arith.constant dense<0.000000e+00> : vector<48x128xf32>
    %273 = tpu.matmul %272, %265, %cst_296 {dimension_numbers = #tpu.dot_dimension_numbers<[1], [0], [0], [1], [0, 0, 1, 1], [], []>} : vector<48x192xbf16>, vector<192x128xbf16>, vector<48x128xf32> -> vector<48x128xf32>
    %274 = arith.addf %245, %273 : vector<48x128xf32>
    %c2_297 = arith.constant 2 : index
    %c0_298 = arith.constant 0 : index
    %c448_299 = arith.constant 448 : index
    %275 = vector.load %arg1[%c2_297, %c0_298, %c448_299] : memref<11x16x704xbf16, #tpu.memory_space<vmem>>, vector<1x16x192xbf16>
    %276 = vector.shape_cast %275 : vector<1x16x192xbf16> to vector<16x192xbf16>
    %c3_300 = arith.constant 3 : index
    %c0_301 = arith.constant 0 : index
    %c448_302 = arith.constant 448 : index
    %277 = vector.load %arg1[%c3_300, %c0_301, %c448_302] : memref<11x16x704xbf16, #tpu.memory_space<vmem>>, vector<1x16x192xbf16>
    %278 = vector.shape_cast %277 : vector<1x16x192xbf16> to vector<16x192xbf16>
    %c4_303 = arith.constant 4 : index
    %c0_304 = arith.constant 0 : index
    %c448_305 = arith.constant 448 : index
    %279 = vector.load %arg1[%c4_303, %c0_304, %c448_305] : memref<11x16x704xbf16, #tpu.memory_space<vmem>>, vector<1x16x192xbf16>
    %280 = vector.shape_cast %279 : vector<1x16x192xbf16> to vector<16x192xbf16>
    %281 = tpu.concatenate %276, %278, %280 in 0 : vector<16x192xbf16>, vector<16x192xbf16>, vector<16x192xbf16> -> vector<48x192xbf16>
    %cst_306 = arith.constant dense<0.000000e+00> : vector<48x128xf32>
    %282 = tpu.matmul %281, %265, %cst_306 {dimension_numbers = #tpu.dot_dimension_numbers<[1], [0], [0], [1], [0, 0, 1, 1], [], []>} : vector<48x192xbf16>, vector<192x128xbf16>, vector<48x128xf32> -> vector<48x128xf32>
    %283 = arith.addf %254, %282 : vector<48x128xf32>
    %c2_307 = arith.constant 2 : index
    %c0_308 = arith.constant 0 : index
    %c512_309 = arith.constant 512 : index
    %284 = vector.load %arg1[%c2_307, %c0_308, %c512_309] : memref<11x16x704xbf16, #tpu.memory_space<vmem>>, vector<1x16x192xbf16>
    %285 = vector.shape_cast %284 : vector<1x16x192xbf16> to vector<16x192xbf16>
    %c3_310 = arith.constant 3 : index
    %c0_311 = arith.constant 0 : index
    %c512_312 = arith.constant 512 : index
    %286 = vector.load %arg1[%c3_310, %c0_311, %c512_312] : memref<11x16x704xbf16, #tpu.memory_space<vmem>>, vector<1x16x192xbf16>
    %287 = vector.shape_cast %286 : vector<1x16x192xbf16> to vector<16x192xbf16>
    %c4_313 = arith.constant 4 : index
    %c0_314 = arith.constant 0 : index
    %c512_315 = arith.constant 512 : index
    %288 = vector.load %arg1[%c4_313, %c0_314, %c512_315] : memref<11x16x704xbf16, #tpu.memory_space<vmem>>, vector<1x16x192xbf16>
    %289 = vector.shape_cast %288 : vector<1x16x192xbf16> to vector<16x192xbf16>
    %290 = tpu.concatenate %285, %287, %289 in 0 : vector<16x192xbf16>, vector<16x192xbf16>, vector<16x192xbf16> -> vector<48x192xbf16>
    %cst_316 = arith.constant dense<0.000000e+00> : vector<48x128xf32>
    %291 = tpu.matmul %290, %265, %cst_316 {dimension_numbers = #tpu.dot_dimension_numbers<[1], [0], [0], [1], [0, 0, 1, 1], [], []>} : vector<48x192xbf16>, vector<192x128xbf16>, vector<48x128xf32> -> vector<48x128xf32>
    %292 = arith.addf %263, %291 : vector<48x128xf32>
    %c10 = arith.constant 10 : index
    %c0_317 = arith.constant 0 : index
    %c0_318 = arith.constant 0 : index
    %293 = vector.load %arg2[%c10, %c0_317, %c0_318] : memref<12x192x128xbf16, #tpu.memory_space<vmem>>, vector<1x192x128xbf16>
    %294 = vector.shape_cast %293 : vector<1x192x128xbf16> to vector<192x128xbf16>
    %c8_319 = arith.constant 8 : index
    %c0_320 = arith.constant 0 : index
    %c0_321 = arith.constant 0 : index
    %295 = vector.load %arg1[%c8_319, %c0_320, %c0_321] : memref<11x16x704xbf16, #tpu.memory_space<vmem>>, vector<1x16x192xbf16>
    %296 = vector.shape_cast %295 : vector<1x16x192xbf16> to vector<16x192xbf16>
    %c9_322 = arith.constant 9 : index
    %c0_323 = arith.constant 0 : index
    %c0_324 = arith.constant 0 : index
    %297 = vector.load %arg1[%c9_322, %c0_323, %c0_324] : memref<11x16x704xbf16, #tpu.memory_space<vmem>>, vector<1x16x192xbf16>
    %298 = vector.shape_cast %297 : vector<1x16x192xbf16> to vector<16x192xbf16>
    %c10_325 = arith.constant 10 : index
    %c0_326 = arith.constant 0 : index
    %c0_327 = arith.constant 0 : index
    %299 = vector.load %arg1[%c10_325, %c0_326, %c0_327] : memref<11x16x704xbf16, #tpu.memory_space<vmem>>, vector<1x16x192xbf16>
    %300 = vector.shape_cast %299 : vector<1x16x192xbf16> to vector<16x192xbf16>
    %301 = tpu.concatenate %296, %298, %300 in 0 : vector<16x192xbf16>, vector<16x192xbf16>, vector<16x192xbf16> -> vector<48x192xbf16>
    %cst_328 = arith.constant dense<0.000000e+00> : vector<48x128xf32>
    %302 = tpu.matmul %301, %294, %cst_328 {dimension_numbers = #tpu.dot_dimension_numbers<[1], [0], [0], [1], [0, 0, 1, 1], [], []>} : vector<48x192xbf16>, vector<192x128xbf16>, vector<48x128xf32> -> vector<48x128xf32>
    %303 = arith.addf %274, %302 : vector<48x128xf32>
    %c8_329 = arith.constant 8 : index
    %c0_330 = arith.constant 0 : index
    %c64_331 = arith.constant 64 : index
    %304 = vector.load %arg1[%c8_329, %c0_330, %c64_331] : memref<11x16x704xbf16, #tpu.memory_space<vmem>>, vector<1x16x192xbf16>
    %305 = vector.shape_cast %304 : vector<1x16x192xbf16> to vector<16x192xbf16>
    %c9_332 = arith.constant 9 : index
    %c0_333 = arith.constant 0 : index
    %c64_334 = arith.constant 64 : index
    %306 = vector.load %arg1[%c9_332, %c0_333, %c64_334] : memref<11x16x704xbf16, #tpu.memory_space<vmem>>, vector<1x16x192xbf16>
    %307 = vector.shape_cast %306 : vector<1x16x192xbf16> to vector<16x192xbf16>
    %c10_335 = arith.constant 10 : index
    %c0_336 = arith.constant 0 : index
    %c64_337 = arith.constant 64 : index
    %308 = vector.load %arg1[%c10_335, %c0_336, %c64_337] : memref<11x16x704xbf16, #tpu.memory_space<vmem>>, vector<1x16x192xbf16>
    %309 = vector.shape_cast %308 : vector<1x16x192xbf16> to vector<16x192xbf16>
    %310 = tpu.concatenate %305, %307, %309 in 0 : vector<16x192xbf16>, vector<16x192xbf16>, vector<16x192xbf16> -> vector<48x192xbf16>
    %cst_338 = arith.constant dense<0.000000e+00> : vector<48x128xf32>
    %311 = tpu.matmul %310, %294, %cst_338 {dimension_numbers = #tpu.dot_dimension_numbers<[1], [0], [0], [1], [0, 0, 1, 1], [], []>} : vector<48x192xbf16>, vector<192x128xbf16>, vector<48x128xf32> -> vector<48x128xf32>
    %312 = arith.addf %283, %311 : vector<48x128xf32>
    %c8_339 = arith.constant 8 : index
    %c0_340 = arith.constant 0 : index
    %c128_341 = arith.constant 128 : index
    %313 = vector.load %arg1[%c8_339, %c0_340, %c128_341] : memref<11x16x704xbf16, #tpu.memory_space<vmem>>, vector<1x16x192xbf16>
    %314 = vector.shape_cast %313 : vector<1x16x192xbf16> to vector<16x192xbf16>
    %c9_342 = arith.constant 9 : index
    %c0_343 = arith.constant 0 : index
    %c128_344 = arith.constant 128 : index
    %315 = vector.load %arg1[%c9_342, %c0_343, %c128_344] : memref<11x16x704xbf16, #tpu.memory_space<vmem>>, vector<1x16x192xbf16>
    %316 = vector.shape_cast %315 : vector<1x16x192xbf16> to vector<16x192xbf16>
    %c10_345 = arith.constant 10 : index
    %c0_346 = arith.constant 0 : index
    %c128_347 = arith.constant 128 : index
    %317 = vector.load %arg1[%c10_345, %c0_346, %c128_347] : memref<11x16x704xbf16, #tpu.memory_space<vmem>>, vector<1x16x192xbf16>
    %318 = vector.shape_cast %317 : vector<1x16x192xbf16> to vector<16x192xbf16>
    %319 = tpu.concatenate %314, %316, %318 in 0 : vector<16x192xbf16>, vector<16x192xbf16>, vector<16x192xbf16> -> vector<48x192xbf16>
    %cst_348 = arith.constant dense<0.000000e+00> : vector<48x128xf32>
    %320 = tpu.matmul %319, %294, %cst_348 {dimension_numbers = #tpu.dot_dimension_numbers<[1], [0], [0], [1], [0, 0, 1, 1], [], []>} : vector<48x192xbf16>, vector<192x128xbf16>, vector<48x128xf32> -> vector<48x128xf32>
    %321 = arith.addf %292, %320 : vector<48x128xf32>
    %c11 = arith.constant 11 : index
    %c0_349 = arith.constant 0 : index
    %c0_350 = arith.constant 0 : index
    %322 = vector.load %arg2[%c11, %c0_349, %c0_350] : memref<12x192x128xbf16, #tpu.memory_space<vmem>>, vector<1x192x128xbf16>
    %323 = vector.shape_cast %322 : vector<1x192x128xbf16> to vector<192x128xbf16>
    %c8_351 = arith.constant 8 : index
    %c0_352 = arith.constant 0 : index
    %c384_353 = arith.constant 384 : index
    %324 = vector.load %arg1[%c8_351, %c0_352, %c384_353] : memref<11x16x704xbf16, #tpu.memory_space<vmem>>, vector<1x16x192xbf16>
    %325 = vector.shape_cast %324 : vector<1x16x192xbf16> to vector<16x192xbf16>
    %c9_354 = arith.constant 9 : index
    %c0_355 = arith.constant 0 : index
    %c384_356 = arith.constant 384 : index
    %326 = vector.load %arg1[%c9_354, %c0_355, %c384_356] : memref<11x16x704xbf16, #tpu.memory_space<vmem>>, vector<1x16x192xbf16>
    %327 = vector.shape_cast %326 : vector<1x16x192xbf16> to vector<16x192xbf16>
    %c10_357 = arith.constant 10 : index
    %c0_358 = arith.constant 0 : index
    %c384_359 = arith.constant 384 : index
    %328 = vector.load %arg1[%c10_357, %c0_358, %c384_359] : memref<11x16x704xbf16, #tpu.memory_space<vmem>>, vector<1x16x192xbf16>
    %329 = vector.shape_cast %328 : vector<1x16x192xbf16> to vector<16x192xbf16>
    %330 = tpu.concatenate %325, %327, %329 in 0 : vector<16x192xbf16>, vector<16x192xbf16>, vector<16x192xbf16> -> vector<48x192xbf16>
    %cst_360 = arith.constant dense<0.000000e+00> : vector<48x128xf32>
    %331 = tpu.matmul %330, %323, %cst_360 {dimension_numbers = #tpu.dot_dimension_numbers<[1], [0], [0], [1], [0, 0, 1, 1], [], []>} : vector<48x192xbf16>, vector<192x128xbf16>, vector<48x128xf32> -> vector<48x128xf32>
    %332 = arith.addf %303, %331 : vector<48x128xf32>
    %c8_361 = arith.constant 8 : index
    %c0_362 = arith.constant 0 : index
    %c448_363 = arith.constant 448 : index
    %333 = vector.load %arg1[%c8_361, %c0_362, %c448_363] : memref<11x16x704xbf16, #tpu.memory_space<vmem>>, vector<1x16x192xbf16>
    %334 = vector.shape_cast %333 : vector<1x16x192xbf16> to vector<16x192xbf16>
    %c9_364 = arith.constant 9 : index
    %c0_365 = arith.constant 0 : index
    %c448_366 = arith.constant 448 : index
    %335 = vector.load %arg1[%c9_364, %c0_365, %c448_366] : memref<11x16x704xbf16, #tpu.memory_space<vmem>>, vector<1x16x192xbf16>
    %336 = vector.shape_cast %335 : vector<1x16x192xbf16> to vector<16x192xbf16>
    %c10_367 = arith.constant 10 : index
    %c0_368 = arith.constant 0 : index
    %c448_369 = arith.constant 448 : index
    %337 = vector.load %arg1[%c10_367, %c0_368, %c448_369] : memref<11x16x704xbf16, #tpu.memory_space<vmem>>, vector<1x16x192xbf16>
    %338 = vector.shape_cast %337 : vector<1x16x192xbf16> to vector<16x192xbf16>
    %339 = tpu.concatenate %334, %336, %338 in 0 : vector<16x192xbf16>, vector<16x192xbf16>, vector<16x192xbf16> -> vector<48x192xbf16>
    %cst_370 = arith.constant dense<0.000000e+00> : vector<48x128xf32>
    %340 = tpu.matmul %339, %323, %cst_370 {dimension_numbers = #tpu.dot_dimension_numbers<[1], [0], [0], [1], [0, 0, 1, 1], [], []>} : vector<48x192xbf16>, vector<192x128xbf16>, vector<48x128xf32> -> vector<48x128xf32>
    %341 = arith.addf %312, %340 : vector<48x128xf32>
    %c8_371 = arith.constant 8 : index
    %c0_372 = arith.constant 0 : index
    %c512_373 = arith.constant 512 : index
    %342 = vector.load %arg1[%c8_371, %c0_372, %c512_373] : memref<11x16x704xbf16, #tpu.memory_space<vmem>>, vector<1x16x192xbf16>
    %343 = vector.shape_cast %342 : vector<1x16x192xbf16> to vector<16x192xbf16>
    %c9_374 = arith.constant 9 : index
    %c0_375 = arith.constant 0 : index
    %c512_376 = arith.constant 512 : index
    %344 = vector.load %arg1[%c9_374, %c0_375, %c512_376] : memref<11x16x704xbf16, #tpu.memory_space<vmem>>, vector<1x16x192xbf16>
    %345 = vector.shape_cast %344 : vector<1x16x192xbf16> to vector<16x192xbf16>
    %c10_377 = arith.constant 10 : index
    %c0_378 = arith.constant 0 : index
    %c512_379 = arith.constant 512 : index
    %346 = vector.load %arg1[%c10_377, %c0_378, %c512_379] : memref<11x16x704xbf16, #tpu.memory_space<vmem>>, vector<1x16x192xbf16>
    %347 = vector.shape_cast %346 : vector<1x16x192xbf16> to vector<16x192xbf16>
    %348 = tpu.concatenate %343, %345, %347 in 0 : vector<16x192xbf16>, vector<16x192xbf16>, vector<16x192xbf16> -> vector<48x192xbf16>
    %cst_380 = arith.constant dense<0.000000e+00> : vector<48x128xf32>
    %349 = tpu.matmul %348, %323, %cst_380 {dimension_numbers = #tpu.dot_dimension_numbers<[1], [0], [0], [1], [0, 0, 1, 1], [], []>} : vector<48x192xbf16>, vector<192x128xbf16>, vector<48x128xf32> -> vector<48x128xf32>
    %350 = arith.addf %321, %349 : vector<48x128xf32>
    %c0_381 = arith.constant 0 : index
    %c0_382 = arith.constant 0 : index
    %351 = vector.load %arg3[%c0_381, %c0_382] : memref<1x128xf32, #tpu.memory_space<vmem>>, vector<1x128xf32>
    %352 = vector.broadcast %351 : vector<1x128xf32> to vector<48x128xf32>
    %353 = arith.addf %332, %352 : vector<48x128xf32>
    %cst_383 = arith.constant 0.000000e+00 : f32
    %354 = vector.broadcast %cst_383 : f32 to vector<48x128xf32>
    %355 = arith.maximumf %353, %354 : vector<48x128xf32>
    %356 = arith.truncf %355 : vector<48x128xf32> to vector<48x128xbf16>
    %c0_384 = arith.constant 0 : index
    %c0_385 = arith.constant 0 : index
    %357 = vector.load %arg3[%c0_384, %c0_385] : memref<1x128xf32, #tpu.memory_space<vmem>>, vector<1x128xf32>
    %358 = vector.broadcast %357 : vector<1x128xf32> to vector<48x128xf32>
    %359 = arith.addf %341, %358 : vector<48x128xf32>
    %cst_386 = arith.constant 0.000000e+00 : f32
    %360 = vector.broadcast %cst_386 : f32 to vector<48x128xf32>
    %361 = arith.maximumf %359, %360 : vector<48x128xf32>
    %362 = arith.truncf %361 : vector<48x128xf32> to vector<48x128xbf16>
    %c0_387 = arith.constant 0 : index
    %c0_388 = arith.constant 0 : index
    %363 = vector.load %arg3[%c0_387, %c0_388] : memref<1x128xf32, #tpu.memory_space<vmem>>, vector<1x128xf32>
    %364 = vector.broadcast %363 : vector<1x128xf32> to vector<48x128xf32>
    %365 = arith.addf %350, %364 : vector<48x128xf32>
    %cst_389 = arith.constant 0.000000e+00 : f32
    %366 = vector.broadcast %cst_389 : f32 to vector<48x128xf32>
    %367 = arith.maximumf %365, %366 : vector<48x128xf32>
    %368 = arith.truncf %367 : vector<48x128xf32> to vector<48x128xbf16>
    %cst_390 = arith.constant 0.000000e+00 : f32
    %369 = vector.broadcast %cst_390 : f32 to vector<16x128xf32>
    %370 = vector.extract_strided_slice %356 {offsets = [0, 0], sizes = [16, 128], strides = [1, 1]} : vector<48x128xbf16> to vector<16x128xbf16>
    %c0_391 = arith.constant 0 : index
    %c0_392 = arith.constant 0 : index
    %c0_393 = arith.constant 0 : index
    %371 = vector.load %arg4[%c0_391, %c0_392, %c0_393] : memref<9x128x128xbf16, #tpu.memory_space<vmem>>, vector<1x128x128xbf16>
    %372 = vector.shape_cast %371 : vector<1x128x128xbf16> to vector<128x128xbf16>
    %cst_394 = arith.constant dense<0.000000e+00> : vector<16x128xf32>
    %373 = tpu.matmul %370, %372, %cst_394 {dimension_numbers = #tpu.dot_dimension_numbers<[1], [0], [0], [1], [0, 0, 1, 1], [], []>} : vector<16x128xbf16>, vector<128x128xbf16>, vector<16x128xf32> -> vector<16x128xf32>
    %374 = arith.addf %369, %373 : vector<16x128xf32>
    %375 = vector.extract_strided_slice %362 {offsets = [0, 0], sizes = [16, 128], strides = [1, 1]} : vector<48x128xbf16> to vector<16x128xbf16>
    %c1_395 = arith.constant 1 : index
    %c0_396 = arith.constant 0 : index
    %c0_397 = arith.constant 0 : index
    %376 = vector.load %arg4[%c1_395, %c0_396, %c0_397] : memref<9x128x128xbf16, #tpu.memory_space<vmem>>, vector<1x128x128xbf16>
    %377 = vector.shape_cast %376 : vector<1x128x128xbf16> to vector<128x128xbf16>
    %cst_398 = arith.constant dense<0.000000e+00> : vector<16x128xf32>
    %378 = tpu.matmul %375, %377, %cst_398 {dimension_numbers = #tpu.dot_dimension_numbers<[1], [0], [0], [1], [0, 0, 1, 1], [], []>} : vector<16x128xbf16>, vector<128x128xbf16>, vector<16x128xf32> -> vector<16x128xf32>
    %379 = arith.addf %374, %378 : vector<16x128xf32>
    %380 = vector.extract_strided_slice %368 {offsets = [0, 0], sizes = [16, 128], strides = [1, 1]} : vector<48x128xbf16> to vector<16x128xbf16>
    %c2_399 = arith.constant 2 : index
    %c0_400 = arith.constant 0 : index
    %c0_401 = arith.constant 0 : index
    %381 = vector.load %arg4[%c2_399, %c0_400, %c0_401] : memref<9x128x128xbf16, #tpu.memory_space<vmem>>, vector<1x128x128xbf16>
    %382 = vector.shape_cast %381 : vector<1x128x128xbf16> to vector<128x128xbf16>
    %cst_402 = arith.constant dense<0.000000e+00> : vector<16x128xf32>
    %383 = tpu.matmul %380, %382, %cst_402 {dimension_numbers = #tpu.dot_dimension_numbers<[1], [0], [0], [1], [0, 0, 1, 1], [], []>} : vector<16x128xbf16>, vector<128x128xbf16>, vector<16x128xf32> -> vector<16x128xf32>
    %384 = arith.addf %379, %383 : vector<16x128xf32>
    %385 = vector.extract_strided_slice %356 {offsets = [16, 0], sizes = [16, 128], strides = [1, 1]} : vector<48x128xbf16> to vector<16x128xbf16>
    %c3_403 = arith.constant 3 : index
    %c0_404 = arith.constant 0 : index
    %c0_405 = arith.constant 0 : index
    %386 = vector.load %arg4[%c3_403, %c0_404, %c0_405] : memref<9x128x128xbf16, #tpu.memory_space<vmem>>, vector<1x128x128xbf16>
    %387 = vector.shape_cast %386 : vector<1x128x128xbf16> to vector<128x128xbf16>
    %cst_406 = arith.constant dense<0.000000e+00> : vector<16x128xf32>
    %388 = tpu.matmul %385, %387, %cst_406 {dimension_numbers = #tpu.dot_dimension_numbers<[1], [0], [0], [1], [0, 0, 1, 1], [], []>} : vector<16x128xbf16>, vector<128x128xbf16>, vector<16x128xf32> -> vector<16x128xf32>
    %389 = arith.addf %384, %388 : vector<16x128xf32>
    %390 = vector.extract_strided_slice %362 {offsets = [16, 0], sizes = [16, 128], strides = [1, 1]} : vector<48x128xbf16> to vector<16x128xbf16>
    %c4_407 = arith.constant 4 : index
    %c0_408 = arith.constant 0 : index
    %c0_409 = arith.constant 0 : index
    %391 = vector.load %arg4[%c4_407, %c0_408, %c0_409] : memref<9x128x128xbf16, #tpu.memory_space<vmem>>, vector<1x128x128xbf16>
    %392 = vector.shape_cast %391 : vector<1x128x128xbf16> to vector<128x128xbf16>
    %cst_410 = arith.constant dense<0.000000e+00> : vector<16x128xf32>
    %393 = tpu.matmul %390, %392, %cst_410 {dimension_numbers = #tpu.dot_dimension_numbers<[1], [0], [0], [1], [0, 0, 1, 1], [], []>} : vector<16x128xbf16>, vector<128x128xbf16>, vector<16x128xf32> -> vector<16x128xf32>
    %394 = arith.addf %389, %393 : vector<16x128xf32>
    %395 = vector.extract_strided_slice %368 {offsets = [16, 0], sizes = [16, 128], strides = [1, 1]} : vector<48x128xbf16> to vector<16x128xbf16>
    %c5_411 = arith.constant 5 : index
    %c0_412 = arith.constant 0 : index
    %c0_413 = arith.constant 0 : index
    %396 = vector.load %arg4[%c5_411, %c0_412, %c0_413] : memref<9x128x128xbf16, #tpu.memory_space<vmem>>, vector<1x128x128xbf16>
    %397 = vector.shape_cast %396 : vector<1x128x128xbf16> to vector<128x128xbf16>
    %cst_414 = arith.constant dense<0.000000e+00> : vector<16x128xf32>
    %398 = tpu.matmul %395, %397, %cst_414 {dimension_numbers = #tpu.dot_dimension_numbers<[1], [0], [0], [1], [0, 0, 1, 1], [], []>} : vector<16x128xbf16>, vector<128x128xbf16>, vector<16x128xf32> -> vector<16x128xf32>
    %399 = arith.addf %394, %398 : vector<16x128xf32>
    %400 = vector.extract_strided_slice %356 {offsets = [32, 0], sizes = [16, 128], strides = [1, 1]} : vector<48x128xbf16> to vector<16x128xbf16>
    %c6_415 = arith.constant 6 : index
    %c0_416 = arith.constant 0 : index
    %c0_417 = arith.constant 0 : index
    %401 = vector.load %arg4[%c6_415, %c0_416, %c0_417] : memref<9x128x128xbf16, #tpu.memory_space<vmem>>, vector<1x128x128xbf16>
    %402 = vector.shape_cast %401 : vector<1x128x128xbf16> to vector<128x128xbf16>
    %cst_418 = arith.constant dense<0.000000e+00> : vector<16x128xf32>
    %403 = tpu.matmul %400, %402, %cst_418 {dimension_numbers = #tpu.dot_dimension_numbers<[1], [0], [0], [1], [0, 0, 1, 1], [], []>} : vector<16x128xbf16>, vector<128x128xbf16>, vector<16x128xf32> -> vector<16x128xf32>
    %404 = arith.addf %399, %403 : vector<16x128xf32>
    %405 = vector.extract_strided_slice %362 {offsets = [32, 0], sizes = [16, 128], strides = [1, 1]} : vector<48x128xbf16> to vector<16x128xbf16>
    %c7_419 = arith.constant 7 : index
    %c0_420 = arith.constant 0 : index
    %c0_421 = arith.constant 0 : index
    %406 = vector.load %arg4[%c7_419, %c0_420, %c0_421] : memref<9x128x128xbf16, #tpu.memory_space<vmem>>, vector<1x128x128xbf16>
    %407 = vector.shape_cast %406 : vector<1x128x128xbf16> to vector<128x128xbf16>
    %cst_422 = arith.constant dense<0.000000e+00> : vector<16x128xf32>
    %408 = tpu.matmul %405, %407, %cst_422 {dimension_numbers = #tpu.dot_dimension_numbers<[1], [0], [0], [1], [0, 0, 1, 1], [], []>} : vector<16x128xbf16>, vector<128x128xbf16>, vector<16x128xf32> -> vector<16x128xf32>
    %409 = arith.addf %404, %408 : vector<16x128xf32>
    %410 = vector.extract_strided_slice %368 {offsets = [32, 0], sizes = [16, 128], strides = [1, 1]} : vector<48x128xbf16> to vector<16x128xbf16>
    %c8_423 = arith.constant 8 : index
    %c0_424 = arith.constant 0 : index
    %c0_425 = arith.constant 0 : index
    %411 = vector.load %arg4[%c8_423, %c0_424, %c0_425] : memref<9x128x128xbf16, #tpu.memory_space<vmem>>, vector<1x128x128xbf16>
    %412 = vector.shape_cast %411 : vector<1x128x128xbf16> to vector<128x128xbf16>
    %cst_426 = arith.constant dense<0.000000e+00> : vector<16x128xf32>
    %413 = tpu.matmul %410, %412, %cst_426 {dimension_numbers = #tpu.dot_dimension_numbers<[1], [0], [0], [1], [0, 0, 1, 1], [], []>} : vector<16x128xbf16>, vector<128x128xbf16>, vector<16x128xf32> -> vector<16x128xf32>
    %414 = arith.addf %409, %413 : vector<16x128xf32>
    %c0_427 = arith.constant 0 : index
    %c0_428 = arith.constant 0 : index
    %415 = vector.load %arg5[%c0_427, %c0_428] : memref<1x128xf32, #tpu.memory_space<vmem>>, vector<1x128xf32>
    %416 = vector.broadcast %415 : vector<1x128xf32> to vector<16x128xf32>
    %417 = arith.addf %414, %416 : vector<16x128xf32>
    %cst_429 = arith.constant 0.000000e+00 : f32
    %418 = vector.broadcast %cst_429 : f32 to vector<16x128xf32>
    %419 = arith.maximumf %417, %418 : vector<16x128xf32>
    %420 = arith.truncf %419 : vector<16x128xf32> to vector<16x128xbf16>
    %c0_430 = arith.constant 0 : index
    %c0_431 = arith.constant 0 : index
    %421 = vector.load %arg6[%c0_430, %c0_431] : memref<128x128xbf16, #tpu.memory_space<vmem>>, vector<128x128xbf16>
    %cst_432 = arith.constant dense<0.000000e+00> : vector<16x128xf32>
    %422 = tpu.matmul %420, %421, %cst_432 {dimension_numbers = #tpu.dot_dimension_numbers<[1], [0], [0], [1], [0, 0, 1, 1], [], []>} : vector<16x128xbf16>, vector<128x128xbf16>, vector<16x128xf32> -> vector<16x128xf32>
    %c0_433 = arith.constant 0 : index
    %c0_434 = arith.constant 0 : index
    %423 = vector.load %arg7[%c0_433, %c0_434] : memref<1x128xf32, #tpu.memory_space<vmem>>, vector<1x128xf32>
    %424 = vector.broadcast %423 : vector<1x128xf32> to vector<16x128xf32>
    %425 = arith.addf %422, %424 : vector<16x128xf32>
    %c0_435 = arith.constant 0 : index
    %c0_436 = arith.constant 0 : index
    %426 = vector.load %arg8[%c0_435, %c0_436] : memref<16x128xf32, #tpu.memory_space<vmem>>, vector<16x128xf32>
    tpu.vector_store %arg8[%c0_435, %c0_436], %425 {strides = array<i32>} : memref<16x128xf32, #tpu.memory_space<vmem>>, vector<16x128xf32>,
    return
  }
  func.func @transform_0(%arg0: i32) -> (i32, i32, i32) {
    %c0_i32 = arith.constant 0 : i32
    %c0_i32_0 = arith.constant 0 : i32
    %c0_i32_1 = arith.constant 0 : i32
    return %c0_i32, %arg0, %c0_i32_0 : i32, i32, i32
  }
  func.func @transform_1(%arg0: i32) -> (i32, i32, i32) {
    %c0_i32 = arith.constant 0 : i32
    %c0_i32_0 = arith.constant 0 : i32
    %c0_i32_1 = arith.constant 0 : i32
    %c0_i32_2 = arith.constant 0 : i32
    return %c0_i32, %c0_i32_0, %c0_i32_1 : i32, i32, i32
  }
  func.func @transform_2(%arg0: i32) -> (i32, i32) {
    %c0_i32 = arith.constant 0 : i32
    %c0_i32_0 = arith.constant 0 : i32
    %c0_i32_1 = arith.constant 0 : i32
    return %c0_i32, %c0_i32_0 : i32, i32
  }
  func.func @transform_3(%arg0: i32) -> (i32, i32, i32) {
    %c0_i32 = arith.constant 0 : i32
    %c0_i32_0 = arith.constant 0 : i32
    %c0_i32_1 = arith.constant 0 : i32
    %c0_i32_2 = arith.constant 0 : i32
    return %c0_i32, %c0_i32_0, %c0_i32_1 : i32, i32, i32
  }
  func.func @transform_4(%arg0: i32) -> (i32, i32) {
    %c0_i32 = arith.constant 0 : i32
    %c0_i32_0 = arith.constant 0 : i32
    %c0_i32_1 = arith.constant 0 : i32
    return %c0_i32, %c0_i32_0 : i32, i32
  }
  func.func @transform_5(%arg0: i32) -> (i32, i32) {
    %c0_i32 = arith.constant 0 : i32
    %c0_i32_0 = arith.constant 0 : i32
    %c0_i32_1 = arith.constant 0 : i32
    return %c0_i32, %c0_i32_0 : i32, i32
  }
  func.func @transform_6(%arg0: i32) -> (i32, i32) {
    %c0_i32 = arith.constant 0 : i32
    %c0_i32_0 = arith.constant 0 : i32
    %c0_i32_1 = arith.constant 0 : i32
    return %c0_i32, %c0_i32_0 : i32, i32
  }
  func.func @transform_7(%arg0: i32) -> (i32, i32) {
    %c0_i32 = arith.constant 0 : i32
    %c0_i32_0 = arith.constant 0 : i32
    return %arg0, %c0_i32 : i32, i32
  }
}

</mosaic_0001>

<llo_original>
// kernel: classifier_b_forward.2
$region0: #{classifier_b_forward.2}
  #allocation0 [shape = 'u32[]', space=smem, size = 0x4, offset = 0x4, fixed_abs, tag = 'smem constant byte address 0x4 - core index']
  #allocation1 [shape = 'u32[144,128]{1,0:T(1,128)}', space=vmem, size = 0x12000, scoped, tag = 'internal scratch']
  %s0 = inlined_call_operand.vmem [shape: bf16[1936,64], index: 0, kind: input, shape index: {}]
  %s1 = inlined_call_operand.vmem [shape: bf16[64,64], index: 1, kind: input, shape index: {}]
  %s2 = inlined_call_operand.vmem [shape: f32[1,64], index: 2, kind: input, shape index: {}]
  %s3 = inlined_call_operand.vmem [shape: bf16[1936,64], index: 3, kind: output, shape index: {}]
  %s4 = sld [smem:[#allocation0]]
  $region89: #{classifier_b_forward.2} parent=0
    _
  %s6 = ssub.s32 1, %s4
  %s7 = scalar_select 0, %s6, %s4
  $region1: #{classifier_b_forward.2} parent=0
    #allocation2 [shape = 'u8[499712]{0}', space=vmem, size = 0x7a000, scoped, tag = 'output window, operand 0']
    loop: start=0, step=1, limit=4
    $region2: #{classifier_b_forward.2} parent=1 // loop_pre_header
      _
    $region3: #{classifier_b_forward.2} parent=1 // loop_header
      %s9 = sphi 0, %s13
      %p10 = scmp.ge.s32.totalorder %s9, 4
      %s19 = sphi 0, %s21
      %s22 = sphi 0, %s19
      %s23 = sphi 0, %s22
      %s39 = sphi 0, %s23
      %s43 = sphi 0, %s43
      %s45 = sphi 0, %s43
      %s46 = sphi 0, %s45
      %s60 = sphi 0, %s46
      %s64 = sphi 0, %s64
      %s66 = sphi 0, %s64
      %s67 = sphi 0, %s66
      %s81 = sphi 0, %s67
      %s87 = sphi 0, %s89
      %s90 = sphi 0, %s87
      %s91 = sphi 0, %s90
      %s107 = sphi 0, %s91
    $region4: #{classifier_b_forward.2} parent=1 // loop_header_branch
      %12 = sbr.rel (%p10) target = $region8
    $region5: #{classifier_b_forward.2} parent=1 // loop_body
      %s14 = ssub.s32 %s9, 1
      %s15 = ssub.s32 %s9, 2
      %s16 = sadd.s32 %s9, 1
      %s17 = ssub.s32 %s9, %s16
      %p18 = scmp.eq.s32.totalorder %s17, 0
      %s20 = sadd.s32 %s19, 1
      %s21 = scalar_select %p18, %s19, %s20
      %p24 = pneg %p18
      %p25 = scmp.eq.s32.totalorder %s9, 1
      %p26 = por %p24, %p25
      %p27 = scmp.ne.s32.totalorder %s19, %s22
      %p28 = scmp.eq.s32.totalorder %s9, 0
      %p29 = por %p27, %p28
      %p30 = scmp.ne.s32.totalorder %s19, %s22
      %p31 = scmp.eq.s32.totalorder %s14, 1
      %p32 = por %p30, %p31
      %p33 = scmp.ne.s32.totalorder %s22, %s23
      %p34 = scmp.eq.s32.totalorder %s14, 0
      %p35 = por %p33, %p34
      %p36 = scmp.ne.s32.totalorder %s22, %s23
      %p37 = scmp.eq.s32.totalorder %s15, 1
      %p38 = por %p36, %p37
      %p40 = scmp.ne.s32.totalorder %s23, %s39
      %p41 = scmp.eq.s32.totalorder %s15, 0
      %p42 = por %p40, %p41
      %s44 = sadd.s32 %s43, 1
      %p47 = scmp.eq.s32.totalorder %s9, 1
      %p48 = scmp.ne.s32.totalorder %s43, %s45
      %p49 = scmp.eq.s32.totalorder %s9, 0
      %p50 = por %p48, %p49
      %p51 = scmp.ne.s32.totalorder %s43, %s45
      %p52 = scmp.eq.s32.totalorder %s14, 1
      %p53 = por %p51, %p52
      %p54 = scmp.ne.s32.totalorder %s45, %s46
      %p55 = scmp.eq.s32.totalorder %s14, 0
      %p56 = por %p54, %p55
      %p57 = scmp.ne.s32.totalorder %s45, %s46
      %p58 = scmp.eq.s32.totalorder %s15, 1
      %p59 = por %p57, %p58
      %p61 = scmp.ne.s32.totalorder %s46, %s60
      %p62 = scmp.eq.s32.totalorder %s15, 0
      %p63 = por %p61, %p62
      %s65 = sadd.s32 %s64, 1
      %p68 = scmp.eq.s32.totalorder %s9, 1
      %p69 = scmp.ne.s32.totalorder %s64, %s66
      %p70 = scmp.eq.s32.totalorder %s9, 0
      %p71 = por %p69, %p70
      %p72 = scmp.ne.s32.totalorder %s64, %s66
      %p73 = scmp.eq.s32.totalorder %s14, 1
      %p74 = por %p72, %p73
      %p75 = scmp.ne.s32.totalorder %s66, %s67
      %p76 = scmp.eq.s32.totalorder %s14, 0
      %p77 = por %p75, %p76
      %p78 = scmp.ne.s32.totalorder %s66, %s67
      %p79 = scmp.eq.s32.totalorder %s15, 1
      %p80 = por %p78, %p79
      %p82 = scmp.ne.s32.totalorder %s67, %s81
      %p83 = scmp.eq.s32.totalorder %s15, 0
      %p84 = por %p82, %p83
      %s85 = ssub.s32 %s9, %s16
      %p86 = scmp.eq.s32.totalorder %s85, 0
      %s88 = sadd.s32 %s87, 1
      %s89 = scalar_select %p86, %s87, %s88
      %p92 = pneg %p86
      %p93 = scmp.eq.s32.totalorder %s9, 1
      %p94 = por %p92, %p93
      %p95 = scmp.ne.s32.totalorder %s87, %s90
      %p96 = scmp.eq.s32.totalorder %s9, 0
      %p97 = por %p95, %p96
      %p98 = scmp.ne.s32.totalorder %s87, %s90
      %p99 = scmp.eq.s32.totalorder %s14, 1
      %p100 = por %p98, %p99
      %p101 = scmp.ne.s32.totalorder %s90, %s91
      %p102 = scmp.eq.s32.totalorder %s14, 0
      %p103 = por %p101, %p102
      %p104 = scmp.ne.s32.totalorder %s90, %s91
      %p105 = scmp.eq.s32.totalorder %s15, 1
      %p106 = por %p104, %p105
      %p108 = scmp.ne.s32.totalorder %s91, %s107
      %p109 = scmp.eq.s32.totalorder %s15, 0
      %p110 = por %p108, %p109
      %p111 = scmp.le.s32.totalorder 1, %s9
      %p112 = scmp.lt.s32.totalorder %s9, 3
      %p113 = pnand %p111, %p112
      %p114 = pneg %p113
      // Predicated region
      $region9: #{classifier_b_forward.2} parent=5 // pred_check
        _
      $region10: #{classifier_b_forward.2} parent=5 // pred_check_branch
        %116 = sbr.rel (%p113) target = $region12
      $region11: #{classifier_b_forward.2} parent=5 // pred_region
        %s117 = ssub.s32 %s9, 1
        // Predicated region
        $region13: #{classifier_b_forward.2} parent=11 // pred_check
          %p118 = pneg %p56
        $region14: #{classifier_b_forward.2} parent=11 // pred_check_branch
          %120 = sbr.rel (%p118) target = $region16
        $region15: #{classifier_b_forward.2} parent=11 // pred_region
          _
        $region16: #{classifier_b_forward.2} parent=11 // pred_fallthru
          _
        // Predicated region
        $region17: #{classifier_b_forward.2} parent=11 // pred_check
          %p121 = pneg %p77
        $region18: #{classifier_b_forward.2} parent=11 // pred_check_branch
          %123 = sbr.rel (%p121) target = $region20
        $region19: #{classifier_b_forward.2} parent=11 // pred_region
          _
        $region20: #{classifier_b_forward.2} parent=11 // pred_fallthru
          _
      $region12: #{classifier_b_forward.2} parent=5 // pred_fallthru
        _
      %p124 = scmp.lt.s32.totalorder %s9, 2
      // Predicated region
      $region21: #{classifier_b_forward.2} parent=5 // pred_check
        %p125 = pneg %p124
      $region22: #{classifier_b_forward.2} parent=5 // pred_check_branch
        %127 = sbr.rel (%p125) target = $region24
      $region23: #{classifier_b_forward.2} parent=5 // pred_region
        // Predicated region
        $region25: #{classifier_b_forward.2} parent=23 // pred_check
          %p128 = pneg %p29
        $region26: #{classifier_b_forward.2} parent=23 // pred_check_branch
          %130 = sbr.rel (%p128) target = $region28
        $region27: #{classifier_b_forward.2} parent=23 // pred_region
          %s131 = smul.u32 122, %s9
          %s132 = ssub.s32 242, %s131
          %p133 = scmp.lt.s32.totalorder %s132, 122
          %s134 = scalar_select %p133, %s132, 122
          %s135 = smul.u32 64, %s134
          %p136 = scmp.lt.s32.totalorder %s131, 241
          %s137 = scalar_select %p136, %s131, 241
          %s138 = smul.addr %s137, 4
          %s139 = scalar_lea.vmem %s0, %s138
          %s140 = smul.u32 122, %s9
          %s141 = ssub.s32 242, %s140
          %p142 = scmp.lt.s32.totalorder %s141, 122
          %s143 = scalar_select %p142, %s141, 122
          %s144 = smul.u32 64, %s143
        $region28: #{classifier_b_forward.2} parent=23 // pred_fallthru
          _
      $region24: #{classifier_b_forward.2} parent=5 // pred_fallthru
        _
      %p145 = scmp.le.s32.totalorder 1, %s9
      %p146 = scmp.lt.s32.totalorder %s9, 3
      %p147 = pnand %p145, %p146
      %p148 = pneg %p147
      // Predicated region
      $region29: #{classifier_b_forward.2} parent=5 // pred_check
        _
      $region30: #{classifier_b_forward.2} parent=5 // pred_check_branch
        %150 = sbr.rel (%p147) target = $region32
      $region31: #{classifier_b_forward.2} parent=5 // pred_region
        %s151 = ssub.s32 %s9, 1
        %s152 = smul.u32 122, %s14
        %s153 = ssub.s32 242, %s152
        %p154 = scmp.lt.s32.totalorder %s153, 122
        %s155 = scalar_select %p154, %s153, 122
        %s156 = smul.u32 64, %s155
        %p157 = scmp.lt.s32.totalorder %s152, 241
        %s158 = scalar_select %p157, %s152, 241
        %s159 = smul.addr %s158, 4
        %s160 = scalar_lea.vmem %s0, %s159
        %p161 = pneg %p35
        %p162 = pneg %p32
        %p163 = pneg %p56
        %p164 = pneg %p53
        %p165 = pneg %p77
        %p166 = pneg %p74
        %p167 = pneg %p103
        %p168 = pneg %p100
        %s169 = sand.u32 %s90, 1
        %s170 = sand.u32 %s90, 1
        %s171 = smul.addr %s170, 488
        %s172 = scalar_lea.vmem [#allocation2], %s171
        %s173 = smul.u32 122, %s14
        %s174 = ssub.s32 242, %s173
        %p175 = scmp.lt.s32.totalorder %s174, 122
        %s176 = scalar_select %p175, %s174, 122
        %s177 = smul.u32 64, %s176
        %p178 = scmp.lt.s32.totalorder %s173, 241
        %s179 = scalar_select %p178, %s173, 241
        %s180 = smul.addr %s179, 4
        %s181 = scalar_lea.vmem %s0, %s180
        %s182 = smul.u32 122, %s14
        %s183 = ssub.s32 242, %s182
        %p184 = scmp.lt.s32.totalorder %s183, 122
        %s185 = scalar_select %p184, %s183, 122
        %s186 = smul.u32 64, %s185
        %s187 = smul.u32 122, %s14
        %s188 = ssub.s32 242, %s187
        %p189 = scmp.lt.s32.totalorder %s188, 122
        %s190 = scalar_select %p189, %s188, 122
        %s191 = smul.u32 64, %s190
        %v193 = vld [vmem:[%s181] sm:$0xf]
        %v194 = vld [vmem:[%s181 + $0x4] sm:$0xf]
        %v195 = vld [vmem:[%s181 + $0x8] sm:$0xf]
        %v196 = vld [vmem:[%s181 + $0xc] sm:$0xf]
        %v197 = vld [vmem:[%s181 + $0x10] sm:$0xf]
        %v198 = vld [vmem:[%s181 + $0x14] sm:$0xf]
        %v199 = vld [vmem:[%s181 + $0x18] sm:$0xf]
        %v200 = vld [vmem:[%s181 + $0x1c] sm:$0xf]
        %v201 = vld [vmem:[%s181 + $0x20] sm:$0xf]
        %v202 = vld [vmem:[%s181 + $0x24] sm:$0xf]
        %v203 = vld [vmem:[%s181 + $0x28] sm:$0xf]
        %v204 = vld [vmem:[%s181 + $0x2c] sm:$0xf]
        %v205 = vld [vmem:[%s181 + $0x30] sm:$0xf]
        %v206 = vld [vmem:[%s181 + $0x34] sm:$0xf]
        %v207 = vld [vmem:[%s181 + $0x38] sm:$0xf]
        %v208 = vld [vmem:[%s181 + $0x3c] sm:$0xf]
        %v209 = vld [vmem:[%s181 + $0x40] sm:$0xf]
        %v210 = vld [vmem:[%s181 + $0x44] sm:$0xf]
        %v211 = vld [vmem:[%s181 + $0x48] sm:$0xf]
        %v212 = vld [vmem:[%s181 + $0x4c] sm:$0xf]
        %v213 = vld [vmem:[%s181 + $0x50] sm:$0xf]
        %v214 = vld [vmem:[%s181 + $0x54] sm:$0xf]
        %v215 = vld [vmem:[%s181 + $0x58] sm:$0xf]
        %v216 = vld [vmem:[%s181 + $0x5c] sm:$0xf]
        %v217 = vld [vmem:[%s181 + $0x60] sm:$0xf]
        %v218 = vld [vmem:[%s181 + $0x64] sm:$0xf]
        %v219 = vld [vmem:[%s181 + $0x68] sm:$0xf]
        %v220 = vld [vmem:[%s181 + $0x6c] sm:$0xf]
        %v221 = vld [vmem:[%s181 + $0x70] sm:$0xf]
        %v222 = vld [vmem:[%s181 + $0x74] sm:$0xf]
        %v223 = vld [vmem:[%s181 + $0x78] sm:$0xf]
        %v224 = vld [vmem:[%s181 + $0x7c] sm:$0xf]
        %v225 = vld [vmem:[%s181 + $0x80] sm:$0xf]
        %v226 = vld [vmem:[%s181 + $0x84] sm:$0xf]
        %v227 = vld [vmem:[%s181 + $0x88] sm:$0xf]
        %v228 = vld [vmem:[%s181 + $0x8c] sm:$0xf]
        %v229 = vld [vmem:[%s181 + $0x90] sm:$0xf]
        %v230 = vld [vmem:[%s181 + $0x94] sm:$0xf]
        %v231 = vld [vmem:[%s181 + $0x98] sm:$0xf]
        %v232 = vld [vmem:[%s181 + $0x9c] sm:$0xf]
        %v233 = vld [vmem:[%s181 + $0xa0] sm:$0xf]
        %v234 = vld [vmem:[%s181 + $0xa4] sm:$0xf]
        %v235 = vld [vmem:[%s181 + $0xa8] sm:$0xf]
        %v236 = vld [vmem:[%s181 + $0xac] sm:$0xf]
        %v237 = vld [vmem:[%s181 + $0xb0] sm:$0xf]
        %v238 = vld [vmem:[%s181 + $0xb4] sm:$0xf]
        %v239 = vld [vmem:[%s181 + $0xb8] sm:$0xf]
        %v240 = vld [vmem:[%s181 + $0xbc] sm:$0xf]
        %v241 = vld [vmem:[%s181 + $0xc0] sm:$0xf]
        %v242 = vld [vmem:[%s181 + $0xc4] sm:$0xf]
        %v243 = vld [vmem:[%s181 + $0xc8] sm:$0xf]
        %v244 = vld [vmem:[%s181 + $0xcc] sm:$0xf]
        %v245 = vld [vmem:[%s181 + $0xd0] sm:$0xf]
        %v246 = vld [vmem:[%s181 + $0xd4] sm:$0xf]
        %v247 = vld [vmem:[%s181 + $0xd8] sm:$0xf]
        %v248 = vld [vmem:[%s181 + $0xdc] sm:$0xf]
        %v249 = vld [vmem:[%s181 + $0xe0] sm:$0xf]
        %v250 = vld [vmem:[%s181 + $0xe4] sm:$0xf]
        %v251 = vld [vmem:[%s181 + $0xe8] sm:$0xf]
        %v252 = vld [vmem:[%s181 + $0xec] sm:$0xf]
        %v253 = vld [vmem:[%s181 + $0xf0] sm:$0xf]
        %v254 = vld [vmem:[%s181 + $0xf4] sm:$0xf]
        %v255 = vld [vmem:[%s181 + $0xf8] sm:$0xf]
        %v256 = vld [vmem:[%s181 + $0xfc] sm:$0xf]
        %v257 = vld [vmem:[%s181 + $0x100] sm:$0xf]
        %v258 = vld [vmem:[%s181 + $0x104] sm:$0xf]
        %v259 = vld [vmem:[%s181 + $0x108] sm:$0xf]
        %v260 = vld [vmem:[%s181 + $0x10c] sm:$0xf]
        %v261 = vld [vmem:[%s181 + $0x110] sm:$0xf]
        %v262 = vld [vmem:[%s181 + $0x114] sm:$0xf]
        %v263 = vld [vmem:[%s181 + $0x118] sm:$0xf]
        %v264 = vld [vmem:[%s181 + $0x11c] sm:$0xf]
        %v265 = vld [vmem:[%s181 + $0x120] sm:$0xf]
        %v266 = vld [vmem:[%s181 + $0x124] sm:$0xf]
        %v267 = vld [vmem:[%s181 + $0x128] sm:$0xf]
        %v268 = vld [vmem:[%s181 + $0x12c] sm:$0xf]
        %v269 = vld [vmem:[%s181 + $0x130] sm:$0xf]
        %v270 = vld [vmem:[%s181 + $0x134] sm:$0xf]
        %v271 = vld [vmem:[%s181 + $0x138] sm:$0xf]
        %v272 = vld [vmem:[%s181 + $0x13c] sm:$0xf]
        %v273 = vld [vmem:[%s181 + $0x140] sm:$0xf]
        %v274 = vld [vmem:[%s181 + $0x144] sm:$0xf]
        %v275 = vld [vmem:[%s181 + $0x148] sm:$0xf]
        %v276 = vld [vmem:[%s181 + $0x14c] sm:$0xf]
        %v277 = vld [vmem:[%s181 + $0x150] sm:$0xf]
        %v278 = vld [vmem:[%s181 + $0x154] sm:$0xf]
        %v279 = vld [vmem:[%s181 + $0x158] sm:$0xf]
        %v280 = vld [vmem:[%s181 + $0x15c] sm:$0xf]
        %v281 = vld [vmem:[%s181 + $0x160] sm:$0xf]
        %v282 = vld [vmem:[%s181 + $0x164] sm:$0xf]
        %v283 = vld [vmem:[%s181 + $0x168] sm:$0xf]
        %v284 = vld [vmem:[%s181 + $0x16c] sm:$0xf]
        %v285 = vld [vmem:[%s181 + $0x170] sm:$0xf]
        %v286 = vld [vmem:[%s181 + $0x174] sm:$0xf]
        %v287 = vld [vmem:[%s181 + $0x178] sm:$0xf]
        %v288 = vld [vmem:[%s181 + $0x17c] sm:$0xf]
        %v289 = vld [vmem:[%s181 + $0x180] sm:$0xf]
        %v290 = vld [vmem:[%s181 + $0x184] sm:$0xf]
        %v291 = vld [vmem:[%s181 + $0x188] sm:$0xf]
        %v292 = vld [vmem:[%s181 + $0x18c] sm:$0xf]
        %v293 = vld [vmem:[%s181 + $0x190] sm:$0xf]
        %v294 = vld [vmem:[%s181 + $0x194] sm:$0xf]
        %v295 = vld [vmem:[%s181 + $0x198] sm:$0xf]
        %v296 = vld [vmem:[%s181 + $0x19c] sm:$0xf]
        %v297 = vld [vmem:[%s181 + $0x1a0] sm:$0xf]
        %v298 = vld [vmem:[%s181 + $0x1a4] sm:$0xf]
        %v299 = vld [vmem:[%s181 + $0x1a8] sm:$0xf]
        %v300 = vld [vmem:[%s181 + $0x1ac] sm:$0xf]
        %v301 = vld [vmem:[%s181 + $0x1b0] sm:$0xf]
        %v302 = vld [vmem:[%s181 + $0x1b4] sm:$0xf]
        %v303 = vld [vmem:[%s181 + $0x1b8] sm:$0xf]
        %v304 = vld [vmem:[%s181 + $0x1bc] sm:$0xf]
        %v305 = vld [vmem:[%s181 + $0x1c0] sm:$0xf]
        %v306 = vld [vmem:[%s181 + $0x1c4] sm:$0xf]
        %v307 = vld [vmem:[%s181 + $0x1c8] sm:$0xf]
        %v308 = vld [vmem:[%s181 + $0x1cc] sm:$0xf]
        %v309 = vld [vmem:[%s181 + $0x1d0] sm:$0xf]
        %v310 = vld [vmem:[%s181 + $0x1d4] sm:$0xf]
        %v311 = vld [vmem:[%s181 + $0x1d8] sm:$0xf]
        %v312 = vld [vmem:[%s181 + $0x1dc] sm:$0xf]
        %v313 = vld [vmem:[%s181 + $0x1e0] sm:$0xf]
        %v314 = vld [vmem:[%s181 + $0x1e4] sm:$0xf]
        %v315 = vld [vmem:[%s1] sm:$0xf]
        %v316 = vld [vmem:[%s1 + $0x4] sm:$0xf]
        %v317 = vld [vmem:[%s1 + $0x8] sm:$0xf]
        %v318 = vld [vmem:[%s1 + $0xc] sm:$0xf]
        %v319 = vld [vmem:[%s1 + $0x10] sm:$0xf]
        %v320 = vld [vmem:[%s1 + $0x14] sm:$0xf]
        %v321 = vld [vmem:[%s1 + $0x18] sm:$0xf]
        %v322 = vld [vmem:[%s1 + $0x1c] sm:$0xf]
        %v323 = vld [vmem:[%s2] sm:$0x1]
        %v325 = vlaneseq
        %v326 = vshrl.u32 %v325, 7
        %v327 = vsub.s32 0, %v326
        %v328 = vrot.slane %v323, %v327
        %v452 = vunpack.c.l.b16 %v193
        %v453 = vunpack.c.l.b16 %v194
        %v454 = vunpack.c.l.b16 %v195
        %v455 = vunpack.c.l.b16 %v196
        %v456 = vunpack.c.l.b16 %v197
        %v457 = vunpack.c.l.b16 %v198
        %v458 = vunpack.c.l.b16 %v199
        %v459 = vunpack.c.l.b16 %v200
        %v460 = vunpack.c.l.b16 %v201
        %v461 = vunpack.c.l.b16 %v202
        %v462 = vunpack.c.l.b16 %v203
        %v463 = vunpack.c.l.b16 %v204
        %v464 = vunpack.c.l.b16 %v205
        %v465 = vunpack.c.l.b16 %v206
        %v466 = vunpack.c.l.b16 %v207
        %v467 = vunpack.c.l.b16 %v208
        %v468 = vunpack.c.l.b16 %v209
        %v469 = vunpack.c.l.b16 %v210
        %v470 = vunpack.c.l.b16 %v211
        %v471 = vunpack.c.l.b16 %v212
        %v472 = vunpack.c.l.b16 %v213
        %v473 = vunpack.c.l.b16 %v214
        %v474 = vunpack.c.l.b16 %v215
        %v475 = vunpack.c.l.b16 %v216
        %v476 = vunpack.c.l.b16 %v217
        %v477 = vunpack.c.l.b16 %v218
        %v478 = vunpack.c.l.b16 %v219
        %v479 = vunpack.c.l.b16 %v220
        %v480 = vunpack.c.l.b16 %v221
        %v481 = vunpack.c.l.b16 %v222
        %v482 = vunpack.c.l.b16 %v223
        %v483 = vunpack.c.l.b16 %v224
        %v484 = vunpack.c.l.b16 %v225
        %v485 = vunpack.c.l.b16 %v226
        %v486 = vunpack.c.l.b16 %v227
        %v487 = vunpack.c.l.b16 %v228
        %v488 = vunpack.c.l.b16 %v229
        %v489 = vunpack.c.l.b16 %v230
        %v490 = vunpack.c.l.b16 %v231
        %v491 = vunpack.c.l.b16 %v232
        %v492 = vunpack.c.l.b16 %v233
        %v493 = vunpack.c.l.b16 %v234
        %v494 = vunpack.c.l.b16 %v235
        %v495 = vunpack.c.l.b16 %v236
        %v496 = vunpack.c.l.b16 %v237
        %v497 = vunpack.c.l.b16 %v238
        %v498 = vunpack.c.l.b16 %v239
        %v499 = vunpack.c.l.b16 %v240
        %v500 = vunpack.c.l.b16 %v241
        %v501 = vunpack.c.l.b16 %v242
        %v502 = vunpack.c.l.b16 %v243
        %v503 = vunpack.c.l.b16 %v244
        %v504 = vunpack.c.l.b16 %v245
        %v505 = vunpack.c.l.b16 %v246
        %v506 = vunpack.c.l.b16 %v247
        %v507 = vunpack.c.l.b16 %v248
        %v508 = vunpack.c.l.b16 %v249
        %v509 = vunpack.c.l.b16 %v250
        %v510 = vunpack.c.l.b16 %v251
        %v511 = vunpack.c.l.b16 %v252
        %v512 = vunpack.c.l.b16 %v253
        %v513 = vunpack.c.l.b16 %v254
        %v514 = vunpack.c.l.b16 %v255
        %v515 = vunpack.c.l.b16 %v256
        %v516 = vunpack.c.l.b16 %v257
        %v517 = vunpack.c.l.b16 %v258
        %v518 = vunpack.c.l.b16 %v259
        %v519 = vunpack.c.l.b16 %v260
        %v520 = vunpack.c.l.b16 %v261
        %v521 = vunpack.c.l.b16 %v262
        %v522 = vunpack.c.l.b16 %v263
        %v523 = vunpack.c.l.b16 %v264
        %v524 = vunpack.c.l.b16 %v265
        %v525 = vunpack.c.l.b16 %v266
        %v526 = vunpack.c.l.b16 %v267
        %v527 = vunpack.c.l.b16 %v268
        %v528 = vunpack.c.l.b16 %v269
        %v529 = vunpack.c.l.b16 %v270
        %v530 = vunpack.c.l.b16 %v271
        %v531 = vunpack.c.l.b16 %v272
        %v532 = vunpack.c.l.b16 %v273
        %v533 = vunpack.c.l.b16 %v274
        %v534 = vunpack.c.l.b16 %v275
        %v535 = vunpack.c.l.b16 %v276
        %v536 = vunpack.c.l.b16 %v277
        %v537 = vunpack.c.l.b16 %v278
        %v538 = vunpack.c.l.b16 %v279
        %v539 = vunpack.c.l.b16 %v280
        %v540 = vunpack.c.l.b16 %v281
        %v541 = vunpack.c.l.b16 %v282
        %v542 = vunpack.c.l.b16 %v283
        %v543 = vunpack.c.l.b16 %v284
        %v544 = vunpack.c.l.b16 %v285
        %v545 = vunpack.c.l.b16 %v286
        %v546 = vunpack.c.l.b16 %v287
        %v547 = vunpack.c.l.b16 %v288
        %v548 = vunpack.c.l.b16 %v289
        %v549 = vunpack.c.l.b16 %v290
        %v550 = vunpack.c.l.b16 %v291
        %v551 = vunpack.c.l.b16 %v292
        %v552 = vunpack.c.l.b16 %v293
        %v553 = vunpack.c.l.b16 %v294
        %v554 = vunpack.c.l.b16 %v295
        %v555 = vunpack.c.l.b16 %v296
        %v556 = vunpack.c.l.b16 %v297
        %v557 = vunpack.c.l.b16 %v298
        %v558 = vunpack.c.l.b16 %v299
        %v559 = vunpack.c.l.b16 %v300
        %v560 = vunpack.c.l.b16 %v301
        %v561 = vunpack.c.l.b16 %v302
        %v562 = vunpack.c.l.b16 %v303
        %v563 = vunpack.c.l.b16 %v304
        %v564 = vunpack.c.l.b16 %v305
        %v565 = vunpack.c.l.b16 %v306
        %v566 = vunpack.c.l.b16 %v307
        %v567 = vunpack.c.l.b16 %v308
        %v568 = vunpack.c.l.b16 %v309
        %v569 = vunpack.c.l.b16 %v310
        %v570 = vunpack.c.l.b16 %v311
        %v571 = vunpack.c.l.b16 %v312
        %v572 = vunpack.c.l.b16 %v313
        %v573 = vunpack.c.l.b16 %v314
        %v574 = vpack.c.b16 %v453, %v452
        %v575 = vpack.c.b16 %v455, %v454
        %v576 = vpack.c.b16 %v457, %v456
        %v577 = vpack.c.b16 %v459, %v458
        %v578 = vpack.c.b16 %v461, %v460
        %v579 = vpack.c.b16 %v463, %v462
        %v580 = vpack.c.b16 %v465, %v464
        %v581 = vpack.c.b16 %v467, %v466
        %v582 = vpack.c.b16 %v469, %v468
        %v583 = vpack.c.b16 %v471, %v470
        %v584 = vpack.c.b16 %v473, %v472
        %v585 = vpack.c.b16 %v475, %v474
        %v586 = vpack.c.b16 %v477, %v476
        %v587 = vpack.c.b16 %v479, %v478
        %v588 = vpack.c.b16 %v481, %v480
        %v589 = vpack.c.b16 %v483, %v482
        %v590 = vpack.c.b16 %v485, %v484
        %v591 = vpack.c.b16 %v487, %v486
        %v592 = vpack.c.b16 %v489, %v488
        %v593 = vpack.c.b16 %v491, %v490
        %v594 = vpack.c.b16 %v493, %v492
        %v595 = vpack.c.b16 %v495, %v494
        %v596 = vpack.c.b16 %v497, %v496
        %v597 = vpack.c.b16 %v499, %v498
        %v598 = vpack.c.b16 %v501, %v500
        %v599 = vpack.c.b16 %v503, %v502
        %v600 = vpack.c.b16 %v505, %v504
        %v601 = vpack.c.b16 %v507, %v506
        %v602 = vpack.c.b16 %v509, %v508
        %v603 = vpack.c.b16 %v511, %v510
        %v604 = vpack.c.b16 %v513, %v512
        %v605 = vpack.c.b16 %v515, %v514
        %v606 = vpack.c.b16 %v517, %v516
        %v607 = vpack.c.b16 %v519, %v518
        %v608 = vpack.c.b16 %v521, %v520
        %v609 = vpack.c.b16 %v523, %v522
        %v610 = vpack.c.b16 %v525, %v524
        %v611 = vpack.c.b16 %v527, %v526
        %v612 = vpack.c.b16 %v529, %v528
        %v613 = vpack.c.b16 %v531, %v530
        %v614 = vpack.c.b16 %v533, %v532
        %v615 = vpack.c.b16 %v535, %v534
        %v616 = vpack.c.b16 %v537, %v536
        %v617 = vpack.c.b16 %v539, %v538
        %v618 = vpack.c.b16 %v541, %v540
        %v619 = vpack.c.b16 %v543, %v542
        %v620 = vpack.c.b16 %v545, %v544
        %v621 = vpack.c.b16 %v547, %v546
        %v622 = vpack.c.b16 %v549, %v548
        %v623 = vpack.c.b16 %v551, %v550
        %v624 = vpack.c.b16 %v553, %v552
        %v625 = vpack.c.b16 %v555, %v554
        %v626 = vpack.c.b16 %v557, %v556
        %v627 = vpack.c.b16 %v559, %v558
        %v628 = vpack.c.b16 %v561, %v560
        %v629 = vpack.c.b16 %v563, %v562
        %v630 = vpack.c.b16 %v565, %v564
        %v631 = vpack.c.b16 %v567, %v566
        %v632 = vpack.c.b16 %v569, %v568
        %v633 = vpack.c.b16 %v571, %v570
        %v634 = vpack.c.b16 %v573, %v572
        %v643 = vunpack.c.l.b16 %v315
        %v644 = vunpack.c.l.b16 %v316
        %v645 = vunpack.c.l.b16 %v317
        %v646 = vunpack.c.l.b16 %v318
        %v647 = vunpack.c.l.b16 %v319
        %v648 = vunpack.c.l.b16 %v320
        %v649 = vunpack.c.l.b16 %v321
        %v650 = vunpack.c.l.b16 %v322
        %v651 = vpack.c.b16 %v644, %v643
        %v652 = vpack.c.b16 %v646, %v645
        %v653 = vpack.c.b16 %v648, %v647
        %v654 = vpack.c.b16 %v650, %v649
        %vm659 = vcmask 523264
        %v661 = vsel %vm659, %v574, 0
        %v664 = vsel %vm659, %v575, 0
        %v667 = vsel %vm659, %v576, 0
        %v670 = vsel %vm659, %v577, 0
        %v673 = vsel %vm659, %v578, 0
        %v676 = vsel %vm659, %v579, 0
        %v679 = vsel %vm659, %v580, 0
        %v682 = vsel %vm659, %v581, 0
        %v685 = vsel %vm659, %v582, 0
        %v688 = vsel %vm659, %v583, 0
        %v691 = vsel %vm659, %v584, 0
        %v694 = vsel %vm659, %v585, 0
        %v697 = vsel %vm659, %v586, 0
        %v700 = vsel %vm659, %v587, 0
        %v703 = vsel %vm659, %v588, 0
        %v706 = vsel %vm659, %v589, 0
        %v709 = vsel %vm659, %v590, 0
        %v712 = vsel %vm659, %v591, 0
        %v715 = vsel %vm659, %v592, 0
        %v718 = vsel %vm659, %v593, 0
        %v721 = vsel %vm659, %v594, 0
        %v724 = vsel %vm659, %v595, 0
        %v727 = vsel %vm659, %v596, 0
        %v730 = vsel %vm659, %v597, 0
        %v733 = vsel %vm659, %v598, 0
        %v736 = vsel %vm659, %v599, 0
        %v739 = vsel %vm659, %v600, 0
        %v742 = vsel %vm659, %v601, 0
        %v745 = vsel %vm659, %v602, 0
        %v748 = vsel %vm659, %v603, 0
        %v751 = vsel %vm659, %v604, 0
        %v754 = vsel %vm659, %v605, 0
        %v757 = vsel %vm659, %v606, 0
        %v760 = vsel %vm659, %v607, 0
        %v763 = vsel %vm659, %v608, 0
        %v766 = vsel %vm659, %v609, 0
        %v769 = vsel %vm659, %v610, 0
        %v772 = vsel %vm659, %v611, 0
        %v775 = vsel %vm659, %v612, 0
        %v778 = vsel %vm659, %v613, 0
        %v781 = vsel %vm659, %v614, 0
        %v784 = vsel %vm659, %v615, 0
        %v787 = vsel %vm659, %v616, 0
        %v790 = vsel %vm659, %v617, 0
        %v793 = vsel %vm659, %v618, 0
        %v796 = vsel %vm659, %v619, 0
        %v799 = vsel %vm659, %v620, 0
        %v802 = vsel %vm659, %v621, 0
        %v805 = vsel %vm659, %v622, 0
        %v808 = vsel %vm659, %v623, 0
        %v811 = vsel %vm659, %v624, 0
        %v814 = vsel %vm659, %v625, 0
        %v817 = vsel %vm659, %v626, 0
        %v820 = vsel %vm659, %v627, 0
        %v823 = vsel %vm659, %v628, 0
        %v826 = vsel %vm659, %v629, 0
        %v829 = vsel %vm659, %v630, 0
        %v832 = vsel %vm659, %v631, 0
        %v835 = vsel %vm659, %v632, 0
        %v838 = vsel %vm659, %v633, 0
        %v841 = vsel %vm659, %v634, 0
        %843 = vmatprep.subr.bf16.mxu0 0
        %844 = vmatpush1.bf16.msra.mxu0 %v651
        %845 = vmatprep.subr.bf16.mxu0 0
        %846 = vmatpush1.bf16.msra.mxu0 %v652
        %847 = vmatprep.subr.bf16.mxu0 0
        %848 = vmatpush1.bf16.msra.mxu0 %v653
        %849 = vmatprep.subr.bf16.mxu0 0
        %850 = vmatpush1.bf16.msra.mxu0 %v654
        %851 = vmatprep.subr.bf16.mxu0 0
        %852 = vmatpush1.bf16.msra.mxu0 0
        %853 = vmatprep.subr.bf16.mxu0 0
        %854 = vmatpush1.bf16.msra.mxu0 0
        %855 = vmatprep.subr.bf16.mxu0 0
        %856 = vmatpush1.bf16.msra.mxu0 0
        %857 = vmatprep.subr.bf16.mxu0 0
        %858 = vmatpush1.bf16.msra.mxu0 0
        %859 = vmatprep.subr.bf16.mxu0 0
        %860 = vmatpush1.bf16.msra.mxu0 0
        %861 = vmatprep.subr.bf16.mxu0 0
        %862 = vmatpush1.bf16.msra.mxu0 0
        %863 = vmatprep.subr.bf16.mxu0 0
        %864 = vmatpush1.bf16.msra.mxu0 0
        %865 = vmatprep.subr.bf16.mxu0 0
        %866 = vmatpush1.bf16.msra.mxu0 0
        %867 = vmatprep.subr.bf16.mxu0 0
        %868 = vmatpush1.bf16.msra.mxu0 0
        %869 = vmatprep.subr.bf16.mxu0 0
        %870 = vmatpush1.bf16.msra.mxu0 0
        %871 = vmatprep.subr.bf16.mxu0 0
        %872 = vmatpush1.bf16.msra.mxu0 0
        %873 = vmatprep.subr.bf16.mxu0 0
        %874 = vmatpush1.bf16.msra.mxu0 0
        %875 = vmatprep.mubr.bf16.mxu0 0
        %876 = vmatmul.mubr.bf16.gmra.mrb[0].mxu0 %v661
        %v877 = vpop.f32.mrb[0].mxu0
        %v878 = vadd.f32 %v328, %v877
        %v879 = vpop.f32.mrb[0].mxu0
        %v880 = vpop.f32.mrb[0].mxu0
        %v881 = vadd.f32 %v328, %v880
        %v882 = vpop.f32.mrb[0].mxu0
        %883 = vmatprep.mubr.bf16.mxu0 0
        %884 = vmatmul.mubr.bf16.gmra.mrb[0].mxu0 %v664
        %v885 = vpop.f32.mrb[0].mxu0
        %v886 = vadd.f32 %v328, %v885
        %v887 = vpop.f32.mrb[0].mxu0
        %v888 = vpop.f32.mrb[0].mxu0
        %v889 = vadd.f32 %v328, %v888
        %v890 = vpop.f32.mrb[0].mxu0
        %891 = vmatprep.mubr.bf16.mxu0 0
        %892 = vmatmul.mubr.bf16.gmra.mrb[0].mxu0 %v667
        %v893 = vpop.f32.mrb[0].mxu0
        %v894 = vadd.f32 %v328, %v893
        %v895 = vpop.f32.mrb[0].mxu0
        %v896 = vpop.f32.mrb[0].mxu0
        %v897 = vadd.f32 %v328, %v896
        %v898 = vpop.f32.mrb[0].mxu0
        %899 = vmatprep.mubr.bf16.mxu0 0
        %900 = vmatmul.mubr.bf16.gmra.mrb[0].mxu0 %v670
        %v901 = vpop.f32.mrb[0].mxu0
        %v902 = vadd.f32 %v328, %v901
        %v903 = vpop.f32.mrb[0].mxu0
        %v904 = vpop.f32.mrb[0].mxu0
        %v905 = vadd.f32 %v328, %v904
        %v906 = vpop.f32.mrb[0].mxu0
        %907 = vmatprep.mubr.bf16.mxu0 0
        %908 = vmatmul.mubr.bf16.gmra.mrb[0].mxu0 %v673
        %v909 = vpop.f32.mrb[0].mxu0
        %v910 = vadd.f32 %v328, %v909
        %v911 = vpop.f32.mrb[0].mxu0
        %v912 = vpop.f32.mrb[0].mxu0
        %v913 = vadd.f32 %v328, %v912
        %v914 = vpop.f32.mrb[0].mxu0
        %915 = vmatprep.mubr.bf16.mxu0 0
        %916 = vmatmul.mubr.bf16.gmra.mrb[0].mxu0 %v676
        %v917 = vpop.f32.mrb[0].mxu0
        %v918 = vadd.f32 %v328, %v917
        %v919 = vpop.f32.mrb[0].mxu0
        %v920 = vpop.f32.mrb[0].mxu0
        %v921 = vadd.f32 %v328, %v920
        %v922 = vpop.f32.mrb[0].mxu0
        %923 = vmatprep.mubr.bf16.mxu0 0
        %924 = vmatmul.mubr.bf16.gmra.mrb[0].mxu0 %v679
        %v925 = vpop.f32.mrb[0].mxu0
        %v926 = vadd.f32 %v328, %v925
        %v927 = vpop.f32.mrb[0].mxu0
        %v928 = vpop.f32.mrb[0].mxu0
        %v929 = vadd.f32 %v328, %v928
        %v930 = vpop.f32.mrb[0].mxu0
        %931 = vmatprep.mubr.bf16.mxu0 0
        %932 = vmatmul.mubr.bf16.gmra.mrb[0].mxu0 %v682
        %v933 = vpop.f32.mrb[0].mxu0
        %v934 = vadd.f32 %v328, %v933
        %v935 = vpop.f32.mrb[0].mxu0
        %v936 = vpop.f32.mrb[0].mxu0
        %v937 = vadd.f32 %v328, %v936
        %v938 = vpop.f32.mrb[0].mxu0
        %939 = vmatprep.mubr.bf16.mxu0 0
        %940 = vmatmul.mubr.bf16.gmra.mrb[0].mxu0 %v685
        %v941 = vpop.f32.mrb[0].mxu0
        %v942 = vadd.f32 %v328, %v941
        %v943 = vpop.f32.mrb[0].mxu0
        %v944 = vpop.f32.mrb[0].mxu0
        %v945 = vadd.f32 %v328, %v944
        %v946 = vpop.f32.mrb[0].mxu0
        %947 = vmatprep.mubr.bf16.mxu0 0
        %948 = vmatmul.mubr.bf16.gmra.mrb[0].mxu0 %v688
        %v949 = vpop.f32.mrb[0].mxu0
        %v950 = vadd.f32 %v328, %v949
        %v951 = vpop.f32.mrb[0].mxu0
        %v952 = vpop.f32.mrb[0].mxu0
        %v953 = vadd.f32 %v328, %v952
        %v954 = vpop.f32.mrb[0].mxu0
        %955 = vmatprep.mubr.bf16.mxu0 0
        %956 = vmatmul.mubr.bf16.gmra.mrb[0].mxu0 %v691
        %v957 = vpop.f32.mrb[0].mxu0
        %v958 = vadd.f32 %v328, %v957
        %v959 = vpop.f32.mrb[0].mxu0
        %v960 = vpop.f32.mrb[0].mxu0
        %v961 = vadd.f32 %v328, %v960
        %v962 = vpop.f32.mrb[0].mxu0
        %963 = vmatprep.mubr.bf16.mxu0 0
        %964 = vmatmul.mubr.bf16.gmra.mrb[0].mxu0 %v694
        %v965 = vpop.f32.mrb[0].mxu0
        %v966 = vadd.f32 %v328, %v965
        %v967 = vpop.f32.mrb[0].mxu0
        %v968 = vpop.f32.mrb[0].mxu0
        %v969 = vadd.f32 %v328, %v968
        %v970 = vpop.f32.mrb[0].mxu0
        %971 = vmatprep.mubr.bf16.mxu0 0
        %972 = vmatmul.mubr.bf16.gmra.mrb[0].mxu0 %v697
        %v973 = vpop.f32.mrb[0].mxu0
        %v974 = vadd.f32 %v328, %v973
        %v975 = vpop.f32.mrb[0].mxu0
        %v976 = vpop.f32.mrb[0].mxu0
        %v977 = vadd.f32 %v328, %v976
        %v978 = vpop.f32.mrb[0].mxu0
        %979 = vmatprep.mubr.bf16.mxu0 0
        %980 = vmatmul.mubr.bf16.gmra.mrb[0].mxu0 %v700
        %v981 = vpop.f32.mrb[0].mxu0
        %v982 = vadd.f32 %v328, %v981
        %v983 = vpop.f32.mrb[0].mxu0
        %v984 = vpop.f32.mrb[0].mxu0
        %v985 = vadd.f32 %v328, %v984
        %v986 = vpop.f32.mrb[0].mxu0
        %987 = vmatprep.mubr.bf16.mxu0 0
        %988 = vmatmul.mubr.bf16.gmra.mrb[0].mxu0 %v703
        %v989 = vpop.f32.mrb[0].mxu0
        %v990 = vadd.f32 %v328, %v989
        %v991 = vpop.f32.mrb[0].mxu0
        %v992 = vpop.f32.mrb[0].mxu0
        %v993 = vadd.f32 %v328, %v992
        %v994 = vpop.f32.mrb[0].mxu0
        %995 = vmatprep.mubr.bf16.mxu0 0
        %996 = vmatmul.mubr.bf16.gmra.mrb[0].mxu0 %v706
        %v997 = vpop.f32.mrb[0].mxu0
        %v998 = vadd.f32 %v328, %v997
        %v999 = vpop.f32.mrb[0].mxu0
        %v1000 = vpop.f32.mrb[0].mxu0
        %v1001 = vadd.f32 %v328, %v1000
        %v1002 = vpop.f32.mrb[0].mxu0
        %1003 = vmatprep.mubr.bf16.mxu0 0
        %1004 = vmatmul.mubr.bf16.gmra.mrb[0].mxu0 %v709
        %v1005 = vpop.f32.mrb[0].mxu0
        %v1006 = vadd.f32 %v328, %v1005
        %v1007 = vpop.f32.mrb[0].mxu0
        %v1008 = vpop.f32.mrb[0].mxu0
        %v1009 = vadd.f32 %v328, %v1008
        %v1010 = vpop.f32.mrb[0].mxu0
        %1011 = vmatprep.mubr.bf16.mxu0 0
        %1012 = vmatmul.mubr.bf16.gmra.mrb[0].mxu0 %v712
        %v1013 = vpop.f32.mrb[0].mxu0
        %v1014 = vadd.f32 %v328, %v1013
        %v1015 = vpop.f32.mrb[0].mxu0
        %v1016 = vpop.f32.mrb[0].mxu0
        %v1017 = vadd.f32 %v328, %v1016
        %v1018 = vpop.f32.mrb[0].mxu0
        %1019 = vmatprep.mubr.bf16.mxu0 0
        %1020 = vmatmul.mubr.bf16.gmra.mrb[0].mxu0 %v715
        %v1021 = vpop.f32.mrb[0].mxu0
        %v1022 = vadd.f32 %v328, %v1021
        %v1023 = vpop.f32.mrb[0].mxu0
        %v1024 = vpop.f32.mrb[0].mxu0
        %v1025 = vadd.f32 %v328, %v1024
        %v1026 = vpop.f32.mrb[0].mxu0
        %1027 = vmatprep.mubr.bf16.mxu0 0
        %1028 = vmatmul.mubr.bf16.gmra.mrb[0].mxu0 %v718
        %v1029 = vpop.f32.mrb[0].mxu0
        %v1030 = vadd.f32 %v328, %v1029
        %v1031 = vpop.f32.mrb[0].mxu0
        %v1032 = vpop.f32.mrb[0].mxu0
        %v1033 = vadd.f32 %v328, %v1032
        %v1034 = vpop.f32.mrb[0].mxu0
        %1035 = vmatprep.mubr.bf16.mxu0 0
        %1036 = vmatmul.mubr.bf16.gmra.mrb[0].mxu0 %v721
        %v1037 = vpop.f32.mrb[0].mxu0
        %v1038 = vadd.f32 %v328, %v1037
        %v1039 = vpop.f32.mrb[0].mxu0
        %v1040 = vpop.f32.mrb[0].mxu0
        %v1041 = vadd.f32 %v328, %v1040
        %v1042 = vpop.f32.mrb[0].mxu0
        %1043 = vmatprep.mubr.bf16.mxu0 0
        %1044 = vmatmul.mubr.bf16.gmra.mrb[0].mxu0 %v724
        %v1045 = vpop.f32.mrb[0].mxu0
        %v1046 = vadd.f32 %v328, %v1045
        %v1047 = vpop.f32.mrb[0].mxu0
        %v1048 = vpop.f32.mrb[0].mxu0
        %v1049 = vadd.f32 %v328, %v1048
        %v1050 = vpop.f32.mrb[0].mxu0
        %1051 = vmatprep.mubr.bf16.mxu0 0
        %1052 = vmatmul.mubr.bf16.gmra.mrb[0].mxu0 %v727
        %v1053 = vpop.f32.mrb[0].mxu0
        %v1054 = vadd.f32 %v328, %v1053
        %v1055 = vpop.f32.mrb[0].mxu0
        %v1056 = vpop.f32.mrb[0].mxu0
        %v1057 = vadd.f32 %v328, %v1056
        %v1058 = vpop.f32.mrb[0].mxu0
        %1059 = vmatprep.mubr.bf16.mxu0 0
        %1060 = vmatmul.mubr.bf16.gmra.mrb[0].mxu0 %v730
        %v1061 = vpop.f32.mrb[0].mxu0
        %v1062 = vadd.f32 %v328, %v1061
        %v1063 = vpop.f32.mrb[0].mxu0
        %v1064 = vpop.f32.mrb[0].mxu0
        %v1065 = vadd.f32 %v328, %v1064
        %v1066 = vpop.f32.mrb[0].mxu0
        %1067 = vmatprep.mubr.bf16.mxu0 0
        %1068 = vmatmul.mubr.bf16.gmra.mrb[0].mxu0 %v733
        %v1069 = vpop.f32.mrb[0].mxu0
        %v1070 = vadd.f32 %v328, %v1069
        %v1071 = vpop.f32.mrb[0].mxu0
        %v1072 = vpop.f32.mrb[0].mxu0
        %v1073 = vadd.f32 %v328, %v1072
        %v1074 = vpop.f32.mrb[0].mxu0
        %1075 = vmatprep.mubr.bf16.mxu0 0
        %1076 = vmatmul.mubr.bf16.gmra.mrb[0].mxu0 %v736
        %v1077 = vpop.f32.mrb[0].mxu0
        %v1078 = vadd.f32 %v328, %v1077
        %v1079 = vpop.f32.mrb[0].mxu0
        %v1080 = vpop.f32.mrb[0].mxu0
        %v1081 = vadd.f32 %v328, %v1080
        %v1082 = vpop.f32.mrb[0].mxu0
        %1083 = vmatprep.mubr.bf16.mxu0 0
        %1084 = vmatmul.mubr.bf16.gmra.mrb[0].mxu0 %v739
        %v1085 = vpop.f32.mrb[0].mxu0
        %v1086 = vadd.f32 %v328, %v1085
        %v1087 = vpop.f32.mrb[0].mxu0
        %v1088 = vpop.f32.mrb[0].mxu0
        %v1089 = vadd.f32 %v328, %v1088
        %v1090 = vpop.f32.mrb[0].mxu0
        %1091 = vmatprep.mubr.bf16.mxu0 0
        %1092 = vmatmul.mubr.bf16.gmra.mrb[0].mxu0 %v742
        %v1093 = vpop.f32.mrb[0].mxu0
        %v1094 = vadd.f32 %v328, %v1093
        %v1095 = vpop.f32.mrb[0].mxu0
        %v1096 = vpop.f32.mrb[0].mxu0
        %v1097 = vadd.f32 %v328, %v1096
        %v1098 = vpop.f32.mrb[0].mxu0
        %1099 = vmatprep.mubr.bf16.mxu0 0
        %1100 = vmatmul.mubr.bf16.gmra.mrb[0].mxu0 %v745
        %v1101 = vpop.f32.mrb[0].mxu0
        %v1102 = vadd.f32 %v328, %v1101
        %v1103 = vpop.f32.mrb[0].mxu0
        %v1104 = vpop.f32.mrb[0].mxu0
        %v1105 = vadd.f32 %v328, %v1104
        %v1106 = vpop.f32.mrb[0].mxu0
        %1107 = vmatprep.mubr.bf16.mxu0 0
        %1108 = vmatmul.mubr.bf16.gmra.mrb[0].mxu0 %v748
        %v1109 = vpop.f32.mrb[0].mxu0
        %v1110 = vadd.f32 %v328, %v1109
        %v1111 = vpop.f32.mrb[0].mxu0
        %v1112 = vpop.f32.mrb[0].mxu0
        %v1113 = vadd.f32 %v328, %v1112
        %v1114 = vpop.f32.mrb[0].mxu0
        %1115 = vmatprep.mubr.bf16.mxu0 0
        %1116 = vmatmul.mubr.bf16.gmra.mrb[0].mxu0 %v751
        %v1117 = vpop.f32.mrb[0].mxu0
        %v1118 = vadd.f32 %v328, %v1117
        %v1119 = vpop.f32.mrb[0].mxu0
        %v1120 = vpop.f32.mrb[0].mxu0
        %v1121 = vadd.f32 %v328, %v1120
        %v1122 = vpop.f32.mrb[0].mxu0
        %1123 = vmatprep.mubr.bf16.mxu0 0
        %1124 = vmatmul.mubr.bf16.gmra.mrb[0].mxu0 %v754
        %v1125 = vpop.f32.mrb[0].mxu0
        %v1126 = vadd.f32 %v328, %v1125
        %v1127 = vpop.f32.mrb[0].mxu0
        %v1128 = vpop.f32.mrb[0].mxu0
        %v1129 = vadd.f32 %v328, %v1128
        %v1130 = vpop.f32.mrb[0].mxu0
        %1131 = vmatprep.mubr.bf16.mxu0 0
        %1132 = vmatmul.mubr.bf16.gmra.mrb[0].mxu0 %v757
        %v1133 = vpop.f32.mrb[0].mxu0
        %v1134 = vadd.f32 %v328, %v1133
        %v1135 = vpop.f32.mrb[0].mxu0
        %v1136 = vpop.f32.mrb[0].mxu0
        %v1137 = vadd.f32 %v328, %v1136
        %v1138 = vpop.f32.mrb[0].mxu0
        %1139 = vmatprep.mubr.bf16.mxu0 0
        %1140 = vmatmul.mubr.bf16.gmra.mrb[0].mxu0 %v760
        %v1141 = vpop.f32.mrb[0].mxu0
        %v1142 = vadd.f32 %v328, %v1141
        %v1143 = vpop.f32.mrb[0].mxu0
        %v1144 = vpop.f32.mrb[0].mxu0
        %v1145 = vadd.f32 %v328, %v1144
        %v1146 = vpop.f32.mrb[0].mxu0
        %1147 = vmatprep.mubr.bf16.mxu0 0
        %1148 = vmatmul.mubr.bf16.gmra.mrb[0].mxu0 %v763
        %v1149 = vpop.f32.mrb[0].mxu0
        %v1150 = vadd.f32 %v328, %v1149
        %v1151 = vpop.f32.mrb[0].mxu0
        %v1152 = vpop.f32.mrb[0].mxu0
        %v1153 = vadd.f32 %v328, %v1152
        %v1154 = vpop.f32.mrb[0].mxu0
        %1155 = vmatprep.mubr.bf16.mxu0 0
        %1156 = vmatmul.mubr.bf16.gmra.mrb[0].mxu0 %v766
        %v1157 = vpop.f32.mrb[0].mxu0
        %v1158 = vadd.f32 %v328, %v1157
        %v1159 = vpop.f32.mrb[0].mxu0
        %v1160 = vpop.f32.mrb[0].mxu0
        %v1161 = vadd.f32 %v328, %v1160
        %v1162 = vpop.f32.mrb[0].mxu0
        %1163 = vmatprep.mubr.bf16.mxu0 0
        %1164 = vmatmul.mubr.bf16.gmra.mrb[0].mxu0 %v769
        %v1165 = vpop.f32.mrb[0].mxu0
        %v1166 = vadd.f32 %v328, %v1165
        %v1167 = vpop.f32.mrb[0].mxu0
        %v1168 = vpop.f32.mrb[0].mxu0
        %v1169 = vadd.f32 %v328, %v1168
        %v1170 = vpop.f32.mrb[0].mxu0
        %1171 = vmatprep.mubr.bf16.mxu0 0
        %1172 = vmatmul.mubr.bf16.gmra.mrb[0].mxu0 %v772
        %v1173 = vpop.f32.mrb[0].mxu0
        %v1174 = vadd.f32 %v328, %v1173
        %v1175 = vpop.f32.mrb[0].mxu0
        %v1176 = vpop.f32.mrb[0].mxu0
        %v1177 = vadd.f32 %v328, %v1176
        %v1178 = vpop.f32.mrb[0].mxu0
        %1179 = vmatprep.mubr.bf16.mxu0 0
        %1180 = vmatmul.mubr.bf16.gmra.mrb[0].mxu0 %v775
        %v1181 = vpop.f32.mrb[0].mxu0
        %v1182 = vadd.f32 %v328, %v1181
        %v1183 = vpop.f32.mrb[0].mxu0
        %v1184 = vpop.f32.mrb[0].mxu0
        %v1185 = vadd.f32 %v328, %v1184
        %v1186 = vpop.f32.mrb[0].mxu0
        %1187 = vmatprep.mubr.bf16.mxu0 0
        %1188 = vmatmul.mubr.bf16.gmra.mrb[0].mxu0 %v778
        %v1189 = vpop.f32.mrb[0].mxu0
        %v1190 = vadd.f32 %v328, %v1189
        %v1191 = vpop.f32.mrb[0].mxu0
        %v1192 = vpop.f32.mrb[0].mxu0
        %v1193 = vadd.f32 %v328, %v1192
        %v1194 = vpop.f32.mrb[0].mxu0
        %1195 = vmatprep.mubr.bf16.mxu0 0
        %1196 = vmatmul.mubr.bf16.gmra.mrb[0].mxu0 %v781
        %v1197 = vpop.f32.mrb[0].mxu0
        %v1198 = vadd.f32 %v328, %v1197
        %v1199 = vpop.f32.mrb[0].mxu0
        %v1200 = vpop.f32.mrb[0].mxu0
        %v1201 = vadd.f32 %v328, %v1200
        %v1202 = vpop.f32.mrb[0].mxu0
        %1203 = vmatprep.mubr.bf16.mxu0 0
        %1204 = vmatmul.mubr.bf16.gmra.mrb[0].mxu0 %v784
        %v1205 = vpop.f32.mrb[0].mxu0
        %v1206 = vadd.f32 %v328, %v1205
        %v1207 = vpop.f32.mrb[0].mxu0
        %v1208 = vpop.f32.mrb[0].mxu0
        %v1209 = vadd.f32 %v328, %v1208
        %v1210 = vpop.f32.mrb[0].mxu0
        %1211 = vmatprep.mubr.bf16.mxu0 0
        %1212 = vmatmul.mubr.bf16.gmra.mrb[0].mxu0 %v787
        %v1213 = vpop.f32.mrb[0].mxu0
        %v1214 = vadd.f32 %v328, %v1213
        %v1215 = vpop.f32.mrb[0].mxu0
        %v1216 = vpop.f32.mrb[0].mxu0
        %v1217 = vadd.f32 %v328, %v1216
        %v1218 = vpop.f32.mrb[0].mxu0
        %1219 = vmatprep.mubr.bf16.mxu0 0
        %1220 = vmatmul.mubr.bf16.gmra.mrb[0].mxu0 %v790
        %v1221 = vpop.f32.mrb[0].mxu0
        %v1222 = vadd.f32 %v328, %v1221
        %v1223 = vpop.f32.mrb[0].mxu0
        %v1224 = vpop.f32.mrb[0].mxu0
        %v1225 = vadd.f32 %v328, %v1224
        %v1226 = vpop.f32.mrb[0].mxu0
        %1227 = vmatprep.mubr.bf16.mxu0 0
        %1228 = vmatmul.mubr.bf16.gmra.mrb[0].mxu0 %v793
        %v1229 = vpop.f32.mrb[0].mxu0
        %v1230 = vadd.f32 %v328, %v1229
        %v1231 = vpop.f32.mrb[0].mxu0
        %v1232 = vpop.f32.mrb[0].mxu0
        %v1233 = vadd.f32 %v328, %v1232
        %v1234 = vpop.f32.mrb[0].mxu0
        %1235 = vmatprep.mubr.bf16.mxu0 0
        %1236 = vmatmul.mubr.bf16.gmra.mrb[0].mxu0 %v796
        %v1237 = vpop.f32.mrb[0].mxu0
        %v1238 = vadd.f32 %v328, %v1237
        %v1239 = vpop.f32.mrb[0].mxu0
        %v1240 = vpop.f32.mrb[0].mxu0
        %v1241 = vadd.f32 %v328, %v1240
        %v1242 = vpop.f32.mrb[0].mxu0
        %1243 = vmatprep.mubr.bf16.mxu0 0
        %1244 = vmatmul.mubr.bf16.gmra.mrb[0].mxu0 %v799
        %v1245 = vpop.f32.mrb[0].mxu0
        %v1246 = vadd.f32 %v328, %v1245
        %v1247 = vpop.f32.mrb[0].mxu0
        %v1248 = vpop.f32.mrb[0].mxu0
        %v1249 = vadd.f32 %v328, %v1248
        %v1250 = vpop.f32.mrb[0].mxu0
        %1251 = vmatprep.mubr.bf16.mxu0 0
        %1252 = vmatmul.mubr.bf16.gmra.mrb[0].mxu0 %v802
        %v1253 = vpop.f32.mrb[0].mxu0
        %v1254 = vadd.f32 %v328, %v1253
        %v1255 = vpop.f32.mrb[0].mxu0
        %v1256 = vpop.f32.mrb[0].mxu0
        %v1257 = vadd.f32 %v328, %v1256
        %v1258 = vpop.f32.mrb[0].mxu0
        %1259 = vmatprep.mubr.bf16.mxu0 0
        %1260 = vmatmul.mubr.bf16.gmra.mrb[0].mxu0 %v805
        %v1261 = vpop.f32.mrb[0].mxu0
        %v1262 = vadd.f32 %v328, %v1261
        %v1263 = vpop.f32.mrb[0].mxu0
        %v1264 = vpop.f32.mrb[0].mxu0
        %v1265 = vadd.f32 %v328, %v1264
        %v1266 = vpop.f32.mrb[0].mxu0
        %1267 = vmatprep.mubr.bf16.mxu0 0
        %1268 = vmatmul.mubr.bf16.gmra.mrb[0].mxu0 %v808
        %v1269 = vpop.f32.mrb[0].mxu0
        %v1270 = vadd.f32 %v328, %v1269
        %v1271 = vpop.f32.mrb[0].mxu0
        %v1272 = vpop.f32.mrb[0].mxu0
        %v1273 = vadd.f32 %v328, %v1272
        %v1274 = vpop.f32.mrb[0].mxu0
        %1275 = vmatprep.mubr.bf16.mxu0 0
        %1276 = vmatmul.mubr.bf16.gmra.mrb[0].mxu0 %v811
        %v1277 = vpop.f32.mrb[0].mxu0
        %v1278 = vadd.f32 %v328, %v1277
        %v1279 = vpop.f32.mrb[0].mxu0
        %v1280 = vpop.f32.mrb[0].mxu0
        %v1281 = vadd.f32 %v328, %v1280
        %v1282 = vpop.f32.mrb[0].mxu0
        %1283 = vmatprep.mubr.bf16.mxu0 0
        %1284 = vmatmul.mubr.bf16.gmra.mrb[0].mxu0 %v814
        %v1285 = vpop.f32.mrb[0].mxu0
        %v1286 = vadd.f32 %v328, %v1285
        %v1287 = vpop.f32.mrb[0].mxu0
        %v1288 = vpop.f32.mrb[0].mxu0
        %v1289 = vadd.f32 %v328, %v1288
        %v1290 = vpop.f32.mrb[0].mxu0
        %1291 = vmatprep.mubr.bf16.mxu0 0
        %1292 = vmatmul.mubr.bf16.gmra.mrb[0].mxu0 %v817
        %v1293 = vpop.f32.mrb[0].mxu0
        %v1294 = vadd.f32 %v328, %v1293
        %v1295 = vpop.f32.mrb[0].mxu0
        %v1296 = vpop.f32.mrb[0].mxu0
        %v1297 = vadd.f32 %v328, %v1296
        %v1298 = vpop.f32.mrb[0].mxu0
        %1299 = vmatprep.mubr.bf16.mxu0 0
        %1300 = vmatmul.mubr.bf16.gmra.mrb[0].mxu0 %v820
        %v1301 = vpop.f32.mrb[0].mxu0
        %v1302 = vadd.f32 %v328, %v1301
        %v1303 = vpop.f32.mrb[0].mxu0
        %v1304 = vpop.f32.mrb[0].mxu0
        %v1305 = vadd.f32 %v328, %v1304
        %v1306 = vpop.f32.mrb[0].mxu0
        %1307 = vmatprep.mubr.bf16.mxu0 0
        %1308 = vmatmul.mubr.bf16.gmra.mrb[0].mxu0 %v823
        %v1309 = vpop.f32.mrb[0].mxu0
        %v1310 = vadd.f32 %v328, %v1309
        %v1311 = vpop.f32.mrb[0].mxu0
        %v1312 = vpop.f32.mrb[0].mxu0
        %v1313 = vadd.f32 %v328, %v1312
        %v1314 = vpop.f32.mrb[0].mxu0
        %1315 = vmatprep.mubr.bf16.mxu0 0
        %1316 = vmatmul.mubr.bf16.gmra.mrb[0].mxu0 %v826
        %v1317 = vpop.f32.mrb[0].mxu0
        %v1318 = vadd.f32 %v328, %v1317
        %v1319 = vpop.f32.mrb[0].mxu0
        %v1320 = vpop.f32.mrb[0].mxu0
        %v1321 = vadd.f32 %v328, %v1320
        %v1322 = vpop.f32.mrb[0].mxu0
        %1323 = vmatprep.mubr.bf16.mxu0 0
        %1324 = vmatmul.mubr.bf16.gmra.mrb[0].mxu0 %v829
        %v1325 = vpop.f32.mrb[0].mxu0
        %v1326 = vadd.f32 %v328, %v1325
        %v1327 = vpop.f32.mrb[0].mxu0
        %v1328 = vpop.f32.mrb[0].mxu0
        %v1329 = vadd.f32 %v328, %v1328
        %v1330 = vpop.f32.mrb[0].mxu0
        %1331 = vmatprep.mubr.bf16.mxu0 0
        %1332 = vmatmul.mubr.bf16.gmra.mrb[0].mxu0 %v832
        %v1333 = vpop.f32.mrb[0].mxu0
        %v1334 = vadd.f32 %v328, %v1333
        %v1335 = vpop.f32.mrb[0].mxu0
        %v1336 = vpop.f32.mrb[0].mxu0
        %v1337 = vadd.f32 %v328, %v1336
        %v1338 = vpop.f32.mrb[0].mxu0
        %1339 = vmatprep.mubr.bf16.mxu0 0
        %1340 = vmatmul.mubr.bf16.gmra.mrb[0].mxu0 %v835
        %v1341 = vpop.f32.mrb[0].mxu0
        %v1342 = vadd.f32 %v328, %v1341
        %v1343 = vpop.f32.mrb[0].mxu0
        %v1344 = vpop.f32.mrb[0].mxu0
        %v1345 = vadd.f32 %v328, %v1344
        %v1346 = vpop.f32.mrb[0].mxu0
        %1347 = vmatprep.mubr.bf16.mxu0 0
        %1348 = vmatmul.mubr.bf16.gmra.mrb[0].mxu0 %v838
        %v1349 = vpop.f32.mrb[0].mxu0
        %v1350 = vadd.f32 %v328, %v1349
        %v1351 = vpop.f32.mrb[0].mxu0
        %v1352 = vpop.f32.mrb[0].mxu0
        %v1353 = vadd.f32 %v328, %v1352
        %v1354 = vpop.f32.mrb[0].mxu0
        %1355 = vmatprep.mubr.bf16.mxu0 0
        %1356 = vmatmul.mubr.bf16.gmra.mrb[0].mxu0 %v841
        %v1357 = vpop.f32.mrb[0].mxu0
        %v1358 = vadd.f32 %v328, %v1357
        %v1359 = vpop.f32.mrb[0].mxu0
        %v1360 = vpop.f32.mrb[0].mxu0
        %v1361 = vadd.f32 %v328, %v1360
        %v1362 = vpop.f32.mrb[0].mxu0
        %1363 = vdwg.mxu0
        %v1364 = vmax.f32 %v878, 0.0
        %v1365 = vmax.f32 %v881, 0.0
        %v1366 = vmax.f32 %v886, 0.0
        %v1367 = vmax.f32 %v889, 0.0
        %v1368 = vmax.f32 %v894, 0.0
        %v1369 = vmax.f32 %v897, 0.0
        %v1370 = vmax.f32 %v902, 0.0
        %v1371 = vmax.f32 %v905, 0.0
        %v1372 = vmax.f32 %v910, 0.0
        %v1373 = vmax.f32 %v913, 0.0
        %v1374 = vmax.f32 %v918, 0.0
        %v1375 = vmax.f32 %v921, 0.0
        %v1376 = vmax.f32 %v926, 0.0
        %v1377 = vmax.f32 %v929, 0.0
        %v1378 = vmax.f32 %v934, 0.0
        %v1379 = vmax.f32 %v937, 0.0
        %v1380 = vmax.f32 %v942, 0.0
        %v1381 = vmax.f32 %v945, 0.0
        %v1382 = vmax.f32 %v950, 0.0
        %v1383 = vmax.f32 %v953, 0.0
        %v1384 = vmax.f32 %v958, 0.0
        %v1385 = vmax.f32 %v961, 0.0
        %v1386 = vmax.f32 %v966, 0.0
        %v1387 = vmax.f32 %v969, 0.0
        %v1388 = vmax.f32 %v974, 0.0
        %v1389 = vmax.f32 %v977, 0.0
        %v1390 = vmax.f32 %v982, 0.0
        %v1391 = vmax.f32 %v985, 0.0
        %v1392 = vmax.f32 %v990, 0.0
        %v1393 = vmax.f32 %v993, 0.0
        %v1394 = vmax.f32 %v998, 0.0
        %v1395 = vmax.f32 %v1001, 0.0
        %v1396 = vmax.f32 %v1006, 0.0
        %v1397 = vmax.f32 %v1009, 0.0
        %v1398 = vmax.f32 %v1014, 0.0
        %v1399 = vmax.f32 %v1017, 0.0
        %v1400 = vmax.f32 %v1022, 0.0
        %v1401 = vmax.f32 %v1025, 0.0
        %v1402 = vmax.f32 %v1030, 0.0
        %v1403 = vmax.f32 %v1033, 0.0
        %v1404 = vmax.f32 %v1038, 0.0
        %v1405 = vmax.f32 %v1041, 0.0
        %v1406 = vmax.f32 %v1046, 0.0
        %v1407 = vmax.f32 %v1049, 0.0
        %v1408 = vmax.f32 %v1054, 0.0
        %v1409 = vmax.f32 %v1057, 0.0
        %v1410 = vmax.f32 %v1062, 0.0
        %v1411 = vmax.f32 %v1065, 0.0
        %v1412 = vmax.f32 %v1070, 0.0
        %v1413 = vmax.f32 %v1073, 0.0
        %v1414 = vmax.f32 %v1078, 0.0
        %v1415 = vmax.f32 %v1081, 0.0
        %v1416 = vmax.f32 %v1086, 0.0
        %v1417 = vmax.f32 %v1089, 0.0
        %v1418 = vmax.f32 %v1094, 0.0
        %v1419 = vmax.f32 %v1097, 0.0
        %v1420 = vmax.f32 %v1102, 0.0
        %v1421 = vmax.f32 %v1105, 0.0
        %v1422 = vmax.f32 %v1110, 0.0
        %v1423 = vmax.f32 %v1113, 0.0
        %v1424 = vmax.f32 %v1118, 0.0
        %v1425 = vmax.f32 %v1121, 0.0
        %v1426 = vmax.f32 %v1126, 0.0
        %v1427 = vmax.f32 %v1129, 0.0
        %v1428 = vmax.f32 %v1134, 0.0
        %v1429 = vmax.f32 %v1137, 0.0
        %v1430 = vmax.f32 %v1142, 0.0
        %v1431 = vmax.f32 %v1145, 0.0
        %v1432 = vmax.f32 %v1150, 0.0
        %v1433 = vmax.f32 %v1153, 0.0
        %v1434 = vmax.f32 %v1158, 0.0
        %v1435 = vmax.f32 %v1161, 0.0
        %v1436 = vmax.f32 %v1166, 0.0
        %v1437 = vmax.f32 %v1169, 0.0
        %v1438 = vmax.f32 %v1174, 0.0
        %v1439 = vmax.f32 %v1177, 0.0
        %v1440 = vmax.f32 %v1182, 0.0
        %v1441 = vmax.f32 %v1185, 0.0
        %v1442 = vmax.f32 %v1190, 0.0
        %v1443 = vmax.f32 %v1193, 0.0
        %v1444 = vmax.f32 %v1198, 0.0
        %v1445 = vmax.f32 %v1201, 0.0
        %v1446 = vmax.f32 %v1206, 0.0
        %v1447 = vmax.f32 %v1209, 0.0
        %v1448 = vmax.f32 %v1214, 0.0
        %v1449 = vmax.f32 %v1217, 0.0
        %v1450 = vmax.f32 %v1222, 0.0
        %v1451 = vmax.f32 %v1225, 0.0
        %v1452 = vmax.f32 %v1230, 0.0
        %v1453 = vmax.f32 %v1233, 0.0
        %v1454 = vmax.f32 %v1238, 0.0
        %v1455 = vmax.f32 %v1241, 0.0
        %v1456 = vmax.f32 %v1246, 0.0
        %v1457 = vmax.f32 %v1249, 0.0
        %v1458 = vmax.f32 %v1254, 0.0
        %v1459 = vmax.f32 %v1257, 0.0
        %v1460 = vmax.f32 %v1262, 0.0
        %v1461 = vmax.f32 %v1265, 0.0
        %v1462 = vmax.f32 %v1270, 0.0
        %v1463 = vmax.f32 %v1273, 0.0
        %v1464 = vmax.f32 %v1278, 0.0
        %v1465 = vmax.f32 %v1281, 0.0
        %v1466 = vmax.f32 %v1286, 0.0
        %v1467 = vmax.f32 %v1289, 0.0
        %v1468 = vmax.f32 %v1294, 0.0
        %v1469 = vmax.f32 %v1297, 0.0
        %v1470 = vmax.f32 %v1302, 0.0
        %v1471 = vmax.f32 %v1305, 0.0
        %v1472 = vmax.f32 %v1310, 0.0
        %v1473 = vmax.f32 %v1313, 0.0
        %v1474 = vmax.f32 %v1318, 0.0
        %v1475 = vmax.f32 %v1321, 0.0
        %v1476 = vmax.f32 %v1326, 0.0
        %v1477 = vmax.f32 %v1329, 0.0
        %v1478 = vmax.f32 %v1334, 0.0
        %v1479 = vmax.f32 %v1337, 0.0
        %v1480 = vmax.f32 %v1342, 0.0
        %v1481 = vmax.f32 %v1345, 0.0
        %v1482 = vmax.f32 %v1350, 0.0
        %v1483 = vmax.f32 %v1353, 0.0
        %v1484 = vmax.f32 %v1358, 0.0
        %v1485 = vmax.f32 %v1361, 0.0
        %v1486 = vpack.c.bf16 %v1365, %v1364
        %v1487 = vpack.c.bf16 %v1367, %v1366
        %v1488 = vpack.c.bf16 %v1369, %v1368
        %v1489 = vpack.c.bf16 %v1371, %v1370
        %v1490 = vpack.c.bf16 %v1373, %v1372
        %v1491 = vpack.c.bf16 %v1375, %v1374
        %v1492 = vpack.c.bf16 %v1377, %v1376
        %v1493 = vpack.c.bf16 %v1379, %v1378
        %v1494 = vpack.c.bf16 %v1381, %v1380
        %v1495 = vpack.c.bf16 %v1383, %v1382
        %v1496 = vpack.c.bf16 %v1385, %v1384
        %v1497 = vpack.c.bf16 %v1387, %v1386
        %v1498 = vpack.c.bf16 %v1389, %v1388
        %v1499 = vpack.c.bf16 %v1391, %v1390
        %v1500 = vpack.c.bf16 %v1393, %v1392
        %v1501 = vpack.c.bf16 %v1395, %v1394
        %v1502 = vpack.c.bf16 %v1397, %v1396
        %v1503 = vpack.c.bf16 %v1399, %v1398
        %v1504 = vpack.c.bf16 %v1401, %v1400
        %v1505 = vpack.c.bf16 %v1403, %v1402
        %v1506 = vpack.c.bf16 %v1405, %v1404
        %v1507 = vpack.c.bf16 %v1407, %v1406
        %v1508 = vpack.c.bf16 %v1409, %v1408
        %v1509 = vpack.c.bf16 %v1411, %v1410
        %v1510 = vpack.c.bf16 %v1413, %v1412
        %v1511 = vpack.c.bf16 %v1415, %v1414
        %v1512 = vpack.c.bf16 %v1417, %v1416
        %v1513 = vpack.c.bf16 %v1419, %v1418
        %v1514 = vpack.c.bf16 %v1421, %v1420
        %v1515 = vpack.c.bf16 %v1423, %v1422
        %v1516 = vpack.c.bf16 %v1425, %v1424
        %v1517 = vpack.c.bf16 %v1427, %v1426
        %v1518 = vpack.c.bf16 %v1429, %v1428
        %v1519 = vpack.c.bf16 %v1431, %v1430
        %v1520 = vpack.c.bf16 %v1433, %v1432
        %v1521 = vpack.c.bf16 %v1435, %v1434
        %v1522 = vpack.c.bf16 %v1437, %v1436
        %v1523 = vpack.c.bf16 %v1439, %v1438
        %v1524 = vpack.c.bf16 %v1441, %v1440
        %v1525 = vpack.c.bf16 %v1443, %v1442
        %v1526 = vpack.c.bf16 %v1445, %v1444
        %v1527 = vpack.c.bf16 %v1447, %v1446
        %v1528 = vpack.c.bf16 %v1449, %v1448
        %v1529 = vpack.c.bf16 %v1451, %v1450
        %v1530 = vpack.c.bf16 %v1453, %v1452
        %v1531 = vpack.c.bf16 %v1455, %v1454
        %v1532 = vpack.c.bf16 %v1457, %v1456
        %v1533 = vpack.c.bf16 %v1459, %v1458
        %v1534 = vpack.c.bf16 %v1461, %v1460
        %v1535 = vpack.c.bf16 %v1463, %v1462
        %v1536 = vpack.c.bf16 %v1465, %v1464
        %v1537 = vpack.c.bf16 %v1467, %v1466
        %v1538 = vpack.c.bf16 %v1469, %v1468
        %v1539 = vpack.c.bf16 %v1471, %v1470
        %v1540 = vpack.c.bf16 %v1473, %v1472
        %v1541 = vpack.c.bf16 %v1475, %v1474
        %v1542 = vpack.c.bf16 %v1477, %v1476
        %v1543 = vpack.c.bf16 %v1479, %v1478
        %v1544 = vpack.c.bf16 %v1481, %v1480
        %v1545 = vpack.c.bf16 %v1483, %v1482
        %v1546 = vpack.c.bf16 %v1485, %v1484
        %v1608 = vunpack.c.l.b16 %v1486
        %v1609 = vunpack.c.h.b16 %v1486
        %v1610 = vunpack.c.l.b16 %v1487
        %v1611 = vunpack.c.h.b16 %v1487
        %v1612 = vunpack.c.l.b16 %v1488
        %v1613 = vunpack.c.h.b16 %v1488
        %v1614 = vunpack.c.l.b16 %v1489
        %v1615 = vunpack.c.h.b16 %v1489
        %v1616 = vunpack.c.l.b16 %v1490
        %v1617 = vunpack.c.h.b16 %v1490
        %v1618 = vunpack.c.l.b16 %v1491
        %v1619 = vunpack.c.h.b16 %v1491
        %v1620 = vunpack.c.l.b16 %v1492
        %v1621 = vunpack.c.h.b16 %v1492
        %v1622 = vunpack.c.l.b16 %v1493
        %v1623 = vunpack.c.h.b16 %v1493
        %v1624 = vunpack.c.l.b16 %v1494
        %v1625 = vunpack.c.h.b16 %v1494
        %v1626 = vunpack.c.l.b16 %v1495
        %v1627 = vunpack.c.h.b16 %v1495
        %v1628 = vunpack.c.l.b16 %v1496
        %v1629 = vunpack.c.h.b16 %v1496
        %v1630 = vunpack.c.l.b16 %v1497
        %v1631 = vunpack.c.h.b16 %v1497
        %v1632 = vunpack.c.l.b16 %v1498
        %v1633 = vunpack.c.h.b16 %v1498
        %v1634 = vunpack.c.l.b16 %v1499
        %v1635 = vunpack.c.h.b16 %v1499
        %v1636 = vunpack.c.l.b16 %v1500
        %v1637 = vunpack.c.h.b16 %v1500
        %v1638 = vunpack.c.l.b16 %v1501
        %v1639 = vunpack.c.h.b16 %v1501
        %v1640 = vunpack.c.l.b16 %v1502
        %v1641 = vunpack.c.h.b16 %v1502
        %v1642 = vunpack.c.l.b16 %v1503
        %v1643 = vunpack.c.h.b16 %v1503
        %v1644 = vunpack.c.l.b16 %v1504
        %v1645 = vunpack.c.h.b16 %v1504
        %v1646 = vunpack.c.l.b16 %v1505
        %v1647 = vunpack.c.h.b16 %v1505
        %v1648 = vunpack.c.l.b16 %v1506
        %v1649 = vunpack.c.h.b16 %v1506
        %v1650 = vunpack.c.l.b16 %v1507
        %v1651 = vunpack.c.h.b16 %v1507
        %v1652 = vunpack.c.l.b16 %v1508
        %v1653 = vunpack.c.h.b16 %v1508
        %v1654 = vunpack.c.l.b16 %v1509
        %v1655 = vunpack.c.h.b16 %v1509
        %v1656 = vunpack.c.l.b16 %v1510
        %v1657 = vunpack.c.h.b16 %v1510
        %v1658 = vunpack.c.l.b16 %v1511
        %v1659 = vunpack.c.h.b16 %v1511
        %v1660 = vunpack.c.l.b16 %v1512
        %v1661 = vunpack.c.h.b16 %v1512
        %v1662 = vunpack.c.l.b16 %v1513
        %v1663 = vunpack.c.h.b16 %v1513
        %v1664 = vunpack.c.l.b16 %v1514
        %v1665 = vunpack.c.h.b16 %v1514
        %v1666 = vunpack.c.l.b16 %v1515
        %v1667 = vunpack.c.h.b16 %v1515
        %v1668 = vunpack.c.l.b16 %v1516
        %v1669 = vunpack.c.h.b16 %v1516
        %v1670 = vunpack.c.l.b16 %v1517
        %v1671 = vunpack.c.h.b16 %v1517
        %v1672 = vunpack.c.l.b16 %v1518
        %v1673 = vunpack.c.h.b16 %v1518
        %v1674 = vunpack.c.l.b16 %v1519
        %v1675 = vunpack.c.h.b16 %v1519
        %v1676 = vunpack.c.l.b16 %v1520
        %v1677 = vunpack.c.h.b16 %v1520
        %v1678 = vunpack.c.l.b16 %v1521
        %v1679 = vunpack.c.h.b16 %v1521
        %v1680 = vunpack.c.l.b16 %v1522
        %v1681 = vunpack.c.h.b16 %v1522
        %v1682 = vunpack.c.l.b16 %v1523
        %v1683 = vunpack.c.h.b16 %v1523
        %v1684 = vunpack.c.l.b16 %v1524
        %v1685 = vunpack.c.h.b16 %v1524
        %v1686 = vunpack.c.l.b16 %v1525
        %v1687 = vunpack.c.h.b16 %v1525
        %v1688 = vunpack.c.l.b16 %v1526
        %v1689 = vunpack.c.h.b16 %v1526
        %v1690 = vunpack.c.l.b16 %v1527
        %v1691 = vunpack.c.h.b16 %v1527
        %v1692 = vunpack.c.l.b16 %v1528
        %v1693 = vunpack.c.h.b16 %v1528
        %v1694 = vunpack.c.l.b16 %v1529
        %v1695 = vunpack.c.h.b16 %v1529
        %v1696 = vunpack.c.l.b16 %v1530
        %v1697 = vunpack.c.h.b16 %v1530
        %v1698 = vunpack.c.l.b16 %v1531
        %v1699 = vunpack.c.h.b16 %v1531
        %v1700 = vunpack.c.l.b16 %v1532
        %v1701 = vunpack.c.h.b16 %v1532
        %v1702 = vunpack.c.l.b16 %v1533
        %v1703 = vunpack.c.h.b16 %v1533
        %v1704 = vunpack.c.l.b16 %v1534
        %v1705 = vunpack.c.h.b16 %v1534
        %v1706 = vunpack.c.l.b16 %v1535
        %v1707 = vunpack.c.h.b16 %v1535
        %v1708 = vunpack.c.l.b16 %v1536
        %v1709 = vunpack.c.h.b16 %v1536
        %v1710 = vunpack.c.l.b16 %v1537
        %v1711 = vunpack.c.h.b16 %v1537
        %v1712 = vunpack.c.l.b16 %v1538
        %v1713 = vunpack.c.h.b16 %v1538
        %v1714 = vunpack.c.l.b16 %v1539
        %v1715 = vunpack.c.h.b16 %v1539
        %v1716 = vunpack.c.l.b16 %v1540
        %v1717 = vunpack.c.h.b16 %v1540
        %v1718 = vunpack.c.l.b16 %v1541
        %v1719 = vunpack.c.h.b16 %v1541
        %v1720 = vunpack.c.l.b16 %v1542
        %v1721 = vunpack.c.h.b16 %v1542
        %v1722 = vunpack.c.l.b16 %v1543
        %v1723 = vunpack.c.h.b16 %v1543
        %v1724 = vunpack.c.l.b16 %v1544
        %v1725 = vunpack.c.h.b16 %v1544
        %v1726 = vunpack.c.l.b16 %v1545
        %v1727 = vunpack.c.h.b16 %v1545
        %v1728 = vunpack.c.l.b16 %v1546
        %v1729 = vunpack.c.h.b16 %v1546
        %v1730 = vpack.c.b16 %v1608, %v1608
        %v1731 = vpack.c.b16 %v1609, %v1609
        %v1732 = vpack.c.b16 %v1610, %v1610
        %v1733 = vpack.c.b16 %v1611, %v1611
        %v1734 = vpack.c.b16 %v1612, %v1612
        %v1735 = vpack.c.b16 %v1613, %v1613
        %v1736 = vpack.c.b16 %v1614, %v1614
        %v1737 = vpack.c.b16 %v1615, %v1615
        %v1738 = vpack.c.b16 %v1616, %v1616
        %v1739 = vpack.c.b16 %v1617, %v1617
        %v1740 = vpack.c.b16 %v1618, %v1618
        %v1741 = vpack.c.b16 %v1619, %v1619
        %v1742 = vpack.c.b16 %v1620, %v1620
        %v1743 = vpack.c.b16 %v1621, %v1621
        %v1744 = vpack.c.b16 %v1622, %v1622
        %v1745 = vpack.c.b16 %v1623, %v1623
        %v1746 = vpack.c.b16 %v1624, %v1624
        %v1747 = vpack.c.b16 %v1625, %v1625
        %v1748 = vpack.c.b16 %v1626, %v1626
        %v1749 = vpack.c.b16 %v1627, %v1627
        %v1750 = vpack.c.b16 %v1628, %v1628
        %v1751 = vpack.c.b16 %v1629, %v1629
        %v1752 = vpack.c.b16 %v1630, %v1630
        %v1753 = vpack.c.b16 %v1631, %v1631
        %v1754 = vpack.c.b16 %v1632, %v1632
        %v1755 = vpack.c.b16 %v1633, %v1633
        %v1756 = vpack.c.b16 %v1634, %v1634
        %v1757 = vpack.c.b16 %v1635, %v1635
        %v1758 = vpack.c.b16 %v1636, %v1636
        %v1759 = vpack.c.b16 %v1637, %v1637
        %v1760 = vpack.c.b16 %v1638, %v1638
        %v1761 = vpack.c.b16 %v1639, %v1639
        %v1762 = vpack.c.b16 %v1640, %v1640
        %v1763 = vpack.c.b16 %v1641, %v1641
        %v1764 = vpack.c.b16 %v1642, %v1642
        %v1765 = vpack.c.b16 %v1643, %v1643
        %v1766 = vpack.c.b16 %v1644, %v1644
        %v1767 = vpack.c.b16 %v1645, %v1645
        %v1768 = vpack.c.b16 %v1646, %v1646
        %v1769 = vpack.c.b16 %v1647, %v1647
        %v1770 = vpack.c.b16 %v1648, %v1648
        %v1771 = vpack.c.b16 %v1649, %v1649
        %v1772 = vpack.c.b16 %v1650, %v1650
        %v1773 = vpack.c.b16 %v1651, %v1651
        %v1774 = vpack.c.b16 %v1652, %v1652
        %v1775 = vpack.c.b16 %v1653, %v1653
        %v1776 = vpack.c.b16 %v1654, %v1654
        %v1777 = vpack.c.b16 %v1655, %v1655
        %v1778 = vpack.c.b16 %v1656, %v1656
        %v1779 = vpack.c.b16 %v1657, %v1657
        %v1780 = vpack.c.b16 %v1658, %v1658
        %v1781 = vpack.c.b16 %v1659, %v1659
        %v1782 = vpack.c.b16 %v1660, %v1660
        %v1783 = vpack.c.b16 %v1661, %v1661
        %v1784 = vpack.c.b16 %v1662, %v1662
        %v1785 = vpack.c.b16 %v1663, %v1663
        %v1786 = vpack.c.b16 %v1664, %v1664
        %v1787 = vpack.c.b16 %v1665, %v1665
        %v1788 = vpack.c.b16 %v1666, %v1666
        %v1789 = vpack.c.b16 %v1667, %v1667
        %v1790 = vpack.c.b16 %v1668, %v1668
        %v1791 = vpack.c.b16 %v1669, %v1669
        %v1792 = vpack.c.b16 %v1670, %v1670
        %v1793 = vpack.c.b16 %v1671, %v1671
        %v1794 = vpack.c.b16 %v1672, %v1672
        %v1795 = vpack.c.b16 %v1673, %v1673
        %v1796 = vpack.c.b16 %v1674, %v1674
        %v1797 = vpack.c.b16 %v1675, %v1675
        %v1798 = vpack.c.b16 %v1676, %v1676
        %v1799 = vpack.c.b16 %v1677, %v1677
        %v1800 = vpack.c.b16 %v1678, %v1678
        %v1801 = vpack.c.b16 %v1679, %v1679
        %v1802 = vpack.c.b16 %v1680, %v1680
        %v1803 = vpack.c.b16 %v1681, %v1681
        %v1804 = vpack.c.b16 %v1682, %v1682
        %v1805 = vpack.c.b16 %v1683, %v1683
        %v1806 = vpack.c.b16 %v1684, %v1684
        %v1807 = vpack.c.b16 %v1685, %v1685
        %v1808 = vpack.c.b16 %v1686, %v1686
        %v1809 = vpack.c.b16 %v1687, %v1687
        %v1810 = vpack.c.b16 %v1688, %v1688
        %v1811 = vpack.c.b16 %v1689, %v1689
        %v1812 = vpack.c.b16 %v1690, %v1690
        %v1813 = vpack.c.b16 %v1691, %v1691
        %v1814 = vpack.c.b16 %v1692, %v1692
        %v1815 = vpack.c.b16 %v1693, %v1693
        %v1816 = vpack.c.b16 %v1694, %v1694
        %v1817 = vpack.c.b16 %v1695, %v1695
        %v1818 = vpack.c.b16 %v1696, %v1696
        %v1819 = vpack.c.b16 %v1697, %v1697
        %v1820 = vpack.c.b16 %v1698, %v1698
        %v1821 = vpack.c.b16 %v1699, %v1699
        %v1822 = vpack.c.b16 %v1700, %v1700
        %v1823 = vpack.c.b16 %v1701, %v1701
        %v1824 = vpack.c.b16 %v1702, %v1702
        %v1825 = vpack.c.b16 %v1703, %v1703
        %v1826 = vpack.c.b16 %v1704, %v1704
        %v1827 = vpack.c.b16 %v1705, %v1705
        %v1828 = vpack.c.b16 %v1706, %v1706
        %v1829 = vpack.c.b16 %v1707, %v1707
        %v1830 = vpack.c.b16 %v1708, %v1708
        %v1831 = vpack.c.b16 %v1709, %v1709
        %v1832 = vpack.c.b16 %v1710, %v1710
        %v1833 = vpack.c.b16 %v1711, %v1711
        %v1834 = vpack.c.b16 %v1712, %v1712
        %v1835 = vpack.c.b16 %v1713, %v1713
        %v1836 = vpack.c.b16 %v1714, %v1714
        %v1837 = vpack.c.b16 %v1715, %v1715
        %v1838 = vpack.c.b16 %v1716, %v1716
        %v1839 = vpack.c.b16 %v1717, %v1717
        %v1840 = vpack.c.b16 %v1718, %v1718
        %v1841 = vpack.c.b16 %v1719, %v1719
        %v1842 = vpack.c.b16 %v1720, %v1720
        %v1843 = vpack.c.b16 %v1721, %v1721
        %v1844 = vpack.c.b16 %v1722, %v1722
        %v1845 = vpack.c.b16 %v1723, %v1723
        %v1846 = vpack.c.b16 %v1724, %v1724
        %v1847 = vpack.c.b16 %v1725, %v1725
        %v1848 = vpack.c.b16 %v1726, %v1726
        %v1849 = vpack.c.b16 %v1727, %v1727
        %v1850 = vpack.c.b16 %v1728, %v1728
        %v1851 = vpack.c.b16 %v1729, %v1729
        %vm1974 = vcmask 519168
        %1975 = vst.msk [vmem:[%s172] sm:$0xf] %vm1974, %v1730
        %1976 = vst.msk [vmem:[%s172 + $0x4] sm:$0xf] %vm1974, %v1731
        %1977 = vst.msk [vmem:[%s172 + $0x8] sm:$0xf] %vm1974, %v1732
        %1978 = vst.msk [vmem:[%s172 + $0xc] sm:$0xf] %vm1974, %v1733
        %1979 = vst.msk [vmem:[%s172 + $0x10] sm:$0xf] %vm1974, %v1734
        %1980 = vst.msk [vmem:[%s172 + $0x14] sm:$0xf] %vm1974, %v1735
        %1981 = vst.msk [vmem:[%s172 + $0x18] sm:$0xf] %vm1974, %v1736
        %1982 = vst.msk [vmem:[%s172 + $0x1c] sm:$0xf] %vm1974, %v1737
        %1983 = vst.msk [vmem:[%s172 + $0x20] sm:$0xf] %vm1974, %v1738
        %1984 = vst.msk [vmem:[%s172 + $0x24] sm:$0xf] %vm1974, %v1739
        %1985 = vst.msk [vmem:[%s172 + $0x28] sm:$0xf] %vm1974, %v1740
        %1986 = vst.msk [vmem:[%s172 + $0x2c] sm:$0xf] %vm1974, %v1741
        %1987 = vst.msk [vmem:[%s172 + $0x30] sm:$0xf] %vm1974, %v1742
        %1988 = vst.msk [vmem:[%s172 + $0x34] sm:$0xf] %vm1974, %v1743
        %1989 = vst.msk [vmem:[%s172 + $0x38] sm:$0xf] %vm1974, %v1744
        %1990 = vst.msk [vmem:[%s172 + $0x3c] sm:$0xf] %vm1974, %v1745
        %1991 = vst.msk [vmem:[%s172 + $0x40] sm:$0xf] %vm1974, %v1746
        %1992 = vst.msk [vmem:[%s172 + $0x44] sm:$0xf] %vm1974, %v1747
        %1993 = vst.msk [vmem:[%s172 + $0x48] sm:$0xf] %vm1974, %v1748
        %1994 = vst.msk [vmem:[%s172 + $0x4c] sm:$0xf] %vm1974, %v1749
        %1995 = vst.msk [vmem:[%s172 + $0x50] sm:$0xf] %vm1974, %v1750
        %1996 = vst.msk [vmem:[%s172 + $0x54] sm:$0xf] %vm1974, %v1751
        %1997 = vst.msk [vmem:[%s172 + $0x58] sm:$0xf] %vm1974, %v1752
        %1998 = vst.msk [vmem:[%s172 + $0x5c] sm:$0xf] %vm1974, %v1753
        %1999 = vst.msk [vmem:[%s172 + $0x60] sm:$0xf] %vm1974, %v1754
        %2000 = vst.msk [vmem:[%s172 + $0x64] sm:$0xf] %vm1974, %v1755
        %2001 = vst.msk [vmem:[%s172 + $0x68] sm:$0xf] %vm1974, %v1756
        %2002 = vst.msk [vmem:[%s172 + $0x6c] sm:$0xf] %vm1974, %v1757
        %2003 = vst.msk [vmem:[%s172 + $0x70] sm:$0xf] %vm1974, %v1758
        %2004 = vst.msk [vmem:[%s172 + $0x74] sm:$0xf] %vm1974, %v1759
        %2005 = vst.msk [vmem:[%s172 + $0x78] sm:$0xf] %vm1974, %v1760
        %2006 = vst.msk [vmem:[%s172 + $0x7c] sm:$0xf] %vm1974, %v1761
        %2007 = vst.msk [vmem:[%s172 + $0x80] sm:$0xf] %vm1974, %v1762
        %2008 = vst.msk [vmem:[%s172 + $0x84] sm:$0xf] %vm1974, %v1763
        %2009 = vst.msk [vmem:[%s172 + $0x88] sm:$0xf] %vm1974, %v1764
        %2010 = vst.msk [vmem:[%s172 + $0x8c] sm:$0xf] %vm1974, %v1765
        %2011 = vst.msk [vmem:[%s172 + $0x90] sm:$0xf] %vm1974, %v1766
        %2012 = vst.msk [vmem:[%s172 + $0x94] sm:$0xf] %vm1974, %v1767
        %2013 = vst.msk [vmem:[%s172 + $0x98] sm:$0xf] %vm1974, %v1768
        %2014 = vst.msk [vmem:[%s172 + $0x9c] sm:$0xf] %vm1974, %v1769
        %2015 = vst.msk [vmem:[%s172 + $0xa0] sm:$0xf] %vm1974, %v1770
        %2016 = vst.msk [vmem:[%s172 + $0xa4] sm:$0xf] %vm1974, %v1771
        %2017 = vst.msk [vmem:[%s172 + $0xa8] sm:$0xf] %vm1974, %v1772
        %2018 = vst.msk [vmem:[%s172 + $0xac] sm:$0xf] %vm1974, %v1773
        %2019 = vst.msk [vmem:[%s172 + $0xb0] sm:$0xf] %vm1974, %v1774
        %2020 = vst.msk [vmem:[%s172 + $0xb4] sm:$0xf] %vm1974, %v1775
        %2021 = vst.msk [vmem:[%s172 + $0xb8] sm:$0xf] %vm1974, %v1776
        %2022 = vst.msk [vmem:[%s172 + $0xbc] sm:$0xf] %vm1974, %v1777
        %2023 = vst.msk [vmem:[%s172 + $0xc0] sm:$0xf] %vm1974, %v1778
        %2024 = vst.msk [vmem:[%s172 + $0xc4] sm:$0xf] %vm1974, %v1779
        %2025 = vst.msk [vmem:[%s172 + $0xc8] sm:$0xf] %vm1974, %v1780
        %2026 = vst.msk [vmem:[%s172 + $0xcc] sm:$0xf] %vm1974, %v1781
        %2027 = vst.msk [vmem:[%s172 + $0xd0] sm:$0xf] %vm1974, %v1782
        %2028 = vst.msk [vmem:[%s172 + $0xd4] sm:$0xf] %vm1974, %v1783
        %2029 = vst.msk [vmem:[%s172 + $0xd8] sm:$0xf] %vm1974, %v1784
        %2030 = vst.msk [vmem:[%s172 + $0xdc] sm:$0xf] %vm1974, %v1785
        %2031 = vst.msk [vmem:[%s172 + $0xe0] sm:$0xf] %vm1974, %v1786
        %2032 = vst.msk [vmem:[%s172 + $0xe4] sm:$0xf] %vm1974, %v1787
        %2033 = vst.msk [vmem:[%s172 + $0xe8] sm:$0xf] %vm1974, %v1788
        %2034 = vst.msk [vmem:[%s172 + $0xec] sm:$0xf] %vm1974, %v1789
        %2035 = vst.msk [vmem:[%s172 + $0xf0] sm:$0xf] %vm1974, %v1790
        %2036 = vst.msk [vmem:[%s172 + $0xf4] sm:$0xf] %vm1974, %v1791
        %2037 = vst.msk [vmem:[%s172 + $0xf8] sm:$0xf] %vm1974, %v1792
        %2038 = vst.msk [vmem:[%s172 + $0xfc] sm:$0xf] %vm1974, %v1793
        %2039 = vst.msk [vmem:[%s172 + $0x100] sm:$0xf] %vm1974, %v1794
        %2040 = vst.msk [vmem:[%s172 + $0x104] sm:$0xf] %vm1974, %v1795
        %2041 = vst.msk [vmem:[%s172 + $0x108] sm:$0xf] %vm1974, %v1796
        %2042 = vst.msk [vmem:[%s172 + $0x10c] sm:$0xf] %vm1974, %v1797
        %2043 = vst.msk [vmem:[%s172 + $0x110] sm:$0xf] %vm1974, %v1798
        %2044 = vst.msk [vmem:[%s172 + $0x114] sm:$0xf] %vm1974, %v1799
        %2045 = vst.msk [vmem:[%s172 + $0x118] sm:$0xf] %vm1974, %v1800
        %2046 = vst.msk [vmem:[%s172 + $0x11c] sm:$0xf] %vm1974, %v1801
        %2047 = vst.msk [vmem:[%s172 + $0x120] sm:$0xf] %vm1974, %v1802
        %2048 = vst.msk [vmem:[%s172 + $0x124] sm:$0xf] %vm1974, %v1803
        %2049 = vst.msk [vmem:[%s172 + $0x128] sm:$0xf] %vm1974, %v1804
        %2050 = vst.msk [vmem:[%s172 + $0x12c] sm:$0xf] %vm1974, %v1805
        %2051 = vst.msk [vmem:[%s172 + $0x130] sm:$0xf] %vm1974, %v1806
        %2052 = vst.msk [vmem:[%s172 + $0x134] sm:$0xf] %vm1974, %v1807
        %2053 = vst.msk [vmem:[%s172 + $0x138] sm:$0xf] %vm1974, %v1808
        %2054 = vst.msk [vmem:[%s172 + $0x13c] sm:$0xf] %vm1974, %v1809
        %2055 = vst.msk [vmem:[%s172 + $0x140] sm:$0xf] %vm1974, %v1810
        %2056 = vst.msk [vmem:[%s172 + $0x144] sm:$0xf] %vm1974, %v1811
        %2057 = vst.msk [vmem:[%s172 + $0x148] sm:$0xf] %vm1974, %v1812
        %2058 = vst.msk [vmem:[%s172 + $0x14c] sm:$0xf] %vm1974, %v1813
        %2059 = vst.msk [vmem:[%s172 + $0x150] sm:$0xf] %vm1974, %v1814
        %2060 = vst.msk [vmem:[%s172 + $0x154] sm:$0xf] %vm1974, %v1815
        %2061 = vst.msk [vmem:[%s172 + $0x158] sm:$0xf] %vm1974, %v1816
        %2062 = vst.msk [vmem:[%s172 + $0x15c] sm:$0xf] %vm1974, %v1817
        %2063 = vst.msk [vmem:[%s172 + $0x160] sm:$0xf] %vm1974, %v1818
        %2064 = vst.msk [vmem:[%s172 + $0x164] sm:$0xf] %vm1974, %v1819
        %2065 = vst.msk [vmem:[%s172 + $0x168] sm:$0xf] %vm1974, %v1820
        %2066 = vst.msk [vmem:[%s172 + $0x16c] sm:$0xf] %vm1974, %v1821
        %2067 = vst.msk [vmem:[%s172 + $0x170] sm:$0xf] %vm1974, %v1822
        %2068 = vst.msk [vmem:[%s172 + $0x174] sm:$0xf] %vm1974, %v1823
        %2069 = vst.msk [vmem:[%s172 + $0x178] sm:$0xf] %vm1974, %v1824
        %2070 = vst.msk [vmem:[%s172 + $0x17c] sm:$0xf] %vm1974, %v1825
        %2071 = vst.msk [vmem:[%s172 + $0x180] sm:$0xf] %vm1974, %v1826
        %2072 = vst.msk [vmem:[%s172 + $0x184] sm:$0xf] %vm1974, %v1827
        %2073 = vst.msk [vmem:[%s172 + $0x188] sm:$0xf] %vm1974, %v1828
        %2074 = vst.msk [vmem:[%s172 + $0x18c] sm:$0xf] %vm1974, %v1829
        %2075 = vst.msk [vmem:[%s172 + $0x190] sm:$0xf] %vm1974, %v1830
        %2076 = vst.msk [vmem:[%s172 + $0x194] sm:$0xf] %vm1974, %v1831
        %2077 = vst.msk [vmem:[%s172 + $0x198] sm:$0xf] %vm1974, %v1832
        %2078 = vst.msk [vmem:[%s172 + $0x19c] sm:$0xf] %vm1974, %v1833
        %2079 = vst.msk [vmem:[%s172 + $0x1a0] sm:$0xf] %vm1974, %v1834
        %2080 = vst.msk [vmem:[%s172 + $0x1a4] sm:$0xf] %vm1974, %v1835
        %2081 = vst.msk [vmem:[%s172 + $0x1a8] sm:$0xf] %vm1974, %v1836
        %2082 = vst.msk [vmem:[%s172 + $0x1ac] sm:$0xf] %vm1974, %v1837
        %2083 = vst.msk [vmem:[%s172 + $0x1b0] sm:$0xf] %vm1974, %v1838
        %2084 = vst.msk [vmem:[%s172 + $0x1b4] sm:$0xf] %vm1974, %v1839
        %2085 = vst.msk [vmem:[%s172 + $0x1b8] sm:$0xf] %vm1974, %v1840
        %2086 = vst.msk [vmem:[%s172 + $0x1bc] sm:$0xf] %vm1974, %v1841
        %2087 = vst.msk [vmem:[%s172 + $0x1c0] sm:$0xf] %vm1974, %v1842
        %2088 = vst.msk [vmem:[%s172 + $0x1c4] sm:$0xf] %vm1974, %v1843
        %2089 = vst.msk [vmem:[%s172 + $0x1c8] sm:$0xf] %vm1974, %v1844
        %2090 = vst.msk [vmem:[%s172 + $0x1cc] sm:$0xf] %vm1974, %v1845
        %2091 = vst.msk [vmem:[%s172 + $0x1d0] sm:$0xf] %vm1974, %v1846
        %2092 = vst.msk [vmem:[%s172 + $0x1d4] sm:$0xf] %vm1974, %v1847
        %2093 = vst.msk [vmem:[%s172 + $0x1d8] sm:$0xf] %vm1974, %v1848
        %2094 = vst.msk [vmem:[%s172 + $0x1dc] sm:$0xf] %vm1974, %v1849
        %2095 = vst.msk [vmem:[%s172 + $0x1e0] sm:$0xf] %vm1974, %v1850
        %2096 = vst.msk [vmem:[%s172 + $0x1e4] sm:$0xf] %vm1974, %v1851
        %s2097 = sand.u32 %s90, 1
        %s2098 = sand.u32 %s90, 1
        %s2099 = smul.addr %s2098, 488
        %s2100 = scalar_lea.vmem [#allocation2], %s2099
        // Predicated region
        $region33: #{classifier_b_forward.2} parent=31 // pred_check
          %p2101 = pneg %p100
        $region34: #{classifier_b_forward.2} parent=31 // pred_check_branch
          %2103 = sbr.rel (%p2101) target = $region36
        $region35: #{classifier_b_forward.2} parent=31 // pred_region
          %s2104 = smul.u32 122, %s14
          %s2105 = ssub.s32 242, %s2104
          %p2106 = scmp.lt.s32.totalorder %s2105, 122
          %s2107 = scalar_select %p2106, %s2105, 122
          %s2108 = smul.u32 64, %s2107
          %p2109 = scmp.ne.s32.totalorder 0, %s2108
          %s2110 = smul.addr %s2104, 4
          %s2111 = scalar_lea.vmem %s3, %s2110
          // Predicated region
          $region37: #{classifier_b_forward.2} parent=35 // pred_check
            %p2112 = pneg %p2109
          $region38: #{classifier_b_forward.2} parent=35 // pred_check_branch
            %2114 = sbr.rel (%p2112) target = $region40
          $region39: #{classifier_b_forward.2} parent=35 // pred_region
            // Predicated region
            $region41: #{classifier_b_forward.2} parent=39 // pred_check
              _
            $region42: #{classifier_b_forward.2} parent=39 // pred_check_branch
              %2116 = sbr.rel target = $region44
            $region43: #{classifier_b_forward.2} parent=39 // pred_region
              // Predicated region
              $region63: #{classifier_b_forward.2} parent=43 // pred_check
                _
              $region64: #{classifier_b_forward.2} parent=43 // pred_check_branch
                %2291 = sbr.rel (0) target = $region66
              $region65: #{classifier_b_forward.2} parent=43 // pred_region
                %s2293 = sshrl.u32 %s2107, 6
                // While loop
                $region67: #{classifier_b_forward.2} parent=65 // loop_pre_header
                  _
                $region68: #{classifier_b_forward.2} parent=65 // loop_header
                  %s2295 = sphi 0, %s2297
                  %p2296 = scmp.ge.s32.totalorder %s2295, %s2293
                  %s2300 = sphi 0, %s2433
                  %s2301 = sphi %s2100, %s2436
                  %s2302 = sphi %s2111, %s2437
                $region69: #{classifier_b_forward.2} parent=65 // loop_header_branch
                  %2299 = sbr.rel (%p2296) target = $region73
                $region70: #{classifier_b_forward.2} parent=65 // loop_body
                  %v2303 = vld [vmem:[%s2301] sm:$0xf]
                  %2304 = vst [vmem:[%s2302] sm:$0xf] %v2303
                  %v2305 = vld [vmem:[%s2301 + $0x4] sm:$0xf]
                  %2306 = vst [vmem:[%s2302 + $0x4] sm:$0xf] %v2305
                  %v2307 = vld [vmem:[%s2301 + $0x8] sm:$0xf]
                  %2308 = vst [vmem:[%s2302 + $0x8] sm:$0xf] %v2307
                  %v2309 = vld [vmem:[%s2301 + $0xc] sm:$0xf]
                  %2310 = vst [vmem:[%s2302 + $0xc] sm:$0xf] %v2309
                  %v2311 = vld [vmem:[%s2301 + $0x10] sm:$0xf]
                  %2312 = vst [vmem:[%s2302 + $0x10] sm:$0xf] %v2311
                  %v2313 = vld [vmem:[%s2301 + $0x14] sm:$0xf]
                  %2314 = vst [vmem:[%s2302 + $0x14] sm:$0xf] %v2313
                  %v2315 = vld [vmem:[%s2301 + $0x18] sm:$0xf]
                  %2316 = vst [vmem:[%s2302 + $0x18] sm:$0xf] %v2315
                  %v2317 = vld [vmem:[%s2301 + $0x1c] sm:$0xf]
                  %2318 = vst [vmem:[%s2302 + $0x1c] sm:$0xf] %v2317
                  %v2319 = vld [vmem:[%s2301 + $0x20] sm:$0xf]
                  %2320 = vst [vmem:[%s2302 + $0x20] sm:$0xf] %v2319
                  %v2321 = vld [vmem:[%s2301 + $0x24] sm:$0xf]
                  %2322 = vst [vmem:[%s2302 + $0x24] sm:$0xf] %v2321
                  %v2323 = vld [vmem:[%s2301 + $0x28] sm:$0xf]
                  %2324 = vst [vmem:[%s2302 + $0x28] sm:$0xf] %v2323
                  %v2325 = vld [vmem:[%s2301 + $0x2c] sm:$0xf]
                  %2326 = vst [vmem:[%s2302 + $0x2c] sm:$0xf] %v2325
                  %v2327 = vld [vmem:[%s2301 + $0x30] sm:$0xf]
                  %2328 = vst [vmem:[%s2302 + $0x30] sm:$0xf] %v2327
                  %v2329 = vld [vmem:[%s2301 + $0x34] sm:$0xf]
                  %2330 = vst [vmem:[%s2302 + $0x34] sm:$0xf] %v2329
                  %v2331 = vld [vmem:[%s2301 + $0x38] sm:$0xf]
                  %2332 = vst [vmem:[%s2302 + $0x38] sm:$0xf] %v2331
                  %v2333 = vld [vmem:[%s2301 + $0x3c] sm:$0xf]
                  %2334 = vst [vmem:[%s2302 + $0x3c] sm:$0xf] %v2333
                  %v2335 = vld [vmem:[%s2301 + $0x40] sm:$0xf]
                  %2336 = vst [vmem:[%s2302 + $0x40] sm:$0xf] %v2335
                  %v2337 = vld [vmem:[%s2301 + $0x44] sm:$0xf]
                  %2338 = vst [vmem:[%s2302 + $0x44] sm:$0xf] %v2337
                  %v2339 = vld [vmem:[%s2301 + $0x48] sm:$0xf]
                  %2340 = vst [vmem:[%s2302 + $0x48] sm:$0xf] %v2339
                  %v2341 = vld [vmem:[%s2301 + $0x4c] sm:$0xf]
                  %2342 = vst [vmem:[%s2302 + $0x4c] sm:$0xf] %v2341
                  %v2343 = vld [vmem:[%s2301 + $0x50] sm:$0xf]
                  %2344 = vst [vmem:[%s2302 + $0x50] sm:$0xf] %v2343
                  %v2345 = vld [vmem:[%s2301 + $0x54] sm:$0xf]
                  %2346 = vst [vmem:[%s2302 + $0x54] sm:$0xf] %v2345
                  %v2347 = vld [vmem:[%s2301 + $0x58] sm:$0xf]
                  %2348 = vst [vmem:[%s2302 + $0x58] sm:$0xf] %v2347
                  %v2349 = vld [vmem:[%s2301 + $0x5c] sm:$0xf]
                  %2350 = vst [vmem:[%s2302 + $0x5c] sm:$0xf] %v2349
                  %v2351 = vld [vmem:[%s2301 + $0x60] sm:$0xf]
                  %2352 = vst [vmem:[%s2302 + $0x60] sm:$0xf] %v2351
                  %v2353 = vld [vmem:[%s2301 + $0x64] sm:$0xf]
                  %2354 = vst [vmem:[%s2302 + $0x64] sm:$0xf] %v2353
                  %v2355 = vld [vmem:[%s2301 + $0x68] sm:$0xf]
                  %2356 = vst [vmem:[%s2302 + $0x68] sm:$0xf] %v2355
                  %v2357 = vld [vmem:[%s2301 + $0x6c] sm:$0xf]
                  %2358 = vst [vmem:[%s2302 + $0x6c] sm:$0xf] %v2357
                  %v2359 = vld [vmem:[%s2301 + $0x70] sm:$0xf]
                  %2360 = vst [vmem:[%s2302 + $0x70] sm:$0xf] %v2359
                  %v2361 = vld [vmem:[%s2301 + $0x74] sm:$0xf]
                  %2362 = vst [vmem:[%s2302 + $0x74] sm:$0xf] %v2361
                  %v2363 = vld [vmem:[%s2301 + $0x78] sm:$0xf]
                  %2364 = vst [vmem:[%s2302 + $0x78] sm:$0xf] %v2363
                  %v2365 = vld [vmem:[%s2301 + $0x7c] sm:$0xf]
                  %2366 = vst [vmem:[%s2302 + $0x7c] sm:$0xf] %v2365
                  %v2367 = vld [vmem:[%s2301 + $0x80] sm:$0xf]
                  %2368 = vst [vmem:[%s2302 + $0x80] sm:$0xf] %v2367
                  %v2369 = vld [vmem:[%s2301 + $0x84] sm:$0xf]
                  %2370 = vst [vmem:[%s2302 + $0x84] sm:$0xf] %v2369
                  %v2371 = vld [vmem:[%s2301 + $0x88] sm:$0xf]
                  %2372 = vst [vmem:[%s2302 + $0x88] sm:$0xf] %v2371
                  %v2373 = vld [vmem:[%s2301 + $0x8c] sm:$0xf]
                  %2374 = vst [vmem:[%s2302 + $0x8c] sm:$0xf] %v2373
                  %v2375 = vld [vmem:[%s2301 + $0x90] sm:$0xf]
                  %2376 = vst [vmem:[%s2302 + $0x90] sm:$0xf] %v2375
                  %v2377 = vld [vmem:[%s2301 + $0x94] sm:$0xf]
                  %2378 = vst [vmem:[%s2302 + $0x94] sm:$0xf] %v2377
                  %v2379 = vld [vmem:[%s2301 + $0x98] sm:$0xf]
                  %2380 = vst [vmem:[%s2302 + $0x98] sm:$0xf] %v2379
                  %v2381 = vld [vmem:[%s2301 + $0x9c] sm:$0xf]
                  %2382 = vst [vmem:[%s2302 + $0x9c] sm:$0xf] %v2381
                  %v2383 = vld [vmem:[%s2301 + $0xa0] sm:$0xf]
                  %2384 = vst [vmem:[%s2302 + $0xa0] sm:$0xf] %v2383
                  %v2385 = vld [vmem:[%s2301 + $0xa4] sm:$0xf]
                  %2386 = vst [vmem:[%s2302 + $0xa4] sm:$0xf] %v2385
                  %v2387 = vld [vmem:[%s2301 + $0xa8] sm:$0xf]
                  %2388 = vst [vmem:[%s2302 + $0xa8] sm:$0xf] %v2387
                  %v2389 = vld [vmem:[%s2301 + $0xac] sm:$0xf]
                  %2390 = vst [vmem:[%s2302 + $0xac] sm:$0xf] %v2389
                  %v2391 = vld [vmem:[%s2301 + $0xb0] sm:$0xf]
                  %2392 = vst [vmem:[%s2302 + $0xb0] sm:$0xf] %v2391
                  %v2393 = vld [vmem:[%s2301 + $0xb4] sm:$0xf]
                  %2394 = vst [vmem:[%s2302 + $0xb4] sm:$0xf] %v2393
                  %v2395 = vld [vmem:[%s2301 + $0xb8] sm:$0xf]
                  %2396 = vst [vmem:[%s2302 + $0xb8] sm:$0xf] %v2395
                  %v2397 = vld [vmem:[%s2301 + $0xbc] sm:$0xf]
                  %2398 = vst [vmem:[%s2302 + $0xbc] sm:$0xf] %v2397
                  %v2399 = vld [vmem:[%s2301 + $0xc0] sm:$0xf]
                  %2400 = vst [vmem:[%s2302 + $0xc0] sm:$0xf] %v2399
                  %v2401 = vld [vmem:[%s2301 + $0xc4] sm:$0xf]
                  %2402 = vst [vmem:[%s2302 + $0xc4] sm:$0xf] %v2401
                  %v2403 = vld [vmem:[%s2301 + $0xc8] sm:$0xf]
                  %2404 = vst [vmem:[%s2302 + $0xc8] sm:$0xf] %v2403
                  %v2405 = vld [vmem:[%s2301 + $0xcc] sm:$0xf]
                  %2406 = vst [vmem:[%s2302 + $0xcc] sm:$0xf] %v2405
                  %v2407 = vld [vmem:[%s2301 + $0xd0] sm:$0xf]
                  %2408 = vst [vmem:[%s2302 + $0xd0] sm:$0xf] %v2407
                  %v2409 = vld [vmem:[%s2301 + $0xd4] sm:$0xf]
                  %2410 = vst [vmem:[%s2302 + $0xd4] sm:$0xf] %v2409
                  %v2411 = vld [vmem:[%s2301 + $0xd8] sm:$0xf]
                  %2412 = vst [vmem:[%s2302 + $0xd8] sm:$0xf] %v2411
                  %v2413 = vld [vmem:[%s2301 + $0xdc] sm:$0xf]
                  %2414 = vst [vmem:[%s2302 + $0xdc] sm:$0xf] %v2413
                  %v2415 = vld [vmem:[%s2301 + $0xe0] sm:$0xf]
                  %2416 = vst [vmem:[%s2302 + $0xe0] sm:$0xf] %v2415
                  %v2417 = vld [vmem:[%s2301 + $0xe4] sm:$0xf]
                  %2418 = vst [vmem:[%s2302 + $0xe4] sm:$0xf] %v2417
                  %v2419 = vld [vmem:[%s2301 + $0xe8] sm:$0xf]
                  %2420 = vst [vmem:[%s2302 + $0xe8] sm:$0xf] %v2419
                  %v2421 = vld [vmem:[%s2301 + $0xec] sm:$0xf]
                  %2422 = vst [vmem:[%s2302 + $0xec] sm:$0xf] %v2421
                  %v2423 = vld [vmem:[%s2301 + $0xf0] sm:$0xf]
                  %2424 = vst [vmem:[%s2302 + $0xf0] sm:$0xf] %v2423
                  %v2425 = vld [vmem:[%s2301 + $0xf4] sm:$0xf]
                  %2426 = vst [vmem:[%s2302 + $0xf4] sm:$0xf] %v2425
                  %v2427 = vld [vmem:[%s2301 + $0xf8] sm:$0xf]
                  %2428 = vst [vmem:[%s2302 + $0xf8] sm:$0xf] %v2427
                  %v2429 = vld [vmem:[%s2301 + $0xfc] sm:$0xf]
                  %2430 = vst [vmem:[%s2302 + $0xfc] sm:$0xf] %v2429
                  %s2431 = sadd.s32 1, %s2300
                  %p2432 = scmp.ge.s32.totalorder %s2431, %s2293
                  %s2433 = scalar_select %p2432, 0, %s2431
                  %s2434 = smul.u32 %s2433, 256
                  %s2435 = smul.u32 %s2433, 256
                  %s2436 = scalar_lea.vmem %s2100, %s2434 [#allocation2]
                  %s2437 = scalar_lea.vmem %s2111, %s2435
                $region71: #{classifier_b_forward.2} parent=65 // loop_footer
                  %s2297 = sadd.s32 %s2295, 1
                $region72: #{classifier_b_forward.2} parent=65 // loop_footer_branch
                  %2294 = sbr.rel target = $region68
                $region73: #{classifier_b_forward.2} parent=65 // loop_exit
                  _
                %s2438 = sshrl.u32 %s2107, 6
                %s2439 = sand.u32 %s2107, 63
                %s2440 = smul.u32 %s2438, 64
                %s2441 = smul.u32 4, %s2440
                %s2442 = scalar_lea.vmem %s2100, %s2441 [#allocation2]
                %s2443 = smul.u32 4, %s2440
                %s2444 = scalar_lea.vmem %s2111, %s2443
                // While loop
                $region74: #{classifier_b_forward.2} parent=65 // loop_pre_header
                  _
                $region75: #{classifier_b_forward.2} parent=65 // loop_header
                  %s2446 = sphi 0, %s2448
                  %p2447 = scmp.ge.s32.totalorder %s2446, %s2439
                  %s2451 = sphi 0, %s2458
                  %s2452 = sphi %s2442, %s2461
                  %s2453 = sphi %s2444, %s2462
                $region76: #{classifier_b_forward.2} parent=65 // loop_header_branch
                  %2450 = sbr.rel (%p2447) target = $region80
                $region77: #{classifier_b_forward.2} parent=65 // loop_body
                  %v2454 = vld [vmem:[%s2452] sm:$0xf]
                  %2455 = vst [vmem:[%s2453] sm:$0xf] %v2454
                  %s2456 = sadd.s32 1, %s2451
                  %p2457 = scmp.ge.s32.totalorder %s2456, %s2439
                  %s2458 = scalar_select %p2457, 0, %s2456
                  %s2459 = smul.u32 %s2458, 4
                  %s2460 = smul.u32 %s2458, 4
                  %s2461 = scalar_lea.vmem %s2442, %s2459 [#allocation2]
                  %s2462 = scalar_lea.vmem %s2444, %s2460
                $region78: #{classifier_b_forward.2} parent=65 // loop_footer
                  %s2448 = sadd.s32 %s2446, 1
                $region79: #{classifier_b_forward.2} parent=65 // loop_footer_branch
                  %2445 = sbr.rel target = $region75
                $region80: #{classifier_b_forward.2} parent=65 // loop_exit
                  _
              $region66: #{classifier_b_forward.2} parent=43 // pred_fallthru
                _
            $region44: #{classifier_b_forward.2} parent=39 // pred_fallthru
              _
            // Predicated region
            $region45: #{classifier_b_forward.2} parent=39 // pred_check
              _
            $region46: #{classifier_b_forward.2} parent=39 // pred_check_branch
              %2118 = sbr.rel (0) target = $region48
            $region47: #{classifier_b_forward.2} parent=39 // pred_region
              %s2120 = sshrl.u32 %s2107, 6
              // While loop
              $region49: #{classifier_b_forward.2} parent=47 // loop_pre_header
                _
              $region50: #{classifier_b_forward.2} parent=47 // loop_header
                %s2122 = sphi 0, %s2124
                %p2123 = scmp.ge.s32.totalorder %s2122, %s2120
                %s2127 = sphi 0, %s2260
                %s2128 = sphi %s2100, %s2263
                %s2129 = sphi %s2111, %s2264
              $region51: #{classifier_b_forward.2} parent=47 // loop_header_branch
                %2126 = sbr.rel (%p2123) target = $region55
              $region52: #{classifier_b_forward.2} parent=47 // loop_body
                %v2130 = vld [vmem:[%s2128] sm:$0xf]
                %2131 = vst [vmem:[%s2129] sm:$0xf] %v2130
                %v2132 = vld [vmem:[%s2128 + $0x4] sm:$0xf]
                %2133 = vst [vmem:[%s2129 + $0x4] sm:$0xf] %v2132
                %v2134 = vld [vmem:[%s2128 + $0x8] sm:$0xf]
                %2135 = vst [vmem:[%s2129 + $0x8] sm:$0xf] %v2134
                %v2136 = vld [vmem:[%s2128 + $0xc] sm:$0xf]
                %2137 = vst [vmem:[%s2129 + $0xc] sm:$0xf] %v2136
                %v2138 = vld [vmem:[%s2128 + $0x10] sm:$0xf]
                %2139 = vst [vmem:[%s2129 + $0x10] sm:$0xf] %v2138
                %v2140 = vld [vmem:[%s2128 + $0x14] sm:$0xf]
                %2141 = vst [vmem:[%s2129 + $0x14] sm:$0xf] %v2140
                %v2142 = vld [vmem:[%s2128 + $0x18] sm:$0xf]
                %2143 = vst [vmem:[%s2129 + $0x18] sm:$0xf] %v2142
                %v2144 = vld [vmem:[%s2128 + $0x1c] sm:$0xf]
                %2145 = vst [vmem:[%s2129 + $0x1c] sm:$0xf] %v2144
                %v2146 = vld [vmem:[%s2128 + $0x20] sm:$0xf]
                %2147 = vst [vmem:[%s2129 + $0x20] sm:$0xf] %v2146
                %v2148 = vld [vmem:[%s2128 + $0x24] sm:$0xf]
                %2149 = vst [vmem:[%s2129 + $0x24] sm:$0xf] %v2148
                %v2150 = vld [vmem:[%s2128 + $0x28] sm:$0xf]
                %2151 = vst [vmem:[%s2129 + $0x28] sm:$0xf] %v2150
                %v2152 = vld [vmem:[%s2128 + $0x2c] sm:$0xf]
                %2153 = vst [vmem:[%s2129 + $0x2c] sm:$0xf] %v2152
                %v2154 = vld [vmem:[%s2128 + $0x30] sm:$0xf]
                %2155 = vst [vmem:[%s2129 + $0x30] sm:$0xf] %v2154
                %v2156 = vld [vmem:[%s2128 + $0x34] sm:$0xf]
                %2157 = vst [vmem:[%s2129 + $0x34] sm:$0xf] %v2156
                %v2158 = vld [vmem:[%s2128 + $0x38] sm:$0xf]
                %2159 = vst [vmem:[%s2129 + $0x38] sm:$0xf] %v2158
                %v2160 = vld [vmem:[%s2128 + $0x3c] sm:$0xf]
                %2161 = vst [vmem:[%s2129 + $0x3c] sm:$0xf] %v2160
                %v2162 = vld [vmem:[%s2128 + $0x40] sm:$0xf]
                %2163 = vst [vmem:[%s2129 + $0x40] sm:$0xf] %v2162
                %v2164 = vld [vmem:[%s2128 + $0x44] sm:$0xf]
                %2165 = vst [vmem:[%s2129 + $0x44] sm:$0xf] %v2164
                %v2166 = vld [vmem:[%s2128 + $0x48] sm:$0xf]
                %2167 = vst [vmem:[%s2129 + $0x48] sm:$0xf] %v2166
                %v2168 = vld [vmem:[%s2128 + $0x4c] sm:$0xf]
                %2169 = vst [vmem:[%s2129 + $0x4c] sm:$0xf] %v2168
                %v2170 = vld [vmem:[%s2128 + $0x50] sm:$0xf]
                %2171 = vst [vmem:[%s2129 + $0x50] sm:$0xf] %v2170
                %v2172 = vld [vmem:[%s2128 + $0x54] sm:$0xf]
                %2173 = vst [vmem:[%s2129 + $0x54] sm:$0xf] %v2172
                %v2174 = vld [vmem:[%s2128 + $0x58] sm:$0xf]
                %2175 = vst [vmem:[%s2129 + $0x58] sm:$0xf] %v2174
                %v2176 = vld [vmem:[%s2128 + $0x5c] sm:$0xf]
                %2177 = vst [vmem:[%s2129 + $0x5c] sm:$0xf] %v2176
                %v2178 = vld [vmem:[%s2128 + $0x60] sm:$0xf]
                %2179 = vst [vmem:[%s2129 + $0x60] sm:$0xf] %v2178
                %v2180 = vld [vmem:[%s2128 + $0x64] sm:$0xf]
                %2181 = vst [vmem:[%s2129 + $0x64] sm:$0xf] %v2180
                %v2182 = vld [vmem:[%s2128 + $0x68] sm:$0xf]
                %2183 = vst [vmem:[%s2129 + $0x68] sm:$0xf] %v2182
                %v2184 = vld [vmem:[%s2128 + $0x6c] sm:$0xf]
                %2185 = vst [vmem:[%s2129 + $0x6c] sm:$0xf] %v2184
                %v2186 = vld [vmem:[%s2128 + $0x70] sm:$0xf]
                %2187 = vst [vmem:[%s2129 + $0x70] sm:$0xf] %v2186
                %v2188 = vld [vmem:[%s2128 + $0x74] sm:$0xf]
                %2189 = vst [vmem:[%s2129 + $0x74] sm:$0xf] %v2188
                %v2190 = vld [vmem:[%s2128 + $0x78] sm:$0xf]
                %2191 = vst [vmem:[%s2129 + $0x78] sm:$0xf] %v2190
                %v2192 = vld [vmem:[%s2128 + $0x7c] sm:$0xf]
                %2193 = vst [vmem:[%s2129 + $0x7c] sm:$0xf] %v2192
                %v2194 = vld [vmem:[%s2128 + $0x80] sm:$0xf]
                %2195 = vst [vmem:[%s2129 + $0x80] sm:$0xf] %v2194
                %v2196 = vld [vmem:[%s2128 + $0x84] sm:$0xf]
                %2197 = vst [vmem:[%s2129 + $0x84] sm:$0xf] %v2196
                %v2198 = vld [vmem:[%s2128 + $0x88] sm:$0xf]
                %2199 = vst [vmem:[%s2129 + $0x88] sm:$0xf] %v2198
                %v2200 = vld [vmem:[%s2128 + $0x8c] sm:$0xf]
                %2201 = vst [vmem:[%s2129 + $0x8c] sm:$0xf] %v2200
                %v2202 = vld [vmem:[%s2128 + $0x90] sm:$0xf]
                %2203 = vst [vmem:[%s2129 + $0x90] sm:$0xf] %v2202
                %v2204 = vld [vmem:[%s2128 + $0x94] sm:$0xf]
                %2205 = vst [vmem:[%s2129 + $0x94] sm:$0xf] %v2204
                %v2206 = vld [vmem:[%s2128 + $0x98] sm:$0xf]
                %2207 = vst [vmem:[%s2129 + $0x98] sm:$0xf] %v2206
                %v2208 = vld [vmem:[%s2128 + $0x9c] sm:$0xf]
                %2209 = vst [vmem:[%s2129 + $0x9c] sm:$0xf] %v2208
                %v2210 = vld [vmem:[%s2128 + $0xa0] sm:$0xf]
                %2211 = vst [vmem:[%s2129 + $0xa0] sm:$0xf] %v2210
                %v2212 = vld [vmem:[%s2128 + $0xa4] sm:$0xf]
                %2213 = vst [vmem:[%s2129 + $0xa4] sm:$0xf] %v2212
                %v2214 = vld [vmem:[%s2128 + $0xa8] sm:$0xf]
                %2215 = vst [vmem:[%s2129 + $0xa8] sm:$0xf] %v2214
                %v2216 = vld [vmem:[%s2128 + $0xac] sm:$0xf]
                %2217 = vst [vmem:[%s2129 + $0xac] sm:$0xf] %v2216
                %v2218 = vld [vmem:[%s2128 + $0xb0] sm:$0xf]
                %2219 = vst [vmem:[%s2129 + $0xb0] sm:$0xf] %v2218
                %v2220 = vld [vmem:[%s2128 + $0xb4] sm:$0xf]
                %2221 = vst [vmem:[%s2129 + $0xb4] sm:$0xf] %v2220
                %v2222 = vld [vmem:[%s2128 + $0xb8] sm:$0xf]
                %2223 = vst [vmem:[%s2129 + $0xb8] sm:$0xf] %v2222
                %v2224 = vld [vmem:[%s2128 + $0xbc] sm:$0xf]
                %2225 = vst [vmem:[%s2129 + $0xbc] sm:$0xf] %v2224
                %v2226 = vld [vmem:[%s2128 + $0xc0] sm:$0xf]
                %2227 = vst [vmem:[%s2129 + $0xc0] sm:$0xf] %v2226
                %v2228 = vld [vmem:[%s2128 + $0xc4] sm:$0xf]
                %2229 = vst [vmem:[%s2129 + $0xc4] sm:$0xf] %v2228
                %v2230 = vld [vmem:[%s2128 + $0xc8] sm:$0xf]
                %2231 = vst [vmem:[%s2129 + $0xc8] sm:$0xf] %v2230
                %v2232 = vld [vmem:[%s2128 + $0xcc] sm:$0xf]
                %2233 = vst [vmem:[%s2129 + $0xcc] sm:$0xf] %v2232
                %v2234 = vld [vmem:[%s2128 + $0xd0] sm:$0xf]
                %2235 = vst [vmem:[%s2129 + $0xd0] sm:$0xf] %v2234
                %v2236 = vld [vmem:[%s2128 + $0xd4] sm:$0xf]
                %2237 = vst [vmem:[%s2129 + $0xd4] sm:$0xf] %v2236
                %v2238 = vld [vmem:[%s2128 + $0xd8] sm:$0xf]
                %2239 = vst [vmem:[%s2129 + $0xd8] sm:$0xf] %v2238
                %v2240 = vld [vmem:[%s2128 + $0xdc] sm:$0xf]
                %2241 = vst [vmem:[%s2129 + $0xdc] sm:$0xf] %v2240
                %v2242 = vld [vmem:[%s2128 + $0xe0] sm:$0xf]
                %2243 = vst [vmem:[%s2129 + $0xe0] sm:$0xf] %v2242
                %v2244 = vld [vmem:[%s2128 + $0xe4] sm:$0xf]
                %2245 = vst [vmem:[%s2129 + $0xe4] sm:$0xf] %v2244
                %v2246 = vld [vmem:[%s2128 + $0xe8] sm:$0xf]
                %2247 = vst [vmem:[%s2129 + $0xe8] sm:$0xf] %v2246
                %v2248 = vld [vmem:[%s2128 + $0xec] sm:$0xf]
                %2249 = vst [vmem:[%s2129 + $0xec] sm:$0xf] %v2248
                %v2250 = vld [vmem:[%s2128 + $0xf0] sm:$0xf]
                %2251 = vst [vmem:[%s2129 + $0xf0] sm:$0xf] %v2250
                %v2252 = vld [vmem:[%s2128 + $0xf4] sm:$0xf]
                %2253 = vst [vmem:[%s2129 + $0xf4] sm:$0xf] %v2252
                %v2254 = vld [vmem:[%s2128 + $0xf8] sm:$0xf]
                %2255 = vst [vmem:[%s2129 + $0xf8] sm:$0xf] %v2254
                %v2256 = vld [vmem:[%s2128 + $0xfc] sm:$0xf]
                %2257 = vst [vmem:[%s2129 + $0xfc] sm:$0xf] %v2256
                %s2258 = sadd.s32 1, %s2127
                %p2259 = scmp.ge.s32.totalorder %s2258, %s2120
                %s2260 = scalar_select %p2259, 0, %s2258
                %s2261 = smul.u32 %s2260, 256
                %s2262 = smul.u32 %s2260, 256
                %s2263 = scalar_lea.vmem %s2100, %s2261 [#allocation2]
                %s2264 = scalar_lea.vmem %s2111, %s2262
              $region53: #{classifier_b_forward.2} parent=47 // loop_footer
                %s2124 = sadd.s32 %s2122, 1
              $region54: #{classifier_b_forward.2} parent=47 // loop_footer_branch
                %2121 = sbr.rel target = $region50
              $region55: #{classifier_b_forward.2} parent=47 // loop_exit
                _
              %s2265 = sshrl.u32 %s2107, 6
              %s2266 = sand.u32 %s2107, 63
              %s2267 = smul.u32 %s2265, 64
              %s2268 = smul.u32 4, %s2267
              %s2269 = scalar_lea.vmem %s2100, %s2268 [#allocation2]
              %s2270 = smul.u32 4, %s2267
              %s2271 = scalar_lea.vmem %s2111, %s2270
              // While loop
              $region56: #{classifier_b_forward.2} parent=47 // loop_pre_header
                _
              $region57: #{classifier_b_forward.2} parent=47 // loop_header
                %s2273 = sphi 0, %s2275
                %p2274 = scmp.ge.s32.totalorder %s2273, %s2266
                %s2278 = sphi 0, %s2285
                %s2279 = sphi %s2269, %s2288
                %s2280 = sphi %s2271, %s2289
              $region58: #{classifier_b_forward.2} parent=47 // loop_header_branch
                %2277 = sbr.rel (%p2274) target = $region62
              $region59: #{classifier_b_forward.2} parent=47 // loop_body
                %v2281 = vld [vmem:[%s2279] sm:$0xf]
                %2282 = vst [vmem:[%s2280] sm:$0xf] %v2281
                %s2283 = sadd.s32 1, %s2278
                %p2284 = scmp.ge.s32.totalorder %s2283, %s2266
                %s2285 = scalar_select %p2284, 0, %s2283
                %s2286 = smul.u32 %s2285, 4
                %s2287 = smul.u32 %s2285, 4
                %s2288 = scalar_lea.vmem %s2269, %s2286 [#allocation2]
                %s2289 = scalar_lea.vmem %s2271, %s2287
              $region60: #{classifier_b_forward.2} parent=47 // loop_footer
                %s2275 = sadd.s32 %s2273, 1
              $region61: #{classifier_b_forward.2} parent=47 // loop_footer_branch
                %2272 = sbr.rel target = $region57
              $region62: #{classifier_b_forward.2} parent=47 // loop_exit
                _
            $region48: #{classifier_b_forward.2} parent=39 // pred_fallthru
              _
          $region40: #{classifier_b_forward.2} parent=35 // pred_fallthru
            _
          %2463 = vnop
        $region36: #{classifier_b_forward.2} parent=31 // pred_fallthru
          _
      $region32: #{classifier_b_forward.2} parent=5 // pred_fallthru
        _
      %p2464 = scmp.le.s32.totalorder 2, %s9
      // Predicated region
      $region81: #{classifier_b_forward.2} parent=5 // pred_check
        %p2465 = pneg %p2464
      $region82: #{classifier_b_forward.2} parent=5 // pred_check_branch
        %2467 = sbr.rel (%p2465) target = $region84
      $region83: #{classifier_b_forward.2} parent=5 // pred_region
        %s2468 = ssub.s32 %s9, 2
        // Predicated region
        $region85: #{classifier_b_forward.2} parent=83 // pred_check
          %p2469 = pneg %p106
        $region86: #{classifier_b_forward.2} parent=83 // pred_check_branch
          %2471 = sbr.rel (%p2469) target = $region88
        $region87: #{classifier_b_forward.2} parent=83 // pred_region
          %s2472 = sand.u32 %s91, 1
          %s2473 = sand.u32 %s91, 1
          %s2474 = smul.addr %s2473, 488
          %s2475 = scalar_lea.vmem [#allocation2], %s2474
        $region88: #{classifier_b_forward.2} parent=83 // pred_fallthru
          _
      $region84: #{classifier_b_forward.2} parent=5 // pred_fallthru
        _
    $region6: #{classifier_b_forward.2} parent=1 // loop_footer
      %s13 = sadd.s32 1, %s9
    $region7: #{classifier_b_forward.2} parent=1 // loop_footer_branch
      %8 = sbr.rel target = $region3
    $region8: #{classifier_b_forward.2} parent=1 // loop_exit
      _

// kernel: classifier_b_forward.3
$region0: #{classifier_b_forward.3}
  #allocation0 [shape = 'u32[]', space=smem, size = 0x4, offset = 0x4, fixed_abs, tag = 'smem constant byte address 0x4 - core index']
  #allocation1 [shape = 'u32[144,128]{1,0:T(1,128)}', space=vmem, size = 0x12000, scoped, tag = 'internal scratch']
  %s0 = inlined_call_operand.vmem [shape: bf16[11,16,704], index: 0, kind: input, shape index: {}]
  %s1 = inlined_call_operand.vmem [shape: bf16[12,192,128], index: 1, kind: input, shape index: {}]
  %s2 = inlined_call_operand.vmem [shape: f32[1,128], index: 2, kind: input, shape index: {}]
  %s3 = inlined_call_operand.vmem [shape: bf16[9,128,128], index: 3, kind: input, shape index: {}]
  %s4 = inlined_call_operand.vmem [shape: f32[1,128], index: 4, kind: input, shape index: {}]
  %s5 = inlined_call_operand.vmem [shape: bf16[128,128], index: 5, kind: input, shape index: {}]
  %s6 = inlined_call_operand.vmem [shape: f32[1,128], index: 6, kind: input, shape index: {}]
  %s7 = inlined_call_operand.vmem [shape: f32[16,128], index: 7, kind: output, shape index: {}]
  %s8 = sld [smem:[#allocation0]]
  $region38: #{classifier_b_forward.3} parent=0
    _
  %s10 = ssub.s32 1, %s8
  %s11 = scalar_select 0, %s10, %s8
  // Predicated region
  $region2: #{classifier_b_forward.3} parent=0 // pred_check
    _
  $region3: #{classifier_b_forward.3} parent=0 // pred_check_branch
    %13 = sbr.rel (0) target = $region5
  $region4: #{classifier_b_forward.3} parent=0 // pred_region
    _
  $region5: #{classifier_b_forward.3} parent=0 // pred_fallthru
    _
  // Predicated region
  $region6: #{classifier_b_forward.3} parent=0 // pred_check
    _
  $region7: #{classifier_b_forward.3} parent=0 // pred_check_branch
    %15 = sbr.rel (0) target = $region9
  $region8: #{classifier_b_forward.3} parent=0 // pred_region
    _
  $region9: #{classifier_b_forward.3} parent=0 // pred_fallthru
    _
  // Predicated region
  $region10: #{classifier_b_forward.3} parent=0 // pred_check
    _
  $region11: #{classifier_b_forward.3} parent=0 // pred_check_branch
    %17 = sbr.rel (0) target = $region13
  $region12: #{classifier_b_forward.3} parent=0 // pred_region
    _
  $region13: #{classifier_b_forward.3} parent=0 // pred_fallthru
    _
  // Predicated region
  $region14: #{classifier_b_forward.3} parent=0 // pred_check
    _
  $region15: #{classifier_b_forward.3} parent=0 // pred_check_branch
    %19 = sbr.rel (0) target = $region17
  $region16: #{classifier_b_forward.3} parent=0 // pred_region
    _
  $region17: #{classifier_b_forward.3} parent=0 // pred_fallthru
    _
  // Predicated region
  $region18: #{classifier_b_forward.3} parent=0 // pred_check
    _
  $region19: #{classifier_b_forward.3} parent=0 // pred_check_branch
    %21 = sbr.rel (0) target = $region21
  $region20: #{classifier_b_forward.3} parent=0 // pred_region
    _
  $region21: #{classifier_b_forward.3} parent=0 // pred_fallthru
    _
  // Predicated region
  $region22: #{classifier_b_forward.3} parent=0 // pred_check
    _
  $region23: #{classifier_b_forward.3} parent=0 // pred_check_branch
    %23 = sbr.rel (0) target = $region25
  $region24: #{classifier_b_forward.3} parent=0 // pred_region
    _
  $region25: #{classifier_b_forward.3} parent=0 // pred_fallthru
    _
  // Predicated region
  $region26: #{classifier_b_forward.3} parent=0 // pred_check
    _
  $region27: #{classifier_b_forward.3} parent=0 // pred_check_branch
    %25 = sbr.rel (0) target = $region29
  $region28: #{classifier_b_forward.3} parent=0 // pred_region
    _
  $region29: #{classifier_b_forward.3} parent=0 // pred_fallthru
    _
  %v27 = vld [vmem:[%s1] sm:$0xf]
  %v28 = vld [vmem:[%s1 + $0x4] sm:$0xf]
  %v29 = vld [vmem:[%s1 + $0x8] sm:$0xf]
  %v30 = vld [vmem:[%s1 + $0xc] sm:$0xf]
  %v31 = vld [vmem:[%s1 + $0x10] sm:$0xf]
  %v32 = vld [vmem:[%s1 + $0x14] sm:$0xf]
  %v33 = vld [vmem:[%s1 + $0x18] sm:$0xf]
  %v34 = vld [vmem:[%s1 + $0x1c] sm:$0xf]
  %v35 = vld [vmem:[%s1 + $0x20] sm:$0xf]
  %v36 = vld [vmem:[%s1 + $0x24] sm:$0xf]
  %v37 = vld [vmem:[%s1 + $0x28] sm:$0xf]
  %v38 = vld [vmem:[%s1 + $0x2c] sm:$0xf]
  %v39 = vld [vmem:[%s1 + $0x30] sm:$0xf]
  %v40 = vld [vmem:[%s1 + $0x34] sm:$0xf]
  %v41 = vld [vmem:[%s1 + $0x38] sm:$0xf]
  %v42 = vld [vmem:[%s1 + $0x3c] sm:$0xf]
  %v43 = vld [vmem:[%s1 + $0x40] sm:$0xf]
  %v44 = vld [vmem:[%s1 + $0x44] sm:$0xf]
  %v45 = vld [vmem:[%s1 + $0x48] sm:$0xf]
  %v46 = vld [vmem:[%s1 + $0x4c] sm:$0xf]
  %v47 = vld [vmem:[%s1 + $0x50] sm:$0xf]
  %v48 = vld [vmem:[%s1 + $0x54] sm:$0xf]
  %v49 = vld [vmem:[%s1 + $0x58] sm:$0xf]
  %v50 = vld [vmem:[%s1 + $0x5c] sm:$0xf]
  %v51 = vld [vmem:[%s0] sm:$0xff]
  %v52 = vld [vmem:[%s0 + $0x18] sm:$0xff]
  %s53 = scalar_lea.vmem %s0, 48
  %v54 = vld [vmem:[%s53] sm:$0xff]
  %v55 = vld [vmem:[%s53 + $0x18] sm:$0xff]
  %s56 = scalar_lea.vmem %s0, 96
  %v57 = vld [vmem:[%s56] sm:$0xff]
  %v58 = vld [vmem:[%s56 + $0x18] sm:$0xff]
  %v61 = vunpack.c.l.b16 %v51
  %v62 = vunpack.c.h.b16 %v51
  %v63 = vunpack.c.l.b16 %v52
  %v64 = vunpack.c.h.b16 %v52
  %v65 = vpack.c.b16 %v63, %v61
  %v66 = vpack.c.b16 %v64, %v62
  %v70 = vunpack.c.l.b16 %v54
  %v71 = vunpack.c.h.b16 %v54
  %v72 = vunpack.c.l.b16 %v55
  %v73 = vunpack.c.h.b16 %v55
  %v74 = vpack.c.b16 %v72, %v70
  %v75 = vpack.c.b16 %v73, %v71
  %v79 = vunpack.c.l.b16 %v57
  %v80 = vunpack.c.h.b16 %v57
  %v81 = vunpack.c.l.b16 %v58
  %v82 = vunpack.c.h.b16 %v58
  %v83 = vpack.c.b16 %v81, %v79
  %v84 = vpack.c.b16 %v82, %v80
  %v86 = vld [vmem:[%s0 + $0x4] sm:$0xff]
  %v87 = vld [vmem:[%s0 + $0x1c] sm:$0xff]
  %v88 = vld [vmem:[%s53 + $0x4] sm:$0xff]
  %v89 = vld [vmem:[%s53 + $0x1c] sm:$0xff]
  %v90 = vld [vmem:[%s56 + $0x4] sm:$0xff]
  %v91 = vld [vmem:[%s56 + $0x1c] sm:$0xff]
  %v94 = vunpack.c.l.b16 %v86
  %v95 = vunpack.c.h.b16 %v86
  %v96 = vunpack.c.l.b16 %v87
  %v97 = vunpack.c.h.b16 %v87
  %v98 = vpack.c.b16 %v96, %v94
  %v99 = vpack.c.b16 %v97, %v95
  %v103 = vunpack.c.l.b16 %v88
  %v104 = vunpack.c.h.b16 %v88
  %v105 = vunpack.c.l.b16 %v89
  %v106 = vunpack.c.h.b16 %v89
  %v107 = vpack.c.b16 %v105, %v103
  %v108 = vpack.c.b16 %v106, %v104
  %v112 = vunpack.c.l.b16 %v90
  %v113 = vunpack.c.h.b16 %v90
  %v114 = vunpack.c.l.b16 %v91
  %v115 = vunpack.c.h.b16 %v91
  %v116 = vpack.c.b16 %v114, %v112
  %v117 = vpack.c.b16 %v115, %v113
  %s119 = scalar_lea.vmem %s1, 96
  %v120 = vld [vmem:[%s119] sm:$0xf]
  %v121 = vld [vmem:[%s119 + $0x4] sm:$0xf]
  %v122 = vld [vmem:[%s119 + $0x8] sm:$0xf]
  %v123 = vld [vmem:[%s119 + $0xc] sm:$0xf]
  %v124 = vld [vmem:[%s119 + $0x10] sm:$0xf]
  %v125 = vld [vmem:[%s119 + $0x14] sm:$0xf]
  %v126 = vld [vmem:[%s119 + $0x18] sm:$0xf]
  %v127 = vld [vmem:[%s119 + $0x1c] sm:$0xf]
  %v128 = vld [vmem:[%s119 + $0x20] sm:$0xf]
  %v129 = vld [vmem:[%s119 + $0x24] sm:$0xf]
  %v130 = vld [vmem:[%s119 + $0x28] sm:$0xf]
  %v131 = vld [vmem:[%s119 + $0x2c] sm:$0xf]
  %v132 = vld [vmem:[%s119 + $0x30] sm:$0xf]
  %v133 = vld [vmem:[%s119 + $0x34] sm:$0xf]
  %v134 = vld [vmem:[%s119 + $0x38] sm:$0xf]
  %v135 = vld [vmem:[%s119 + $0x3c] sm:$0xf]
  %v136 = vld [vmem:[%s119 + $0x40] sm:$0xf]
  %v137 = vld [vmem:[%s119 + $0x44] sm:$0xf]
  %v138 = vld [vmem:[%s119 + $0x48] sm:$0xf]
  %v139 = vld [vmem:[%s119 + $0x4c] sm:$0xf]
  %v140 = vld [vmem:[%s119 + $0x50] sm:$0xf]
  %v141 = vld [vmem:[%s119 + $0x54] sm:$0xf]
  %v142 = vld [vmem:[%s119 + $0x58] sm:$0xf]
  %v143 = vld [vmem:[%s119 + $0x5c] sm:$0xf]
  %v144 = vld [vmem:[%s0 + $0xc] sm:$0xff]
  %v145 = vld [vmem:[%s0 + $0x24] sm:$0xff]
  %v146 = vld [vmem:[%s53 + $0xc] sm:$0xff]
  %v147 = vld [vmem:[%s53 + $0x24] sm:$0xff]
  %v148 = vld [vmem:[%s56 + $0xc] sm:$0xff]
  %v149 = vld [vmem:[%s56 + $0x24] sm:$0xff]
  %v152 = vunpack.c.l.b16 %v144
  %v153 = vunpack.c.h.b16 %v144
  %v154 = vunpack.c.l.b16 %v145
  %v155 = vunpack.c.h.b16 %v145
  %v156 = vpack.c.b16 %v154, %v152
  %v157 = vpack.c.b16 %v155, %v153
  %v161 = vunpack.c.l.b16 %v146
  %v162 = vunpack.c.h.b16 %v146
  %v163 = vunpack.c.l.b16 %v147
  %v164 = vunpack.c.h.b16 %v147
  %v165 = vpack.c.b16 %v163, %v161
  %v166 = vpack.c.b16 %v164, %v162
  %v170 = vunpack.c.l.b16 %v148
  %v171 = vunpack.c.h.b16 %v148
  %v172 = vunpack.c.l.b16 %v149
  %v173 = vunpack.c.h.b16 %v149
  %v174 = vpack.c.b16 %v172, %v170
  %v175 = vpack.c.b16 %v173, %v171
  %v201 = vunpack.c.l.b16 %v120
  %v202 = vunpack.c.l.b16 %v121
  %v203 = vunpack.c.l.b16 %v122
  %v204 = vunpack.c.l.b16 %v123
  %v205 = vunpack.c.l.b16 %v124
  %v206 = vunpack.c.l.b16 %v125
  %v207 = vunpack.c.l.b16 %v126
  %v208 = vunpack.c.l.b16 %v127
  %v209 = vunpack.c.l.b16 %v128
  %v210 = vunpack.c.l.b16 %v129
  %v211 = vunpack.c.l.b16 %v130
  %v212 = vunpack.c.l.b16 %v131
  %v213 = vunpack.c.l.b16 %v132
  %v214 = vunpack.c.l.b16 %v133
  %v215 = vunpack.c.l.b16 %v134
  %v216 = vunpack.c.l.b16 %v135
  %v217 = vunpack.c.l.b16 %v136
  %v218 = vunpack.c.l.b16 %v137
  %v219 = vunpack.c.l.b16 %v138
  %v220 = vunpack.c.l.b16 %v139
  %v221 = vunpack.c.l.b16 %v140
  %v222 = vunpack.c.l.b16 %v141
  %v223 = vunpack.c.l.b16 %v142
  %v224 = vunpack.c.l.b16 %v143
  %v225 = vpack.c.b16 %v202, %v201
  %v226 = vpack.c.b16 %v204, %v203
  %v227 = vpack.c.b16 %v206, %v205
  %v228 = vpack.c.b16 %v208, %v207
  %v229 = vpack.c.b16 %v210, %v209
  %v230 = vpack.c.b16 %v212, %v211
  %v231 = vpack.c.b16 %v214, %v213
  %v232 = vpack.c.b16 %v216, %v215
  %v233 = vpack.c.b16 %v218, %v217
  %v234 = vpack.c.b16 %v220, %v219
  %v235 = vpack.c.b16 %v222, %v221
  %v236 = vpack.c.b16 %v224, %v223
  %vm249 = vcmask 523264
  %v251 = vsel %vm249, %v157, 0
  %v254 = vsel %vm249, %v166, 0
  %v257 = vsel %vm249, %v175, 0
  %259 = vmatprep.subr.bf16.mxu0 0
  %260 = vmatpush1.bf16.msra.mxu0 %v225
  %261 = vmatprep.subr.bf16.mxu0 0
  %262 = vmatpush1.bf16.msra.mxu0 %v226
  %263 = vmatprep.subr.bf16.mxu0 0
  %264 = vmatpush1.bf16.msra.mxu0 %v227
  %265 = vmatprep.subr.bf16.mxu0 0
  %266 = vmatpush1.bf16.msra.mxu0 %v228
  %267 = vmatprep.subr.bf16.mxu0 0
  %268 = vmatpush1.bf16.msra.mxu0 %v229
  %269 = vmatprep.subr.bf16.mxu0 0
  %270 = vmatpush1.bf16.msra.mxu0 %v230
  %271 = vmatprep.subr.bf16.mxu0 0
  %272 = vmatpush1.bf16.msra.mxu0 %v231
  %273 = vmatprep.subr.bf16.mxu0 0
  %274 = vmatpush1.bf16.msra.mxu0 %v232
  %275 = vmatprep.subr.bf16.mxu0 0
  %276 = vmatpush1.bf16.msra.mxu0 %v233
  %277 = vmatprep.subr.bf16.mxu0 0
  %278 = vmatpush1.bf16.msra.mxu0 %v234
  %279 = vmatprep.subr.bf16.mxu0 0
  %280 = vmatpush1.bf16.msra.mxu0 %v235
  %281 = vmatprep.subr.bf16.mxu0 0
  %282 = vmatpush1.bf16.msra.mxu0 %v236
  %283 = vmatprep.subr.bf16.mxu0 0
  %284 = vmatpush1.bf16.msra.mxu0 0
  %285 = vmatprep.subr.bf16.mxu0 0
  %286 = vmatpush1.bf16.msra.mxu0 0
  %287 = vmatprep.subr.bf16.mxu0 0
  %288 = vmatpush1.bf16.msra.mxu0 0
  %289 = vmatprep.subr.bf16.mxu0 0
  %290 = vmatpush1.bf16.msra.mxu0 0
  %291 = vmatprep.mubr.bf16.mxu0 %v251
  %292 = vmatmul.mubr.bf16.gmra.mrb[0].mxu0 %v156
  %v293 = vpop.f32.mrb[0].mxu0
  %v294 = vadd.f32 0.0, %v293
  %v295 = vpop.f32.mrb[0].mxu0
  %v296 = vpop.f32.mrb[0].mxu0
  %v297 = vadd.f32 0.0, %v296
  %v298 = vpop.f32.mrb[0].mxu0
  %299 = vmatprep.mubr.bf16.mxu0 %v254
  %300 = vmatmul.mubr.bf16.gmra.mrb[0].mxu0 %v165
  %v301 = vpop.f32.mrb[0].mxu0
  %v302 = vadd.f32 0.0, %v301
  %v303 = vpop.f32.mrb[0].mxu0
  %v304 = vpop.f32.mrb[0].mxu0
  %v305 = vadd.f32 0.0, %v304
  %v306 = vpop.f32.mrb[0].mxu0
  %307 = vmatprep.mubr.bf16.mxu0 %v257
  %308 = vmatmul.mubr.bf16.gmra.mrb[0].mxu0 %v174
  %v309 = vpop.f32.mrb[0].mxu0
  %v310 = vadd.f32 0.0, %v309
  %v311 = vpop.f32.mrb[0].mxu0
  %v312 = vpop.f32.mrb[0].mxu0
  %v313 = vadd.f32 0.0, %v312
  %v314 = vpop.f32.mrb[0].mxu0
  %315 = vdwg.mxu0
  %v340 = vunpack.c.l.b16 %v27
  %v341 = vunpack.c.l.b16 %v28
  %v342 = vunpack.c.l.b16 %v29
  %v343 = vunpack.c.l.b16 %v30
  %v344 = vunpack.c.l.b16 %v31
  %v345 = vunpack.c.l.b16 %v32
  %v346 = vunpack.c.l.b16 %v33
  %v347 = vunpack.c.l.b16 %v34
  %v348 = vunpack.c.l.b16 %v35
  %v349 = vunpack.c.l.b16 %v36
  %v350 = vunpack.c.l.b16 %v37
  %v351 = vunpack.c.l.b16 %v38
  %v352 = vunpack.c.l.b16 %v39
  %v353 = vunpack.c.l.b16 %v40
  %v354 = vunpack.c.l.b16 %v41
  %v355 = vunpack.c.l.b16 %v42
  %v356 = vunpack.c.l.b16 %v43
  %v357 = vunpack.c.l.b16 %v44
  %v358 = vunpack.c.l.b16 %v45
  %v359 = vunpack.c.l.b16 %v46
  %v360 = vunpack.c.l.b16 %v47
  %v361 = vunpack.c.l.b16 %v48
  %v362 = vunpack.c.l.b16 %v49
  %v363 = vunpack.c.l.b16 %v50
  %v364 = vpack.c.b16 %v341, %v340
  %v365 = vpack.c.b16 %v343, %v342
  %v366 = vpack.c.b16 %v345, %v344
  %v367 = vpack.c.b16 %v347, %v346
  %v368 = vpack.c.b16 %v349, %v348
  %v369 = vpack.c.b16 %v351, %v350
  %v370 = vpack.c.b16 %v353, %v352
  %v371 = vpack.c.b16 %v355, %v354
  %v372 = vpack.c.b16 %v357, %v356
  %v373 = vpack.c.b16 %v359, %v358
  %v374 = vpack.c.b16 %v361, %v360
  %v375 = vpack.c.b16 %v363, %v362
  %v389 = vsel %vm249, %v66, 0
  %v392 = vsel %vm249, %v75, 0
  %v395 = vsel %vm249, %v84, 0
  %397 = vmatprep.subr.bf16.mxu0 0
  %398 = vmatpush1.bf16.msra.mxu0 %v364
  %399 = vmatprep.subr.bf16.mxu0 0
  %400 = vmatpush1.bf16.msra.mxu0 %v365
  %401 = vmatprep.subr.bf16.mxu0 0
  %402 = vmatpush1.bf16.msra.mxu0 %v366
  %403 = vmatprep.subr.bf16.mxu0 0
  %404 = vmatpush1.bf16.msra.mxu0 %v367
  %405 = vmatprep.subr.bf16.mxu0 0
  %406 = vmatpush1.bf16.msra.mxu0 %v368
  %407 = vmatprep.subr.bf16.mxu0 0
  %408 = vmatpush1.bf16.msra.mxu0 %v369
  %409 = vmatprep.subr.bf16.mxu0 0
  %410 = vmatpush1.bf16.msra.mxu0 %v370
  %411 = vmatprep.subr.bf16.mxu0 0
  %412 = vmatpush1.bf16.msra.mxu0 %v371
  %413 = vmatprep.subr.bf16.mxu0 0
  %414 = vmatpush1.bf16.msra.mxu0 %v372
  %415 = vmatprep.subr.bf16.mxu0 0
  %416 = vmatpush1.bf16.msra.mxu0 %v373
  %417 = vmatprep.subr.bf16.mxu0 0
  %418 = vmatpush1.bf16.msra.mxu0 %v374
  %419 = vmatprep.subr.bf16.mxu0 0
  %420 = vmatpush1.bf16.msra.mxu0 %v375
  %421 = vmatprep.subr.bf16.mxu0 0
  %422 = vmatpush1.bf16.msra.mxu0 0
  %423 = vmatprep.subr.bf16.mxu0 0
  %424 = vmatpush1.bf16.msra.mxu0 0
  %425 = vmatprep.subr.bf16.mxu0 0
  %426 = vmatpush1.bf16.msra.mxu0 0
  %427 = vmatprep.subr.bf16.mxu0 0
  %428 = vmatpush1.bf16.msra.mxu0 0
  %429 = vmatprep.mubr.bf16.mxu0 %v389
  %430 = vmatmul.mubr.bf16.gmra.mrb[0].mxu0 %v65
  %v431 = vpop.f32.mrb[0].mxu0
  %v432 = vadd.f32 %v294, %v431
  %v433 = vpop.f32.mrb[0].mxu0
  %v434 = vpop.f32.mrb[0].mxu0
  %v435 = vadd.f32 %v297, %v434
  %v436 = vpop.f32.mrb[0].mxu0
  %437 = vmatprep.mubr.bf16.mxu0 %v392
  %438 = vmatmul.mubr.bf16.gmra.mrb[0].mxu0 %v74
  %v439 = vpop.f32.mrb[0].mxu0
  %v440 = vadd.f32 %v302, %v439
  %v441 = vpop.f32.mrb[0].mxu0
  %v442 = vpop.f32.mrb[0].mxu0
  %v443 = vadd.f32 %v305, %v442
  %v444 = vpop.f32.mrb[0].mxu0
  %445 = vmatprep.mubr.bf16.mxu0 %v395
  %446 = vmatmul.mubr.bf16.gmra.mrb[0].mxu0 %v83
  %v447 = vpop.f32.mrb[0].mxu0
  %v448 = vadd.f32 %v310, %v447
  %v449 = vpop.f32.mrb[0].mxu0
  %v450 = vpop.f32.mrb[0].mxu0
  %v451 = vadd.f32 %v313, %v450
  %v452 = vpop.f32.mrb[0].mxu0
  %453 = vdwg.mxu0
  %454 = vrot.lane.b32.xlu0 %v156, 64
  %v455 = vpop.permute.xlu0 %454
  %456 = vrot.lane.b32.xlu0 %v157, 64
  %v457 = vpop.permute.xlu0 %456
  %458 = vrot.lane.b32.xlu0 %v165, 64
  %v459 = vpop.permute.xlu0 %458
  %460 = vrot.lane.b32.xlu0 %v166, 64
  %v461 = vpop.permute.xlu0 %460
  %462 = vrot.lane.b32.xlu0 %v174, 64
  %v463 = vpop.permute.xlu0 %462
  %464 = vrot.lane.b32.xlu0 %v175, 64
  %v465 = vpop.permute.xlu0 %464
  %vm466 = vcmask 523264
  %v467 = vsel %vm466, %v455, %v457
  %v468 = vsel %vm466, %v459, %v461
  %v469 = vsel %vm466, %v463, %v465
  %v474 = vsel %vm249, %v457, 0
  %v477 = vsel %vm249, %v461, 0
  %v480 = vsel %vm249, %v465, 0
  %482 = vmatprep.subr.bf16.mxu0 0
  %483 = vmatpush1.bf16.msra.mxu0 %v225
  %484 = vmatprep.subr.bf16.mxu0 0
  %485 = vmatpush1.bf16.msra.mxu0 %v226
  %486 = vmatprep.subr.bf16.mxu0 0
  %487 = vmatpush1.bf16.msra.mxu0 %v227
  %488 = vmatprep.subr.bf16.mxu0 0
  %489 = vmatpush1.bf16.msra.mxu0 %v228
  %490 = vmatprep.subr.bf16.mxu0 0
  %491 = vmatpush1.bf16.msra.mxu0 %v229
  %492 = vmatprep.subr.bf16.mxu0 0
  %493 = vmatpush1.bf16.msra.mxu0 %v230
  %494 = vmatprep.subr.bf16.mxu0 0
  %495 = vmatpush1.bf16.msra.mxu0 %v231
  %496 = vmatprep.subr.bf16.mxu0 0
  %497 = vmatpush1.bf16.msra.mxu0 %v232
  %498 = vmatprep.subr.bf16.mxu0 0
  %499 = vmatpush1.bf16.msra.mxu0 %v233
  %500 = vmatprep.subr.bf16.mxu0 0
  %501 = vmatpush1.bf16.msra.mxu0 %v234
  %502 = vmatprep.subr.bf16.mxu0 0
  %503 = vmatpush1.bf16.msra.mxu0 %v235
  %504 = vmatprep.subr.bf16.mxu0 0
  %505 = vmatpush1.bf16.msra.mxu0 %v236
  %506 = vmatprep.subr.bf16.mxu0 0
  %507 = vmatpush1.bf16.msra.mxu0 0
  %508 = vmatprep.subr.bf16.mxu0 0
  %509 = vmatpush1.bf16.msra.mxu0 0
  %510 = vmatprep.subr.bf16.mxu0 0
  %511 = vmatpush1.bf16.msra.mxu0 0
  %512 = vmatprep.subr.bf16.mxu0 0
  %513 = vmatpush1.bf16.msra.mxu0 0
  %514 = vmatprep.mubr.bf16.mxu0 %v474
  %515 = vmatmul.mubr.bf16.gmra.mrb[0].mxu0 %v467
  %v516 = vpop.f32.mrb[0].mxu0
  %v517 = vadd.f32 0.0, %v516
  %v518 = vpop.f32.mrb[0].mxu0
  %v519 = vpop.f32.mrb[0].mxu0
  %v520 = vadd.f32 0.0, %v519
  %v521 = vpop.f32.mrb[0].mxu0
  %522 = vmatprep.mubr.bf16.mxu0 %v477
  %523 = vmatmul.mubr.bf16.gmra.mrb[0].mxu0 %v468
  %v524 = vpop.f32.mrb[0].mxu0
  %v525 = vadd.f32 0.0, %v524
  %v526 = vpop.f32.mrb[0].mxu0
  %v527 = vpop.f32.mrb[0].mxu0
  %v528 = vadd.f32 0.0, %v527
  %v529 = vpop.f32.mrb[0].mxu0
  %530 = vmatprep.mubr.bf16.mxu0 %v480
  %531 = vmatmul.mubr.bf16.gmra.mrb[0].mxu0 %v469
  %v532 = vpop.f32.mrb[0].mxu0
  %v533 = vadd.f32 0.0, %v532
  %v534 = vpop.f32.mrb[0].mxu0
  %v535 = vpop.f32.mrb[0].mxu0
  %v536 = vadd.f32 0.0, %v535
  %v537 = vpop.f32.mrb[0].mxu0
  %538 = vdwg.mxu0
  %539 = vrot.lane.b32.xlu0 %v65, 64
  %v540 = vpop.permute.xlu0 %539
  %541 = vrot.lane.b32.xlu0 %v66, 64
  %v542 = vpop.permute.xlu0 %541
  %543 = vrot.lane.b32.xlu0 %v74, 64
  %v544 = vpop.permute.xlu0 %543
  %545 = vrot.lane.b32.xlu0 %v75, 64
  %v546 = vpop.permute.xlu0 %545
  %547 = vrot.lane.b32.xlu0 %v83, 64
  %v548 = vpop.permute.xlu0 %547
  %549 = vrot.lane.b32.xlu0 %v84, 64
  %v550 = vpop.permute.xlu0 %549
  %v551 = vsel %vm466, %v540, %v542
  %v552 = vsel %vm466, %v544, %v546
  %v553 = vsel %vm466, %v548, %v550
  %v558 = vsel %vm249, %v542, 0
  %v561 = vsel %vm249, %v546, 0
  %v564 = vsel %vm249, %v550, 0
  %566 = vmatprep.subr.bf16.mxu0 0
  %567 = vmatpush1.bf16.msra.mxu0 %v364
  %568 = vmatprep.subr.bf16.mxu0 0
  %569 = vmatpush1.bf16.msra.mxu0 %v365
  %570 = vmatprep.subr.bf16.mxu0 0
  %571 = vmatpush1.bf16.msra.mxu0 %v366
  %572 = vmatprep.subr.bf16.mxu0 0
  %573 = vmatpush1.bf16.msra.mxu0 %v367
  %574 = vmatprep.subr.bf16.mxu0 0
  %575 = vmatpush1.bf16.msra.mxu0 %v368
  %576 = vmatprep.subr.bf16.mxu0 0
  %577 = vmatpush1.bf16.msra.mxu0 %v369
  %578 = vmatprep.subr.bf16.mxu0 0
  %579 = vmatpush1.bf16.msra.mxu0 %v370
  %580 = vmatprep.subr.bf16.mxu0 0
  %581 = vmatpush1.bf16.msra.mxu0 %v371
  %582 = vmatprep.subr.bf16.mxu0 0
  %583 = vmatpush1.bf16.msra.mxu0 %v372
  %584 = vmatprep.subr.bf16.mxu0 0
  %585 = vmatpush1.bf16.msra.mxu0 %v373
  %586 = vmatprep.subr.bf16.mxu0 0
  %587 = vmatpush1.bf16.msra.mxu0 %v374
  %588 = vmatprep.subr.bf16.mxu0 0
  %589 = vmatpush1.bf16.msra.mxu0 %v375
  %590 = vmatprep.subr.bf16.mxu0 0
  %591 = vmatpush1.bf16.msra.mxu0 0
  %592 = vmatprep.subr.bf16.mxu0 0
  %593 = vmatpush1.bf16.msra.mxu0 0
  %594 = vmatprep.subr.bf16.mxu0 0
  %595 = vmatpush1.bf16.msra.mxu0 0
  %596 = vmatprep.subr.bf16.mxu0 0
  %597 = vmatpush1.bf16.msra.mxu0 0
  %598 = vmatprep.mubr.bf16.mxu0 %v558
  %599 = vmatmul.mubr.bf16.gmra.mrb[0].mxu0 %v551
  %v600 = vpop.f32.mrb[0].mxu0
  %v601 = vadd.f32 %v517, %v600
  %v602 = vpop.f32.mrb[0].mxu0
  %v603 = vpop.f32.mrb[0].mxu0
  %v604 = vadd.f32 %v520, %v603
  %v605 = vpop.f32.mrb[0].mxu0
  %606 = vmatprep.mubr.bf16.mxu0 %v561
  %607 = vmatmul.mubr.bf16.gmra.mrb[0].mxu0 %v552
  %v608 = vpop.f32.mrb[0].mxu0
  %v609 = vadd.f32 %v525, %v608
  %v610 = vpop.f32.mrb[0].mxu0
  %v611 = vpop.f32.mrb[0].mxu0
  %v612 = vadd.f32 %v528, %v611
  %v613 = vpop.f32.mrb[0].mxu0
  %614 = vmatprep.mubr.bf16.mxu0 %v564
  %615 = vmatmul.mubr.bf16.gmra.mrb[0].mxu0 %v553
  %v616 = vpop.f32.mrb[0].mxu0
  %v617 = vadd.f32 %v533, %v616
  %v618 = vpop.f32.mrb[0].mxu0
  %v619 = vpop.f32.mrb[0].mxu0
  %v620 = vadd.f32 %v536, %v619
  %v621 = vpop.f32.mrb[0].mxu0
  %622 = vdwg.mxu0
  %v623 = vld [vmem:[%s0 + $0x10] sm:$0xff]
  %v624 = vld [vmem:[%s0 + $0x28] sm:$0xff]
  %v625 = vld [vmem:[%s53 + $0x10] sm:$0xff]
  %v626 = vld [vmem:[%s53 + $0x28] sm:$0xff]
  %v627 = vld [vmem:[%s56 + $0x10] sm:$0xff]
  %v628 = vld [vmem:[%s56 + $0x28] sm:$0xff]
  %v631 = vunpack.c.l.b16 %v623
  %v632 = vunpack.c.h.b16 %v623
  %v633 = vunpack.c.l.b16 %v624
  %v634 = vunpack.c.h.b16 %v624
  %v635 = vpack.c.b16 %v633, %v631
  %v636 = vpack.c.b16 %v634, %v632
  %v640 = vunpack.c.l.b16 %v625
  %v641 = vunpack.c.h.b16 %v625
  %v642 = vunpack.c.l.b16 %v626
  %v643 = vunpack.c.h.b16 %v626
  %v644 = vpack.c.b16 %v642, %v640
  %v645 = vpack.c.b16 %v643, %v641
  %v649 = vunpack.c.l.b16 %v627
  %v650 = vunpack.c.h.b16 %v627
  %v651 = vunpack.c.l.b16 %v628
  %v652 = vunpack.c.h.b16 %v628
  %v653 = vpack.c.b16 %v651, %v649
  %v654 = vpack.c.b16 %v652, %v650
  %v657 = vsel %vm249, %v636, 0
  %v660 = vsel %vm249, %v645, 0
  %v663 = vsel %vm249, %v654, 0
  %665 = vmatprep.subr.bf16.mxu0 0
  %666 = vmatpush1.bf16.msra.mxu0 %v225
  %667 = vmatprep.subr.bf16.mxu0 0
  %668 = vmatpush1.bf16.msra.mxu0 %v226
  %669 = vmatprep.subr.bf16.mxu0 0
  %670 = vmatpush1.bf16.msra.mxu0 %v227
  %671 = vmatprep.subr.bf16.mxu0 0
  %672 = vmatpush1.bf16.msra.mxu0 %v228
  %673 = vmatprep.subr.bf16.mxu0 0
  %674 = vmatpush1.bf16.msra.mxu0 %v229
  %675 = vmatprep.subr.bf16.mxu0 0
  %676 = vmatpush1.bf16.msra.mxu0 %v230
  %677 = vmatprep.subr.bf16.mxu0 0
  %678 = vmatpush1.bf16.msra.mxu0 %v231
  %679 = vmatprep.subr.bf16.mxu0 0
  %680 = vmatpush1.bf16.msra.mxu0 %v232
  %681 = vmatprep.subr.bf16.mxu0 0
  %682 = vmatpush1.bf16.msra.mxu0 %v233
  %683 = vmatprep.subr.bf16.mxu0 0
  %684 = vmatpush1.bf16.msra.mxu0 %v234
  %685 = vmatprep.subr.bf16.mxu0 0
  %686 = vmatpush1.bf16.msra.mxu0 %v235
  %687 = vmatprep.subr.bf16.mxu0 0
  %688 = vmatpush1.bf16.msra.mxu0 %v236
  %689 = vmatprep.subr.bf16.mxu0 0
  %690 = vmatpush1.bf16.msra.mxu0 0
  %691 = vmatprep.subr.bf16.mxu0 0
  %692 = vmatpush1.bf16.msra.mxu0 0
  %693 = vmatprep.subr.bf16.mxu0 0
  %694 = vmatpush1.bf16.msra.mxu0 0
  %695 = vmatprep.subr.bf16.mxu0 0
  %696 = vmatpush1.bf16.msra.mxu0 0
  %697 = vmatprep.mubr.bf16.mxu0 %v657
  %698 = vmatmul.mubr.bf16.gmra.mrb[0].mxu0 %v635
  %v699 = vpop.f32.mrb[0].mxu0
  %v700 = vadd.f32 0.0, %v699
  %v701 = vpop.f32.mrb[0].mxu0
  %v702 = vpop.f32.mrb[0].mxu0
  %v703 = vadd.f32 0.0, %v702
  %v704 = vpop.f32.mrb[0].mxu0
  %705 = vmatprep.mubr.bf16.mxu0 %v660
  %706 = vmatmul.mubr.bf16.gmra.mrb[0].mxu0 %v644
  %v707 = vpop.f32.mrb[0].mxu0
  %v708 = vadd.f32 0.0, %v707
  %v709 = vpop.f32.mrb[0].mxu0
  %v710 = vpop.f32.mrb[0].mxu0
  %v711 = vadd.f32 0.0, %v710
  %v712 = vpop.f32.mrb[0].mxu0
  %713 = vmatprep.mubr.bf16.mxu0 %v663
  %714 = vmatmul.mubr.bf16.gmra.mrb[0].mxu0 %v653
  %v715 = vpop.f32.mrb[0].mxu0
  %v716 = vadd.f32 0.0, %v715
  %v717 = vpop.f32.mrb[0].mxu0
  %v718 = vpop.f32.mrb[0].mxu0
  %v719 = vadd.f32 0.0, %v718
  %v720 = vpop.f32.mrb[0].mxu0
  %721 = vdwg.mxu0
  %v723 = vsel %vm249, %v99, 0
  %v726 = vsel %vm249, %v108, 0
  %v729 = vsel %vm249, %v117, 0
  %731 = vmatprep.subr.bf16.mxu0 0
  %732 = vmatpush1.bf16.msra.mxu0 %v364
  %733 = vmatprep.subr.bf16.mxu0 0
  %734 = vmatpush1.bf16.msra.mxu0 %v365
  %735 = vmatprep.subr.bf16.mxu0 0
  %736 = vmatpush1.bf16.msra.mxu0 %v366
  %737 = vmatprep.subr.bf16.mxu0 0
  %738 = vmatpush1.bf16.msra.mxu0 %v367
  %739 = vmatprep.subr.bf16.mxu0 0
  %740 = vmatpush1.bf16.msra.mxu0 %v368
  %741 = vmatprep.subr.bf16.mxu0 0
  %742 = vmatpush1.bf16.msra.mxu0 %v369
  %743 = vmatprep.subr.bf16.mxu0 0
  %744 = vmatpush1.bf16.msra.mxu0 %v370
  %745 = vmatprep.subr.bf16.mxu0 0
  %746 = vmatpush1.bf16.msra.mxu0 %v371
  %747 = vmatprep.subr.bf16.mxu0 0
  %748 = vmatpush1.bf16.msra.mxu0 %v372
  %749 = vmatprep.subr.bf16.mxu0 0
  %750 = vmatpush1.bf16.msra.mxu0 %v373
  %751 = vmatprep.subr.bf16.mxu0 0
  %752 = vmatpush1.bf16.msra.mxu0 %v374
  %753 = vmatprep.subr.bf16.mxu0 0
  %754 = vmatpush1.bf16.msra.mxu0 %v375
  %755 = vmatprep.subr.bf16.mxu0 0
  %756 = vmatpush1.bf16.msra.mxu0 0
  %757 = vmatprep.subr.bf16.mxu0 0
  %758 = vmatpush1.bf16.msra.mxu0 0
  %759 = vmatprep.subr.bf16.mxu0 0
  %760 = vmatpush1.bf16.msra.mxu0 0
  %761 = vmatprep.subr.bf16.mxu0 0
  %762 = vmatpush1.bf16.msra.mxu0 0
  %763 = vmatprep.mubr.bf16.mxu0 %v723
  %764 = vmatmul.mubr.bf16.gmra.mrb[0].mxu0 %v98
  %v765 = vpop.f32.mrb[0].mxu0
  %v766 = vadd.f32 %v700, %v765
  %v767 = vpop.f32.mrb[0].mxu0
  %v768 = vpop.f32.mrb[0].mxu0
  %v769 = vadd.f32 %v703, %v768
  %v770 = vpop.f32.mrb[0].mxu0
  %771 = vmatprep.mubr.bf16.mxu0 %v726
  %772 = vmatmul.mubr.bf16.gmra.mrb[0].mxu0 %v107
  %v773 = vpop.f32.mrb[0].mxu0
  %v774 = vadd.f32 %v708, %v773
  %v775 = vpop.f32.mrb[0].mxu0
  %v776 = vpop.f32.mrb[0].mxu0
  %v777 = vadd.f32 %v711, %v776
  %v778 = vpop.f32.mrb[0].mxu0
  %779 = vmatprep.mubr.bf16.mxu0 %v729
  %780 = vmatmul.mubr.bf16.gmra.mrb[0].mxu0 %v116
  %v781 = vpop.f32.mrb[0].mxu0
  %v782 = vadd.f32 %v716, %v781
  %v783 = vpop.f32.mrb[0].mxu0
  %v784 = vpop.f32.mrb[0].mxu0
  %v785 = vadd.f32 %v719, %v784
  %v786 = vpop.f32.mrb[0].mxu0
  %787 = vdwg.mxu0
  %s788 = scalar_lea.vmem %s1, 192
  %v789 = vld [vmem:[%s788] sm:$0xf]
  %v790 = vld [vmem:[%s788 + $0x4] sm:$0xf]
  %v791 = vld [vmem:[%s788 + $0x8] sm:$0xf]
  %v792 = vld [vmem:[%s788 + $0xc] sm:$0xf]
  %v793 = vld [vmem:[%s788 + $0x10] sm:$0xf]
  %v794 = vld [vmem:[%s788 + $0x14] sm:$0xf]
  %v795 = vld [vmem:[%s788 + $0x18] sm:$0xf]
  %v796 = vld [vmem:[%s788 + $0x1c] sm:$0xf]
  %v797 = vld [vmem:[%s788 + $0x20] sm:$0xf]
  %v798 = vld [vmem:[%s788 + $0x24] sm:$0xf]
  %v799 = vld [vmem:[%s788 + $0x28] sm:$0xf]
  %v800 = vld [vmem:[%s788 + $0x2c] sm:$0xf]
  %v801 = vld [vmem:[%s788 + $0x30] sm:$0xf]
  %v802 = vld [vmem:[%s788 + $0x34] sm:$0xf]
  %v803 = vld [vmem:[%s788 + $0x38] sm:$0xf]
  %v804 = vld [vmem:[%s788 + $0x3c] sm:$0xf]
  %v805 = vld [vmem:[%s788 + $0x40] sm:$0xf]
  %v806 = vld [vmem:[%s788 + $0x44] sm:$0xf]
  %v807 = vld [vmem:[%s788 + $0x48] sm:$0xf]
  %v808 = vld [vmem:[%s788 + $0x4c] sm:$0xf]
  %v809 = vld [vmem:[%s788 + $0x50] sm:$0xf]
  %v810 = vld [vmem:[%s788 + $0x54] sm:$0xf]
  %v811 = vld [vmem:[%s788 + $0x58] sm:$0xf]
  %v812 = vld [vmem:[%s788 + $0x5c] sm:$0xf]
  %s813 = scalar_lea.vmem %s0, 288
  %v814 = vld [vmem:[%s813] sm:$0xff]
  %v815 = vld [vmem:[%s813 + $0x18] sm:$0xff]
  %s816 = scalar_lea.vmem %s0, 336
  %v817 = vld [vmem:[%s816] sm:$0xff]
  %v818 = vld [vmem:[%s816 + $0x18] sm:$0xff]
  %s819 = scalar_lea.vmem %s0, 384
  %v820 = vld [vmem:[%s819] sm:$0xff]
  %v821 = vld [vmem:[%s819 + $0x18] sm:$0xff]
  %v824 = vunpack.c.l.b16 %v814
  %v825 = vunpack.c.h.b16 %v814
  %v826 = vunpack.c.l.b16 %v815
  %v827 = vunpack.c.h.b16 %v815
  %v828 = vpack.c.b16 %v826, %v824
  %v829 = vpack.c.b16 %v827, %v825
  %v833 = vunpack.c.l.b16 %v817
  %v834 = vunpack.c.h.b16 %v817
  %v835 = vunpack.c.l.b16 %v818
  %v836 = vunpack.c.h.b16 %v818
  %v837 = vpack.c.b16 %v835, %v833
  %v838 = vpack.c.b16 %v836, %v834
  %v842 = vunpack.c.l.b16 %v820
  %v843 = vunpack.c.h.b16 %v820
  %v844 = vunpack.c.l.b16 %v821
  %v845 = vunpack.c.h.b16 %v821
  %v846 = vpack.c.b16 %v844, %v842
  %v847 = vpack.c.b16 %v845, %v843
  %v873 = vunpack.c.l.b16 %v789
  %v874 = vunpack.c.l.b16 %v790
  %v875 = vunpack.c.l.b16 %v791
  %v876 = vunpack.c.l.b16 %v792
  %v877 = vunpack.c.l.b16 %v793
  %v878 = vunpack.c.l.b16 %v794
  %v879 = vunpack.c.l.b16 %v795
  %v880 = vunpack.c.l.b16 %v796
  %v881 = vunpack.c.l.b16 %v797
  %v882 = vunpack.c.l.b16 %v798
  %v883 = vunpack.c.l.b16 %v799
  %v884 = vunpack.c.l.b16 %v800
  %v885 = vunpack.c.l.b16 %v801
  %v886 = vunpack.c.l.b16 %v802
  %v887 = vunpack.c.l.b16 %v803
  %v888 = vunpack.c.l.b16 %v804
  %v889 = vunpack.c.l.b16 %v805
  %v890 = vunpack.c.l.b16 %v806
  %v891 = vunpack.c.l.b16 %v807
  %v892 = vunpack.c.l.b16 %v808
  %v893 = vunpack.c.l.b16 %v809
  %v894 = vunpack.c.l.b16 %v810
  %v895 = vunpack.c.l.b16 %v811
  %v896 = vunpack.c.l.b16 %v812
  %v897 = vpack.c.b16 %v874, %v873
  %v898 = vpack.c.b16 %v876, %v875
  %v899 = vpack.c.b16 %v878, %v877
  %v900 = vpack.c.b16 %v880, %v879
  %v901 = vpack.c.b16 %v882, %v881
  %v902 = vpack.c.b16 %v884, %v883
  %v903 = vpack.c.b16 %v886, %v885
  %v904 = vpack.c.b16 %v888, %v887
  %v905 = vpack.c.b16 %v890, %v889
  %v906 = vpack.c.b16 %v892, %v891
  %v907 = vpack.c.b16 %v894, %v893
  %v908 = vpack.c.b16 %v896, %v895
  %v922 = vsel %vm249, %v829, 0
  %v925 = vsel %vm249, %v838, 0
  %v928 = vsel %vm249, %v847, 0
  %930 = vmatprep.subr.bf16.mxu0 0
  %931 = vmatpush1.bf16.msra.mxu0 %v897
  %932 = vmatprep.subr.bf16.mxu0 0
  %933 = vmatpush1.bf16.msra.mxu0 %v898
  %934 = vmatprep.subr.bf16.mxu0 0
  %935 = vmatpush1.bf16.msra.mxu0 %v899
  %936 = vmatprep.subr.bf16.mxu0 0
  %937 = vmatpush1.bf16.msra.mxu0 %v900
  %938 = vmatprep.subr.bf16.mxu0 0
  %939 = vmatpush1.bf16.msra.mxu0 %v901
  %940 = vmatprep.subr.bf16.mxu0 0
  %941 = vmatpush1.bf16.msra.mxu0 %v902
  %942 = vmatprep.subr.bf16.mxu0 0
  %943 = vmatpush1.bf16.msra.mxu0 %v903
  %944 = vmatprep.subr.bf16.mxu0 0
  %945 = vmatpush1.bf16.msra.mxu0 %v904
  %946 = vmatprep.subr.bf16.mxu0 0
  %947 = vmatpush1.bf16.msra.mxu0 %v905
  %948 = vmatprep.subr.bf16.mxu0 0
  %949 = vmatpush1.bf16.msra.mxu0 %v906
  %950 = vmatprep.subr.bf16.mxu0 0
  %951 = vmatpush1.bf16.msra.mxu0 %v907
  %952 = vmatprep.subr.bf16.mxu0 0
  %953 = vmatpush1.bf16.msra.mxu0 %v908
  %954 = vmatprep.subr.bf16.mxu0 0
  %955 = vmatpush1.bf16.msra.mxu0 0
  %956 = vmatprep.subr.bf16.mxu0 0
  %957 = vmatpush1.bf16.msra.mxu0 0
  %958 = vmatprep.subr.bf16.mxu0 0
  %959 = vmatpush1.bf16.msra.mxu0 0
  %960 = vmatprep.subr.bf16.mxu0 0
  %961 = vmatpush1.bf16.msra.mxu0 0
  %962 = vmatprep.mubr.bf16.mxu0 %v922
  %963 = vmatmul.mubr.bf16.gmra.mrb[0].mxu0 %v828
  %v964 = vpop.f32.mrb[0].mxu0
  %v965 = vadd.f32 0.0, %v964
  %v966 = vpop.f32.mrb[0].mxu0
  %v967 = vpop.f32.mrb[0].mxu0
  %v968 = vadd.f32 0.0, %v967
  %v969 = vpop.f32.mrb[0].mxu0
  %970 = vmatprep.mubr.bf16.mxu0 %v925
  %971 = vmatmul.mubr.bf16.gmra.mrb[0].mxu0 %v837
  %v972 = vpop.f32.mrb[0].mxu0
  %v973 = vadd.f32 0.0, %v972
  %v974 = vpop.f32.mrb[0].mxu0
  %v975 = vpop.f32.mrb[0].mxu0
  %v976 = vadd.f32 0.0, %v975
  %v977 = vpop.f32.mrb[0].mxu0
  %978 = vmatprep.mubr.bf16.mxu0 %v928
  %979 = vmatmul.mubr.bf16.gmra.mrb[0].mxu0 %v846
  %v980 = vpop.f32.mrb[0].mxu0
  %v981 = vadd.f32 0.0, %v980
  %v982 = vpop.f32.mrb[0].mxu0
  %v983 = vpop.f32.mrb[0].mxu0
  %v984 = vadd.f32 0.0, %v983
  %v985 = vpop.f32.mrb[0].mxu0
  %986 = vdwg.mxu0
  %v987 = vadd.f32 %v432, %v965
  %v988 = vadd.f32 %v435, %v968
  %v989 = vadd.f32 %v440, %v973
  %v990 = vadd.f32 %v443, %v976
  %v991 = vadd.f32 %v448, %v981
  %v992 = vadd.f32 %v451, %v984
  %993 = vrot.lane.b32.xlu0 %v828, 64
  %v994 = vpop.permute.xlu0 %993
  %995 = vrot.lane.b32.xlu0 %v829, 64
  %v996 = vpop.permute.xlu0 %995
  %997 = vrot.lane.b32.xlu0 %v837, 64
  %v998 = vpop.permute.xlu0 %997
  %999 = vrot.lane.b32.xlu0 %v838, 64
  %v1000 = vpop.permute.xlu0 %999
  %1001 = vrot.lane.b32.xlu0 %v846, 64
  %v1002 = vpop.permute.xlu0 %1001
  %1003 = vrot.lane.b32.xlu0 %v847, 64
  %v1004 = vpop.permute.xlu0 %1003
  %v1005 = vsel %vm466, %v994, %v996
  %v1006 = vsel %vm466, %v998, %v1000
  %v1007 = vsel %vm466, %v1002, %v1004
  %v1012 = vsel %vm249, %v996, 0
  %v1015 = vsel %vm249, %v1000, 0
  %v1018 = vsel %vm249, %v1004, 0
  %1020 = vmatprep.subr.bf16.mxu0 0
  %1021 = vmatpush1.bf16.msra.mxu0 %v897
  %1022 = vmatprep.subr.bf16.mxu0 0
  %1023 = vmatpush1.bf16.msra.mxu0 %v898
  %1024 = vmatprep.subr.bf16.mxu0 0
  %1025 = vmatpush1.bf16.msra.mxu0 %v899
  %1026 = vmatprep.subr.bf16.mxu0 0
  %1027 = vmatpush1.bf16.msra.mxu0 %v900
  %1028 = vmatprep.subr.bf16.mxu0 0
  %1029 = vmatpush1.bf16.msra.mxu0 %v901
  %1030 = vmatprep.subr.bf16.mxu0 0
  %1031 = vmatpush1.bf16.msra.mxu0 %v902
  %1032 = vmatprep.subr.bf16.mxu0 0
  %1033 = vmatpush1.bf16.msra.mxu0 %v903
  %1034 = vmatprep.subr.bf16.mxu0 0
  %1035 = vmatpush1.bf16.msra.mxu0 %v904
  %1036 = vmatprep.subr.bf16.mxu0 0
  %1037 = vmatpush1.bf16.msra.mxu0 %v905
  %1038 = vmatprep.subr.bf16.mxu0 0
  %1039 = vmatpush1.bf16.msra.mxu0 %v906
  %1040 = vmatprep.subr.bf16.mxu0 0
  %1041 = vmatpush1.bf16.msra.mxu0 %v907
  %1042 = vmatprep.subr.bf16.mxu0 0
  %1043 = vmatpush1.bf16.msra.mxu0 %v908
  %1044 = vmatprep.subr.bf16.mxu0 0
  %1045 = vmatpush1.bf16.msra.mxu0 0
  %1046 = vmatprep.subr.bf16.mxu0 0
  %1047 = vmatpush1.bf16.msra.mxu0 0
  %1048 = vmatprep.subr.bf16.mxu0 0
  %1049 = vmatpush1.bf16.msra.mxu0 0
  %1050 = vmatprep.subr.bf16.mxu0 0
  %1051 = vmatpush1.bf16.msra.mxu0 0
  %1052 = vmatprep.mubr.bf16.mxu0 %v1012
  %1053 = vmatmul.mubr.bf16.gmra.mrb[0].mxu0 %v1005
  %v1054 = vpop.f32.mrb[0].mxu0
  %v1055 = vadd.f32 0.0, %v1054
  %v1056 = vpop.f32.mrb[0].mxu0
  %v1057 = vpop.f32.mrb[0].mxu0
  %v1058 = vadd.f32 0.0, %v1057
  %v1059 = vpop.f32.mrb[0].mxu0
  %1060 = vmatprep.mubr.bf16.mxu0 %v1015
  %1061 = vmatmul.mubr.bf16.gmra.mrb[0].mxu0 %v1006
  %v1062 = vpop.f32.mrb[0].mxu0
  %v1063 = vadd.f32 0.0, %v1062
  %v1064 = vpop.f32.mrb[0].mxu0
  %v1065 = vpop.f32.mrb[0].mxu0
  %v1066 = vadd.f32 0.0, %v1065
  %v1067 = vpop.f32.mrb[0].mxu0
  %1068 = vmatprep.mubr.bf16.mxu0 %v1018
  %1069 = vmatmul.mubr.bf16.gmra.mrb[0].mxu0 %v1007
  %v1070 = vpop.f32.mrb[0].mxu0
  %v1071 = vadd.f32 0.0, %v1070
  %v1072 = vpop.f32.mrb[0].mxu0
  %v1073 = vpop.f32.mrb[0].mxu0
  %v1074 = vadd.f32 0.0, %v1073
  %v1075 = vpop.f32.mrb[0].mxu0
  %1076 = vdwg.mxu0
  %v1077 = vadd.f32 %v601, %v1055
  %v1078 = vadd.f32 %v604, %v1058
  %v1079 = vadd.f32 %v609, %v1063
  %v1080 = vadd.f32 %v612, %v1066
  %v1081 = vadd.f32 %v617, %v1071
  %v1082 = vadd.f32 %v620, %v1074
  %v1083 = vld [vmem:[%s813 + $0x4] sm:$0xff]
  %v1084 = vld [vmem:[%s813 + $0x1c] sm:$0xff]
  %v1085 = vld [vmem:[%s816 + $0x4] sm:$0xff]
  %v1086 = vld [vmem:[%s816 + $0x1c] sm:$0xff]
  %v1087 = vld [vmem:[%s819 + $0x4] sm:$0xff]
  %v1088 = vld [vmem:[%s819 + $0x1c] sm:$0xff]
  %v1091 = vunpack.c.l.b16 %v1083
  %v1092 = vunpack.c.h.b16 %v1083
  %v1093 = vunpack.c.l.b16 %v1084
  %v1094 = vunpack.c.h.b16 %v1084
  %v1095 = vpack.c.b16 %v1093, %v1091
  %v1096 = vpack.c.b16 %v1094, %v1092
  %v1100 = vunpack.c.l.b16 %v1085
  %v1101 = vunpack.c.h.b16 %v1085
  %v1102 = vunpack.c.l.b16 %v1086
  %v1103 = vunpack.c.h.b16 %v1086
  %v1104 = vpack.c.b16 %v1102, %v1100
  %v1105 = vpack.c.b16 %v1103, %v1101
  %v1109 = vunpack.c.l.b16 %v1087
  %v1110 = vunpack.c.h.b16 %v1087
  %v1111 = vunpack.c.l.b16 %v1088
  %v1112 = vunpack.c.h.b16 %v1088
  %v1113 = vpack.c.b16 %v1111, %v1109
  %v1114 = vpack.c.b16 %v1112, %v1110
  %v1117 = vsel %vm249, %v1096, 0
  %v1120 = vsel %vm249, %v1105, 0
  %v1123 = vsel %vm249, %v1114, 0
  %1125 = vmatprep.subr.bf16.mxu0 0
  %1126 = vmatpush1.bf16.msra.mxu0 %v897
  %1127 = vmatprep.subr.bf16.mxu0 0
  %1128 = vmatpush1.bf16.msra.mxu0 %v898
  %1129 = vmatprep.subr.bf16.mxu0 0
  %1130 = vmatpush1.bf16.msra.mxu0 %v899
  %1131 = vmatprep.subr.bf16.mxu0 0
  %1132 = vmatpush1.bf16.msra.mxu0 %v900
  %1133 = vmatprep.subr.bf16.mxu0 0
  %1134 = vmatpush1.bf16.msra.mxu0 %v901
  %1135 = vmatprep.subr.bf16.mxu0 0
  %1136 = vmatpush1.bf16.msra.mxu0 %v902
  %1137 = vmatprep.subr.bf16.mxu0 0
  %1138 = vmatpush1.bf16.msra.mxu0 %v903
  %1139 = vmatprep.subr.bf16.mxu0 0
  %1140 = vmatpush1.bf16.msra.mxu0 %v904
  %1141 = vmatprep.subr.bf16.mxu0 0
  %1142 = vmatpush1.bf16.msra.mxu0 %v905
  %1143 = vmatprep.subr.bf16.mxu0 0
  %1144 = vmatpush1.bf16.msra.mxu0 %v906
  %1145 = vmatprep.subr.bf16.mxu0 0
  %1146 = vmatpush1.bf16.msra.mxu0 %v907
  %1147 = vmatprep.subr.bf16.mxu0 0
  %1148 = vmatpush1.bf16.msra.mxu0 %v908
  %1149 = vmatprep.subr.bf16.mxu0 0
  %1150 = vmatpush1.bf16.msra.mxu0 0
  %1151 = vmatprep.subr.bf16.mxu0 0
  %1152 = vmatpush1.bf16.msra.mxu0 0
  %1153 = vmatprep.subr.bf16.mxu0 0
  %1154 = vmatpush1.bf16.msra.mxu0 0
  %1155 = vmatprep.subr.bf16.mxu0 0
  %1156 = vmatpush1.bf16.msra.mxu0 0
  %1157 = vmatprep.mubr.bf16.mxu0 %v1117
  %1158 = vmatmul.mubr.bf16.gmra.mrb[0].mxu0 %v1095
  %v1159 = vpop.f32.mrb[0].mxu0
  %v1160 = vadd.f32 0.0, %v1159
  %v1161 = vpop.f32.mrb[0].mxu0
  %v1162 = vpop.f32.mrb[0].mxu0
  %v1163 = vadd.f32 0.0, %v1162
  %v1164 = vpop.f32.mrb[0].mxu0
  %1165 = vmatprep.mubr.bf16.mxu0 %v1120
  %1166 = vmatmul.mubr.bf16.gmra.mrb[0].mxu0 %v1104
  %v1167 = vpop.f32.mrb[0].mxu0
  %v1168 = vadd.f32 0.0, %v1167
  %v1169 = vpop.f32.mrb[0].mxu0
  %v1170 = vpop.f32.mrb[0].mxu0
  %v1171 = vadd.f32 0.0, %v1170
  %v1172 = vpop.f32.mrb[0].mxu0
  %1173 = vmatprep.mubr.bf16.mxu0 %v1123
  %1174 = vmatmul.mubr.bf16.gmra.mrb[0].mxu0 %v1113
  %v1175 = vpop.f32.mrb[0].mxu0
  %v1176 = vadd.f32 0.0, %v1175
  %v1177 = vpop.f32.mrb[0].mxu0
  %v1178 = vpop.f32.mrb[0].mxu0
  %v1179 = vadd.f32 0.0, %v1178
  %v1180 = vpop.f32.mrb[0].mxu0
  %1181 = vdwg.mxu0
  %v1182 = vadd.f32 %v766, %v1160
  %v1183 = vadd.f32 %v769, %v1163
  %v1184 = vadd.f32 %v774, %v1168
  %v1185 = vadd.f32 %v777, %v1171
  %v1186 = vadd.f32 %v782, %v1176
  %v1187 = vadd.f32 %v785, %v1179
  %s1188 = scalar_lea.vmem %s1, 288
  %v1189 = vld [vmem:[%s1188] sm:$0xf]
  %v1190 = vld [vmem:[%s1188 + $0x4] sm:$0xf]
  %v1191 = vld [vmem:[%s1188 + $0x8] sm:$0xf]
  %v1192 = vld [vmem:[%s1188 + $0xc] sm:$0xf]
  %v1193 = vld [vmem:[%s1188 + $0x10] sm:$0xf]
  %v1194 = vld [vmem:[%s1188 + $0x14] sm:$0xf]
  %v1195 = vld [vmem:[%s1188 + $0x18] sm:$0xf]
  %v1196 = vld [vmem:[%s1188 + $0x1c] sm:$0xf]
  %v1197 = vld [vmem:[%s1188 + $0x20] sm:$0xf]
  %v1198 = vld [vmem:[%s1188 + $0x24] sm:$0xf]
  %v1199 = vld [vmem:[%s1188 + $0x28] sm:$0xf]
  %v1200 = vld [vmem:[%s1188 + $0x2c] sm:$0xf]
  %v1201 = vld [vmem:[%s1188 + $0x30] sm:$0xf]
  %v1202 = vld [vmem:[%s1188 + $0x34] sm:$0xf]
  %v1203 = vld [vmem:[%s1188 + $0x38] sm:$0xf]
  %v1204 = vld [vmem:[%s1188 + $0x3c] sm:$0xf]
  %v1205 = vld [vmem:[%s1188 + $0x40] sm:$0xf]
  %v1206 = vld [vmem:[%s1188 + $0x44] sm:$0xf]
  %v1207 = vld [vmem:[%s1188 + $0x48] sm:$0xf]
  %v1208 = vld [vmem:[%s1188 + $0x4c] sm:$0xf]
  %v1209 = vld [vmem:[%s1188 + $0x50] sm:$0xf]
  %v1210 = vld [vmem:[%s1188 + $0x54] sm:$0xf]
  %v1211 = vld [vmem:[%s1188 + $0x58] sm:$0xf]
  %v1212 = vld [vmem:[%s1188 + $0x5c] sm:$0xf]
  %v1213 = vld [vmem:[%s813 + $0xc] sm:$0xff]
  %v1214 = vld [vmem:[%s813 + $0x24] sm:$0xff]
  %v1215 = vld [vmem:[%s816 + $0xc] sm:$0xff]
  %v1216 = vld [vmem:[%s816 + $0x24] sm:$0xff]
  %v1217 = vld [vmem:[%s819 + $0xc] sm:$0xff]
  %v1218 = vld [vmem:[%s819 + $0x24] sm:$0xff]
  %v1221 = vunpack.c.l.b16 %v1213
  %v1222 = vunpack.c.h.b16 %v1213
  %v1223 = vunpack.c.l.b16 %v1214
  %v1224 = vunpack.c.h.b16 %v1214
  %v1225 = vpack.c.b16 %v1223, %v1221
  %v1226 = vpack.c.b16 %v1224, %v1222
  %v1230 = vunpack.c.l.b16 %v1215
  %v1231 = vunpack.c.h.b16 %v1215
  %v1232 = vunpack.c.l.b16 %v1216
  %v1233 = vunpack.c.h.b16 %v1216
  %v1234 = vpack.c.b16 %v1232, %v1230
  %v1235 = vpack.c.b16 %v1233, %v1231
  %v1239 = vunpack.c.l.b16 %v1217
  %v1240 = vunpack.c.h.b16 %v1217
  %v1241 = vunpack.c.l.b16 %v1218
  %v1242 = vunpack.c.h.b16 %v1218
  %v1243 = vpack.c.b16 %v1241, %v1239
  %v1244 = vpack.c.b16 %v1242, %v1240
  %v1270 = vunpack.c.l.b16 %v1189
  %v1271 = vunpack.c.l.b16 %v1190
  %v1272 = vunpack.c.l.b16 %v1191
  %v1273 = vunpack.c.l.b16 %v1192
  %v1274 = vunpack.c.l.b16 %v1193
  %v1275 = vunpack.c.l.b16 %v1194
  %v1276 = vunpack.c.l.b16 %v1195
  %v1277 = vunpack.c.l.b16 %v1196
  %v1278 = vunpack.c.l.b16 %v1197
  %v1279 = vunpack.c.l.b16 %v1198
  %v1280 = vunpack.c.l.b16 %v1199
  %v1281 = vunpack.c.l.b16 %v1200
  %v1282 = vunpack.c.l.b16 %v1201
  %v1283 = vunpack.c.l.b16 %v1202
  %v1284 = vunpack.c.l.b16 %v1203
  %v1285 = vunpack.c.l.b16 %v1204
  %v1286 = vunpack.c.l.b16 %v1205
  %v1287 = vunpack.c.l.b16 %v1206
  %v1288 = vunpack.c.l.b16 %v1207
  %v1289 = vunpack.c.l.b16 %v1208
  %v1290 = vunpack.c.l.b16 %v1209
  %v1291 = vunpack.c.l.b16 %v1210
  %v1292 = vunpack.c.l.b16 %v1211
  %v1293 = vunpack.c.l.b16 %v1212
  %v1294 = vpack.c.b16 %v1271, %v1270
  %v1295 = vpack.c.b16 %v1273, %v1272
  %v1296 = vpack.c.b16 %v1275, %v1274
  %v1297 = vpack.c.b16 %v1277, %v1276
  %v1298 = vpack.c.b16 %v1279, %v1278
  %v1299 = vpack.c.b16 %v1281, %v1280
  %v1300 = vpack.c.b16 %v1283, %v1282
  %v1301 = vpack.c.b16 %v1285, %v1284
  %v1302 = vpack.c.b16 %v1287, %v1286
  %v1303 = vpack.c.b16 %v1289, %v1288
  %v1304 = vpack.c.b16 %v1291, %v1290
  %v1305 = vpack.c.b16 %v1293, %v1292
  %v1319 = vsel %vm249, %v1226, 0
  %v1322 = vsel %vm249, %v1235, 0
  %v1325 = vsel %vm249, %v1244, 0
  %1327 = vmatprep.subr.bf16.mxu0 0
  %1328 = vmatpush1.bf16.msra.mxu0 %v1294
  %1329 = vmatprep.subr.bf16.mxu0 0
  %1330 = vmatpush1.bf16.msra.mxu0 %v1295
  %1331 = vmatprep.subr.bf16.mxu0 0
  %1332 = vmatpush1.bf16.msra.mxu0 %v1296
  %1333 = vmatprep.subr.bf16.mxu0 0
  %1334 = vmatpush1.bf16.msra.mxu0 %v1297
  %1335 = vmatprep.subr.bf16.mxu0 0
  %1336 = vmatpush1.bf16.msra.mxu0 %v1298
  %1337 = vmatprep.subr.bf16.mxu0 0
  %1338 = vmatpush1.bf16.msra.mxu0 %v1299
  %1339 = vmatprep.subr.bf16.mxu0 0
  %1340 = vmatpush1.bf16.msra.mxu0 %v1300
  %1341 = vmatprep.subr.bf16.mxu0 0
  %1342 = vmatpush1.bf16.msra.mxu0 %v1301
  %1343 = vmatprep.subr.bf16.mxu0 0
  %1344 = vmatpush1.bf16.msra.mxu0 %v1302
  %1345 = vmatprep.subr.bf16.mxu0 0
  %1346 = vmatpush1.bf16.msra.mxu0 %v1303
  %1347 = vmatprep.subr.bf16.mxu0 0
  %1348 = vmatpush1.bf16.msra.mxu0 %v1304
  %1349 = vmatprep.subr.bf16.mxu0 0
  %1350 = vmatpush1.bf16.msra.mxu0 %v1305
  %1351 = vmatprep.subr.bf16.mxu0 0
  %1352 = vmatpush1.bf16.msra.mxu0 0
  %1353 = vmatprep.subr.bf16.mxu0 0
  %1354 = vmatpush1.bf16.msra.mxu0 0
  %1355 = vmatprep.subr.bf16.mxu0 0
  %1356 = vmatpush1.bf16.msra.mxu0 0
  %1357 = vmatprep.subr.bf16.mxu0 0
  %1358 = vmatpush1.bf16.msra.mxu0 0
  %1359 = vmatprep.mubr.bf16.mxu0 %v1319
  %1360 = vmatmul.mubr.bf16.gmra.mrb[0].mxu0 %v1225
  %v1361 = vpop.f32.mrb[0].mxu0
  %v1362 = vadd.f32 0.0, %v1361
  %v1363 = vpop.f32.mrb[0].mxu0
  %v1364 = vpop.f32.mrb[0].mxu0
  %v1365 = vadd.f32 0.0, %v1364
  %v1366 = vpop.f32.mrb[0].mxu0
  %1367 = vmatprep.mubr.bf16.mxu0 %v1322
  %1368 = vmatmul.mubr.bf16.gmra.mrb[0].mxu0 %v1234
  %v1369 = vpop.f32.mrb[0].mxu0
  %v1370 = vadd.f32 0.0, %v1369
  %v1371 = vpop.f32.mrb[0].mxu0
  %v1372 = vpop.f32.mrb[0].mxu0
  %v1373 = vadd.f32 0.0, %v1372
  %v1374 = vpop.f32.mrb[0].mxu0
  %1375 = vmatprep.mubr.bf16.mxu0 %v1325
  %1376 = vmatmul.mubr.bf16.gmra.mrb[0].mxu0 %v1243
  %v1377 = vpop.f32.mrb[0].mxu0
  %v1378 = vadd.f32 0.0, %v1377
  %v1379 = vpop.f32.mrb[0].mxu0
  %v1380 = vpop.f32.mrb[0].mxu0
  %v1381 = vadd.f32 0.0, %v1380
  %v1382 = vpop.f32.mrb[0].mxu0
  %1383 = vdwg.mxu0
  %v1384 = vadd.f32 %v987, %v1362
  %v1385 = vadd.f32 %v988, %v1365
  %v1386 = vadd.f32 %v989, %v1370
  %v1387 = vadd.f32 %v990, %v1373
  %v1388 = vadd.f32 %v991, %v1378
  %v1389 = vadd.f32 %v992, %v1381
  %1390 = vrot.lane.b32.xlu0 %v1225, 64
  %v1391 = vpop.permute.xlu0 %1390
  %1392 = vrot.lane.b32.xlu0 %v1226, 64
  %v1393 = vpop.permute.xlu0 %1392
  %1394 = vrot.lane.b32.xlu0 %v1234, 64
  %v1395 = vpop.permute.xlu0 %1394
  %1396 = vrot.lane.b32.xlu0 %v1235, 64
  %v1397 = vpop.permute.xlu0 %1396
  %1398 = vrot.lane.b32.xlu0 %v1243, 64
  %v1399 = vpop.permute.xlu0 %1398
  %1400 = vrot.lane.b32.xlu0 %v1244, 64
  %v1401 = vpop.permute.xlu0 %1400
  %v1402 = vsel %vm466, %v1391, %v1393
  %v1403 = vsel %vm466, %v1395, %v1397
  %v1404 = vsel %vm466, %v1399, %v1401
  %v1409 = vsel %vm249, %v1393, 0
  %v1412 = vsel %vm249, %v1397, 0
  %v1415 = vsel %vm249, %v1401, 0
  %1417 = vmatprep.subr.bf16.mxu0 0
  %1418 = vmatpush1.bf16.msra.mxu0 %v1294
  %1419 = vmatprep.subr.bf16.mxu0 0
  %1420 = vmatpush1.bf16.msra.mxu0 %v1295
  %1421 = vmatprep.subr.bf16.mxu0 0
  %1422 = vmatpush1.bf16.msra.mxu0 %v1296
  %1423 = vmatprep.subr.bf16.mxu0 0
  %1424 = vmatpush1.bf16.msra.mxu0 %v1297
  %1425 = vmatprep.subr.bf16.mxu0 0
  %1426 = vmatpush1.bf16.msra.mxu0 %v1298
  %1427 = vmatprep.subr.bf16.mxu0 0
  %1428 = vmatpush1.bf16.msra.mxu0 %v1299
  %1429 = vmatprep.subr.bf16.mxu0 0
  %1430 = vmatpush1.bf16.msra.mxu0 %v1300
  %1431 = vmatprep.subr.bf16.mxu0 0
  %1432 = vmatpush1.bf16.msra.mxu0 %v1301
  %1433 = vmatprep.subr.bf16.mxu0 0
  %1434 = vmatpush1.bf16.msra.mxu0 %v1302
  %1435 = vmatprep.subr.bf16.mxu0 0
  %1436 = vmatpush1.bf16.msra.mxu0 %v1303
  %1437 = vmatprep.subr.bf16.mxu0 0
  %1438 = vmatpush1.bf16.msra.mxu0 %v1304
  %1439 = vmatprep.subr.bf16.mxu0 0
  %1440 = vmatpush1.bf16.msra.mxu0 %v1305
  %1441 = vmatprep.subr.bf16.mxu0 0
  %1442 = vmatpush1.bf16.msra.mxu0 0
  %1443 = vmatprep.subr.bf16.mxu0 0
  %1444 = vmatpush1.bf16.msra.mxu0 0
  %1445 = vmatprep.subr.bf16.mxu0 0
  %1446 = vmatpush1.bf16.msra.mxu0 0
  %1447 = vmatprep.subr.bf16.mxu0 0
  %1448 = vmatpush1.bf16.msra.mxu0 0
  %1449 = vmatprep.mubr.bf16.mxu0 %v1409
  %1450 = vmatmul.mubr.bf16.gmra.mrb[0].mxu0 %v1402
  %v1451 = vpop.f32.mrb[0].mxu0
  %v1452 = vadd.f32 0.0, %v1451
  %v1453 = vpop.f32.mrb[0].mxu0
  %v1454 = vpop.f32.mrb[0].mxu0
  %v1455 = vadd.f32 0.0, %v1454
  %v1456 = vpop.f32.mrb[0].mxu0
  %1457 = vmatprep.mubr.bf16.mxu0 %v1412
  %1458 = vmatmul.mubr.bf16.gmra.mrb[0].mxu0 %v1403
  %v1459 = vpop.f32.mrb[0].mxu0
  %v1460 = vadd.f32 0.0, %v1459
  %v1461 = vpop.f32.mrb[0].mxu0
  %v1462 = vpop.f32.mrb[0].mxu0
  %v1463 = vadd.f32 0.0, %v1462
  %v1464 = vpop.f32.mrb[0].mxu0
  %1465 = vmatprep.mubr.bf16.mxu0 %v1415
  %1466 = vmatmul.mubr.bf16.gmra.mrb[0].mxu0 %v1404
  %v1467 = vpop.f32.mrb[0].mxu0
  %v1468 = vadd.f32 0.0, %v1467
  %v1469 = vpop.f32.mrb[0].mxu0
  %v1470 = vpop.f32.mrb[0].mxu0
  %v1471 = vadd.f32 0.0, %v1470
  %v1472 = vpop.f32.mrb[0].mxu0
  %1473 = vdwg.mxu0
  %v1474 = vadd.f32 %v1077, %v1452
  %v1475 = vadd.f32 %v1078, %v1455
  %v1476 = vadd.f32 %v1079, %v1460
  %v1477 = vadd.f32 %v1080, %v1463
  %v1478 = vadd.f32 %v1081, %v1468
  %v1479 = vadd.f32 %v1082, %v1471
  %v1480 = vld [vmem:[%s813 + $0x10] sm:$0xff]
  %v1481 = vld [vmem:[%s813 + $0x28] sm:$0xff]
  %v1482 = vld [vmem:[%s816 + $0x10] sm:$0xff]
  %v1483 = vld [vmem:[%s816 + $0x28] sm:$0xff]
  %v1484 = vld [vmem:[%s819 + $0x10] sm:$0xff]
  %v1485 = vld [vmem:[%s819 + $0x28] sm:$0xff]
  %v1488 = vunpack.c.l.b16 %v1480
  %v1489 = vunpack.c.h.b16 %v1480
  %v1490 = vunpack.c.l.b16 %v1481
  %v1491 = vunpack.c.h.b16 %v1481
  %v1492 = vpack.c.b16 %v1490, %v1488
  %v1493 = vpack.c.b16 %v1491, %v1489
  %v1497 = vunpack.c.l.b16 %v1482
  %v1498 = vunpack.c.h.b16 %v1482
  %v1499 = vunpack.c.l.b16 %v1483
  %v1500 = vunpack.c.h.b16 %v1483
  %v1501 = vpack.c.b16 %v1499, %v1497
  %v1502 = vpack.c.b16 %v1500, %v1498
  %v1506 = vunpack.c.l.b16 %v1484
  %v1507 = vunpack.c.h.b16 %v1484
  %v1508 = vunpack.c.l.b16 %v1485
  %v1509 = vunpack.c.h.b16 %v1485
  %v1510 = vpack.c.b16 %v1508, %v1506
  %v1511 = vpack.c.b16 %v1509, %v1507
  %v1514 = vsel %vm249, %v1493, 0
  %v1517 = vsel %vm249, %v1502, 0
  %v1520 = vsel %vm249, %v1511, 0
  %1522 = vmatprep.subr.bf16.mxu0 0
  %1523 = vmatpush1.bf16.msra.mxu0 %v1294
  %1524 = vmatprep.subr.bf16.mxu0 0
  %1525 = vmatpush1.bf16.msra.mxu0 %v1295
  %1526 = vmatprep.subr.bf16.mxu0 0
  %1527 = vmatpush1.bf16.msra.mxu0 %v1296
  %1528 = vmatprep.subr.bf16.mxu0 0
  %1529 = vmatpush1.bf16.msra.mxu0 %v1297
  %1530 = vmatprep.subr.bf16.mxu0 0
  %1531 = vmatpush1.bf16.msra.mxu0 %v1298
  %1532 = vmatprep.subr.bf16.mxu0 0
  %1533 = vmatpush1.bf16.msra.mxu0 %v1299
  %1534 = vmatprep.subr.bf16.mxu0 0
  %1535 = vmatpush1.bf16.msra.mxu0 %v1300
  %1536 = vmatprep.subr.bf16.mxu0 0
  %1537 = vmatpush1.bf16.msra.mxu0 %v1301
  %1538 = vmatprep.subr.bf16.mxu0 0
  %1539 = vmatpush1.bf16.msra.mxu0 %v1302
  %1540 = vmatprep.subr.bf16.mxu0 0
  %1541 = vmatpush1.bf16.msra.mxu0 %v1303
  %1542 = vmatprep.subr.bf16.mxu0 0
  %1543 = vmatpush1.bf16.msra.mxu0 %v1304
  %1544 = vmatprep.subr.bf16.mxu0 0
  %1545 = vmatpush1.bf16.msra.mxu0 %v1305
  %1546 = vmatprep.subr.bf16.mxu0 0
  %1547 = vmatpush1.bf16.msra.mxu0 0
  %1548 = vmatprep.subr.bf16.mxu0 0
  %1549 = vmatpush1.bf16.msra.mxu0 0
  %1550 = vmatprep.subr.bf16.mxu0 0
  %1551 = vmatpush1.bf16.msra.mxu0 0
  %1552 = vmatprep.subr.bf16.mxu0 0
  %1553 = vmatpush1.bf16.msra.mxu0 0
  %1554 = vmatprep.mubr.bf16.mxu0 %v1514
  %1555 = vmatmul.mubr.bf16.gmra.mrb[0].mxu0 %v1492
  %v1556 = vpop.f32.mrb[0].mxu0
  %v1557 = vadd.f32 0.0, %v1556
  %v1558 = vpop.f32.mrb[0].mxu0
  %v1559 = vpop.f32.mrb[0].mxu0
  %v1560 = vadd.f32 0.0, %v1559
  %v1561 = vpop.f32.mrb[0].mxu0
  %1562 = vmatprep.mubr.bf16.mxu0 %v1517
  %1563 = vmatmul.mubr.bf16.gmra.mrb[0].mxu0 %v1501
  %v1564 = vpop.f32.mrb[0].mxu0
  %v1565 = vadd.f32 0.0, %v1564
  %v1566 = vpop.f32.mrb[0].mxu0
  %v1567 = vpop.f32.mrb[0].mxu0
  %v1568 = vadd.f32 0.0, %v1567
  %v1569 = vpop.f32.mrb[0].mxu0
  %1570 = vmatprep.mubr.bf16.mxu0 %v1520
  %1571 = vmatmul.mubr.bf16.gmra.mrb[0].mxu0 %v1510
  %v1572 = vpop.f32.mrb[0].mxu0
  %v1573 = vadd.f32 0.0, %v1572
  %v1574 = vpop.f32.mrb[0].mxu0
  %v1575 = vpop.f32.mrb[0].mxu0
  %v1576 = vadd.f32 0.0, %v1575
  %v1577 = vpop.f32.mrb[0].mxu0
  %1578 = vdwg.mxu0
  %v1579 = vadd.f32 %v1182, %v1557
  %v1580 = vadd.f32 %v1183, %v1560
  %v1581 = vadd.f32 %v1184, %v1565
  %v1582 = vadd.f32 %v1185, %v1568
  %v1583 = vadd.f32 %v1186, %v1573
  %v1584 = vadd.f32 %v1187, %v1576
  %s1585 = scalar_lea.vmem %s1, 384
  %v1586 = vld [vmem:[%s1585] sm:$0xf]
  %v1587 = vld [vmem:[%s1585 + $0x4] sm:$0xf]
  %v1588 = vld [vmem:[%s1585 + $0x8] sm:$0xf]
  %v1589 = vld [vmem:[%s1585 + $0xc] sm:$0xf]
  %v1590 = vld [vmem:[%s1585 + $0x10] sm:$0xf]
  %v1591 = vld [vmem:[%s1585 + $0x14] sm:$0xf]
  %v1592 = vld [vmem:[%s1585 + $0x18] sm:$0xf]
  %v1593 = vld [vmem:[%s1585 + $0x1c] sm:$0xf]
  %v1594 = vld [vmem:[%s1585 + $0x20] sm:$0xf]
  %v1595 = vld [vmem:[%s1585 + $0x24] sm:$0xf]
  %v1596 = vld [vmem:[%s1585 + $0x28] sm:$0xf]
  %v1597 = vld [vmem:[%s1585 + $0x2c] sm:$0xf]
  %v1598 = vld [vmem:[%s1585 + $0x30] sm:$0xf]
  %v1599 = vld [vmem:[%s1585 + $0x34] sm:$0xf]
  %v1600 = vld [vmem:[%s1585 + $0x38] sm:$0xf]
  %v1601 = vld [vmem:[%s1585 + $0x3c] sm:$0xf]
  %v1602 = vld [vmem:[%s1585 + $0x40] sm:$0xf]
  %v1603 = vld [vmem:[%s1585 + $0x44] sm:$0xf]
  %v1604 = vld [vmem:[%s1585 + $0x48] sm:$0xf]
  %v1605 = vld [vmem:[%s1585 + $0x4c] sm:$0xf]
  %v1606 = vld [vmem:[%s1585 + $0x50] sm:$0xf]
  %v1607 = vld [vmem:[%s1585 + $0x54] sm:$0xf]
  %v1608 = vld [vmem:[%s1585 + $0x58] sm:$0xf]
  %v1609 = vld [vmem:[%s1585 + $0x5c] sm:$0xf]
  %s1610 = scalar_lea.vmem %s0, 144
  %v1611 = vld [vmem:[%s1610] sm:$0xff]
  %v1612 = vld [vmem:[%s1610 + $0x18] sm:$0xff]
  %v1615 = vunpack.c.l.b16 %v1611
  %v1616 = vunpack.c.h.b16 %v1611
  %v1617 = vunpack.c.l.b16 %v1612
  %v1618 = vunpack.c.h.b16 %v1612
  %v1619 = vpack.c.b16 %v1617, %v1615
  %v1620 = vpack.c.b16 %v1618, %v1616
  %v1646 = vunpack.c.l.b16 %v1586
  %v1647 = vunpack.c.l.b16 %v1587
  %v1648 = vunpack.c.l.b16 %v1588
  %v1649 = vunpack.c.l.b16 %v1589
  %v1650 = vunpack.c.l.b16 %v1590
  %v1651 = vunpack.c.l.b16 %v1591
  %v1652 = vunpack.c.l.b16 %v1592
  %v1653 = vunpack.c.l.b16 %v1593
  %v1654 = vunpack.c.l.b16 %v1594
  %v1655 = vunpack.c.l.b16 %v1595
  %v1656 = vunpack.c.l.b16 %v1596
  %v1657 = vunpack.c.l.b16 %v1597
  %v1658 = vunpack.c.l.b16 %v1598
  %v1659 = vunpack.c.l.b16 %v1599
  %v1660 = vunpack.c.l.b16 %v1600
  %v1661 = vunpack.c.l.b16 %v1601
  %v1662 = vunpack.c.l.b16 %v1602
  %v1663 = vunpack.c.l.b16 %v1603
  %v1664 = vunpack.c.l.b16 %v1604
  %v1665 = vunpack.c.l.b16 %v1605
  %v1666 = vunpack.c.l.b16 %v1606
  %v1667 = vunpack.c.l.b16 %v1607
  %v1668 = vunpack.c.l.b16 %v1608
  %v1669 = vunpack.c.l.b16 %v1609
  %v1670 = vpack.c.b16 %v1647, %v1646
  %v1671 = vpack.c.b16 %v1649, %v1648
  %v1672 = vpack.c.b16 %v1651, %v1650
  %v1673 = vpack.c.b16 %v1653, %v1652
  %v1674 = vpack.c.b16 %v1655, %v1654
  %v1675 = vpack.c.b16 %v1657, %v1656
  %v1676 = vpack.c.b16 %v1659, %v1658
  %v1677 = vpack.c.b16 %v1661, %v1660
  %v1678 = vpack.c.b16 %v1663, %v1662
  %v1679 = vpack.c.b16 %v1665, %v1664
  %v1680 = vpack.c.b16 %v1667, %v1666
  %v1681 = vpack.c.b16 %v1669, %v1668
  %v1695 = vsel %vm249, %v1620, 0
  %1697 = vmatprep.subr.bf16.mxu0 0
  %1698 = vmatpush1.bf16.msra.mxu0 %v1670
  %1699 = vmatprep.subr.bf16.mxu0 0
  %1700 = vmatpush1.bf16.msra.mxu0 %v1671
  %1701 = vmatprep.subr.bf16.mxu0 0
  %1702 = vmatpush1.bf16.msra.mxu0 %v1672
  %1703 = vmatprep.subr.bf16.mxu0 0
  %1704 = vmatpush1.bf16.msra.mxu0 %v1673
  %1705 = vmatprep.subr.bf16.mxu0 0
  %1706 = vmatpush1.bf16.msra.mxu0 %v1674
  %1707 = vmatprep.subr.bf16.mxu0 0
  %1708 = vmatpush1.bf16.msra.mxu0 %v1675
  %1709 = vmatprep.subr.bf16.mxu0 0
  %1710 = vmatpush1.bf16.msra.mxu0 %v1676
  %1711 = vmatprep.subr.bf16.mxu0 0
  %1712 = vmatpush1.bf16.msra.mxu0 %v1677
  %1713 = vmatprep.subr.bf16.mxu0 0
  %1714 = vmatpush1.bf16.msra.mxu0 %v1678
  %1715 = vmatprep.subr.bf16.mxu0 0
  %1716 = vmatpush1.bf16.msra.mxu0 %v1679
  %1717 = vmatprep.subr.bf16.mxu0 0
  %1718 = vmatpush1.bf16.msra.mxu0 %v1680
  %1719 = vmatprep.subr.bf16.mxu0 0
  %1720 = vmatpush1.bf16.msra.mxu0 %v1681
  %1721 = vmatprep.subr.bf16.mxu0 0
  %1722 = vmatpush1.bf16.msra.mxu0 0
  %1723 = vmatprep.subr.bf16.mxu0 0
  %1724 = vmatpush1.bf16.msra.mxu0 0
  %1725 = vmatprep.subr.bf16.mxu0 0
  %1726 = vmatpush1.bf16.msra.mxu0 0
  %1727 = vmatprep.subr.bf16.mxu0 0
  %1728 = vmatpush1.bf16.msra.mxu0 0
  %1729 = vmatprep.mubr.bf16.mxu0 %v392
  %1730 = vmatmul.mubr.bf16.gmra.mrb[0].mxu0 %v74
  %v1731 = vpop.f32.mrb[0].mxu0
  %v1732 = vadd.f32 0.0, %v1731
  %v1733 = vpop.f32.mrb[0].mxu0
  %v1734 = vpop.f32.mrb[0].mxu0
  %v1735 = vadd.f32 0.0, %v1734
  %v1736 = vpop.f32.mrb[0].mxu0
  %1737 = vmatprep.mubr.bf16.mxu0 %v395
  %1738 = vmatmul.mubr.bf16.gmra.mrb[0].mxu0 %v83
  %v1739 = vpop.f32.mrb[0].mxu0
  %v1740 = vadd.f32 0.0, %v1739
  %v1741 = vpop.f32.mrb[0].mxu0
  %v1742 = vpop.f32.mrb[0].mxu0
  %v1743 = vadd.f32 0.0, %v1742
  %v1744 = vpop.f32.mrb[0].mxu0
  %1745 = vmatprep.mubr.bf16.mxu0 %v1695
  %1746 = vmatmul.mubr.bf16.gmra.mrb[0].mxu0 %v1619
  %v1747 = vpop.f32.mrb[0].mxu0
  %v1748 = vadd.f32 0.0, %v1747
  %v1749 = vpop.f32.mrb[0].mxu0
  %v1750 = vpop.f32.mrb[0].mxu0
  %v1751 = vadd.f32 0.0, %v1750
  %v1752 = vpop.f32.mrb[0].mxu0
  %1753 = vdwg.mxu0
  %v1754 = vadd.f32 %v1384, %v1732
  %v1755 = vadd.f32 %v1385, %v1735
  %v1756 = vadd.f32 %v1386, %v1740
  %v1757 = vadd.f32 %v1387, %v1743
  %v1758 = vadd.f32 %v1388, %v1748
  %v1759 = vadd.f32 %v1389, %v1751
  %1760 = vrot.lane.b32.xlu0 %v1619, 64
  %v1761 = vpop.permute.xlu0 %1760
  %1762 = vrot.lane.b32.xlu0 %v1620, 64
  %v1763 = vpop.permute.xlu0 %1762
  %v1764 = vsel %vm466, %v1761, %v1763
  %v1767 = vsel %vm249, %v1763, 0
  %1769 = vmatprep.subr.bf16.mxu0 0
  %1770 = vmatpush1.bf16.msra.mxu0 %v1670
  %1771 = vmatprep.subr.bf16.mxu0 0
  %1772 = vmatpush1.bf16.msra.mxu0 %v1671
  %1773 = vmatprep.subr.bf16.mxu0 0
  %1774 = vmatpush1.bf16.msra.mxu0 %v1672
  %1775 = vmatprep.subr.bf16.mxu0 0
  %1776 = vmatpush1.bf16.msra.mxu0 %v1673
  %1777 = vmatprep.subr.bf16.mxu0 0
  %1778 = vmatpush1.bf16.msra.mxu0 %v1674
  %1779 = vmatprep.subr.bf16.mxu0 0
  %1780 = vmatpush1.bf16.msra.mxu0 %v1675
  %1781 = vmatprep.subr.bf16.mxu0 0
  %1782 = vmatpush1.bf16.msra.mxu0 %v1676
  %1783 = vmatprep.subr.bf16.mxu0 0
  %1784 = vmatpush1.bf16.msra.mxu0 %v1677
  %1785 = vmatprep.subr.bf16.mxu0 0
  %1786 = vmatpush1.bf16.msra.mxu0 %v1678
  %1787 = vmatprep.subr.bf16.mxu0 0
  %1788 = vmatpush1.bf16.msra.mxu0 %v1679
  %1789 = vmatprep.subr.bf16.mxu0 0
  %1790 = vmatpush1.bf16.msra.mxu0 %v1680
  %1791 = vmatprep.subr.bf16.mxu0 0
  %1792 = vmatpush1.bf16.msra.mxu0 %v1681
  %1793 = vmatprep.subr.bf16.mxu0 0
  %1794 = vmatpush1.bf16.msra.mxu0 0
  %1795 = vmatprep.subr.bf16.mxu0 0
  %1796 = vmatpush1.bf16.msra.mxu0 0
  %1797 = vmatprep.subr.bf16.mxu0 0
  %1798 = vmatpush1.bf16.msra.mxu0 0
  %1799 = vmatprep.subr.bf16.mxu0 0
  %1800 = vmatpush1.bf16.msra.mxu0 0
  %1801 = vmatprep.mubr.bf16.mxu0 %v561
  %1802 = vmatmul.mubr.bf16.gmra.mrb[0].mxu0 %v552
  %v1803 = vpop.f32.mrb[0].mxu0
  %v1804 = vadd.f32 0.0, %v1803
  %v1805 = vpop.f32.mrb[0].mxu0
  %v1806 = vpop.f32.mrb[0].mxu0
  %v1807 = vadd.f32 0.0, %v1806
  %v1808 = vpop.f32.mrb[0].mxu0
  %1809 = vmatprep.mubr.bf16.mxu0 %v564
  %1810 = vmatmul.mubr.bf16.gmra.mrb[0].mxu0 %v553
  %v1811 = vpop.f32.mrb[0].mxu0
  %v1812 = vadd.f32 0.0, %v1811
  %v1813 = vpop.f32.mrb[0].mxu0
  %v1814 = vpop.f32.mrb[0].mxu0
  %v1815 = vadd.f32 0.0, %v1814
  %v1816 = vpop.f32.mrb[0].mxu0
  %1817 = vmatprep.mubr.bf16.mxu0 %v1767
  %1818 = vmatmul.mubr.bf16.gmra.mrb[0].mxu0 %v1764
  %v1819 = vpop.f32.mrb[0].mxu0
  %v1820 = vadd.f32 0.0, %v1819
  %v1821 = vpop.f32.mrb[0].mxu0
  %v1822 = vpop.f32.mrb[0].mxu0
  %v1823 = vadd.f32 0.0, %v1822
  %v1824 = vpop.f32.mrb[0].mxu0
  %1825 = vdwg.mxu0
  %v1826 = vadd.f32 %v1474, %v1804
  %v1827 = vadd.f32 %v1475, %v1807
  %v1828 = vadd.f32 %v1476, %v1812
  %v1829 = vadd.f32 %v1477, %v1815
  %v1830 = vadd.f32 %v1478, %v1820
  %v1831 = vadd.f32 %v1479, %v1823
  %v1832 = vld [vmem:[%s1610 + $0x4] sm:$0xff]
  %v1833 = vld [vmem:[%s1610 + $0x1c] sm:$0xff]
  %v1836 = vunpack.c.l.b16 %v1832
  %v1837 = vunpack.c.h.b16 %v1832
  %v1838 = vunpack.c.l.b16 %v1833
  %v1839 = vunpack.c.h.b16 %v1833
  %v1840 = vpack.c.b16 %v1838, %v1836
  %v1841 = vpack.c.b16 %v1839, %v1837
  %v1844 = vsel %vm249, %v1841, 0
  %1846 = vmatprep.subr.bf16.mxu0 0
  %1847 = vmatpush1.bf16.msra.mxu0 %v1670
  %1848 = vmatprep.subr.bf16.mxu0 0
  %1849 = vmatpush1.bf16.msra.mxu0 %v1671
  %1850 = vmatprep.subr.bf16.mxu0 0
  %1851 = vmatpush1.bf16.msra.mxu0 %v1672
  %1852 = vmatprep.subr.bf16.mxu0 0
  %1853 = vmatpush1.bf16.msra.mxu0 %v1673
  %1854 = vmatprep.subr.bf16.mxu0 0
  %1855 = vmatpush1.bf16.msra.mxu0 %v1674
  %1856 = vmatprep.subr.bf16.mxu0 0
  %1857 = vmatpush1.bf16.msra.mxu0 %v1675
  %1858 = vmatprep.subr.bf16.mxu0 0
  %1859 = vmatpush1.bf16.msra.mxu0 %v1676
  %1860 = vmatprep.subr.bf16.mxu0 0
  %1861 = vmatpush1.bf16.msra.mxu0 %v1677
  %1862 = vmatprep.subr.bf16.mxu0 0
  %1863 = vmatpush1.bf16.msra.mxu0 %v1678
  %1864 = vmatprep.subr.bf16.mxu0 0
  %1865 = vmatpush1.bf16.msra.mxu0 %v1679
  %1866 = vmatprep.subr.bf16.mxu0 0
  %1867 = vmatpush1.bf16.msra.mxu0 %v1680
  %1868 = vmatprep.subr.bf16.mxu0 0
  %1869 = vmatpush1.bf16.msra.mxu0 %v1681
  %1870 = vmatprep.subr.bf16.mxu0 0
  %1871 = vmatpush1.bf16.msra.mxu0 0
  %1872 = vmatprep.subr.bf16.mxu0 0
  %1873 = vmatpush1.bf16.msra.mxu0 0
  %1874 = vmatprep.subr.bf16.mxu0 0
  %1875 = vmatpush1.bf16.msra.mxu0 0
  %1876 = vmatprep.subr.bf16.mxu0 0
  %1877 = vmatpush1.bf16.msra.mxu0 0
  %1878 = vmatprep.mubr.bf16.mxu0 %v726
  %1879 = vmatmul.mubr.bf16.gmra.mrb[0].mxu0 %v107
  %v1880 = vpop.f32.mrb[0].mxu0
  %v1881 = vadd.f32 0.0, %v1880
  %v1882 = vpop.f32.mrb[0].mxu0
  %v1883 = vpop.f32.mrb[0].mxu0
  %v1884 = vadd.f32 0.0, %v1883
  %v1885 = vpop.f32.mrb[0].mxu0
  %1886 = vmatprep.mubr.bf16.mxu0 %v729
  %1887 = vmatmul.mubr.bf16.gmra.mrb[0].mxu0 %v116
  %v1888 = vpop.f32.mrb[0].mxu0
  %v1889 = vadd.f32 0.0, %v1888
  %v1890 = vpop.f32.mrb[0].mxu0
  %v1891 = vpop.f32.mrb[0].mxu0
  %v1892 = vadd.f32 0.0, %v1891
  %v1893 = vpop.f32.mrb[0].mxu0
  %1894 = vmatprep.mubr.bf16.mxu0 %v1844
  %1895 = vmatmul.mubr.bf16.gmra.mrb[0].mxu0 %v1840
  %v1896 = vpop.f32.mrb[0].mxu0
  %v1897 = vadd.f32 0.0, %v1896
  %v1898 = vpop.f32.mrb[0].mxu0
  %v1899 = vpop.f32.mrb[0].mxu0
  %v1900 = vadd.f32 0.0, %v1899
  %v1901 = vpop.f32.mrb[0].mxu0
  %1902 = vdwg.mxu0
  %v1903 = vadd.f32 %v1579, %v1881
  %v1904 = vadd.f32 %v1580, %v1884
  %v1905 = vadd.f32 %v1581, %v1889
  %v1906 = vadd.f32 %v1582, %v1892
  %v1907 = vadd.f32 %v1583, %v1897
  %v1908 = vadd.f32 %v1584, %v1900
  %s1909 = scalar_lea.vmem %s1, 480
  %v1910 = vld [vmem:[%s1909] sm:$0xf]
  %v1911 = vld [vmem:[%s1909 + $0x4] sm:$0xf]
  %v1912 = vld [vmem:[%s1909 + $0x8] sm:$0xf]
  %v1913 = vld [vmem:[%s1909 + $0xc] sm:$0xf]
  %v1914 = vld [vmem:[%s1909 + $0x10] sm:$0xf]
  %v1915 = vld [vmem:[%s1909 + $0x14] sm:$0xf]
  %v1916 = vld [vmem:[%s1909 + $0x18] sm:$0xf]
  %v1917 = vld [vmem:[%s1909 + $0x1c] sm:$0xf]
  %v1918 = vld [vmem:[%s1909 + $0x20] sm:$0xf]
  %v1919 = vld [vmem:[%s1909 + $0x24] sm:$0xf]
  %v1920 = vld [vmem:[%s1909 + $0x28] sm:$0xf]
  %v1921 = vld [vmem:[%s1909 + $0x2c] sm:$0xf]
  %v1922 = vld [vmem:[%s1909 + $0x30] sm:$0xf]
  %v1923 = vld [vmem:[%s1909 + $0x34] sm:$0xf]
  %v1924 = vld [vmem:[%s1909 + $0x38] sm:$0xf]
  %v1925 = vld [vmem:[%s1909 + $0x3c] sm:$0xf]
  %v1926 = vld [vmem:[%s1909 + $0x40] sm:$0xf]
  %v1927 = vld [vmem:[%s1909 + $0x44] sm:$0xf]
  %v1928 = vld [vmem:[%s1909 + $0x48] sm:$0xf]
  %v1929 = vld [vmem:[%s1909 + $0x4c] sm:$0xf]
  %v1930 = vld [vmem:[%s1909 + $0x50] sm:$0xf]
  %v1931 = vld [vmem:[%s1909 + $0x54] sm:$0xf]
  %v1932 = vld [vmem:[%s1909 + $0x58] sm:$0xf]
  %v1933 = vld [vmem:[%s1909 + $0x5c] sm:$0xf]
  %v1934 = vld [vmem:[%s1610 + $0xc] sm:$0xff]
  %v1935 = vld [vmem:[%s1610 + $0x24] sm:$0xff]
  %v1938 = vunpack.c.l.b16 %v1934
  %v1939 = vunpack.c.h.b16 %v1934
  %v1940 = vunpack.c.l.b16 %v1935
  %v1941 = vunpack.c.h.b16 %v1935
  %v1942 = vpack.c.b16 %v1940, %v1938
  %v1943 = vpack.c.b16 %v1941, %v1939
  %v1969 = vunpack.c.l.b16 %v1910
  %v1970 = vunpack.c.l.b16 %v1911
  %v1971 = vunpack.c.l.b16 %v1912
  %v1972 = vunpack.c.l.b16 %v1913
  %v1973 = vunpack.c.l.b16 %v1914
  %v1974 = vunpack.c.l.b16 %v1915
  %v1975 = vunpack.c.l.b16 %v1916
  %v1976 = vunpack.c.l.b16 %v1917
  %v1977 = vunpack.c.l.b16 %v1918
  %v1978 = vunpack.c.l.b16 %v1919
  %v1979 = vunpack.c.l.b16 %v1920
  %v1980 = vunpack.c.l.b16 %v1921
  %v1981 = vunpack.c.l.b16 %v1922
  %v1982 = vunpack.c.l.b16 %v1923
  %v1983 = vunpack.c.l.b16 %v1924
  %v1984 = vunpack.c.l.b16 %v1925
  %v1985 = vunpack.c.l.b16 %v1926
  %v1986 = vunpack.c.l.b16 %v1927
  %v1987 = vunpack.c.l.b16 %v1928
  %v1988 = vunpack.c.l.b16 %v1929
  %v1989 = vunpack.c.l.b16 %v1930
  %v1990 = vunpack.c.l.b16 %v1931
  %v1991 = vunpack.c.l.b16 %v1932
  %v1992 = vunpack.c.l.b16 %v1933
  %v1993 = vpack.c.b16 %v1970, %v1969
  %v1994 = vpack.c.b16 %v1972, %v1971
  %v1995 = vpack.c.b16 %v1974, %v1973
  %v1996 = vpack.c.b16 %v1976, %v1975
  %v1997 = vpack.c.b16 %v1978, %v1977
  %v1998 = vpack.c.b16 %v1980, %v1979
  %v1999 = vpack.c.b16 %v1982, %v1981
  %v2000 = vpack.c.b16 %v1984, %v1983
  %v2001 = vpack.c.b16 %v1986, %v1985
  %v2002 = vpack.c.b16 %v1988, %v1987
  %v2003 = vpack.c.b16 %v1990, %v1989
  %v2004 = vpack.c.b16 %v1992, %v1991
  %v2018 = vsel %vm249, %v1943, 0
  %2020 = vmatprep.subr.bf16.mxu0 0
  %2021 = vmatpush1.bf16.msra.mxu0 %v1993
  %2022 = vmatprep.subr.bf16.mxu0 0
  %2023 = vmatpush1.bf16.msra.mxu0 %v1994
  %2024 = vmatprep.subr.bf16.mxu0 0
  %2025 = vmatpush1.bf16.msra.mxu0 %v1995
  %2026 = vmatprep.subr.bf16.mxu0 0
  %2027 = vmatpush1.bf16.msra.mxu0 %v1996
  %2028 = vmatprep.subr.bf16.mxu0 0
  %2029 = vmatpush1.bf16.msra.mxu0 %v1997
  %2030 = vmatprep.subr.bf16.mxu0 0
  %2031 = vmatpush1.bf16.msra.mxu0 %v1998
  %2032 = vmatprep.subr.bf16.mxu0 0
  %2033 = vmatpush1.bf16.msra.mxu0 %v1999
  %2034 = vmatprep.subr.bf16.mxu0 0
  %2035 = vmatpush1.bf16.msra.mxu0 %v2000
  %2036 = vmatprep.subr.bf16.mxu0 0
  %2037 = vmatpush1.bf16.msra.mxu0 %v2001
  %2038 = vmatprep.subr.bf16.mxu0 0
  %2039 = vmatpush1.bf16.msra.mxu0 %v2002
  %2040 = vmatprep.subr.bf16.mxu0 0
  %2041 = vmatpush1.bf16.msra.mxu0 %v2003
  %2042 = vmatprep.subr.bf16.mxu0 0
  %2043 = vmatpush1.bf16.msra.mxu0 %v2004
  %2044 = vmatprep.subr.bf16.mxu0 0
  %2045 = vmatpush1.bf16.msra.mxu0 0
  %2046 = vmatprep.subr.bf16.mxu0 0
  %2047 = vmatpush1.bf16.msra.mxu0 0
  %2048 = vmatprep.subr.bf16.mxu0 0
  %2049 = vmatpush1.bf16.msra.mxu0 0
  %2050 = vmatprep.subr.bf16.mxu0 0
  %2051 = vmatpush1.bf16.msra.mxu0 0
  %2052 = vmatprep.mubr.bf16.mxu0 %v254
  %2053 = vmatmul.mubr.bf16.gmra.mrb[0].mxu0 %v165
  %v2054 = vpop.f32.mrb[0].mxu0
  %v2055 = vadd.f32 0.0, %v2054
  %v2056 = vpop.f32.mrb[0].mxu0
  %v2057 = vpop.f32.mrb[0].mxu0
  %v2058 = vadd.f32 0.0, %v2057
  %v2059 = vpop.f32.mrb[0].mxu0
  %2060 = vmatprep.mubr.bf16.mxu0 %v257
  %2061 = vmatmul.mubr.bf16.gmra.mrb[0].mxu0 %v174
  %v2062 = vpop.f32.mrb[0].mxu0
  %v2063 = vadd.f32 0.0, %v2062
  %v2064 = vpop.f32.mrb[0].mxu0
  %v2065 = vpop.f32.mrb[0].mxu0
  %v2066 = vadd.f32 0.0, %v2065
  %v2067 = vpop.f32.mrb[0].mxu0
  %2068 = vmatprep.mubr.bf16.mxu0 %v2018
  %2069 = vmatmul.mubr.bf16.gmra.mrb[0].mxu0 %v1942
  %v2070 = vpop.f32.mrb[0].mxu0
  %v2071 = vadd.f32 0.0, %v2070
  %v2072 = vpop.f32.mrb[0].mxu0
  %v2073 = vpop.f32.mrb[0].mxu0
  %v2074 = vadd.f32 0.0, %v2073
  %v2075 = vpop.f32.mrb[0].mxu0
  %2076 = vdwg.mxu0
  %v2077 = vadd.f32 %v1754, %v2055
  %v2078 = vadd.f32 %v1755, %v2058
  %v2079 = vadd.f32 %v1756, %v2063
  %v2080 = vadd.f32 %v1757, %v2066
  %v2081 = vadd.f32 %v1758, %v2071
  %v2082 = vadd.f32 %v1759, %v2074
  %2083 = vrot.lane.b32.xlu0 %v1942, 64
  %v2084 = vpop.permute.xlu0 %2083
  %2085 = vrot.lane.b32.xlu0 %v1943, 64
  %v2086 = vpop.permute.xlu0 %2085
  %v2087 = vsel %vm466, %v2084, %v2086
  %v2090 = vsel %vm249, %v2086, 0
  %2092 = vmatprep.subr.bf16.mxu0 0
  %2093 = vmatpush1.bf16.msra.mxu0 %v1993
  %2094 = vmatprep.subr.bf16.mxu0 0
  %2095 = vmatpush1.bf16.msra.mxu0 %v1994
  %2096 = vmatprep.subr.bf16.mxu0 0
  %2097 = vmatpush1.bf16.msra.mxu0 %v1995
  %2098 = vmatprep.subr.bf16.mxu0 0
  %2099 = vmatpush1.bf16.msra.mxu0 %v1996
  %2100 = vmatprep.subr.bf16.mxu0 0
  %2101 = vmatpush1.bf16.msra.mxu0 %v1997
  %2102 = vmatprep.subr.bf16.mxu0 0
  %2103 = vmatpush1.bf16.msra.mxu0 %v1998
  %2104 = vmatprep.subr.bf16.mxu0 0
  %2105 = vmatpush1.bf16.msra.mxu0 %v1999
  %2106 = vmatprep.subr.bf16.mxu0 0
  %2107 = vmatpush1.bf16.msra.mxu0 %v2000
  %2108 = vmatprep.subr.bf16.mxu0 0
  %2109 = vmatpush1.bf16.msra.mxu0 %v2001
  %2110 = vmatprep.subr.bf16.mxu0 0
  %2111 = vmatpush1.bf16.msra.mxu0 %v2002
  %2112 = vmatprep.subr.bf16.mxu0 0
  %2113 = vmatpush1.bf16.msra.mxu0 %v2003
  %2114 = vmatprep.subr.bf16.mxu0 0
  %2115 = vmatpush1.bf16.msra.mxu0 %v2004
  %2116 = vmatprep.subr.bf16.mxu0 0
  %2117 = vmatpush1.bf16.msra.mxu0 0
  %2118 = vmatprep.subr.bf16.mxu0 0
  %2119 = vmatpush1.bf16.msra.mxu0 0
  %2120 = vmatprep.subr.bf16.mxu0 0
  %2121 = vmatpush1.bf16.msra.mxu0 0
  %2122 = vmatprep.subr.bf16.mxu0 0
  %2123 = vmatpush1.bf16.msra.mxu0 0
  %2124 = vmatprep.mubr.bf16.mxu0 %v477
  %2125 = vmatmul.mubr.bf16.gmra.mrb[0].mxu0 %v468
  %v2126 = vpop.f32.mrb[0].mxu0
  %v2127 = vadd.f32 0.0, %v2126
  %v2128 = vpop.f32.mrb[0].mxu0
  %v2129 = vpop.f32.mrb[0].mxu0
  %v2130 = vadd.f32 0.0, %v2129
  %v2131 = vpop.f32.mrb[0].mxu0
  %2132 = vmatprep.mubr.bf16.mxu0 %v480
  %2133 = vmatmul.mubr.bf16.gmra.mrb[0].mxu0 %v469
  %v2134 = vpop.f32.mrb[0].mxu0
  %v2135 = vadd.f32 0.0, %v2134
  %v2136 = vpop.f32.mrb[0].mxu0
  %v2137 = vpop.f32.mrb[0].mxu0
  %v2138 = vadd.f32 0.0, %v2137
  %v2139 = vpop.f32.mrb[0].mxu0
  %2140 = vmatprep.mubr.bf16.mxu0 %v2090
  %2141 = vmatmul.mubr.bf16.gmra.mrb[0].mxu0 %v2087
  %v2142 = vpop.f32.mrb[0].mxu0
  %v2143 = vadd.f32 0.0, %v2142
  %v2144 = vpop.f32.mrb[0].mxu0
  %v2145 = vpop.f32.mrb[0].mxu0
  %v2146 = vadd.f32 0.0, %v2145
  %v2147 = vpop.f32.mrb[0].mxu0
  %2148 = vdwg.mxu0
  %v2149 = vadd.f32 %v1826, %v2127
  %v2150 = vadd.f32 %v1827, %v2130
  %v2151 = vadd.f32 %v1828, %v2135
  %v2152 = vadd.f32 %v1829, %v2138
  %v2153 = vadd.f32 %v1830, %v2143
  %v2154 = vadd.f32 %v1831, %v2146
  %v2155 = vld [vmem:[%s1610 + $0x10] sm:$0xff]
  %v2156 = vld [vmem:[%s1610 + $0x28] sm:$0xff]
  %v2159 = vunpack.c.l.b16 %v2155
  %v2160 = vunpack.c.h.b16 %v2155
  %v2161 = vunpack.c.l.b16 %v2156
  %v2162 = vunpack.c.h.b16 %v2156
  %v2163 = vpack.c.b16 %v2161, %v2159
  %v2164 = vpack.c.b16 %v2162, %v2160
  %v2167 = vsel %vm249, %v2164, 0
  %2169 = vmatprep.subr.bf16.mxu0 0
  %2170 = vmatpush1.bf16.msra.mxu0 %v1993
  %2171 = vmatprep.subr.bf16.mxu0 0
  %2172 = vmatpush1.bf16.msra.mxu0 %v1994
  %2173 = vmatprep.subr.bf16.mxu0 0
  %2174 = vmatpush1.bf16.msra.mxu0 %v1995
  %2175 = vmatprep.subr.bf16.mxu0 0
  %2176 = vmatpush1.bf16.msra.mxu0 %v1996
  %2177 = vmatprep.subr.bf16.mxu0 0
  %2178 = vmatpush1.bf16.msra.mxu0 %v1997
  %2179 = vmatprep.subr.bf16.mxu0 0
  %2180 = vmatpush1.bf16.msra.mxu0 %v1998
  %2181 = vmatprep.subr.bf16.mxu0 0
  %2182 = vmatpush1.bf16.msra.mxu0 %v1999
  %2183 = vmatprep.subr.bf16.mxu0 0
  %2184 = vmatpush1.bf16.msra.mxu0 %v2000
  %2185 = vmatprep.subr.bf16.mxu0 0
  %2186 = vmatpush1.bf16.msra.mxu0 %v2001
  %2187 = vmatprep.subr.bf16.mxu0 0
  %2188 = vmatpush1.bf16.msra.mxu0 %v2002
  %2189 = vmatprep.subr.bf16.mxu0 0
  %2190 = vmatpush1.bf16.msra.mxu0 %v2003
  %2191 = vmatprep.subr.bf16.mxu0 0
  %2192 = vmatpush1.bf16.msra.mxu0 %v2004
  %2193 = vmatprep.subr.bf16.mxu0 0
  %2194 = vmatpush1.bf16.msra.mxu0 0
  %2195 = vmatprep.subr.bf16.mxu0 0
  %2196 = vmatpush1.bf16.msra.mxu0 0
  %2197 = vmatprep.subr.bf16.mxu0 0
  %2198 = vmatpush1.bf16.msra.mxu0 0
  %2199 = vmatprep.subr.bf16.mxu0 0
  %2200 = vmatpush1.bf16.msra.mxu0 0
  %2201 = vmatprep.mubr.bf16.mxu0 %v660
  %2202 = vmatmul.mubr.bf16.gmra.mrb[0].mxu0 %v644
  %v2203 = vpop.f32.mrb[0].mxu0
  %v2204 = vadd.f32 0.0, %v2203
  %v2205 = vpop.f32.mrb[0].mxu0
  %v2206 = vpop.f32.mrb[0].mxu0
  %v2207 = vadd.f32 0.0, %v2206
  %v2208 = vpop.f32.mrb[0].mxu0
  %2209 = vmatprep.mubr.bf16.mxu0 %v663
  %2210 = vmatmul.mubr.bf16.gmra.mrb[0].mxu0 %v653
  %v2211 = vpop.f32.mrb[0].mxu0
  %v2212 = vadd.f32 0.0, %v2211
  %v2213 = vpop.f32.mrb[0].mxu0
  %v2214 = vpop.f32.mrb[0].mxu0
  %v2215 = vadd.f32 0.0, %v2214
  %v2216 = vpop.f32.mrb[0].mxu0
  %2217 = vmatprep.mubr.bf16.mxu0 %v2167
  %2218 = vmatmul.mubr.bf16.gmra.mrb[0].mxu0 %v2163
  %v2219 = vpop.f32.mrb[0].mxu0
  %v2220 = vadd.f32 0.0, %v2219
  %v2221 = vpop.f32.mrb[0].mxu0
  %v2222 = vpop.f32.mrb[0].mxu0
  %v2223 = vadd.f32 0.0, %v2222
  %v2224 = vpop.f32.mrb[0].mxu0
  %2225 = vdwg.mxu0
  %v2226 = vadd.f32 %v1903, %v2204
  %v2227 = vadd.f32 %v1904, %v2207
  %v2228 = vadd.f32 %v1905, %v2212
  %v2229 = vadd.f32 %v1906, %v2215
  %v2230 = vadd.f32 %v1907, %v2220
  %v2231 = vadd.f32 %v1908, %v2223
  %s2232 = scalar_lea.vmem %s1, 576
  %v2233 = vld [vmem:[%s2232] sm:$0xf]
  %v2234 = vld [vmem:[%s2232 + $0x4] sm:$0xf]
  %v2235 = vld [vmem:[%s2232 + $0x8] sm:$0xf]
  %v2236 = vld [vmem:[%s2232 + $0xc] sm:$0xf]
  %v2237 = vld [vmem:[%s2232 + $0x10] sm:$0xf]
  %v2238 = vld [vmem:[%s2232 + $0x14] sm:$0xf]
  %v2239 = vld [vmem:[%s2232 + $0x18] sm:$0xf]
  %v2240 = vld [vmem:[%s2232 + $0x1c] sm:$0xf]
  %v2241 = vld [vmem:[%s2232 + $0x20] sm:$0xf]
  %v2242 = vld [vmem:[%s2232 + $0x24] sm:$0xf]
  %v2243 = vld [vmem:[%s2232 + $0x28] sm:$0xf]
  %v2244 = vld [vmem:[%s2232 + $0x2c] sm:$0xf]
  %v2245 = vld [vmem:[%s2232 + $0x30] sm:$0xf]
  %v2246 = vld [vmem:[%s2232 + $0x34] sm:$0xf]
  %v2247 = vld [vmem:[%s2232 + $0x38] sm:$0xf]
  %v2248 = vld [vmem:[%s2232 + $0x3c] sm:$0xf]
  %v2249 = vld [vmem:[%s2232 + $0x40] sm:$0xf]
  %v2250 = vld [vmem:[%s2232 + $0x44] sm:$0xf]
  %v2251 = vld [vmem:[%s2232 + $0x48] sm:$0xf]
  %v2252 = vld [vmem:[%s2232 + $0x4c] sm:$0xf]
  %v2253 = vld [vmem:[%s2232 + $0x50] sm:$0xf]
  %v2254 = vld [vmem:[%s2232 + $0x54] sm:$0xf]
  %v2255 = vld [vmem:[%s2232 + $0x58] sm:$0xf]
  %v2256 = vld [vmem:[%s2232 + $0x5c] sm:$0xf]
  %s2257 = scalar_lea.vmem %s0, 432
  %v2258 = vld [vmem:[%s2257] sm:$0xff]
  %v2259 = vld [vmem:[%s2257 + $0x18] sm:$0xff]
  %v2262 = vunpack.c.l.b16 %v2258
  %v2263 = vunpack.c.h.b16 %v2258
  %v2264 = vunpack.c.l.b16 %v2259
  %v2265 = vunpack.c.h.b16 %v2259
  %v2266 = vpack.c.b16 %v2264, %v2262
  %v2267 = vpack.c.b16 %v2265, %v2263
  %v2293 = vunpack.c.l.b16 %v2233
  %v2294 = vunpack.c.l.b16 %v2234
  %v2295 = vunpack.c.l.b16 %v2235
  %v2296 = vunpack.c.l.b16 %v2236
  %v2297 = vunpack.c.l.b16 %v2237
  %v2298 = vunpack.c.l.b16 %v2238
  %v2299 = vunpack.c.l.b16 %v2239
  %v2300 = vunpack.c.l.b16 %v2240
  %v2301 = vunpack.c.l.b16 %v2241
  %v2302 = vunpack.c.l.b16 %v2242
  %v2303 = vunpack.c.l.b16 %v2243
  %v2304 = vunpack.c.l.b16 %v2244
  %v2305 = vunpack.c.l.b16 %v2245
  %v2306 = vunpack.c.l.b16 %v2246
  %v2307 = vunpack.c.l.b16 %v2247
  %v2308 = vunpack.c.l.b16 %v2248
  %v2309 = vunpack.c.l.b16 %v2249
  %v2310 = vunpack.c.l.b16 %v2250
  %v2311 = vunpack.c.l.b16 %v2251
  %v2312 = vunpack.c.l.b16 %v2252
  %v2313 = vunpack.c.l.b16 %v2253
  %v2314 = vunpack.c.l.b16 %v2254
  %v2315 = vunpack.c.l.b16 %v2255
  %v2316 = vunpack.c.l.b16 %v2256
  %v2317 = vpack.c.b16 %v2294, %v2293
  %v2318 = vpack.c.b16 %v2296, %v2295
  %v2319 = vpack.c.b16 %v2298, %v2297
  %v2320 = vpack.c.b16 %v2300, %v2299
  %v2321 = vpack.c.b16 %v2302, %v2301
  %v2322 = vpack.c.b16 %v2304, %v2303
  %v2323 = vpack.c.b16 %v2306, %v2305
  %v2324 = vpack.c.b16 %v2308, %v2307
  %v2325 = vpack.c.b16 %v2310, %v2309
  %v2326 = vpack.c.b16 %v2312, %v2311
  %v2327 = vpack.c.b16 %v2314, %v2313
  %v2328 = vpack.c.b16 %v2316, %v2315
  %v2342 = vsel %vm249, %v2267, 0
  %2344 = vmatprep.subr.bf16.mxu0 0
  %2345 = vmatpush1.bf16.msra.mxu0 %v2317
  %2346 = vmatprep.subr.bf16.mxu0 0
  %2347 = vmatpush1.bf16.msra.mxu0 %v2318
  %2348 = vmatprep.subr.bf16.mxu0 0
  %2349 = vmatpush1.bf16.msra.mxu0 %v2319
  %2350 = vmatprep.subr.bf16.mxu0 0
  %2351 = vmatpush1.bf16.msra.mxu0 %v2320
  %2352 = vmatprep.subr.bf16.mxu0 0
  %2353 = vmatpush1.bf16.msra.mxu0 %v2321
  %2354 = vmatprep.subr.bf16.mxu0 0
  %2355 = vmatpush1.bf16.msra.mxu0 %v2322
  %2356 = vmatprep.subr.bf16.mxu0 0
  %2357 = vmatpush1.bf16.msra.mxu0 %v2323
  %2358 = vmatprep.subr.bf16.mxu0 0
  %2359 = vmatpush1.bf16.msra.mxu0 %v2324
  %2360 = vmatprep.subr.bf16.mxu0 0
  %2361 = vmatpush1.bf16.msra.mxu0 %v2325
  %2362 = vmatprep.subr.bf16.mxu0 0
  %2363 = vmatpush1.bf16.msra.mxu0 %v2326
  %2364 = vmatprep.subr.bf16.mxu0 0
  %2365 = vmatpush1.bf16.msra.mxu0 %v2327
  %2366 = vmatprep.subr.bf16.mxu0 0
  %2367 = vmatpush1.bf16.msra.mxu0 %v2328
  %2368 = vmatprep.subr.bf16.mxu0 0
  %2369 = vmatpush1.bf16.msra.mxu0 0
  %2370 = vmatprep.subr.bf16.mxu0 0
  %2371 = vmatpush1.bf16.msra.mxu0 0
  %2372 = vmatprep.subr.bf16.mxu0 0
  %2373 = vmatpush1.bf16.msra.mxu0 0
  %2374 = vmatprep.subr.bf16.mxu0 0
  %2375 = vmatpush1.bf16.msra.mxu0 0
  %2376 = vmatprep.mubr.bf16.mxu0 %v925
  %2377 = vmatmul.mubr.bf16.gmra.mrb[0].mxu0 %v837
  %v2378 = vpop.f32.mrb[0].mxu0
  %v2379 = vadd.f32 0.0, %v2378
  %v2380 = vpop.f32.mrb[0].mxu0
  %v2381 = vpop.f32.mrb[0].mxu0
  %v2382 = vadd.f32 0.0, %v2381
  %v2383 = vpop.f32.mrb[0].mxu0
  %2384 = vmatprep.mubr.bf16.mxu0 %v928
  %2385 = vmatmul.mubr.bf16.gmra.mrb[0].mxu0 %v846
  %v2386 = vpop.f32.mrb[0].mxu0
  %v2387 = vadd.f32 0.0, %v2386
  %v2388 = vpop.f32.mrb[0].mxu0
  %v2389 = vpop.f32.mrb[0].mxu0
  %v2390 = vadd.f32 0.0, %v2389
  %v2391 = vpop.f32.mrb[0].mxu0
  %2392 = vmatprep.mubr.bf16.mxu0 %v2342
  %2393 = vmatmul.mubr.bf16.gmra.mrb[0].mxu0 %v2266
  %v2394 = vpop.f32.mrb[0].mxu0
  %v2395 = vadd.f32 0.0, %v2394
  %v2396 = vpop.f32.mrb[0].mxu0
  %v2397 = vpop.f32.mrb[0].mxu0
  %v2398 = vadd.f32 0.0, %v2397
  %v2399 = vpop.f32.mrb[0].mxu0
  %2400 = vdwg.mxu0
  %v2401 = vadd.f32 %v2077, %v2379
  %v2402 = vadd.f32 %v2078, %v2382
  %v2403 = vadd.f32 %v2079, %v2387
  %v2404 = vadd.f32 %v2080, %v2390
  %v2405 = vadd.f32 %v2081, %v2395
  %v2406 = vadd.f32 %v2082, %v2398
  %2407 = vrot.lane.b32.xlu0 %v2266, 64
  %v2408 = vpop.permute.xlu0 %2407
  %2409 = vrot.lane.b32.xlu0 %v2267, 64
  %v2410 = vpop.permute.xlu0 %2409
  %v2411 = vsel %vm466, %v2408, %v2410
  %v2414 = vsel %vm249, %v2410, 0
  %2416 = vmatprep.subr.bf16.mxu0 0
  %2417 = vmatpush1.bf16.msra.mxu0 %v2317
  %2418 = vmatprep.subr.bf16.mxu0 0
  %2419 = vmatpush1.bf16.msra.mxu0 %v2318
  %2420 = vmatprep.subr.bf16.mxu0 0
  %2421 = vmatpush1.bf16.msra.mxu0 %v2319
  %2422 = vmatprep.subr.bf16.mxu0 0
  %2423 = vmatpush1.bf16.msra.mxu0 %v2320
  %2424 = vmatprep.subr.bf16.mxu0 0
  %2425 = vmatpush1.bf16.msra.mxu0 %v2321
  %2426 = vmatprep.subr.bf16.mxu0 0
  %2427 = vmatpush1.bf16.msra.mxu0 %v2322
  %2428 = vmatprep.subr.bf16.mxu0 0
  %2429 = vmatpush1.bf16.msra.mxu0 %v2323
  %2430 = vmatprep.subr.bf16.mxu0 0
  %2431 = vmatpush1.bf16.msra.mxu0 %v2324
  %2432 = vmatprep.subr.bf16.mxu0 0
  %2433 = vmatpush1.bf16.msra.mxu0 %v2325
  %2434 = vmatprep.subr.bf16.mxu0 0
  %2435 = vmatpush1.bf16.msra.mxu0 %v2326
  %2436 = vmatprep.subr.bf16.mxu0 0
  %2437 = vmatpush1.bf16.msra.mxu0 %v2327
  %2438 = vmatprep.subr.bf16.mxu0 0
  %2439 = vmatpush1.bf16.msra.mxu0 %v2328
  %2440 = vmatprep.subr.bf16.mxu0 0
  %2441 = vmatpush1.bf16.msra.mxu0 0
  %2442 = vmatprep.subr.bf16.mxu0 0
  %2443 = vmatpush1.bf16.msra.mxu0 0
  %2444 = vmatprep.subr.bf16.mxu0 0
  %2445 = vmatpush1.bf16.msra.mxu0 0
  %2446 = vmatprep.subr.bf16.mxu0 0
  %2447 = vmatpush1.bf16.msra.mxu0 0
  %2448 = vmatprep.mubr.bf16.mxu0 %v1015
  %2449 = vmatmul.mubr.bf16.gmra.mrb[0].mxu0 %v1006
  %v2450 = vpop.f32.mrb[0].mxu0
  %v2451 = vadd.f32 0.0, %v2450
  %v2452 = vpop.f32.mrb[0].mxu0
  %v2453 = vpop.f32.mrb[0].mxu0
  %v2454 = vadd.f32 0.0, %v2453
  %v2455 = vpop.f32.mrb[0].mxu0
  %2456 = vmatprep.mubr.bf16.mxu0 %v1018
  %2457 = vmatmul.mubr.bf16.gmra.mrb[0].mxu0 %v1007
  %v2458 = vpop.f32.mrb[0].mxu0
  %v2459 = vadd.f32 0.0, %v2458
  %v2460 = vpop.f32.mrb[0].mxu0
  %v2461 = vpop.f32.mrb[0].mxu0
  %v2462 = vadd.f32 0.0, %v2461
  %v2463 = vpop.f32.mrb[0].mxu0
  %2464 = vmatprep.mubr.bf16.mxu0 %v2414
  %2465 = vmatmul.mubr.bf16.gmra.mrb[0].mxu0 %v2411
  %v2466 = vpop.f32.mrb[0].mxu0
  %v2467 = vadd.f32 0.0, %v2466
  %v2468 = vpop.f32.mrb[0].mxu0
  %v2469 = vpop.f32.mrb[0].mxu0
  %v2470 = vadd.f32 0.0, %v2469
  %v2471 = vpop.f32.mrb[0].mxu0
  %2472 = vdwg.mxu0
  %v2473 = vadd.f32 %v2149, %v2451
  %v2474 = vadd.f32 %v2150, %v2454
  %v2475 = vadd.f32 %v2151, %v2459
  %v2476 = vadd.f32 %v2152, %v2462
  %v2477 = vadd.f32 %v2153, %v2467
  %v2478 = vadd.f32 %v2154, %v2470
  %v2479 = vld [vmem:[%s2257 + $0x4] sm:$0xff]
  %v2480 = vld [vmem:[%s2257 + $0x1c] sm:$0xff]
  %v2483 = vunpack.c.l.b16 %v2479
  %v2484 = vunpack.c.h.b16 %v2479
  %v2485 = vunpack.c.l.b16 %v2480
  %v2486 = vunpack.c.h.b16 %v2480
  %v2487 = vpack.c.b16 %v2485, %v2483
  %v2488 = vpack.c.b16 %v2486, %v2484
  %v2491 = vsel %vm249, %v2488, 0
  %2493 = vmatprep.subr.bf16.mxu0 0
  %2494 = vmatpush1.bf16.msra.mxu0 %v2317
  %2495 = vmatprep.subr.bf16.mxu0 0
  %2496 = vmatpush1.bf16.msra.mxu0 %v2318
  %2497 = vmatprep.subr.bf16.mxu0 0
  %2498 = vmatpush1.bf16.msra.mxu0 %v2319
  %2499 = vmatprep.subr.bf16.mxu0 0
  %2500 = vmatpush1.bf16.msra.mxu0 %v2320
  %2501 = vmatprep.subr.bf16.mxu0 0
  %2502 = vmatpush1.bf16.msra.mxu0 %v2321
  %2503 = vmatprep.subr.bf16.mxu0 0
  %2504 = vmatpush1.bf16.msra.mxu0 %v2322
  %2505 = vmatprep.subr.bf16.mxu0 0
  %2506 = vmatpush1.bf16.msra.mxu0 %v2323
  %2507 = vmatprep.subr.bf16.mxu0 0
  %2508 = vmatpush1.bf16.msra.mxu0 %v2324
  %2509 = vmatprep.subr.bf16.mxu0 0
  %2510 = vmatpush1.bf16.msra.mxu0 %v2325
  %2511 = vmatprep.subr.bf16.mxu0 0
  %2512 = vmatpush1.bf16.msra.mxu0 %v2326
  %2513 = vmatprep.subr.bf16.mxu0 0
  %2514 = vmatpush1.bf16.msra.mxu0 %v2327
  %2515 = vmatprep.subr.bf16.mxu0 0
  %2516 = vmatpush1.bf16.msra.mxu0 %v2328
  %2517 = vmatprep.subr.bf16.mxu0 0
  %2518 = vmatpush1.bf16.msra.mxu0 0
  %2519 = vmatprep.subr.bf16.mxu0 0
  %2520 = vmatpush1.bf16.msra.mxu0 0
  %2521 = vmatprep.subr.bf16.mxu0 0
  %2522 = vmatpush1.bf16.msra.mxu0 0
  %2523 = vmatprep.subr.bf16.mxu0 0
  %2524 = vmatpush1.bf16.msra.mxu0 0
  %2525 = vmatprep.mubr.bf16.mxu0 %v1120
  %2526 = vmatmul.mubr.bf16.gmra.mrb[0].mxu0 %v1104
  %v2527 = vpop.f32.mrb[0].mxu0
  %v2528 = vadd.f32 0.0, %v2527
  %v2529 = vpop.f32.mrb[0].mxu0
  %v2530 = vpop.f32.mrb[0].mxu0
  %v2531 = vadd.f32 0.0, %v2530
  %v2532 = vpop.f32.mrb[0].mxu0
  %2533 = vmatprep.mubr.bf16.mxu0 %v1123
  %2534 = vmatmul.mubr.bf16.gmra.mrb[0].mxu0 %v1113
  %v2535 = vpop.f32.mrb[0].mxu0
  %v2536 = vadd.f32 0.0, %v2535
  %v2537 = vpop.f32.mrb[0].mxu0
  %v2538 = vpop.f32.mrb[0].mxu0
  %v2539 = vadd.f32 0.0, %v2538
  %v2540 = vpop.f32.mrb[0].mxu0
  %2541 = vmatprep.mubr.bf16.mxu0 %v2491
  %2542 = vmatmul.mubr.bf16.gmra.mrb[0].mxu0 %v2487
  %v2543 = vpop.f32.mrb[0].mxu0
  %v2544 = vadd.f32 0.0, %v2543
  %v2545 = vpop.f32.mrb[0].mxu0
  %v2546 = vpop.f32.mrb[0].mxu0
  %v2547 = vadd.f32 0.0, %v2546
  %v2548 = vpop.f32.mrb[0].mxu0
  %2549 = vdwg.mxu0
  %v2550 = vadd.f32 %v2226, %v2528
  %v2551 = vadd.f32 %v2227, %v2531
  %v2552 = vadd.f32 %v2228, %v2536
  %v2553 = vadd.f32 %v2229, %v2539
  %v2554 = vadd.f32 %v2230, %v2544
  %v2555 = vadd.f32 %v2231, %v2547
  %s2556 = scalar_lea.vmem %s1, 672
  %v2557 = vld [vmem:[%s2556] sm:$0xf]
  %v2558 = vld [vmem:[%s2556 + $0x4] sm:$0xf]
  %v2559 = vld [vmem:[%s2556 + $0x8] sm:$0xf]
  %v2560 = vld [vmem:[%s2556 + $0xc] sm:$0xf]
  %v2561 = vld [vmem:[%s2556 + $0x10] sm:$0xf]
  %v2562 = vld [vmem:[%s2556 + $0x14] sm:$0xf]
  %v2563 = vld [vmem:[%s2556 + $0x18] sm:$0xf]
  %v2564 = vld [vmem:[%s2556 + $0x1c] sm:$0xf]
  %v2565 = vld [vmem:[%s2556 + $0x20] sm:$0xf]
  %v2566 = vld [vmem:[%s2556 + $0x24] sm:$0xf]
  %v2567 = vld [vmem:[%s2556 + $0x28] sm:$0xf]
  %v2568 = vld [vmem:[%s2556 + $0x2c] sm:$0xf]
  %v2569 = vld [vmem:[%s2556 + $0x30] sm:$0xf]
  %v2570 = vld [vmem:[%s2556 + $0x34] sm:$0xf]
  %v2571 = vld [vmem:[%s2556 + $0x38] sm:$0xf]
  %v2572 = vld [vmem:[%s2556 + $0x3c] sm:$0xf]
  %v2573 = vld [vmem:[%s2556 + $0x40] sm:$0xf]
  %v2574 = vld [vmem:[%s2556 + $0x44] sm:$0xf]
  %v2575 = vld [vmem:[%s2556 + $0x48] sm:$0xf]
  %v2576 = vld [vmem:[%s2556 + $0x4c] sm:$0xf]
  %v2577 = vld [vmem:[%s2556 + $0x50] sm:$0xf]
  %v2578 = vld [vmem:[%s2556 + $0x54] sm:$0xf]
  %v2579 = vld [vmem:[%s2556 + $0x58] sm:$0xf]
  %v2580 = vld [vmem:[%s2556 + $0x5c] sm:$0xf]
  %v2581 = vld [vmem:[%s2257 + $0xc] sm:$0xff]
  %v2582 = vld [vmem:[%s2257 + $0x24] sm:$0xff]
  %v2585 = vunpack.c.l.b16 %v2581
  %v2586 = vunpack.c.h.b16 %v2581
  %v2587 = vunpack.c.l.b16 %v2582
  %v2588 = vunpack.c.h.b16 %v2582
  %v2589 = vpack.c.b16 %v2587, %v2585
  %v2590 = vpack.c.b16 %v2588, %v2586
  %v2616 = vunpack.c.l.b16 %v2557
  %v2617 = vunpack.c.l.b16 %v2558
  %v2618 = vunpack.c.l.b16 %v2559
  %v2619 = vunpack.c.l.b16 %v2560
  %v2620 = vunpack.c.l.b16 %v2561
  %v2621 = vunpack.c.l.b16 %v2562
  %v2622 = vunpack.c.l.b16 %v2563
  %v2623 = vunpack.c.l.b16 %v2564
  %v2624 = vunpack.c.l.b16 %v2565
  %v2625 = vunpack.c.l.b16 %v2566
  %v2626 = vunpack.c.l.b16 %v2567
  %v2627 = vunpack.c.l.b16 %v2568
  %v2628 = vunpack.c.l.b16 %v2569
  %v2629 = vunpack.c.l.b16 %v2570
  %v2630 = vunpack.c.l.b16 %v2571
  %v2631 = vunpack.c.l.b16 %v2572
  %v2632 = vunpack.c.l.b16 %v2573
  %v2633 = vunpack.c.l.b16 %v2574
  %v2634 = vunpack.c.l.b16 %v2575
  %v2635 = vunpack.c.l.b16 %v2576
  %v2636 = vunpack.c.l.b16 %v2577
  %v2637 = vunpack.c.l.b16 %v2578
  %v2638 = vunpack.c.l.b16 %v2579
  %v2639 = vunpack.c.l.b16 %v2580
  %v2640 = vpack.c.b16 %v2617, %v2616
  %v2641 = vpack.c.b16 %v2619, %v2618
  %v2642 = vpack.c.b16 %v2621, %v2620
  %v2643 = vpack.c.b16 %v2623, %v2622
  %v2644 = vpack.c.b16 %v2625, %v2624
  %v2645 = vpack.c.b16 %v2627, %v2626
  %v2646 = vpack.c.b16 %v2629, %v2628
  %v2647 = vpack.c.b16 %v2631, %v2630
  %v2648 = vpack.c.b16 %v2633, %v2632
  %v2649 = vpack.c.b16 %v2635, %v2634
  %v2650 = vpack.c.b16 %v2637, %v2636
  %v2651 = vpack.c.b16 %v2639, %v2638
  %v2665 = vsel %vm249, %v2590, 0
  %2667 = vmatprep.subr.bf16.mxu0 0
  %2668 = vmatpush1.bf16.msra.mxu0 %v2640
  %2669 = vmatprep.subr.bf16.mxu0 0
  %2670 = vmatpush1.bf16.msra.mxu0 %v2641
  %2671 = vmatprep.subr.bf16.mxu0 0
  %2672 = vmatpush1.bf16.msra.mxu0 %v2642
  %2673 = vmatprep.subr.bf16.mxu0 0
  %2674 = vmatpush1.bf16.msra.mxu0 %v2643
  %2675 = vmatprep.subr.bf16.mxu0 0
  %2676 = vmatpush1.bf16.msra.mxu0 %v2644
  %2677 = vmatprep.subr.bf16.mxu0 0
  %2678 = vmatpush1.bf16.msra.mxu0 %v2645
  %2679 = vmatprep.subr.bf16.mxu0 0
  %2680 = vmatpush1.bf16.msra.mxu0 %v2646
  %2681 = vmatprep.subr.bf16.mxu0 0
  %2682 = vmatpush1.bf16.msra.mxu0 %v2647
  %2683 = vmatprep.subr.bf16.mxu0 0
  %2684 = vmatpush1.bf16.msra.mxu0 %v2648
  %2685 = vmatprep.subr.bf16.mxu0 0
  %2686 = vmatpush1.bf16.msra.mxu0 %v2649
  %2687 = vmatprep.subr.bf16.mxu0 0
  %2688 = vmatpush1.bf16.msra.mxu0 %v2650
  %2689 = vmatprep.subr.bf16.mxu0 0
  %2690 = vmatpush1.bf16.msra.mxu0 %v2651
  %2691 = vmatprep.subr.bf16.mxu0 0
  %2692 = vmatpush1.bf16.msra.mxu0 0
  %2693 = vmatprep.subr.bf16.mxu0 0
  %2694 = vmatpush1.bf16.msra.mxu0 0
  %2695 = vmatprep.subr.bf16.mxu0 0
  %2696 = vmatpush1.bf16.msra.mxu0 0
  %2697 = vmatprep.subr.bf16.mxu0 0
  %2698 = vmatpush1.bf16.msra.mxu0 0
  %2699 = vmatprep.mubr.bf16.mxu0 %v1322
  %2700 = vmatmul.mubr.bf16.gmra.mrb[0].mxu0 %v1234
  %v2701 = vpop.f32.mrb[0].mxu0
  %v2702 = vadd.f32 0.0, %v2701
  %v2703 = vpop.f32.mrb[0].mxu0
  %v2704 = vpop.f32.mrb[0].mxu0
  %v2705 = vadd.f32 0.0, %v2704
  %v2706 = vpop.f32.mrb[0].mxu0
  %2707 = vmatprep.mubr.bf16.mxu0 %v1325
  %2708 = vmatmul.mubr.bf16.gmra.mrb[0].mxu0 %v1243
  %v2709 = vpop.f32.mrb[0].mxu0
  %v2710 = vadd.f32 0.0, %v2709
  %v2711 = vpop.f32.mrb[0].mxu0
  %v2712 = vpop.f32.mrb[0].mxu0
  %v2713 = vadd.f32 0.0, %v2712
  %v2714 = vpop.f32.mrb[0].mxu0
  %2715 = vmatprep.mubr.bf16.mxu0 %v2665
  %2716 = vmatmul.mubr.bf16.gmra.mrb[0].mxu0 %v2589
  %v2717 = vpop.f32.mrb[0].mxu0
  %v2718 = vadd.f32 0.0, %v2717
  %v2719 = vpop.f32.mrb[0].mxu0
  %v2720 = vpop.f32.mrb[0].mxu0
  %v2721 = vadd.f32 0.0, %v2720
  %v2722 = vpop.f32.mrb[0].mxu0
  %2723 = vdwg.mxu0
  %v2724 = vadd.f32 %v2401, %v2702
  %v2725 = vadd.f32 %v2402, %v2705
  %v2726 = vadd.f32 %v2403, %v2710
  %v2727 = vadd.f32 %v2404, %v2713
  %v2728 = vadd.f32 %v2405, %v2718
  %v2729 = vadd.f32 %v2406, %v2721
  %2730 = vrot.lane.b32.xlu0 %v2589, 64
  %v2731 = vpop.permute.xlu0 %2730
  %2732 = vrot.lane.b32.xlu0 %v2590, 64
  %v2733 = vpop.permute.xlu0 %2732
  %v2734 = vsel %vm466, %v2731, %v2733
  %v2737 = vsel %vm249, %v2733, 0
  %2739 = vmatprep.subr.bf16.mxu0 0
  %2740 = vmatpush1.bf16.msra.mxu0 %v2640
  %2741 = vmatprep.subr.bf16.mxu0 0
  %2742 = vmatpush1.bf16.msra.mxu0 %v2641
  %2743 = vmatprep.subr.bf16.mxu0 0
  %2744 = vmatpush1.bf16.msra.mxu0 %v2642
  %2745 = vmatprep.subr.bf16.mxu0 0
  %2746 = vmatpush1.bf16.msra.mxu0 %v2643
  %2747 = vmatprep.subr.bf16.mxu0 0
  %2748 = vmatpush1.bf16.msra.mxu0 %v2644
  %2749 = vmatprep.subr.bf16.mxu0 0
  %2750 = vmatpush1.bf16.msra.mxu0 %v2645
  %2751 = vmatprep.subr.bf16.mxu0 0
  %2752 = vmatpush1.bf16.msra.mxu0 %v2646
  %2753 = vmatprep.subr.bf16.mxu0 0
  %2754 = vmatpush1.bf16.msra.mxu0 %v2647
  %2755 = vmatprep.subr.bf16.mxu0 0
  %2756 = vmatpush1.bf16.msra.mxu0 %v2648
  %2757 = vmatprep.subr.bf16.mxu0 0
  %2758 = vmatpush1.bf16.msra.mxu0 %v2649
  %2759 = vmatprep.subr.bf16.mxu0 0
  %2760 = vmatpush1.bf16.msra.mxu0 %v2650
  %2761 = vmatprep.subr.bf16.mxu0 0
  %2762 = vmatpush1.bf16.msra.mxu0 %v2651
  %2763 = vmatprep.subr.bf16.mxu0 0
  %2764 = vmatpush1.bf16.msra.mxu0 0
  %2765 = vmatprep.subr.bf16.mxu0 0
  %2766 = vmatpush1.bf16.msra.mxu0 0
  %2767 = vmatprep.subr.bf16.mxu0 0
  %2768 = vmatpush1.bf16.msra.mxu0 0
  %2769 = vmatprep.subr.bf16.mxu0 0
  %2770 = vmatpush1.bf16.msra.mxu0 0
  %2771 = vmatprep.mubr.bf16.mxu0 %v1412
  %2772 = vmatmul.mubr.bf16.gmra.mrb[0].mxu0 %v1403
  %v2773 = vpop.f32.mrb[0].mxu0
  %v2774 = vadd.f32 0.0, %v2773
  %v2775 = vpop.f32.mrb[0].mxu0
  %v2776 = vpop.f32.mrb[0].mxu0
  %v2777 = vadd.f32 0.0, %v2776
  %v2778 = vpop.f32.mrb[0].mxu0
  %2779 = vmatprep.mubr.bf16.mxu0 %v1415
  %2780 = vmatmul.mubr.bf16.gmra.mrb[0].mxu0 %v1404
  %v2781 = vpop.f32.mrb[0].mxu0
  %v2782 = vadd.f32 0.0, %v2781
  %v2783 = vpop.f32.mrb[0].mxu0
  %v2784 = vpop.f32.mrb[0].mxu0
  %v2785 = vadd.f32 0.0, %v2784
  %v2786 = vpop.f32.mrb[0].mxu0
  %2787 = vmatprep.mubr.bf16.mxu0 %v2737
  %2788 = vmatmul.mubr.bf16.gmra.mrb[0].mxu0 %v2734
  %v2789 = vpop.f32.mrb[0].mxu0
  %v2790 = vadd.f32 0.0, %v2789
  %v2791 = vpop.f32.mrb[0].mxu0
  %v2792 = vpop.f32.mrb[0].mxu0
  %v2793 = vadd.f32 0.0, %v2792
  %v2794 = vpop.f32.mrb[0].mxu0
  %2795 = vdwg.mxu0
  %v2796 = vadd.f32 %v2473, %v2774
  %v2797 = vadd.f32 %v2474, %v2777
  %v2798 = vadd.f32 %v2475, %v2782
  %v2799 = vadd.f32 %v2476, %v2785
  %v2800 = vadd.f32 %v2477, %v2790
  %v2801 = vadd.f32 %v2478, %v2793
  %v2802 = vld [vmem:[%s2257 + $0x10] sm:$0xff]
  %v2803 = vld [vmem:[%s2257 + $0x28] sm:$0xff]
  %v2806 = vunpack.c.l.b16 %v2802
  %v2807 = vunpack.c.h.b16 %v2802
  %v2808 = vunpack.c.l.b16 %v2803
  %v2809 = vunpack.c.h.b16 %v2803
  %v2810 = vpack.c.b16 %v2808, %v2806
  %v2811 = vpack.c.b16 %v2809, %v2807
  %v2814 = vsel %vm249, %v2811, 0
  %2816 = vmatprep.subr.bf16.mxu0 0
  %2817 = vmatpush1.bf16.msra.mxu0 %v2640
  %2818 = vmatprep.subr.bf16.mxu0 0
  %2819 = vmatpush1.bf16.msra.mxu0 %v2641
  %2820 = vmatprep.subr.bf16.mxu0 0
  %2821 = vmatpush1.bf16.msra.mxu0 %v2642
  %2822 = vmatprep.subr.bf16.mxu0 0
  %2823 = vmatpush1.bf16.msra.mxu0 %v2643
  %2824 = vmatprep.subr.bf16.mxu0 0
  %2825 = vmatpush1.bf16.msra.mxu0 %v2644
  %2826 = vmatprep.subr.bf16.mxu0 0
  %2827 = vmatpush1.bf16.msra.mxu0 %v2645
  %2828 = vmatprep.subr.bf16.mxu0 0
  %2829 = vmatpush1.bf16.msra.mxu0 %v2646
  %2830 = vmatprep.subr.bf16.mxu0 0
  %2831 = vmatpush1.bf16.msra.mxu0 %v2647
  %2832 = vmatprep.subr.bf16.mxu0 0
  %2833 = vmatpush1.bf16.msra.mxu0 %v2648
  %2834 = vmatprep.subr.bf16.mxu0 0
  %2835 = vmatpush1.bf16.msra.mxu0 %v2649
  %2836 = vmatprep.subr.bf16.mxu0 0
  %2837 = vmatpush1.bf16.msra.mxu0 %v2650
  %2838 = vmatprep.subr.bf16.mxu0 0
  %2839 = vmatpush1.bf16.msra.mxu0 %v2651
  %2840 = vmatprep.subr.bf16.mxu0 0
  %2841 = vmatpush1.bf16.msra.mxu0 0
  %2842 = vmatprep.subr.bf16.mxu0 0
  %2843 = vmatpush1.bf16.msra.mxu0 0
  %2844 = vmatprep.subr.bf16.mxu0 0
  %2845 = vmatpush1.bf16.msra.mxu0 0
  %2846 = vmatprep.subr.bf16.mxu0 0
  %2847 = vmatpush1.bf16.msra.mxu0 0
  %2848 = vmatprep.mubr.bf16.mxu0 %v1517
  %2849 = vmatmul.mubr.bf16.gmra.mrb[0].mxu0 %v1501
  %v2850 = vpop.f32.mrb[0].mxu0
  %v2851 = vadd.f32 0.0, %v2850
  %v2852 = vpop.f32.mrb[0].mxu0
  %v2853 = vpop.f32.mrb[0].mxu0
  %v2854 = vadd.f32 0.0, %v2853
  %v2855 = vpop.f32.mrb[0].mxu0
  %2856 = vmatprep.mubr.bf16.mxu0 %v1520
  %2857 = vmatmul.mubr.bf16.gmra.mrb[0].mxu0 %v1510
  %v2858 = vpop.f32.mrb[0].mxu0
  %v2859 = vadd.f32 0.0, %v2858
  %v2860 = vpop.f32.mrb[0].mxu0
  %v2861 = vpop.f32.mrb[0].mxu0
  %v2862 = vadd.f32 0.0, %v2861
  %v2863 = vpop.f32.mrb[0].mxu0
  %2864 = vmatprep.mubr.bf16.mxu0 %v2814
  %2865 = vmatmul.mubr.bf16.gmra.mrb[0].mxu0 %v2810
  %v2866 = vpop.f32.mrb[0].mxu0
  %v2867 = vadd.f32 0.0, %v2866
  %v2868 = vpop.f32.mrb[0].mxu0
  %v2869 = vpop.f32.mrb[0].mxu0
  %v2870 = vadd.f32 0.0, %v2869
  %v2871 = vpop.f32.mrb[0].mxu0
  %2872 = vdwg.mxu0
  %v2873 = vadd.f32 %v2550, %v2851
  %v2874 = vadd.f32 %v2551, %v2854
  %v2875 = vadd.f32 %v2552, %v2859
  %v2876 = vadd.f32 %v2553, %v2862
  %v2877 = vadd.f32 %v2554, %v2867
  %v2878 = vadd.f32 %v2555, %v2870
  %s2879 = scalar_lea.vmem %s1, 768
  %v2880 = vld [vmem:[%s2879] sm:$0xf]
  %v2881 = vld [vmem:[%s2879 + $0x4] sm:$0xf]
  %v2882 = vld [vmem:[%s2879 + $0x8] sm:$0xf]
  %v2883 = vld [vmem:[%s2879 + $0xc] sm:$0xf]
  %v2884 = vld [vmem:[%s2879 + $0x10] sm:$0xf]
  %v2885 = vld [vmem:[%s2879 + $0x14] sm:$0xf]
  %v2886 = vld [vmem:[%s2879 + $0x18] sm:$0xf]
  %v2887 = vld [vmem:[%s2879 + $0x1c] sm:$0xf]
  %v2888 = vld [vmem:[%s2879 + $0x20] sm:$0xf]
  %v2889 = vld [vmem:[%s2879 + $0x24] sm:$0xf]
  %v2890 = vld [vmem:[%s2879 + $0x28] sm:$0xf]
  %v2891 = vld [vmem:[%s2879 + $0x2c] sm:$0xf]
  %v2892 = vld [vmem:[%s2879 + $0x30] sm:$0xf]
  %v2893 = vld [vmem:[%s2879 + $0x34] sm:$0xf]
  %v2894 = vld [vmem:[%s2879 + $0x38] sm:$0xf]
  %v2895 = vld [vmem:[%s2879 + $0x3c] sm:$0xf]
  %v2896 = vld [vmem:[%s2879 + $0x40] sm:$0xf]
  %v2897 = vld [vmem:[%s2879 + $0x44] sm:$0xf]
  %v2898 = vld [vmem:[%s2879 + $0x48] sm:$0xf]
  %v2899 = vld [vmem:[%s2879 + $0x4c] sm:$0xf]
  %v2900 = vld [vmem:[%s2879 + $0x50] sm:$0xf]
  %v2901 = vld [vmem:[%s2879 + $0x54] sm:$0xf]
  %v2902 = vld [vmem:[%s2879 + $0x58] sm:$0xf]
  %v2903 = vld [vmem:[%s2879 + $0x5c] sm:$0xf]
  %s2904 = scalar_lea.vmem %s0, 192
  %v2905 = vld [vmem:[%s2904] sm:$0xff]
  %v2906 = vld [vmem:[%s2904 + $0x18] sm:$0xff]
  %v2909 = vunpack.c.l.b16 %v2905
  %v2910 = vunpack.c.h.b16 %v2905
  %v2911 = vunpack.c.l.b16 %v2906
  %v2912 = vunpack.c.h.b16 %v2906
  %v2913 = vpack.c.b16 %v2911, %v2909
  %v2914 = vpack.c.b16 %v2912, %v2910
  %v2940 = vunpack.c.l.b16 %v2880
  %v2941 = vunpack.c.l.b16 %v2881
  %v2942 = vunpack.c.l.b16 %v2882
  %v2943 = vunpack.c.l.b16 %v2883
  %v2944 = vunpack.c.l.b16 %v2884
  %v2945 = vunpack.c.l.b16 %v2885
  %v2946 = vunpack.c.l.b16 %v2886
  %v2947 = vunpack.c.l.b16 %v2887
  %v2948 = vunpack.c.l.b16 %v2888
  %v2949 = vunpack.c.l.b16 %v2889
  %v2950 = vunpack.c.l.b16 %v2890
  %v2951 = vunpack.c.l.b16 %v2891
  %v2952 = vunpack.c.l.b16 %v2892
  %v2953 = vunpack.c.l.b16 %v2893
  %v2954 = vunpack.c.l.b16 %v2894
  %v2955 = vunpack.c.l.b16 %v2895
  %v2956 = vunpack.c.l.b16 %v2896
  %v2957 = vunpack.c.l.b16 %v2897
  %v2958 = vunpack.c.l.b16 %v2898
  %v2959 = vunpack.c.l.b16 %v2899
  %v2960 = vunpack.c.l.b16 %v2900
  %v2961 = vunpack.c.l.b16 %v2901
  %v2962 = vunpack.c.l.b16 %v2902
  %v2963 = vunpack.c.l.b16 %v2903
  %v2964 = vpack.c.b16 %v2941, %v2940
  %v2965 = vpack.c.b16 %v2943, %v2942
  %v2966 = vpack.c.b16 %v2945, %v2944
  %v2967 = vpack.c.b16 %v2947, %v2946
  %v2968 = vpack.c.b16 %v2949, %v2948
  %v2969 = vpack.c.b16 %v2951, %v2950
  %v2970 = vpack.c.b16 %v2953, %v2952
  %v2971 = vpack.c.b16 %v2955, %v2954
  %v2972 = vpack.c.b16 %v2957, %v2956
  %v2973 = vpack.c.b16 %v2959, %v2958
  %v2974 = vpack.c.b16 %v2961, %v2960
  %v2975 = vpack.c.b16 %v2963, %v2962
  %v2989 = vsel %vm249, %v2914, 0
  %2991 = vmatprep.subr.bf16.mxu0 0
  %2992 = vmatpush1.bf16.msra.mxu0 %v2964
  %2993 = vmatprep.subr.bf16.mxu0 0
  %2994 = vmatpush1.bf16.msra.mxu0 %v2965
  %2995 = vmatprep.subr.bf16.mxu0 0
  %2996 = vmatpush1.bf16.msra.mxu0 %v2966
  %2997 = vmatprep.subr.bf16.mxu0 0
  %2998 = vmatpush1.bf16.msra.mxu0 %v2967
  %2999 = vmatprep.subr.bf16.mxu0 0
  %3000 = vmatpush1.bf16.msra.mxu0 %v2968
  %3001 = vmatprep.subr.bf16.mxu0 0
  %3002 = vmatpush1.bf16.msra.mxu0 %v2969
  %3003 = vmatprep.subr.bf16.mxu0 0
  %3004 = vmatpush1.bf16.msra.mxu0 %v2970
  %3005 = vmatprep.subr.bf16.mxu0 0
  %3006 = vmatpush1.bf16.msra.mxu0 %v2971
  %3007 = vmatprep.subr.bf16.mxu0 0
  %3008 = vmatpush1.bf16.msra.mxu0 %v2972
  %3009 = vmatprep.subr.bf16.mxu0 0
  %3010 = vmatpush1.bf16.msra.mxu0 %v2973
  %3011 = vmatprep.subr.bf16.mxu0 0
  %3012 = vmatpush1.bf16.msra.mxu0 %v2974
  %3013 = vmatprep.subr.bf16.mxu0 0
  %3014 = vmatpush1.bf16.msra.mxu0 %v2975
  %3015 = vmatprep.subr.bf16.mxu0 0
  %3016 = vmatpush1.bf16.msra.mxu0 0
  %3017 = vmatprep.subr.bf16.mxu0 0
  %3018 = vmatpush1.bf16.msra.mxu0 0
  %3019 = vmatprep.subr.bf16.mxu0 0
  %3020 = vmatpush1.bf16.msra.mxu0 0
  %3021 = vmatprep.subr.bf16.mxu0 0
  %3022 = vmatpush1.bf16.msra.mxu0 0
  %3023 = vmatprep.mubr.bf16.mxu0 %v395
  %3024 = vmatmul.mubr.bf16.gmra.mrb[0].mxu0 %v83
  %v3025 = vpop.f32.mrb[0].mxu0
  %v3026 = vadd.f32 0.0, %v3025
  %v3027 = vpop.f32.mrb[0].mxu0
  %v3028 = vpop.f32.mrb[0].mxu0
  %v3029 = vadd.f32 0.0, %v3028
  %v3030 = vpop.f32.mrb[0].mxu0
  %3031 = vmatprep.mubr.bf16.mxu0 %v1695
  %3032 = vmatmul.mubr.bf16.gmra.mrb[0].mxu0 %v1619
  %v3033 = vpop.f32.mrb[0].mxu0
  %v3034 = vadd.f32 0.0, %v3033
  %v3035 = vpop.f32.mrb[0].mxu0
  %v3036 = vpop.f32.mrb[0].mxu0
  %v3037 = vadd.f32 0.0, %v3036
  %v3038 = vpop.f32.mrb[0].mxu0
  %3039 = vmatprep.mubr.bf16.mxu0 %v2989
  %3040 = vmatmul.mubr.bf16.gmra.mrb[0].mxu0 %v2913
  %v3041 = vpop.f32.mrb[0].mxu0
  %v3042 = vadd.f32 0.0, %v3041
  %v3043 = vpop.f32.mrb[0].mxu0
  %v3044 = vpop.f32.mrb[0].mxu0
  %v3045 = vadd.f32 0.0, %v3044
  %v3046 = vpop.f32.mrb[0].mxu0
  %3047 = vdwg.mxu0
  %v3048 = vadd.f32 %v2724, %v3026
  %v3049 = vadd.f32 %v2725, %v3029
  %v3050 = vadd.f32 %v2726, %v3034
  %v3051 = vadd.f32 %v2727, %v3037
  %v3052 = vadd.f32 %v2728, %v3042
  %v3053 = vadd.f32 %v2729, %v3045
  %3054 = vrot.lane.b32.xlu0 %v2913, 64
  %v3055 = vpop.permute.xlu0 %3054
  %3056 = vrot.lane.b32.xlu0 %v2914, 64
  %v3057 = vpop.permute.xlu0 %3056
  %v3058 = vsel %vm466, %v3055, %v3057
  %v3061 = vsel %vm249, %v3057, 0
  %3063 = vmatprep.subr.bf16.mxu0 0
  %3064 = vmatpush1.bf16.msra.mxu0 %v2964
  %3065 = vmatprep.subr.bf16.mxu0 0
  %3066 = vmatpush1.bf16.msra.mxu0 %v2965
  %3067 = vmatprep.subr.bf16.mxu0 0
  %3068 = vmatpush1.bf16.msra.mxu0 %v2966
  %3069 = vmatprep.subr.bf16.mxu0 0
  %3070 = vmatpush1.bf16.msra.mxu0 %v2967
  %3071 = vmatprep.subr.bf16.mxu0 0
  %3072 = vmatpush1.bf16.msra.mxu0 %v2968
  %3073 = vmatprep.subr.bf16.mxu0 0
  %3074 = vmatpush1.bf16.msra.mxu0 %v2969
  %3075 = vmatprep.subr.bf16.mxu0 0
  %3076 = vmatpush1.bf16.msra.mxu0 %v2970
  %3077 = vmatprep.subr.bf16.mxu0 0
  %3078 = vmatpush1.bf16.msra.mxu0 %v2971
  %3079 = vmatprep.subr.bf16.mxu0 0
  %3080 = vmatpush1.bf16.msra.mxu0 %v2972
  %3081 = vmatprep.subr.bf16.mxu0 0
  %3082 = vmatpush1.bf16.msra.mxu0 %v2973
  %3083 = vmatprep.subr.bf16.mxu0 0
  %3084 = vmatpush1.bf16.msra.mxu0 %v2974
  %3085 = vmatprep.subr.bf16.mxu0 0
  %3086 = vmatpush1.bf16.msra.mxu0 %v2975
  %3087 = vmatprep.subr.bf16.mxu0 0
  %3088 = vmatpush1.bf16.msra.mxu0 0
  %3089 = vmatprep.subr.bf16.mxu0 0
  %3090 = vmatpush1.bf16.msra.mxu0 0
  %3091 = vmatprep.subr.bf16.mxu0 0
  %3092 = vmatpush1.bf16.msra.mxu0 0
  %3093 = vmatprep.subr.bf16.mxu0 0
  %3094 = vmatpush1.bf16.msra.mxu0 0
  %3095 = vmatprep.mubr.bf16.mxu0 %v564
  %3096 = vmatmul.mubr.bf16.gmra.mrb[0].mxu0 %v553
  %v3097 = vpop.f32.mrb[0].mxu0
  %v3098 = vadd.f32 0.0, %v3097
  %v3099 = vpop.f32.mrb[0].mxu0
  %v3100 = vpop.f32.mrb[0].mxu0
  %v3101 = vadd.f32 0.0, %v3100
  %v3102 = vpop.f32.mrb[0].mxu0
  %3103 = vmatprep.mubr.bf16.mxu0 %v1767
  %3104 = vmatmul.mubr.bf16.gmra.mrb[0].mxu0 %v1764
  %v3105 = vpop.f32.mrb[0].mxu0
  %v3106 = vadd.f32 0.0, %v3105
  %v3107 = vpop.f32.mrb[0].mxu0
  %v3108 = vpop.f32.mrb[0].mxu0
  %v3109 = vadd.f32 0.0, %v3108
  %v3110 = vpop.f32.mrb[0].mxu0
  %3111 = vmatprep.mubr.bf16.mxu0 %v3061
  %3112 = vmatmul.mubr.bf16.gmra.mrb[0].mxu0 %v3058
  %v3113 = vpop.f32.mrb[0].mxu0
  %v3114 = vadd.f32 0.0, %v3113
  %v3115 = vpop.f32.mrb[0].mxu0
  %v3116 = vpop.f32.mrb[0].mxu0
  %v3117 = vadd.f32 0.0, %v3116
  %v3118 = vpop.f32.mrb[0].mxu0
  %3119 = vdwg.mxu0
  %v3120 = vadd.f32 %v2796, %v3098
  %v3121 = vadd.f32 %v2797, %v3101
  %v3122 = vadd.f32 %v2798, %v3106
  %v3123 = vadd.f32 %v2799, %v3109
  %v3124 = vadd.f32 %v2800, %v3114
  %v3125 = vadd.f32 %v2801, %v3117
  %v3126 = vld [vmem:[%s2904 + $0x4] sm:$0xff]
  %v3127 = vld [vmem:[%s2904 + $0x1c] sm:$0xff]
  %v3130 = vunpack.c.l.b16 %v3126
  %v3131 = vunpack.c.h.b16 %v3126
  %v3132 = vunpack.c.l.b16 %v3127
  %v3133 = vunpack.c.h.b16 %v3127
  %v3134 = vpack.c.b16 %v3132, %v3130
  %v3135 = vpack.c.b16 %v3133, %v3131
  %v3138 = vsel %vm249, %v3135, 0
  %3140 = vmatprep.subr.bf16.mxu0 0
  %3141 = vmatpush1.bf16.msra.mxu0 %v2964
  %3142 = vmatprep.subr.bf16.mxu0 0
  %3143 = vmatpush1.bf16.msra.mxu0 %v2965
  %3144 = vmatprep.subr.bf16.mxu0 0
  %3145 = vmatpush1.bf16.msra.mxu0 %v2966
  %3146 = vmatprep.subr.bf16.mxu0 0
  %3147 = vmatpush1.bf16.msra.mxu0 %v2967
  %3148 = vmatprep.subr.bf16.mxu0 0
  %3149 = vmatpush1.bf16.msra.mxu0 %v2968
  %3150 = vmatprep.subr.bf16.mxu0 0
  %3151 = vmatpush1.bf16.msra.mxu0 %v2969
  %3152 = vmatprep.subr.bf16.mxu0 0
  %3153 = vmatpush1.bf16.msra.mxu0 %v2970
  %3154 = vmatprep.subr.bf16.mxu0 0
  %3155 = vmatpush1.bf16.msra.mxu0 %v2971
  %3156 = vmatprep.subr.bf16.mxu0 0
  %3157 = vmatpush1.bf16.msra.mxu0 %v2972
  %3158 = vmatprep.subr.bf16.mxu0 0
  %3159 = vmatpush1.bf16.msra.mxu0 %v2973
  %3160 = vmatprep.subr.bf16.mxu0 0
  %3161 = vmatpush1.bf16.msra.mxu0 %v2974
  %3162 = vmatprep.subr.bf16.mxu0 0
  %3163 = vmatpush1.bf16.msra.mxu0 %v2975
  %3164 = vmatprep.subr.bf16.mxu0 0
  %3165 = vmatpush1.bf16.msra.mxu0 0
  %3166 = vmatprep.subr.bf16.mxu0 0
  %3167 = vmatpush1.bf16.msra.mxu0 0
  %3168 = vmatprep.subr.bf16.mxu0 0
  %3169 = vmatpush1.bf16.msra.mxu0 0
  %3170 = vmatprep.subr.bf16.mxu0 0
  %3171 = vmatpush1.bf16.msra.mxu0 0
  %3172 = vmatprep.mubr.bf16.mxu0 %v729
  %3173 = vmatmul.mubr.bf16.gmra.mrb[0].mxu0 %v116
  %v3174 = vpop.f32.mrb[0].mxu0
  %v3175 = vadd.f32 0.0, %v3174
  %v3176 = vpop.f32.mrb[0].mxu0
  %v3177 = vpop.f32.mrb[0].mxu0
  %v3178 = vadd.f32 0.0, %v3177
  %v3179 = vpop.f32.mrb[0].mxu0
  %3180 = vmatprep.mubr.bf16.mxu0 %v1844
  %3181 = vmatmul.mubr.bf16.gmra.mrb[0].mxu0 %v1840
  %v3182 = vpop.f32.mrb[0].mxu0
  %v3183 = vadd.f32 0.0, %v3182
  %v3184 = vpop.f32.mrb[0].mxu0
  %v3185 = vpop.f32.mrb[0].mxu0
  %v3186 = vadd.f32 0.0, %v3185
  %v3187 = vpop.f32.mrb[0].mxu0
  %3188 = vmatprep.mubr.bf16.mxu0 %v3138
  %3189 = vmatmul.mubr.bf16.gmra.mrb[0].mxu0 %v3134
  %v3190 = vpop.f32.mrb[0].mxu0
  %v3191 = vadd.f32 0.0, %v3190
  %v3192 = vpop.f32.mrb[0].mxu0
  %v3193 = vpop.f32.mrb[0].mxu0
  %v3194 = vadd.f32 0.0, %v3193
  %v3195 = vpop.f32.mrb[0].mxu0
  %3196 = vdwg.mxu0
  %v3197 = vadd.f32 %v2873, %v3175
  %v3198 = vadd.f32 %v2874, %v3178
  %v3199 = vadd.f32 %v2875, %v3183
  %v3200 = vadd.f32 %v2876, %v3186
  %v3201 = vadd.f32 %v2877, %v3191
  %v3202 = vadd.f32 %v2878, %v3194
  %s3203 = scalar_lea.vmem %s1, 864
  %v3204 = vld [vmem:[%s3203] sm:$0xf]
  %v3205 = vld [vmem:[%s3203 + $0x4] sm:$0xf]
  %v3206 = vld [vmem:[%s3203 + $0x8] sm:$0xf]
  %v3207 = vld [vmem:[%s3203 + $0xc] sm:$0xf]
  %v3208 = vld [vmem:[%s3203 + $0x10] sm:$0xf]
  %v3209 = vld [vmem:[%s3203 + $0x14] sm:$0xf]
  %v3210 = vld [vmem:[%s3203 + $0x18] sm:$0xf]
  %v3211 = vld [vmem:[%s3203 + $0x1c] sm:$0xf]
  %v3212 = vld [vmem:[%s3203 + $0x20] sm:$0xf]
  %v3213 = vld [vmem:[%s3203 + $0x24] sm:$0xf]
  %v3214 = vld [vmem:[%s3203 + $0x28] sm:$0xf]
  %v3215 = vld [vmem:[%s3203 + $0x2c] sm:$0xf]
  %v3216 = vld [vmem:[%s3203 + $0x30] sm:$0xf]
  %v3217 = vld [vmem:[%s3203 + $0x34] sm:$0xf]
  %v3218 = vld [vmem:[%s3203 + $0x38] sm:$0xf]
  %v3219 = vld [vmem:[%s3203 + $0x3c] sm:$0xf]
  %v3220 = vld [vmem:[%s3203 + $0x40] sm:$0xf]
  %v3221 = vld [vmem:[%s3203 + $0x44] sm:$0xf]
  %v3222 = vld [vmem:[%s3203 + $0x48] sm:$0xf]
  %v3223 = vld [vmem:[%s3203 + $0x4c] sm:$0xf]
  %v3224 = vld [vmem:[%s3203 + $0x50] sm:$0xf]
  %v3225 = vld [vmem:[%s3203 + $0x54] sm:$0xf]
  %v3226 = vld [vmem:[%s3203 + $0x58] sm:$0xf]
  %v3227 = vld [vmem:[%s3203 + $0x5c] sm:$0xf]
  %v3228 = vld [vmem:[%s2904 + $0xc] sm:$0xff]
  %v3229 = vld [vmem:[%s2904 + $0x24] sm:$0xff]
  %v3232 = vunpack.c.l.b16 %v3228
  %v3233 = vunpack.c.h.b16 %v3228
  %v3234 = vunpack.c.l.b16 %v3229
  %v3235 = vunpack.c.h.b16 %v3229
  %v3236 = vpack.c.b16 %v3234, %v3232
  %v3237 = vpack.c.b16 %v3235, %v3233
  %v3263 = vunpack.c.l.b16 %v3204
  %v3264 = vunpack.c.l.b16 %v3205
  %v3265 = vunpack.c.l.b16 %v3206
  %v3266 = vunpack.c.l.b16 %v3207
  %v3267 = vunpack.c.l.b16 %v3208
  %v3268 = vunpack.c.l.b16 %v3209
  %v3269 = vunpack.c.l.b16 %v3210
  %v3270 = vunpack.c.l.b16 %v3211
  %v3271 = vunpack.c.l.b16 %v3212
  %v3272 = vunpack.c.l.b16 %v3213
  %v3273 = vunpack.c.l.b16 %v3214
  %v3274 = vunpack.c.l.b16 %v3215
  %v3275 = vunpack.c.l.b16 %v3216
  %v3276 = vunpack.c.l.b16 %v3217
  %v3277 = vunpack.c.l.b16 %v3218
  %v3278 = vunpack.c.l.b16 %v3219
  %v3279 = vunpack.c.l.b16 %v3220
  %v3280 = vunpack.c.l.b16 %v3221
  %v3281 = vunpack.c.l.b16 %v3222
  %v3282 = vunpack.c.l.b16 %v3223
  %v3283 = vunpack.c.l.b16 %v3224
  %v3284 = vunpack.c.l.b16 %v3225
  %v3285 = vunpack.c.l.b16 %v3226
  %v3286 = vunpack.c.l.b16 %v3227
  %v3287 = vpack.c.b16 %v3264, %v3263
  %v3288 = vpack.c.b16 %v3266, %v3265
  %v3289 = vpack.c.b16 %v3268, %v3267
  %v3290 = vpack.c.b16 %v3270, %v3269
  %v3291 = vpack.c.b16 %v3272, %v3271
  %v3292 = vpack.c.b16 %v3274, %v3273
  %v3293 = vpack.c.b16 %v3276, %v3275
  %v3294 = vpack.c.b16 %v3278, %v3277
  %v3295 = vpack.c.b16 %v3280, %v3279
  %v3296 = vpack.c.b16 %v3282, %v3281
  %v3297 = vpack.c.b16 %v3284, %v3283
  %v3298 = vpack.c.b16 %v3286, %v3285
  %v3312 = vsel %vm249, %v3237, 0
  %3314 = vmatprep.subr.bf16.mxu0 0
  %3315 = vmatpush1.bf16.msra.mxu0 %v3287
  %3316 = vmatprep.subr.bf16.mxu0 0
  %3317 = vmatpush1.bf16.msra.mxu0 %v3288
  %3318 = vmatprep.subr.bf16.mxu0 0
  %3319 = vmatpush1.bf16.msra.mxu0 %v3289
  %3320 = vmatprep.subr.bf16.mxu0 0
  %3321 = vmatpush1.bf16.msra.mxu0 %v3290
  %3322 = vmatprep.subr.bf16.mxu0 0
  %3323 = vmatpush1.bf16.msra.mxu0 %v3291
  %3324 = vmatprep.subr.bf16.mxu0 0
  %3325 = vmatpush1.bf16.msra.mxu0 %v3292
  %3326 = vmatprep.subr.bf16.mxu0 0
  %3327 = vmatpush1.bf16.msra.mxu0 %v3293
  %3328 = vmatprep.subr.bf16.mxu0 0
  %3329 = vmatpush1.bf16.msra.mxu0 %v3294
  %3330 = vmatprep.subr.bf16.mxu0 0
  %3331 = vmatpush1.bf16.msra.mxu0 %v3295
  %3332 = vmatprep.subr.bf16.mxu0 0
  %3333 = vmatpush1.bf16.msra.mxu0 %v3296
  %3334 = vmatprep.subr.bf16.mxu0 0
  %3335 = vmatpush1.bf16.msra.mxu0 %v3297
  %3336 = vmatprep.subr.bf16.mxu0 0
  %3337 = vmatpush1.bf16.msra.mxu0 %v3298
  %3338 = vmatprep.subr.bf16.mxu0 0
  %3339 = vmatpush1.bf16.msra.mxu0 0
  %3340 = vmatprep.subr.bf16.mxu0 0
  %3341 = vmatpush1.bf16.msra.mxu0 0
  %3342 = vmatprep.subr.bf16.mxu0 0
  %3343 = vmatpush1.bf16.msra.mxu0 0
  %3344 = vmatprep.subr.bf16.mxu0 0
  %3345 = vmatpush1.bf16.msra.mxu0 0
  %3346 = vmatprep.mubr.bf16.mxu0 %v257
  %3347 = vmatmul.mubr.bf16.gmra.mrb[0].mxu0 %v174
  %v3348 = vpop.f32.mrb[0].mxu0
  %v3349 = vadd.f32 0.0, %v3348
  %v3350 = vpop.f32.mrb[0].mxu0
  %v3351 = vpop.f32.mrb[0].mxu0
  %v3352 = vadd.f32 0.0, %v3351
  %v3353 = vpop.f32.mrb[0].mxu0
  %3354 = vmatprep.mubr.bf16.mxu0 %v2018
  %3355 = vmatmul.mubr.bf16.gmra.mrb[0].mxu0 %v1942
  %v3356 = vpop.f32.mrb[0].mxu0
  %v3357 = vadd.f32 0.0, %v3356
  %v3358 = vpop.f32.mrb[0].mxu0
  %v3359 = vpop.f32.mrb[0].mxu0
  %v3360 = vadd.f32 0.0, %v3359
  %v3361 = vpop.f32.mrb[0].mxu0
  %3362 = vmatprep.mubr.bf16.mxu0 %v3312
  %3363 = vmatmul.mubr.bf16.gmra.mrb[0].mxu0 %v3236
  %v3364 = vpop.f32.mrb[0].mxu0
  %v3365 = vadd.f32 0.0, %v3364
  %v3366 = vpop.f32.mrb[0].mxu0
  %v3367 = vpop.f32.mrb[0].mxu0
  %v3368 = vadd.f32 0.0, %v3367
  %v3369 = vpop.f32.mrb[0].mxu0
  %3370 = vdwg.mxu0
  %v3371 = vadd.f32 %v3048, %v3349
  %v3372 = vadd.f32 %v3049, %v3352
  %v3373 = vadd.f32 %v3050, %v3357
  %v3374 = vadd.f32 %v3051, %v3360
  %v3375 = vadd.f32 %v3052, %v3365
  %v3376 = vadd.f32 %v3053, %v3368
  %3377 = vrot.lane.b32.xlu0 %v3236, 64
  %v3378 = vpop.permute.xlu0 %3377
  %3379 = vrot.lane.b32.xlu0 %v3237, 64
  %v3380 = vpop.permute.xlu0 %3379
  %v3381 = vsel %vm466, %v3378, %v3380
  %v3384 = vsel %vm249, %v3380, 0
  %3386 = vmatprep.subr.bf16.mxu0 0
  %3387 = vmatpush1.bf16.msra.mxu0 %v3287
  %3388 = vmatprep.subr.bf16.mxu0 0
  %3389 = vmatpush1.bf16.msra.mxu0 %v3288
  %3390 = vmatprep.subr.bf16.mxu0 0
  %3391 = vmatpush1.bf16.msra.mxu0 %v3289
  %3392 = vmatprep.subr.bf16.mxu0 0
  %3393 = vmatpush1.bf16.msra.mxu0 %v3290
  %3394 = vmatprep.subr.bf16.mxu0 0
  %3395 = vmatpush1.bf16.msra.mxu0 %v3291
  %3396 = vmatprep.subr.bf16.mxu0 0
  %3397 = vmatpush1.bf16.msra.mxu0 %v3292
  %3398 = vmatprep.subr.bf16.mxu0 0
  %3399 = vmatpush1.bf16.msra.mxu0 %v3293
  %3400 = vmatprep.subr.bf16.mxu0 0
  %3401 = vmatpush1.bf16.msra.mxu0 %v3294
  %3402 = vmatprep.subr.bf16.mxu0 0
  %3403 = vmatpush1.bf16.msra.mxu0 %v3295
  %3404 = vmatprep.subr.bf16.mxu0 0
  %3405 = vmatpush1.bf16.msra.mxu0 %v3296
  %3406 = vmatprep.subr.bf16.mxu0 0
  %3407 = vmatpush1.bf16.msra.mxu0 %v3297
  %3408 = vmatprep.subr.bf16.mxu0 0
  %3409 = vmatpush1.bf16.msra.mxu0 %v3298
  %3410 = vmatprep.subr.bf16.mxu0 0
  %3411 = vmatpush1.bf16.msra.mxu0 0
  %3412 = vmatprep.subr.bf16.mxu0 0
  %3413 = vmatpush1.bf16.msra.mxu0 0
  %3414 = vmatprep.subr.bf16.mxu0 0
  %3415 = vmatpush1.bf16.msra.mxu0 0
  %3416 = vmatprep.subr.bf16.mxu0 0
  %3417 = vmatpush1.bf16.msra.mxu0 0
  %3418 = vmatprep.mubr.bf16.mxu0 %v480
  %3419 = vmatmul.mubr.bf16.gmra.mrb[0].mxu0 %v469
  %v3420 = vpop.f32.mrb[0].mxu0
  %v3421 = vadd.f32 0.0, %v3420
  %v3422 = vpop.f32.mrb[0].mxu0
  %v3423 = vpop.f32.mrb[0].mxu0
  %v3424 = vadd.f32 0.0, %v3423
  %v3425 = vpop.f32.mrb[0].mxu0
  %3426 = vmatprep.mubr.bf16.mxu0 %v2090
  %3427 = vmatmul.mubr.bf16.gmra.mrb[0].mxu0 %v2087
  %v3428 = vpop.f32.mrb[0].mxu0
  %v3429 = vadd.f32 0.0, %v3428
  %v3430 = vpop.f32.mrb[0].mxu0
  %v3431 = vpop.f32.mrb[0].mxu0
  %v3432 = vadd.f32 0.0, %v3431
  %v3433 = vpop.f32.mrb[0].mxu0
  %3434 = vmatprep.mubr.bf16.mxu0 %v3384
  %3435 = vmatmul.mubr.bf16.gmra.mrb[0].mxu0 %v3381
  %v3436 = vpop.f32.mrb[0].mxu0
  %v3437 = vadd.f32 0.0, %v3436
  %v3438 = vpop.f32.mrb[0].mxu0
  %v3439 = vpop.f32.mrb[0].mxu0
  %v3440 = vadd.f32 0.0, %v3439
  %v3441 = vpop.f32.mrb[0].mxu0
  %3442 = vdwg.mxu0
  %v3443 = vadd.f32 %v3120, %v3421
  %v3444 = vadd.f32 %v3121, %v3424
  %v3445 = vadd.f32 %v3122, %v3429
  %v3446 = vadd.f32 %v3123, %v3432
  %v3447 = vadd.f32 %v3124, %v3437
  %v3448 = vadd.f32 %v3125, %v3440
  %v3449 = vld [vmem:[%s2904 + $0x10] sm:$0xff]
  %v3450 = vld [vmem:[%s2904 + $0x28] sm:$0xff]
  %v3453 = vunpack.c.l.b16 %v3449
  %v3454 = vunpack.c.h.b16 %v3449
  %v3455 = vunpack.c.l.b16 %v3450
  %v3456 = vunpack.c.h.b16 %v3450
  %v3457 = vpack.c.b16 %v3455, %v3453
  %v3458 = vpack.c.b16 %v3456, %v3454
  %v3461 = vsel %vm249, %v3458, 0
  %3463 = vmatprep.subr.bf16.mxu0 0
  %3464 = vmatpush1.bf16.msra.mxu0 %v3287
  %3465 = vmatprep.subr.bf16.mxu0 0
  %3466 = vmatpush1.bf16.msra.mxu0 %v3288
  %3467 = vmatprep.subr.bf16.mxu0 0
  %3468 = vmatpush1.bf16.msra.mxu0 %v3289
  %3469 = vmatprep.subr.bf16.mxu0 0
  %3470 = vmatpush1.bf16.msra.mxu0 %v3290
  %3471 = vmatprep.subr.bf16.mxu0 0
  %3472 = vmatpush1.bf16.msra.mxu0 %v3291
  %3473 = vmatprep.subr.bf16.mxu0 0
  %3474 = vmatpush1.bf16.msra.mxu0 %v3292
  %3475 = vmatprep.subr.bf16.mxu0 0
  %3476 = vmatpush1.bf16.msra.mxu0 %v3293
  %3477 = vmatprep.subr.bf16.mxu0 0
  %3478 = vmatpush1.bf16.msra.mxu0 %v3294
  %3479 = vmatprep.subr.bf16.mxu0 0
  %3480 = vmatpush1.bf16.msra.mxu0 %v3295
  %3481 = vmatprep.subr.bf16.mxu0 0
  %3482 = vmatpush1.bf16.msra.mxu0 %v3296
  %3483 = vmatprep.subr.bf16.mxu0 0
  %3484 = vmatpush1.bf16.msra.mxu0 %v3297
  %3485 = vmatprep.subr.bf16.mxu0 0
  %3486 = vmatpush1.bf16.msra.mxu0 %v3298
  %3487 = vmatprep.subr.bf16.mxu0 0
  %3488 = vmatpush1.bf16.msra.mxu0 0
  %3489 = vmatprep.subr.bf16.mxu0 0
  %3490 = vmatpush1.bf16.msra.mxu0 0
  %3491 = vmatprep.subr.bf16.mxu0 0
  %3492 = vmatpush1.bf16.msra.mxu0 0
  %3493 = vmatprep.subr.bf16.mxu0 0
  %3494 = vmatpush1.bf16.msra.mxu0 0
  %3495 = vmatprep.mubr.bf16.mxu0 %v663
  %3496 = vmatmul.mubr.bf16.gmra.mrb[0].mxu0 %v653
  %v3497 = vpop.f32.mrb[0].mxu0
  %v3498 = vadd.f32 0.0, %v3497
  %v3499 = vpop.f32.mrb[0].mxu0
  %v3500 = vpop.f32.mrb[0].mxu0
  %v3501 = vadd.f32 0.0, %v3500
  %v3502 = vpop.f32.mrb[0].mxu0
  %3503 = vmatprep.mubr.bf16.mxu0 %v2167
  %3504 = vmatmul.mubr.bf16.gmra.mrb[0].mxu0 %v2163
  %v3505 = vpop.f32.mrb[0].mxu0
  %v3506 = vadd.f32 0.0, %v3505
  %v3507 = vpop.f32.mrb[0].mxu0
  %v3508 = vpop.f32.mrb[0].mxu0
  %v3509 = vadd.f32 0.0, %v3508
  %v3510 = vpop.f32.mrb[0].mxu0
  %3511 = vmatprep.mubr.bf16.mxu0 %v3461
  %3512 = vmatmul.mubr.bf16.gmra.mrb[0].mxu0 %v3457
  %v3513 = vpop.f32.mrb[0].mxu0
  %v3514 = vadd.f32 0.0, %v3513
  %v3515 = vpop.f32.mrb[0].mxu0
  %v3516 = vpop.f32.mrb[0].mxu0
  %v3517 = vadd.f32 0.0, %v3516
  %v3518 = vpop.f32.mrb[0].mxu0
  %3519 = vdwg.mxu0
  %v3520 = vadd.f32 %v3197, %v3498
  %v3521 = vadd.f32 %v3198, %v3501
  %v3522 = vadd.f32 %v3199, %v3506
  %v3523 = vadd.f32 %v3200, %v3509
  %v3524 = vadd.f32 %v3201, %v3514
  %v3525 = vadd.f32 %v3202, %v3517
  %s3526 = scalar_lea.vmem %s1, 960
  %v3527 = vld [vmem:[%s3526] sm:$0xf]
  %v3528 = vld [vmem:[%s3526 + $0x4] sm:$0xf]
  %v3529 = vld [vmem:[%s3526 + $0x8] sm:$0xf]
  %v3530 = vld [vmem:[%s3526 + $0xc] sm:$0xf]
  %v3531 = vld [vmem:[%s3526 + $0x10] sm:$0xf]
  %v3532 = vld [vmem:[%s3526 + $0x14] sm:$0xf]
  %v3533 = vld [vmem:[%s3526 + $0x18] sm:$0xf]
  %v3534 = vld [vmem:[%s3526 + $0x1c] sm:$0xf]
  %v3535 = vld [vmem:[%s3526 + $0x20] sm:$0xf]
  %v3536 = vld [vmem:[%s3526 + $0x24] sm:$0xf]
  %v3537 = vld [vmem:[%s3526 + $0x28] sm:$0xf]
  %v3538 = vld [vmem:[%s3526 + $0x2c] sm:$0xf]
  %v3539 = vld [vmem:[%s3526 + $0x30] sm:$0xf]
  %v3540 = vld [vmem:[%s3526 + $0x34] sm:$0xf]
  %v3541 = vld [vmem:[%s3526 + $0x38] sm:$0xf]
  %v3542 = vld [vmem:[%s3526 + $0x3c] sm:$0xf]
  %v3543 = vld [vmem:[%s3526 + $0x40] sm:$0xf]
  %v3544 = vld [vmem:[%s3526 + $0x44] sm:$0xf]
  %v3545 = vld [vmem:[%s3526 + $0x48] sm:$0xf]
  %v3546 = vld [vmem:[%s3526 + $0x4c] sm:$0xf]
  %v3547 = vld [vmem:[%s3526 + $0x50] sm:$0xf]
  %v3548 = vld [vmem:[%s3526 + $0x54] sm:$0xf]
  %v3549 = vld [vmem:[%s3526 + $0x58] sm:$0xf]
  %v3550 = vld [vmem:[%s3526 + $0x5c] sm:$0xf]
  %s3551 = scalar_lea.vmem %s0, 480
  %v3552 = vld [vmem:[%s3551] sm:$0xff]
  %v3553 = vld [vmem:[%s3551 + $0x18] sm:$0xff]
  %v3556 = vunpack.c.l.b16 %v3552
  %v3557 = vunpack.c.h.b16 %v3552
  %v3558 = vunpack.c.l.b16 %v3553
  %v3559 = vunpack.c.h.b16 %v3553
  %v3560 = vpack.c.b16 %v3558, %v3556
  %v3561 = vpack.c.b16 %v3559, %v3557
  %v3587 = vunpack.c.l.b16 %v3527
  %v3588 = vunpack.c.l.b16 %v3528
  %v3589 = vunpack.c.l.b16 %v3529
  %v3590 = vunpack.c.l.b16 %v3530
  %v3591 = vunpack.c.l.b16 %v3531
  %v3592 = vunpack.c.l.b16 %v3532
  %v3593 = vunpack.c.l.b16 %v3533
  %v3594 = vunpack.c.l.b16 %v3534
  %v3595 = vunpack.c.l.b16 %v3535
  %v3596 = vunpack.c.l.b16 %v3536
  %v3597 = vunpack.c.l.b16 %v3537
  %v3598 = vunpack.c.l.b16 %v3538
  %v3599 = vunpack.c.l.b16 %v3539
  %v3600 = vunpack.c.l.b16 %v3540
  %v3601 = vunpack.c.l.b16 %v3541
  %v3602 = vunpack.c.l.b16 %v3542
  %v3603 = vunpack.c.l.b16 %v3543
  %v3604 = vunpack.c.l.b16 %v3544
  %v3605 = vunpack.c.l.b16 %v3545
  %v3606 = vunpack.c.l.b16 %v3546
  %v3607 = vunpack.c.l.b16 %v3547
  %v3608 = vunpack.c.l.b16 %v3548
  %v3609 = vunpack.c.l.b16 %v3549
  %v3610 = vunpack.c.l.b16 %v3550
  %v3611 = vpack.c.b16 %v3588, %v3587
  %v3612 = vpack.c.b16 %v3590, %v3589
  %v3613 = vpack.c.b16 %v3592, %v3591
  %v3614 = vpack.c.b16 %v3594, %v3593
  %v3615 = vpack.c.b16 %v3596, %v3595
  %v3616 = vpack.c.b16 %v3598, %v3597
  %v3617 = vpack.c.b16 %v3600, %v3599
  %v3618 = vpack.c.b16 %v3602, %v3601
  %v3619 = vpack.c.b16 %v3604, %v3603
  %v3620 = vpack.c.b16 %v3606, %v3605
  %v3621 = vpack.c.b16 %v3608, %v3607
  %v3622 = vpack.c.b16 %v3610, %v3609
  %v3636 = vsel %vm249, %v3561, 0
  %3638 = vmatprep.subr.bf16.mxu0 0
  %3639 = vmatpush1.bf16.msra.mxu0 %v3611
  %3640 = vmatprep.subr.bf16.mxu0 0
  %3641 = vmatpush1.bf16.msra.mxu0 %v3612
  %3642 = vmatprep.subr.bf16.mxu0 0
  %3643 = vmatpush1.bf16.msra.mxu0 %v3613
  %3644 = vmatprep.subr.bf16.mxu0 0
  %3645 = vmatpush1.bf16.msra.mxu0 %v3614
  %3646 = vmatprep.subr.bf16.mxu0 0
  %3647 = vmatpush1.bf16.msra.mxu0 %v3615
  %3648 = vmatprep.subr.bf16.mxu0 0
  %3649 = vmatpush1.bf16.msra.mxu0 %v3616
  %3650 = vmatprep.subr.bf16.mxu0 0
  %3651 = vmatpush1.bf16.msra.mxu0 %v3617
  %3652 = vmatprep.subr.bf16.mxu0 0
  %3653 = vmatpush1.bf16.msra.mxu0 %v3618
  %3654 = vmatprep.subr.bf16.mxu0 0
  %3655 = vmatpush1.bf16.msra.mxu0 %v3619
  %3656 = vmatprep.subr.bf16.mxu0 0
  %3657 = vmatpush1.bf16.msra.mxu0 %v3620
  %3658 = vmatprep.subr.bf16.mxu0 0
  %3659 = vmatpush1.bf16.msra.mxu0 %v3621
  %3660 = vmatprep.subr.bf16.mxu0 0
  %3661 = vmatpush1.bf16.msra.mxu0 %v3622
  %3662 = vmatprep.subr.bf16.mxu0 0
  %3663 = vmatpush1.bf16.msra.mxu0 0
  %3664 = vmatprep.subr.bf16.mxu0 0
  %3665 = vmatpush1.bf16.msra.mxu0 0
  %3666 = vmatprep.subr.bf16.mxu0 0
  %3667 = vmatpush1.bf16.msra.mxu0 0
  %3668 = vmatprep.subr.bf16.mxu0 0
  %3669 = vmatpush1.bf16.msra.mxu0 0
  %3670 = vmatprep.mubr.bf16.mxu0 %v928
  %3671 = vmatmul.mubr.bf16.gmra.mrb[0].mxu0 %v846
  %v3672 = vpop.f32.mrb[0].mxu0
  %v3673 = vadd.f32 0.0, %v3672
  %v3674 = vpop.f32.mrb[0].mxu0
  %v3675 = vpop.f32.mrb[0].mxu0
  %v3676 = vadd.f32 0.0, %v3675
  %v3677 = vpop.f32.mrb[0].mxu0
  %3678 = vmatprep.mubr.bf16.mxu0 %v2342
  %3679 = vmatmul.mubr.bf16.gmra.mrb[0].mxu0 %v2266
  %v3680 = vpop.f32.mrb[0].mxu0
  %v3681 = vadd.f32 0.0, %v3680
  %v3682 = vpop.f32.mrb[0].mxu0
  %v3683 = vpop.f32.mrb[0].mxu0
  %v3684 = vadd.f32 0.0, %v3683
  %v3685 = vpop.f32.mrb[0].mxu0
  %3686 = vmatprep.mubr.bf16.mxu0 %v3636
  %3687 = vmatmul.mubr.bf16.gmra.mrb[0].mxu0 %v3560
  %v3688 = vpop.f32.mrb[0].mxu0
  %v3689 = vadd.f32 0.0, %v3688
  %v3690 = vpop.f32.mrb[0].mxu0
  %v3691 = vpop.f32.mrb[0].mxu0
  %v3692 = vadd.f32 0.0, %v3691
  %v3693 = vpop.f32.mrb[0].mxu0
  %3694 = vdwg.mxu0
  %v3695 = vadd.f32 %v3371, %v3673
  %v3696 = vadd.f32 %v3372, %v3676
  %v3697 = vadd.f32 %v3373, %v3681
  %v3698 = vadd.f32 %v3374, %v3684
  %v3699 = vadd.f32 %v3375, %v3689
  %v3700 = vadd.f32 %v3376, %v3692
  %3701 = vrot.lane.b32.xlu0 %v3560, 64
  %v3702 = vpop.permute.xlu0 %3701
  %3703 = vrot.lane.b32.xlu0 %v3561, 64
  %v3704 = vpop.permute.xlu0 %3703
  %v3705 = vsel %vm466, %v3702, %v3704
  %v3708 = vsel %vm249, %v3704, 0
  %3710 = vmatprep.subr.bf16.mxu0 0
  %3711 = vmatpush1.bf16.msra.mxu0 %v3611
  %3712 = vmatprep.subr.bf16.mxu0 0
  %3713 = vmatpush1.bf16.msra.mxu0 %v3612
  %3714 = vmatprep.subr.bf16.mxu0 0
  %3715 = vmatpush1.bf16.msra.mxu0 %v3613
  %3716 = vmatprep.subr.bf16.mxu0 0
  %3717 = vmatpush1.bf16.msra.mxu0 %v3614
  %3718 = vmatprep.subr.bf16.mxu0 0
  %3719 = vmatpush1.bf16.msra.mxu0 %v3615
  %3720 = vmatprep.subr.bf16.mxu0 0
  %3721 = vmatpush1.bf16.msra.mxu0 %v3616
  %3722 = vmatprep.subr.bf16.mxu0 0
  %3723 = vmatpush1.bf16.msra.mxu0 %v3617
  %3724 = vmatprep.subr.bf16.mxu0 0
  %3725 = vmatpush1.bf16.msra.mxu0 %v3618
  %3726 = vmatprep.subr.bf16.mxu0 0
  %3727 = vmatpush1.bf16.msra.mxu0 %v3619
  %3728 = vmatprep.subr.bf16.mxu0 0
  %3729 = vmatpush1.bf16.msra.mxu0 %v3620
  %3730 = vmatprep.subr.bf16.mxu0 0
  %3731 = vmatpush1.bf16.msra.mxu0 %v3621
  %3732 = vmatprep.subr.bf16.mxu0 0
  %3733 = vmatpush1.bf16.msra.mxu0 %v3622
  %3734 = vmatprep.subr.bf16.mxu0 0
  %3735 = vmatpush1.bf16.msra.mxu0 0
  %3736 = vmatprep.subr.bf16.mxu0 0
  %3737 = vmatpush1.bf16.msra.mxu0 0
  %3738 = vmatprep.subr.bf16.mxu0 0
  %3739 = vmatpush1.bf16.msra.mxu0 0
  %3740 = vmatprep.subr.bf16.mxu0 0
  %3741 = vmatpush1.bf16.msra.mxu0 0
  %3742 = vmatprep.mubr.bf16.mxu0 %v1018
  %3743 = vmatmul.mubr.bf16.gmra.mrb[0].mxu0 %v1007
  %v3744 = vpop.f32.mrb[0].mxu0
  %v3745 = vadd.f32 0.0, %v3744
  %v3746 = vpop.f32.mrb[0].mxu0
  %v3747 = vpop.f32.mrb[0].mxu0
  %v3748 = vadd.f32 0.0, %v3747
  %v3749 = vpop.f32.mrb[0].mxu0
  %3750 = vmatprep.mubr.bf16.mxu0 %v2414
  %3751 = vmatmul.mubr.bf16.gmra.mrb[0].mxu0 %v2411
  %v3752 = vpop.f32.mrb[0].mxu0
  %v3753 = vadd.f32 0.0, %v3752
  %v3754 = vpop.f32.mrb[0].mxu0
  %v3755 = vpop.f32.mrb[0].mxu0
  %v3756 = vadd.f32 0.0, %v3755
  %v3757 = vpop.f32.mrb[0].mxu0
  %3758 = vmatprep.mubr.bf16.mxu0 %v3708
  %3759 = vmatmul.mubr.bf16.gmra.mrb[0].mxu0 %v3705
  %v3760 = vpop.f32.mrb[0].mxu0
  %v3761 = vadd.f32 0.0, %v3760
  %v3762 = vpop.f32.mrb[0].mxu0
  %v3763 = vpop.f32.mrb[0].mxu0
  %v3764 = vadd.f32 0.0, %v3763
  %v3765 = vpop.f32.mrb[0].mxu0
  %3766 = vdwg.mxu0
  %v3767 = vadd.f32 %v3443, %v3745
  %v3768 = vadd.f32 %v3444, %v3748
  %v3769 = vadd.f32 %v3445, %v3753
  %v3770 = vadd.f32 %v3446, %v3756
  %v3771 = vadd.f32 %v3447, %v3761
  %v3772 = vadd.f32 %v3448, %v3764
  %v3773 = vld [vmem:[%s3551 + $0x4] sm:$0xff]
  %v3774 = vld [vmem:[%s3551 + $0x1c] sm:$0xff]
  %v3777 = vunpack.c.l.b16 %v3773
  %v3778 = vunpack.c.h.b16 %v3773
  %v3779 = vunpack.c.l.b16 %v3774
  %v3780 = vunpack.c.h.b16 %v3774
  %v3781 = vpack.c.b16 %v3779, %v3777
  %v3782 = vpack.c.b16 %v3780, %v3778
  %v3785 = vsel %vm249, %v3782, 0
  %3787 = vmatprep.subr.bf16.mxu0 0
  %3788 = vmatpush1.bf16.msra.mxu0 %v3611
  %3789 = vmatprep.subr.bf16.mxu0 0
  %3790 = vmatpush1.bf16.msra.mxu0 %v3612
  %3791 = vmatprep.subr.bf16.mxu0 0
  %3792 = vmatpush1.bf16.msra.mxu0 %v3613
  %3793 = vmatprep.subr.bf16.mxu0 0
  %3794 = vmatpush1.bf16.msra.mxu0 %v3614
  %3795 = vmatprep.subr.bf16.mxu0 0
  %3796 = vmatpush1.bf16.msra.mxu0 %v3615
  %3797 = vmatprep.subr.bf16.mxu0 0
  %3798 = vmatpush1.bf16.msra.mxu0 %v3616
  %3799 = vmatprep.subr.bf16.mxu0 0
  %3800 = vmatpush1.bf16.msra.mxu0 %v3617
  %3801 = vmatprep.subr.bf16.mxu0 0
  %3802 = vmatpush1.bf16.msra.mxu0 %v3618
  %3803 = vmatprep.subr.bf16.mxu0 0
  %3804 = vmatpush1.bf16.msra.mxu0 %v3619
  %3805 = vmatprep.subr.bf16.mxu0 0
  %3806 = vmatpush1.bf16.msra.mxu0 %v3620
  %3807 = vmatprep.subr.bf16.mxu0 0
  %3808 = vmatpush1.bf16.msra.mxu0 %v3621
  %3809 = vmatprep.subr.bf16.mxu0 0
  %3810 = vmatpush1.bf16.msra.mxu0 %v3622
  %3811 = vmatprep.subr.bf16.mxu0 0
  %3812 = vmatpush1.bf16.msra.mxu0 0
  %3813 = vmatprep.subr.bf16.mxu0 0
  %3814 = vmatpush1.bf16.msra.mxu0 0
  %3815 = vmatprep.subr.bf16.mxu0 0
  %3816 = vmatpush1.bf16.msra.mxu0 0
  %3817 = vmatprep.subr.bf16.mxu0 0
  %3818 = vmatpush1.bf16.msra.mxu0 0
  %3819 = vmatprep.mubr.bf16.mxu0 %v1123
  %3820 = vmatmul.mubr.bf16.gmra.mrb[0].mxu0 %v1113
  %v3821 = vpop.f32.mrb[0].mxu0
  %v3822 = vadd.f32 0.0, %v3821
  %v3823 = vpop.f32.mrb[0].mxu0
  %v3824 = vpop.f32.mrb[0].mxu0
  %v3825 = vadd.f32 0.0, %v3824
  %v3826 = vpop.f32.mrb[0].mxu0
  %3827 = vmatprep.mubr.bf16.mxu0 %v2491
  %3828 = vmatmul.mubr.bf16.gmra.mrb[0].mxu0 %v2487
  %v3829 = vpop.f32.mrb[0].mxu0
  %v3830 = vadd.f32 0.0, %v3829
  %v3831 = vpop.f32.mrb[0].mxu0
  %v3832 = vpop.f32.mrb[0].mxu0
  %v3833 = vadd.f32 0.0, %v3832
  %v3834 = vpop.f32.mrb[0].mxu0
  %3835 = vmatprep.mubr.bf16.mxu0 %v3785
  %3836 = vmatmul.mubr.bf16.gmra.mrb[0].mxu0 %v3781
  %v3837 = vpop.f32.mrb[0].mxu0
  %v3838 = vadd.f32 0.0, %v3837
  %v3839 = vpop.f32.mrb[0].mxu0
  %v3840 = vpop.f32.mrb[0].mxu0
  %v3841 = vadd.f32 0.0, %v3840
  %v3842 = vpop.f32.mrb[0].mxu0
  %3843 = vdwg.mxu0
  %v3844 = vadd.f32 %v3520, %v3822
  %v3845 = vadd.f32 %v3521, %v3825
  %v3846 = vadd.f32 %v3522, %v3830
  %v3847 = vadd.f32 %v3523, %v3833
  %v3848 = vadd.f32 %v3524, %v3838
  %v3849 = vadd.f32 %v3525, %v3841
  %s3850 = scalar_lea.vmem %s1, 1056
  %v3851 = vld [vmem:[%s3850] sm:$0xf]
  %v3852 = vld [vmem:[%s3850 + $0x4] sm:$0xf]
  %v3853 = vld [vmem:[%s3850 + $0x8] sm:$0xf]
  %v3854 = vld [vmem:[%s3850 + $0xc] sm:$0xf]
  %v3855 = vld [vmem:[%s3850 + $0x10] sm:$0xf]
  %v3856 = vld [vmem:[%s3850 + $0x14] sm:$0xf]
  %v3857 = vld [vmem:[%s3850 + $0x18] sm:$0xf]
  %v3858 = vld [vmem:[%s3850 + $0x1c] sm:$0xf]
  %v3859 = vld [vmem:[%s3850 + $0x20] sm:$0xf]
  %v3860 = vld [vmem:[%s3850 + $0x24] sm:$0xf]
  %v3861 = vld [vmem:[%s3850 + $0x28] sm:$0xf]
  %v3862 = vld [vmem:[%s3850 + $0x2c] sm:$0xf]
  %v3863 = vld [vmem:[%s3850 + $0x30] sm:$0xf]
  %v3864 = vld [vmem:[%s3850 + $0x34] sm:$0xf]
  %v3865 = vld [vmem:[%s3850 + $0x38] sm:$0xf]
  %v3866 = vld [vmem:[%s3850 + $0x3c] sm:$0xf]
  %v3867 = vld [vmem:[%s3850 + $0x40] sm:$0xf]
  %v3868 = vld [vmem:[%s3850 + $0x44] sm:$0xf]
  %v3869 = vld [vmem:[%s3850 + $0x48] sm:$0xf]
  %v3870 = vld [vmem:[%s3850 + $0x4c] sm:$0xf]
  %v3871 = vld [vmem:[%s3850 + $0x50] sm:$0xf]
  %v3872 = vld [vmem:[%s3850 + $0x54] sm:$0xf]
  %v3873 = vld [vmem:[%s3850 + $0x58] sm:$0xf]
  %v3874 = vld [vmem:[%s3850 + $0x5c] sm:$0xf]
  %v3875 = vld [vmem:[%s3551 + $0xc] sm:$0xff]
  %v3876 = vld [vmem:[%s3551 + $0x24] sm:$0xff]
  %v3879 = vunpack.c.l.b16 %v3875
  %v3880 = vunpack.c.h.b16 %v3875
  %v3881 = vunpack.c.l.b16 %v3876
  %v3882 = vunpack.c.h.b16 %v3876
  %v3883 = vpack.c.b16 %v3881, %v3879
  %v3884 = vpack.c.b16 %v3882, %v3880
  %v3910 = vunpack.c.l.b16 %v3851
  %v3911 = vunpack.c.l.b16 %v3852
  %v3912 = vunpack.c.l.b16 %v3853
  %v3913 = vunpack.c.l.b16 %v3854
  %v3914 = vunpack.c.l.b16 %v3855
  %v3915 = vunpack.c.l.b16 %v3856
  %v3916 = vunpack.c.l.b16 %v3857
  %v3917 = vunpack.c.l.b16 %v3858
  %v3918 = vunpack.c.l.b16 %v3859
  %v3919 = vunpack.c.l.b16 %v3860
  %v3920 = vunpack.c.l.b16 %v3861
  %v3921 = vunpack.c.l.b16 %v3862
  %v3922 = vunpack.c.l.b16 %v3863
  %v3923 = vunpack.c.l.b16 %v3864
  %v3924 = vunpack.c.l.b16 %v3865
  %v3925 = vunpack.c.l.b16 %v3866
  %v3926 = vunpack.c.l.b16 %v3867
  %v3927 = vunpack.c.l.b16 %v3868
  %v3928 = vunpack.c.l.b16 %v3869
  %v3929 = vunpack.c.l.b16 %v3870
  %v3930 = vunpack.c.l.b16 %v3871
  %v3931 = vunpack.c.l.b16 %v3872
  %v3932 = vunpack.c.l.b16 %v3873
  %v3933 = vunpack.c.l.b16 %v3874
  %v3934 = vpack.c.b16 %v3911, %v3910
  %v3935 = vpack.c.b16 %v3913, %v3912
  %v3936 = vpack.c.b16 %v3915, %v3914
  %v3937 = vpack.c.b16 %v3917, %v3916
  %v3938 = vpack.c.b16 %v3919, %v3918
  %v3939 = vpack.c.b16 %v3921, %v3920
  %v3940 = vpack.c.b16 %v3923, %v3922
  %v3941 = vpack.c.b16 %v3925, %v3924
  %v3942 = vpack.c.b16 %v3927, %v3926
  %v3943 = vpack.c.b16 %v3929, %v3928
  %v3944 = vpack.c.b16 %v3931, %v3930
  %v3945 = vpack.c.b16 %v3933, %v3932
  %v3959 = vsel %vm249, %v3884, 0
  %3961 = vmatprep.subr.bf16.mxu0 0
  %3962 = vmatpush1.bf16.msra.mxu0 %v3934
  %3963 = vmatprep.subr.bf16.mxu0 0
  %3964 = vmatpush1.bf16.msra.mxu0 %v3935
  %3965 = vmatprep.subr.bf16.mxu0 0
  %3966 = vmatpush1.bf16.msra.mxu0 %v3936
  %3967 = vmatprep.subr.bf16.mxu0 0
  %3968 = vmatpush1.bf16.msra.mxu0 %v3937
  %3969 = vmatprep.subr.bf16.mxu0 0
  %3970 = vmatpush1.bf16.msra.mxu0 %v3938
  %3971 = vmatprep.subr.bf16.mxu0 0
  %3972 = vmatpush1.bf16.msra.mxu0 %v3939
  %3973 = vmatprep.subr.bf16.mxu0 0
  %3974 = vmatpush1.bf16.msra.mxu0 %v3940
  %3975 = vmatprep.subr.bf16.mxu0 0
  %3976 = vmatpush1.bf16.msra.mxu0 %v3941
  %3977 = vmatprep.subr.bf16.mxu0 0
  %3978 = vmatpush1.bf16.msra.mxu0 %v3942
  %3979 = vmatprep.subr.bf16.mxu0 0
  %3980 = vmatpush1.bf16.msra.mxu0 %v3943
  %3981 = vmatprep.subr.bf16.mxu0 0
  %3982 = vmatpush1.bf16.msra.mxu0 %v3944
  %3983 = vmatprep.subr.bf16.mxu0 0
  %3984 = vmatpush1.bf16.msra.mxu0 %v3945
  %3985 = vmatprep.subr.bf16.mxu0 0
  %3986 = vmatpush1.bf16.msra.mxu0 0
  %3987 = vmatprep.subr.bf16.mxu0 0
  %3988 = vmatpush1.bf16.msra.mxu0 0
  %3989 = vmatprep.subr.bf16.mxu0 0
  %3990 = vmatpush1.bf16.msra.mxu0 0
  %3991 = vmatprep.subr.bf16.mxu0 0
  %3992 = vmatpush1.bf16.msra.mxu0 0
  %3993 = vmatprep.mubr.bf16.mxu0 %v1325
  %3994 = vmatmul.mubr.bf16.gmra.mrb[0].mxu0 %v1243
  %v3995 = vpop.f32.mrb[0].mxu0
  %v3996 = vadd.f32 0.0, %v3995
  %v3997 = vpop.f32.mrb[0].mxu0
  %v3998 = vpop.f32.mrb[0].mxu0
  %v3999 = vadd.f32 0.0, %v3998
  %v4000 = vpop.f32.mrb[0].mxu0
  %4001 = vmatprep.mubr.bf16.mxu0 %v2665
  %4002 = vmatmul.mubr.bf16.gmra.mrb[0].mxu0 %v2589
  %v4003 = vpop.f32.mrb[0].mxu0
  %v4004 = vadd.f32 0.0, %v4003
  %v4005 = vpop.f32.mrb[0].mxu0
  %v4006 = vpop.f32.mrb[0].mxu0
  %v4007 = vadd.f32 0.0, %v4006
  %v4008 = vpop.f32.mrb[0].mxu0
  %4009 = vmatprep.mubr.bf16.mxu0 %v3959
  %4010 = vmatmul.mubr.bf16.gmra.mrb[0].mxu0 %v3883
  %v4011 = vpop.f32.mrb[0].mxu0
  %v4012 = vadd.f32 0.0, %v4011
  %v4013 = vpop.f32.mrb[0].mxu0
  %v4014 = vpop.f32.mrb[0].mxu0
  %v4015 = vadd.f32 0.0, %v4014
  %v4016 = vpop.f32.mrb[0].mxu0
  %4017 = vdwg.mxu0
  %v4018 = vadd.f32 %v3695, %v3996
  %v4019 = vadd.f32 %v3696, %v3999
  %v4020 = vadd.f32 %v3697, %v4004
  %v4021 = vadd.f32 %v3698, %v4007
  %v4022 = vadd.f32 %v3699, %v4012
  %v4023 = vadd.f32 %v3700, %v4015
  %4024 = vrot.lane.b32.xlu0 %v3883, 64
  %v4025 = vpop.permute.xlu0 %4024
  %4026 = vrot.lane.b32.xlu0 %v3884, 64
  %v4027 = vpop.permute.xlu0 %4026
  %v4028 = vsel %vm466, %v4025, %v4027
  %v4031 = vsel %vm249, %v4027, 0
  %4033 = vmatprep.subr.bf16.mxu0 0
  %4034 = vmatpush1.bf16.msra.mxu0 %v3934
  %4035 = vmatprep.subr.bf16.mxu0 0
  %4036 = vmatpush1.bf16.msra.mxu0 %v3935
  %4037 = vmatprep.subr.bf16.mxu0 0
  %4038 = vmatpush1.bf16.msra.mxu0 %v3936
  %4039 = vmatprep.subr.bf16.mxu0 0
  %4040 = vmatpush1.bf16.msra.mxu0 %v3937
  %4041 = vmatprep.subr.bf16.mxu0 0
  %4042 = vmatpush1.bf16.msra.mxu0 %v3938
  %4043 = vmatprep.subr.bf16.mxu0 0
  %4044 = vmatpush1.bf16.msra.mxu0 %v3939
  %4045 = vmatprep.subr.bf16.mxu0 0
  %4046 = vmatpush1.bf16.msra.mxu0 %v3940
  %4047 = vmatprep.subr.bf16.mxu0 0
  %4048 = vmatpush1.bf16.msra.mxu0 %v3941
  %4049 = vmatprep.subr.bf16.mxu0 0
  %4050 = vmatpush1.bf16.msra.mxu0 %v3942
  %4051 = vmatprep.subr.bf16.mxu0 0
  %4052 = vmatpush1.bf16.msra.mxu0 %v3943
  %4053 = vmatprep.subr.bf16.mxu0 0
  %4054 = vmatpush1.bf16.msra.mxu0 %v3944
  %4055 = vmatprep.subr.bf16.mxu0 0
  %4056 = vmatpush1.bf16.msra.mxu0 %v3945
  %4057 = vmatprep.subr.bf16.mxu0 0
  %4058 = vmatpush1.bf16.msra.mxu0 0
  %4059 = vmatprep.subr.bf16.mxu0 0
  %4060 = vmatpush1.bf16.msra.mxu0 0
  %4061 = vmatprep.subr.bf16.mxu0 0
  %4062 = vmatpush1.bf16.msra.mxu0 0
  %4063 = vmatprep.subr.bf16.mxu0 0
  %4064 = vmatpush1.bf16.msra.mxu0 0
  %4065 = vmatprep.mubr.bf16.mxu0 %v1415
  %4066 = vmatmul.mubr.bf16.gmra.mrb[0].mxu0 %v1404
  %v4067 = vpop.f32.mrb[0].mxu0
  %v4068 = vadd.f32 0.0, %v4067
  %v4069 = vpop.f32.mrb[0].mxu0
  %v4070 = vpop.f32.mrb[0].mxu0
  %v4071 = vadd.f32 0.0, %v4070
  %v4072 = vpop.f32.mrb[0].mxu0
  %4073 = vmatprep.mubr.bf16.mxu0 %v2737
  %4074 = vmatmul.mubr.bf16.gmra.mrb[0].mxu0 %v2734
  %v4075 = vpop.f32.mrb[0].mxu0
  %v4076 = vadd.f32 0.0, %v4075
  %v4077 = vpop.f32.mrb[0].mxu0
  %v4078 = vpop.f32.mrb[0].mxu0
  %v4079 = vadd.f32 0.0, %v4078
  %v4080 = vpop.f32.mrb[0].mxu0
  %4081 = vmatprep.mubr.bf16.mxu0 %v4031
  %4082 = vmatmul.mubr.bf16.gmra.mrb[0].mxu0 %v4028
  %v4083 = vpop.f32.mrb[0].mxu0
  %v4084 = vadd.f32 0.0, %v4083
  %v4085 = vpop.f32.mrb[0].mxu0
  %v4086 = vpop.f32.mrb[0].mxu0
  %v4087 = vadd.f32 0.0, %v4086
  %v4088 = vpop.f32.mrb[0].mxu0
  %4089 = vdwg.mxu0
  %v4090 = vadd.f32 %v3767, %v4068
  %v4091 = vadd.f32 %v3768, %v4071
  %v4092 = vadd.f32 %v3769, %v4076
  %v4093 = vadd.f32 %v3770, %v4079
  %v4094 = vadd.f32 %v3771, %v4084
  %v4095 = vadd.f32 %v3772, %v4087
  %v4096 = vld [vmem:[%s3551 + $0x10] sm:$0xff]
  %v4097 = vld [vmem:[%s3551 + $0x28] sm:$0xff]
  %v4100 = vunpack.c.l.b16 %v4096
  %v4101 = vunpack.c.h.b16 %v4096
  %v4102 = vunpack.c.l.b16 %v4097
  %v4103 = vunpack.c.h.b16 %v4097
  %v4104 = vpack.c.b16 %v4102, %v4100
  %v4105 = vpack.c.b16 %v4103, %v4101
  %v4108 = vsel %vm249, %v4105, 0
  %4110 = vmatprep.subr.bf16.mxu0 0
  %4111 = vmatpush1.bf16.msra.mxu0 %v3934
  %4112 = vmatprep.subr.bf16.mxu0 0
  %4113 = vmatpush1.bf16.msra.mxu0 %v3935
  %4114 = vmatprep.subr.bf16.mxu0 0
  %4115 = vmatpush1.bf16.msra.mxu0 %v3936
  %4116 = vmatprep.subr.bf16.mxu0 0
  %4117 = vmatpush1.bf16.msra.mxu0 %v3937
  %4118 = vmatprep.subr.bf16.mxu0 0
  %4119 = vmatpush1.bf16.msra.mxu0 %v3938
  %4120 = vmatprep.subr.bf16.mxu0 0
  %4121 = vmatpush1.bf16.msra.mxu0 %v3939
  %4122 = vmatprep.subr.bf16.mxu0 0
  %4123 = vmatpush1.bf16.msra.mxu0 %v3940
  %4124 = vmatprep.subr.bf16.mxu0 0
  %4125 = vmatpush1.bf16.msra.mxu0 %v3941
  %4126 = vmatprep.subr.bf16.mxu0 0
  %4127 = vmatpush1.bf16.msra.mxu0 %v3942
  %4128 = vmatprep.subr.bf16.mxu0 0
  %4129 = vmatpush1.bf16.msra.mxu0 %v3943
  %4130 = vmatprep.subr.bf16.mxu0 0
  %4131 = vmatpush1.bf16.msra.mxu0 %v3944
  %4132 = vmatprep.subr.bf16.mxu0 0
  %4133 = vmatpush1.bf16.msra.mxu0 %v3945
  %4134 = vmatprep.subr.bf16.mxu0 0
  %4135 = vmatpush1.bf16.msra.mxu0 0
  %4136 = vmatprep.subr.bf16.mxu0 0
  %4137 = vmatpush1.bf16.msra.mxu0 0
  %4138 = vmatprep.subr.bf16.mxu0 0
  %4139 = vmatpush1.bf16.msra.mxu0 0
  %4140 = vmatprep.subr.bf16.mxu0 0
  %4141 = vmatpush1.bf16.msra.mxu0 0
  %4142 = vmatprep.mubr.bf16.mxu0 %v1520
  %4143 = vmatmul.mubr.bf16.gmra.mrb[0].mxu0 %v1510
  %v4144 = vpop.f32.mrb[0].mxu0
  %v4145 = vadd.f32 0.0, %v4144
  %v4146 = vpop.f32.mrb[0].mxu0
  %v4147 = vpop.f32.mrb[0].mxu0
  %v4148 = vadd.f32 0.0, %v4147
  %v4149 = vpop.f32.mrb[0].mxu0
  %4150 = vmatprep.mubr.bf16.mxu0 %v2814
  %4151 = vmatmul.mubr.bf16.gmra.mrb[0].mxu0 %v2810
  %v4152 = vpop.f32.mrb[0].mxu0
  %v4153 = vadd.f32 0.0, %v4152
  %v4154 = vpop.f32.mrb[0].mxu0
  %v4155 = vpop.f32.mrb[0].mxu0
  %v4156 = vadd.f32 0.0, %v4155
  %v4157 = vpop.f32.mrb[0].mxu0
  %4158 = vmatprep.mubr.bf16.mxu0 %v4108
  %4159 = vmatmul.mubr.bf16.gmra.mrb[0].mxu0 %v4104
  %v4160 = vpop.f32.mrb[0].mxu0
  %v4161 = vadd.f32 0.0, %v4160
  %v4162 = vpop.f32.mrb[0].mxu0
  %v4163 = vpop.f32.mrb[0].mxu0
  %v4164 = vadd.f32 0.0, %v4163
  %v4165 = vpop.f32.mrb[0].mxu0
  %4166 = vdwg.mxu0
  %v4167 = vadd.f32 %v3844, %v4145
  %v4168 = vadd.f32 %v3845, %v4148
  %v4169 = vadd.f32 %v3846, %v4153
  %v4170 = vadd.f32 %v3847, %v4156
  %v4171 = vadd.f32 %v3848, %v4161
  %v4172 = vadd.f32 %v3849, %v4164
  %v4173 = vld [vmem:[%s2] sm:$0x1]
  %v4175 = vlaneseq
  %v4176 = vshrl.u32 %v4175, 7
  %v4177 = vsub.s32 0, %v4176
  %v4178 = vrot.slane %v4173, %v4177
  %v4180 = vadd.f32 %v4018, %v4178
  %v4181 = vadd.f32 %v4019, %v4178
  %v4182 = vadd.f32 %v4020, %v4178
  %v4183 = vadd.f32 %v4021, %v4178
  %v4184 = vadd.f32 %v4022, %v4178
  %v4185 = vadd.f32 %v4023, %v4178
  %v4186 = vmax.f32 %v4180, 0.0
  %v4187 = vmax.f32 %v4181, 0.0
  %v4188 = vmax.f32 %v4182, 0.0
  %v4189 = vmax.f32 %v4183, 0.0
  %v4190 = vmax.f32 %v4184, 0.0
  %v4191 = vmax.f32 %v4185, 0.0
  %v4192 = vpack.c.bf16 %v4187, %v4186
  %v4193 = vpack.c.bf16 %v4189, %v4188
  %v4194 = vpack.c.bf16 %v4191, %v4190
  %v4195 = vadd.f32 %v4090, %v4178
  %v4196 = vadd.f32 %v4091, %v4178
  %v4197 = vadd.f32 %v4092, %v4178
  %v4198 = vadd.f32 %v4093, %v4178
  %v4199 = vadd.f32 %v4094, %v4178
  %v4200 = vadd.f32 %v4095, %v4178
  %v4201 = vmax.f32 %v4195, 0.0
  %v4202 = vmax.f32 %v4196, 0.0
  %v4203 = vmax.f32 %v4197, 0.0
  %v4204 = vmax.f32 %v4198, 0.0
  %v4205 = vmax.f32 %v4199, 0.0
  %v4206 = vmax.f32 %v4200, 0.0
  %v4207 = vpack.c.bf16 %v4202, %v4201
  %v4208 = vpack.c.bf16 %v4204, %v4203
  %v4209 = vpack.c.bf16 %v4206, %v4205
  %v4210 = vadd.f32 %v4167, %v4178
  %v4211 = vadd.f32 %v4168, %v4178
  %v4212 = vadd.f32 %v4169, %v4178
  %v4213 = vadd.f32 %v4170, %v4178
  %v4214 = vadd.f32 %v4171, %v4178
  %v4215 = vadd.f32 %v4172, %v4178
  %v4216 = vmax.f32 %v4210, 0.0
  %v4217 = vmax.f32 %v4211, 0.0
  %v4218 = vmax.f32 %v4212, 0.0
  %v4219 = vmax.f32 %v4213, 0.0
  %v4220 = vmax.f32 %v4214, 0.0
  %v4221 = vmax.f32 %v4215, 0.0
  %v4222 = vpack.c.bf16 %v4217, %v4216
  %v4223 = vpack.c.bf16 %v4219, %v4218
  %v4224 = vpack.c.bf16 %v4221, %v4220
  %v4225 = vld [vmem:[%s3] sm:$0xf]
  %v4226 = vld [vmem:[%s3 + $0x4] sm:$0xf]
  %v4227 = vld [vmem:[%s3 + $0x8] sm:$0xf]
  %v4228 = vld [vmem:[%s3 + $0xc] sm:$0xf]
  %v4229 = vld [vmem:[%s3 + $0x10] sm:$0xf]
  %v4230 = vld [vmem:[%s3 + $0x14] sm:$0xf]
  %v4231 = vld [vmem:[%s3 + $0x18] sm:$0xf]
  %v4232 = vld [vmem:[%s3 + $0x1c] sm:$0xf]
  %v4233 = vld [vmem:[%s3 + $0x20] sm:$0xf]
  %v4234 = vld [vmem:[%s3 + $0x24] sm:$0xf]
  %v4235 = vld [vmem:[%s3 + $0x28] sm:$0xf]
  %v4236 = vld [vmem:[%s3 + $0x2c] sm:$0xf]
  %v4237 = vld [vmem:[%s3 + $0x30] sm:$0xf]
  %v4238 = vld [vmem:[%s3 + $0x34] sm:$0xf]
  %v4239 = vld [vmem:[%s3 + $0x38] sm:$0xf]
  %v4240 = vld [vmem:[%s3 + $0x3c] sm:$0xf]
  %s4241 = scalar_lea.vmem %s3, 64
  %v4242 = vld [vmem:[%s4241] sm:$0xf]
  %v4243 = vld [vmem:[%s4241 + $0x4] sm:$0xf]
  %v4244 = vld [vmem:[%s4241 + $0x8] sm:$0xf]
  %v4245 = vld [vmem:[%s4241 + $0xc] sm:$0xf]
  %v4246 = vld [vmem:[%s4241 + $0x10] sm:$0xf]
  %v4247 = vld [vmem:[%s4241 + $0x14] sm:$0xf]
  %v4248 = vld [vmem:[%s4241 + $0x18] sm:$0xf]
  %v4249 = vld [vmem:[%s4241 + $0x1c] sm:$0xf]
  %v4250 = vld [vmem:[%s4241 + $0x20] sm:$0xf]
  %v4251 = vld [vmem:[%s4241 + $0x24] sm:$0xf]
  %v4252 = vld [vmem:[%s4241 + $0x28] sm:$0xf]
  %v4253 = vld [vmem:[%s4241 + $0x2c] sm:$0xf]
  %v4254 = vld [vmem:[%s4241 + $0x30] sm:$0xf]
  %v4255 = vld [vmem:[%s4241 + $0x34] sm:$0xf]
  %v4256 = vld [vmem:[%s4241 + $0x38] sm:$0xf]
  %v4257 = vld [vmem:[%s4241 + $0x3c] sm:$0xf]
  %v4274 = vunpack.c.l.b16 %v4242
  %v4275 = vunpack.c.l.b16 %v4243
  %v4276 = vunpack.c.l.b16 %v4244
  %v4277 = vunpack.c.l.b16 %v4245
  %v4278 = vunpack.c.l.b16 %v4246
  %v4279 = vunpack.c.l.b16 %v4247
  %v4280 = vunpack.c.l.b16 %v4248
  %v4281 = vunpack.c.l.b16 %v4249
  %v4282 = vunpack.c.l.b16 %v4250
  %v4283 = vunpack.c.l.b16 %v4251
  %v4284 = vunpack.c.l.b16 %v4252
  %v4285 = vunpack.c.l.b16 %v4253
  %v4286 = vunpack.c.l.b16 %v4254
  %v4287 = vunpack.c.l.b16 %v4255
  %v4288 = vunpack.c.l.b16 %v4256
  %v4289 = vunpack.c.l.b16 %v4257
  %v4290 = vpack.c.b16 %v4275, %v4274
  %v4291 = vpack.c.b16 %v4277, %v4276
  %v4292 = vpack.c.b16 %v4279, %v4278
  %v4293 = vpack.c.b16 %v4281, %v4280
  %v4294 = vpack.c.b16 %v4283, %v4282
  %v4295 = vpack.c.b16 %v4285, %v4284
  %v4296 = vpack.c.b16 %v4287, %v4286
  %v4297 = vpack.c.b16 %v4289, %v4288
  %4306 = vmatprep.subr.bf16.mxu0 0
  %4307 = vmatpush1.bf16.msra.mxu0 %v4290
  %4308 = vmatprep.subr.bf16.mxu0 0
  %4309 = vmatpush1.bf16.msra.mxu0 %v4291
  %4310 = vmatprep.subr.bf16.mxu0 0
  %4311 = vmatpush1.bf16.msra.mxu0 %v4292
  %4312 = vmatprep.subr.bf16.mxu0 0
  %4313 = vmatpush1.bf16.msra.mxu0 %v4293
  %4314 = vmatprep.subr.bf16.mxu0 0
  %4315 = vmatpush1.bf16.msra.mxu0 %v4294
  %4316 = vmatprep.subr.bf16.mxu0 0
  %4317 = vmatpush1.bf16.msra.mxu0 %v4295
  %4318 = vmatprep.subr.bf16.mxu0 0
  %4319 = vmatpush1.bf16.msra.mxu0 %v4296
  %4320 = vmatprep.subr.bf16.mxu0 0
  %4321 = vmatpush1.bf16.msra.mxu0 %v4297
  %4322 = vmatprep.subr.bf16.mxu0 0
  %4323 = vmatpush1.bf16.msra.mxu0 0
  %4324 = vmatprep.subr.bf16.mxu0 0
  %4325 = vmatpush1.bf16.msra.mxu0 0
  %4326 = vmatprep.subr.bf16.mxu0 0
  %4327 = vmatpush1.bf16.msra.mxu0 0
  %4328 = vmatprep.subr.bf16.mxu0 0
  %4329 = vmatpush1.bf16.msra.mxu0 0
  %4330 = vmatprep.subr.bf16.mxu0 0
  %4331 = vmatpush1.bf16.msra.mxu0 0
  %4332 = vmatprep.subr.bf16.mxu0 0
  %4333 = vmatpush1.bf16.msra.mxu0 0
  %4334 = vmatprep.subr.bf16.mxu0 0
  %4335 = vmatpush1.bf16.msra.mxu0 0
  %4336 = vmatprep.subr.bf16.mxu0 0
  %4337 = vmatpush1.bf16.msra.mxu0 0
  %4338 = vmatprep.mubr.bf16.mxu0 0
  %4339 = vmatmul.mubr.bf16.gmra.mrb[0].mxu0 %v4207
  %v4340 = vpop.f32.mrb[0].mxu0
  %v4341 = vadd.f32 0.0, %v4340
  %v4342 = vpop.f32.mrb[0].mxu0
  %v4343 = vpop.f32.mrb[0].mxu0
  %v4344 = vadd.f32 0.0, %v4343
  %v4345 = vpop.f32.mrb[0].mxu0
  %4346 = vdwg.mxu0
  %v4363 = vunpack.c.l.b16 %v4225
  %v4364 = vunpack.c.l.b16 %v4226
  %v4365 = vunpack.c.l.b16 %v4227
  %v4366 = vunpack.c.l.b16 %v4228
  %v4367 = vunpack.c.l.b16 %v4229
  %v4368 = vunpack.c.l.b16 %v4230
  %v4369 = vunpack.c.l.b16 %v4231
  %v4370 = vunpack.c.l.b16 %v4232
  %v4371 = vunpack.c.l.b16 %v4233
  %v4372 = vunpack.c.l.b16 %v4234
  %v4373 = vunpack.c.l.b16 %v4235
  %v4374 = vunpack.c.l.b16 %v4236
  %v4375 = vunpack.c.l.b16 %v4237
  %v4376 = vunpack.c.l.b16 %v4238
  %v4377 = vunpack.c.l.b16 %v4239
  %v4378 = vunpack.c.l.b16 %v4240
  %v4379 = vpack.c.b16 %v4364, %v4363
  %v4380 = vpack.c.b16 %v4366, %v4365
  %v4381 = vpack.c.b16 %v4368, %v4367
  %v4382 = vpack.c.b16 %v4370, %v4369
  %v4383 = vpack.c.b16 %v4372, %v4371
  %v4384 = vpack.c.b16 %v4374, %v4373
  %v4385 = vpack.c.b16 %v4376, %v4375
  %v4386 = vpack.c.b16 %v4378, %v4377
  %4395 = vmatprep.subr.bf16.mxu0 0
  %4396 = vmatpush1.bf16.msra.mxu0 %v4379
  %4397 = vmatprep.subr.bf16.mxu0 0
  %4398 = vmatpush1.bf16.msra.mxu0 %v4380
  %4399 = vmatprep.subr.bf16.mxu0 0
  %4400 = vmatpush1.bf16.msra.mxu0 %v4381
  %4401 = vmatprep.subr.bf16.mxu0 0
  %4402 = vmatpush1.bf16.msra.mxu0 %v4382
  %4403 = vmatprep.subr.bf16.mxu0 0
  %4404 = vmatpush1.bf16.msra.mxu0 %v4383
  %4405 = vmatprep.subr.bf16.mxu0 0
  %4406 = vmatpush1.bf16.msra.mxu0 %v4384
  %4407 = vmatprep.subr.bf16.mxu0 0
  %4408 = vmatpush1.bf16.msra.mxu0 %v4385
  %4409 = vmatprep.subr.bf16.mxu0 0
  %4410 = vmatpush1.bf16.msra.mxu0 %v4386
  %4411 = vmatprep.subr.bf16.mxu0 0
  %4412 = vmatpush1.bf16.msra.mxu0 0
  %4413 = vmatprep.subr.bf16.mxu0 0
  %4414 = vmatpush1.bf16.msra.mxu0 0
  %4415 = vmatprep.subr.bf16.mxu0 0
  %4416 = vmatpush1.bf16.msra.mxu0 0
  %4417 = vmatprep.subr.bf16.mxu0 0
  %4418 = vmatpush1.bf16.msra.mxu0 0
  %4419 = vmatprep.subr.bf16.mxu0 0
  %4420 = vmatpush1.bf16.msra.mxu0 0
  %4421 = vmatprep.subr.bf16.mxu0 0
  %4422 = vmatpush1.bf16.msra.mxu0 0
  %4423 = vmatprep.subr.bf16.mxu0 0
  %4424 = vmatpush1.bf16.msra.mxu0 0
  %4425 = vmatprep.subr.bf16.mxu0 0
  %4426 = vmatpush1.bf16.msra.mxu0 0
  %4427 = vmatprep.mubr.bf16.mxu0 0
  %4428 = vmatmul.mubr.bf16.gmra.mrb[0].mxu0 %v4192
  %v4429 = vpop.f32.mrb[0].mxu0
  %v4430 = vadd.f32 %v4341, %v4429
  %v4431 = vpop.f32.mrb[0].mxu0
  %v4432 = vpop.f32.mrb[0].mxu0
  %v4433 = vadd.f32 %v4344, %v4432
  %v4434 = vpop.f32.mrb[0].mxu0
  %4435 = vdwg.mxu0
  %s4436 = scalar_lea.vmem %s3, 128
  %v4437 = vld [vmem:[%s4436] sm:$0xf]
  %v4438 = vld [vmem:[%s4436 + $0x4] sm:$0xf]
  %v4439 = vld [vmem:[%s4436 + $0x8] sm:$0xf]
  %v4440 = vld [vmem:[%s4436 + $0xc] sm:$0xf]
  %v4441 = vld [vmem:[%s4436 + $0x10] sm:$0xf]
  %v4442 = vld [vmem:[%s4436 + $0x14] sm:$0xf]
  %v4443 = vld [vmem:[%s4436 + $0x18] sm:$0xf]
  %v4444 = vld [vmem:[%s4436 + $0x1c] sm:$0xf]
  %v4445 = vld [vmem:[%s4436 + $0x20] sm:$0xf]
  %v4446 = vld [vmem:[%s4436 + $0x24] sm:$0xf]
  %v4447 = vld [vmem:[%s4436 + $0x28] sm:$0xf]
  %v4448 = vld [vmem:[%s4436 + $0x2c] sm:$0xf]
  %v4449 = vld [vmem:[%s4436 + $0x30] sm:$0xf]
  %v4450 = vld [vmem:[%s4436 + $0x34] sm:$0xf]
  %v4451 = vld [vmem:[%s4436 + $0x38] sm:$0xf]
  %v4452 = vld [vmem:[%s4436 + $0x3c] sm:$0xf]
  %v4469 = vunpack.c.l.b16 %v4437
  %v4470 = vunpack.c.l.b16 %v4438
  %v4471 = vunpack.c.l.b16 %v4439
  %v4472 = vunpack.c.l.b16 %v4440
  %v4473 = vunpack.c.l.b16 %v4441
  %v4474 = vunpack.c.l.b16 %v4442
  %v4475 = vunpack.c.l.b16 %v4443
  %v4476 = vunpack.c.l.b16 %v4444
  %v4477 = vunpack.c.l.b16 %v4445
  %v4478 = vunpack.c.l.b16 %v4446
  %v4479 = vunpack.c.l.b16 %v4447
  %v4480 = vunpack.c.l.b16 %v4448
  %v4481 = vunpack.c.l.b16 %v4449
  %v4482 = vunpack.c.l.b16 %v4450
  %v4483 = vunpack.c.l.b16 %v4451
  %v4484 = vunpack.c.l.b16 %v4452
  %v4485 = vpack.c.b16 %v4470, %v4469
  %v4486 = vpack.c.b16 %v4472, %v4471
  %v4487 = vpack.c.b16 %v4474, %v4473
  %v4488 = vpack.c.b16 %v4476, %v4475
  %v4489 = vpack.c.b16 %v4478, %v4477
  %v4490 = vpack.c.b16 %v4480, %v4479
  %v4491 = vpack.c.b16 %v4482, %v4481
  %v4492 = vpack.c.b16 %v4484, %v4483
  %4501 = vmatprep.subr.bf16.mxu0 0
  %4502 = vmatpush1.bf16.msra.mxu0 %v4485
  %4503 = vmatprep.subr.bf16.mxu0 0
  %4504 = vmatpush1.bf16.msra.mxu0 %v4486
  %4505 = vmatprep.subr.bf16.mxu0 0
  %4506 = vmatpush1.bf16.msra.mxu0 %v4487
  %4507 = vmatprep.subr.bf16.mxu0 0
  %4508 = vmatpush1.bf16.msra.mxu0 %v4488
  %4509 = vmatprep.subr.bf16.mxu0 0
  %4510 = vmatpush1.bf16.msra.mxu0 %v4489
  %4511 = vmatprep.subr.bf16.mxu0 0
  %4512 = vmatpush1.bf16.msra.mxu0 %v4490
  %4513 = vmatprep.subr.bf16.mxu0 0
  %4514 = vmatpush1.bf16.msra.mxu0 %v4491
  %4515 = vmatprep.subr.bf16.mxu0 0
  %4516 = vmatpush1.bf16.msra.mxu0 %v4492
  %4517 = vmatprep.subr.bf16.mxu0 0
  %4518 = vmatpush1.bf16.msra.mxu0 0
  %4519 = vmatprep.subr.bf16.mxu0 0
  %4520 = vmatpush1.bf16.msra.mxu0 0
  %4521 = vmatprep.subr.bf16.mxu0 0
  %4522 = vmatpush1.bf16.msra.mxu0 0
  %4523 = vmatprep.subr.bf16.mxu0 0
  %4524 = vmatpush1.bf16.msra.mxu0 0
  %4525 = vmatprep.subr.bf16.mxu0 0
  %4526 = vmatpush1.bf16.msra.mxu0 0
  %4527 = vmatprep.subr.bf16.mxu0 0
  %4528 = vmatpush1.bf16.msra.mxu0 0
  %4529 = vmatprep.subr.bf16.mxu0 0
  %4530 = vmatpush1.bf16.msra.mxu0 0
  %4531 = vmatprep.subr.bf16.mxu0 0
  %4532 = vmatpush1.bf16.msra.mxu0 0
  %4533 = vmatprep.mubr.bf16.mxu0 0
  %4534 = vmatmul.mubr.bf16.gmra.mrb[0].mxu0 %v4222
  %v4535 = vpop.f32.mrb[0].mxu0
  %v4536 = vadd.f32 0.0, %v4535
  %v4537 = vpop.f32.mrb[0].mxu0
  %v4538 = vpop.f32.mrb[0].mxu0
  %v4539 = vadd.f32 0.0, %v4538
  %v4540 = vpop.f32.mrb[0].mxu0
  %4541 = vdwg.mxu0
  %v4542 = vadd.f32 %v4430, %v4536
  %v4543 = vadd.f32 %v4433, %v4539
  %s4544 = scalar_lea.vmem %s3, 192
  %v4545 = vld [vmem:[%s4544] sm:$0xf]
  %v4546 = vld [vmem:[%s4544 + $0x4] sm:$0xf]
  %v4547 = vld [vmem:[%s4544 + $0x8] sm:$0xf]
  %v4548 = vld [vmem:[%s4544 + $0xc] sm:$0xf]
  %v4549 = vld [vmem:[%s4544 + $0x10] sm:$0xf]
  %v4550 = vld [vmem:[%s4544 + $0x14] sm:$0xf]
  %v4551 = vld [vmem:[%s4544 + $0x18] sm:$0xf]
  %v4552 = vld [vmem:[%s4544 + $0x1c] sm:$0xf]
  %v4553 = vld [vmem:[%s4544 + $0x20] sm:$0xf]
  %v4554 = vld [vmem:[%s4544 + $0x24] sm:$0xf]
  %v4555 = vld [vmem:[%s4544 + $0x28] sm:$0xf]
  %v4556 = vld [vmem:[%s4544 + $0x2c] sm:$0xf]
  %v4557 = vld [vmem:[%s4544 + $0x30] sm:$0xf]
  %v4558 = vld [vmem:[%s4544 + $0x34] sm:$0xf]
  %v4559 = vld [vmem:[%s4544 + $0x38] sm:$0xf]
  %v4560 = vld [vmem:[%s4544 + $0x3c] sm:$0xf]
  %v4577 = vunpack.c.l.b16 %v4545
  %v4578 = vunpack.c.l.b16 %v4546
  %v4579 = vunpack.c.l.b16 %v4547
  %v4580 = vunpack.c.l.b16 %v4548
  %v4581 = vunpack.c.l.b16 %v4549
  %v4582 = vunpack.c.l.b16 %v4550
  %v4583 = vunpack.c.l.b16 %v4551
  %v4584 = vunpack.c.l.b16 %v4552
  %v4585 = vunpack.c.l.b16 %v4553
  %v4586 = vunpack.c.l.b16 %v4554
  %v4587 = vunpack.c.l.b16 %v4555
  %v4588 = vunpack.c.l.b16 %v4556
  %v4589 = vunpack.c.l.b16 %v4557
  %v4590 = vunpack.c.l.b16 %v4558
  %v4591 = vunpack.c.l.b16 %v4559
  %v4592 = vunpack.c.l.b16 %v4560
  %v4593 = vpack.c.b16 %v4578, %v4577
  %v4594 = vpack.c.b16 %v4580, %v4579
  %v4595 = vpack.c.b16 %v4582, %v4581
  %v4596 = vpack.c.b16 %v4584, %v4583
  %v4597 = vpack.c.b16 %v4586, %v4585
  %v4598 = vpack.c.b16 %v4588, %v4587
  %v4599 = vpack.c.b16 %v4590, %v4589
  %v4600 = vpack.c.b16 %v4592, %v4591
  %4609 = vmatprep.subr.bf16.mxu0 0
  %4610 = vmatpush1.bf16.msra.mxu0 %v4593
  %4611 = vmatprep.subr.bf16.mxu0 0
  %4612 = vmatpush1.bf16.msra.mxu0 %v4594
  %4613 = vmatprep.subr.bf16.mxu0 0
  %4614 = vmatpush1.bf16.msra.mxu0 %v4595
  %4615 = vmatprep.subr.bf16.mxu0 0
  %4616 = vmatpush1.bf16.msra.mxu0 %v4596
  %4617 = vmatprep.subr.bf16.mxu0 0
  %4618 = vmatpush1.bf16.msra.mxu0 %v4597
  %4619 = vmatprep.subr.bf16.mxu0 0
  %4620 = vmatpush1.bf16.msra.mxu0 %v4598
  %4621 = vmatprep.subr.bf16.mxu0 0
  %4622 = vmatpush1.bf16.msra.mxu0 %v4599
  %4623 = vmatprep.subr.bf16.mxu0 0
  %4624 = vmatpush1.bf16.msra.mxu0 %v4600
  %4625 = vmatprep.subr.bf16.mxu0 0
  %4626 = vmatpush1.bf16.msra.mxu0 0
  %4627 = vmatprep.subr.bf16.mxu0 0
  %4628 = vmatpush1.bf16.msra.mxu0 0
  %4629 = vmatprep.subr.bf16.mxu0 0
  %4630 = vmatpush1.bf16.msra.mxu0 0
  %4631 = vmatprep.subr.bf16.mxu0 0
  %4632 = vmatpush1.bf16.msra.mxu0 0
  %4633 = vmatprep.subr.bf16.mxu0 0
  %4634 = vmatpush1.bf16.msra.mxu0 0
  %4635 = vmatprep.subr.bf16.mxu0 0
  %4636 = vmatpush1.bf16.msra.mxu0 0
  %4637 = vmatprep.subr.bf16.mxu0 0
  %4638 = vmatpush1.bf16.msra.mxu0 0
  %4639 = vmatprep.subr.bf16.mxu0 0
  %4640 = vmatpush1.bf16.msra.mxu0 0
  %4641 = vmatprep.mubr.bf16.mxu0 0
  %4642 = vmatmul.mubr.bf16.gmra.mrb[0].mxu0 %v4193
  %v4643 = vpop.f32.mrb[0].mxu0
  %v4644 = vadd.f32 0.0, %v4643
  %v4645 = vpop.f32.mrb[0].mxu0
  %v4646 = vpop.f32.mrb[0].mxu0
  %v4647 = vadd.f32 0.0, %v4646
  %v4648 = vpop.f32.mrb[0].mxu0
  %4649 = vdwg.mxu0
  %v4650 = vadd.f32 %v4542, %v4644
  %v4651 = vadd.f32 %v4543, %v4647
  %s4652 = scalar_lea.vmem %s3, 256
  %v4653 = vld [vmem:[%s4652] sm:$0xf]
  %v4654 = vld [vmem:[%s4652 + $0x4] sm:$0xf]
  %v4655 = vld [vmem:[%s4652 + $0x8] sm:$0xf]
  %v4656 = vld [vmem:[%s4652 + $0xc] sm:$0xf]
  %v4657 = vld [vmem:[%s4652 + $0x10] sm:$0xf]
  %v4658 = vld [vmem:[%s4652 + $0x14] sm:$0xf]
  %v4659 = vld [vmem:[%s4652 + $0x18] sm:$0xf]
  %v4660 = vld [vmem:[%s4652 + $0x1c] sm:$0xf]
  %v4661 = vld [vmem:[%s4652 + $0x20] sm:$0xf]
  %v4662 = vld [vmem:[%s4652 + $0x24] sm:$0xf]
  %v4663 = vld [vmem:[%s4652 + $0x28] sm:$0xf]
  %v4664 = vld [vmem:[%s4652 + $0x2c] sm:$0xf]
  %v4665 = vld [vmem:[%s4652 + $0x30] sm:$0xf]
  %v4666 = vld [vmem:[%s4652 + $0x34] sm:$0xf]
  %v4667 = vld [vmem:[%s4652 + $0x38] sm:$0xf]
  %v4668 = vld [vmem:[%s4652 + $0x3c] sm:$0xf]
  %v4685 = vunpack.c.l.b16 %v4653
  %v4686 = vunpack.c.l.b16 %v4654
  %v4687 = vunpack.c.l.b16 %v4655
  %v4688 = vunpack.c.l.b16 %v4656
  %v4689 = vunpack.c.l.b16 %v4657
  %v4690 = vunpack.c.l.b16 %v4658
  %v4691 = vunpack.c.l.b16 %v4659
  %v4692 = vunpack.c.l.b16 %v4660
  %v4693 = vunpack.c.l.b16 %v4661
  %v4694 = vunpack.c.l.b16 %v4662
  %v4695 = vunpack.c.l.b16 %v4663
  %v4696 = vunpack.c.l.b16 %v4664
  %v4697 = vunpack.c.l.b16 %v4665
  %v4698 = vunpack.c.l.b16 %v4666
  %v4699 = vunpack.c.l.b16 %v4667
  %v4700 = vunpack.c.l.b16 %v4668
  %v4701 = vpack.c.b16 %v4686, %v4685
  %v4702 = vpack.c.b16 %v4688, %v4687
  %v4703 = vpack.c.b16 %v4690, %v4689
  %v4704 = vpack.c.b16 %v4692, %v4691
  %v4705 = vpack.c.b16 %v4694, %v4693
  %v4706 = vpack.c.b16 %v4696, %v4695
  %v4707 = vpack.c.b16 %v4698, %v4697
  %v4708 = vpack.c.b16 %v4700, %v4699
  %4717 = vmatprep.subr.bf16.mxu0 0
  %4718 = vmatpush1.bf16.msra.mxu0 %v4701
  %4719 = vmatprep.subr.bf16.mxu0 0
  %4720 = vmatpush1.bf16.msra.mxu0 %v4702
  %4721 = vmatprep.subr.bf16.mxu0 0
  %4722 = vmatpush1.bf16.msra.mxu0 %v4703
  %4723 = vmatprep.subr.bf16.mxu0 0
  %4724 = vmatpush1.bf16.msra.mxu0 %v4704
  %4725 = vmatprep.subr.bf16.mxu0 0
  %4726 = vmatpush1.bf16.msra.mxu0 %v4705
  %4727 = vmatprep.subr.bf16.mxu0 0
  %4728 = vmatpush1.bf16.msra.mxu0 %v4706
  %4729 = vmatprep.subr.bf16.mxu0 0
  %4730 = vmatpush1.bf16.msra.mxu0 %v4707
  %4731 = vmatprep.subr.bf16.mxu0 0
  %4732 = vmatpush1.bf16.msra.mxu0 %v4708
  %4733 = vmatprep.subr.bf16.mxu0 0
  %4734 = vmatpush1.bf16.msra.mxu0 0
  %4735 = vmatprep.subr.bf16.mxu0 0
  %4736 = vmatpush1.bf16.msra.mxu0 0
  %4737 = vmatprep.subr.bf16.mxu0 0
  %4738 = vmatpush1.bf16.msra.mxu0 0
  %4739 = vmatprep.subr.bf16.mxu0 0
  %4740 = vmatpush1.bf16.msra.mxu0 0
  %4741 = vmatprep.subr.bf16.mxu0 0
  %4742 = vmatpush1.bf16.msra.mxu0 0
  %4743 = vmatprep.subr.bf16.mxu0 0
  %4744 = vmatpush1.bf16.msra.mxu0 0
  %4745 = vmatprep.subr.bf16.mxu0 0
  %4746 = vmatpush1.bf16.msra.mxu0 0
  %4747 = vmatprep.subr.bf16.mxu0 0
  %4748 = vmatpush1.bf16.msra.mxu0 0
  %4749 = vmatprep.mubr.bf16.mxu0 0
  %4750 = vmatmul.mubr.bf16.gmra.mrb[0].mxu0 %v4208
  %v4751 = vpop.f32.mrb[0].mxu0
  %v4752 = vadd.f32 0.0, %v4751
  %v4753 = vpop.f32.mrb[0].mxu0
  %v4754 = vpop.f32.mrb[0].mxu0
  %v4755 = vadd.f32 0.0, %v4754
  %v4756 = vpop.f32.mrb[0].mxu0
  %4757 = vdwg.mxu0
  %v4758 = vadd.f32 %v4650, %v4752
  %v4759 = vadd.f32 %v4651, %v4755
  %s4760 = scalar_lea.vmem %s3, 320
  %v4761 = vld [vmem:[%s4760] sm:$0xf]
  %v4762 = vld [vmem:[%s4760 + $0x4] sm:$0xf]
  %v4763 = vld [vmem:[%s4760 + $0x8] sm:$0xf]
  %v4764 = vld [vmem:[%s4760 + $0xc] sm:$0xf]
  %v4765 = vld [vmem:[%s4760 + $0x10] sm:$0xf]
  %v4766 = vld [vmem:[%s4760 + $0x14] sm:$0xf]
  %v4767 = vld [vmem:[%s4760 + $0x18] sm:$0xf]
  %v4768 = vld [vmem:[%s4760 + $0x1c] sm:$0xf]
  %v4769 = vld [vmem:[%s4760 + $0x20] sm:$0xf]
  %v4770 = vld [vmem:[%s4760 + $0x24] sm:$0xf]
  %v4771 = vld [vmem:[%s4760 + $0x28] sm:$0xf]
  %v4772 = vld [vmem:[%s4760 + $0x2c] sm:$0xf]
  %v4773 = vld [vmem:[%s4760 + $0x30] sm:$0xf]
  %v4774 = vld [vmem:[%s4760 + $0x34] sm:$0xf]
  %v4775 = vld [vmem:[%s4760 + $0x38] sm:$0xf]
  %v4776 = vld [vmem:[%s4760 + $0x3c] sm:$0xf]
  %v4793 = vunpack.c.l.b16 %v4761
  %v4794 = vunpack.c.l.b16 %v4762
  %v4795 = vunpack.c.l.b16 %v4763
  %v4796 = vunpack.c.l.b16 %v4764
  %v4797 = vunpack.c.l.b16 %v4765
  %v4798 = vunpack.c.l.b16 %v4766
  %v4799 = vunpack.c.l.b16 %v4767
  %v4800 = vunpack.c.l.b16 %v4768
  %v4801 = vunpack.c.l.b16 %v4769
  %v4802 = vunpack.c.l.b16 %v4770
  %v4803 = vunpack.c.l.b16 %v4771
  %v4804 = vunpack.c.l.b16 %v4772
  %v4805 = vunpack.c.l.b16 %v4773
  %v4806 = vunpack.c.l.b16 %v4774
  %v4807 = vunpack.c.l.b16 %v4775
  %v4808 = vunpack.c.l.b16 %v4776
  %v4809 = vpack.c.b16 %v4794, %v4793
  %v4810 = vpack.c.b16 %v4796, %v4795
  %v4811 = vpack.c.b16 %v4798, %v4797
  %v4812 = vpack.c.b16 %v4800, %v4799
  %v4813 = vpack.c.b16 %v4802, %v4801
  %v4814 = vpack.c.b16 %v4804, %v4803
  %v4815 = vpack.c.b16 %v4806, %v4805
  %v4816 = vpack.c.b16 %v4808, %v4807
  %4825 = vmatprep.subr.bf16.mxu0 0
  %4826 = vmatpush1.bf16.msra.mxu0 %v4809
  %4827 = vmatprep.subr.bf16.mxu0 0
  %4828 = vmatpush1.bf16.msra.mxu0 %v4810
  %4829 = vmatprep.subr.bf16.mxu0 0
  %4830 = vmatpush1.bf16.msra.mxu0 %v4811
  %4831 = vmatprep.subr.bf16.mxu0 0
  %4832 = vmatpush1.bf16.msra.mxu0 %v4812
  %4833 = vmatprep.subr.bf16.mxu0 0
  %4834 = vmatpush1.bf16.msra.mxu0 %v4813
  %4835 = vmatprep.subr.bf16.mxu0 0
  %4836 = vmatpush1.bf16.msra.mxu0 %v4814
  %4837 = vmatprep.subr.bf16.mxu0 0
  %4838 = vmatpush1.bf16.msra.mxu0 %v4815
  %4839 = vmatprep.subr.bf16.mxu0 0
  %4840 = vmatpush1.bf16.msra.mxu0 %v4816
  %4841 = vmatprep.subr.bf16.mxu0 0
  %4842 = vmatpush1.bf16.msra.mxu0 0
  %4843 = vmatprep.subr.bf16.mxu0 0
  %4844 = vmatpush1.bf16.msra.mxu0 0
  %4845 = vmatprep.subr.bf16.mxu0 0
  %4846 = vmatpush1.bf16.msra.mxu0 0
  %4847 = vmatprep.subr.bf16.mxu0 0
  %4848 = vmatpush1.bf16.msra.mxu0 0
  %4849 = vmatprep.subr.bf16.mxu0 0
  %4850 = vmatpush1.bf16.msra.mxu0 0
  %4851 = vmatprep.subr.bf16.mxu0 0
  %4852 = vmatpush1.bf16.msra.mxu0 0
  %4853 = vmatprep.subr.bf16.mxu0 0
  %4854 = vmatpush1.bf16.msra.mxu0 0
  %4855 = vmatprep.subr.bf16.mxu0 0
  %4856 = vmatpush1.bf16.msra.mxu0 0
  %4857 = vmatprep.mubr.bf16.mxu0 0
  %4858 = vmatmul.mubr.bf16.gmra.mrb[0].mxu0 %v4223
  %v4859 = vpop.f32.mrb[0].mxu0
  %v4860 = vadd.f32 0.0, %v4859
  %v4861 = vpop.f32.mrb[0].mxu0
  %v4862 = vpop.f32.mrb[0].mxu0
  %v4863 = vadd.f32 0.0, %v4862
  %v4864 = vpop.f32.mrb[0].mxu0
  %4865 = vdwg.mxu0
  %v4866 = vadd.f32 %v4758, %v4860
  %v4867 = vadd.f32 %v4759, %v4863
  %s4868 = scalar_lea.vmem %s3, 384
  %v4869 = vld [vmem:[%s4868] sm:$0xf]
  %v4870 = vld [vmem:[%s4868 + $0x4] sm:$0xf]
  %v4871 = vld [vmem:[%s4868 + $0x8] sm:$0xf]
  %v4872 = vld [vmem:[%s4868 + $0xc] sm:$0xf]
  %v4873 = vld [vmem:[%s4868 + $0x10] sm:$0xf]
  %v4874 = vld [vmem:[%s4868 + $0x14] sm:$0xf]
  %v4875 = vld [vmem:[%s4868 + $0x18] sm:$0xf]
  %v4876 = vld [vmem:[%s4868 + $0x1c] sm:$0xf]
  %v4877 = vld [vmem:[%s4868 + $0x20] sm:$0xf]
  %v4878 = vld [vmem:[%s4868 + $0x24] sm:$0xf]
  %v4879 = vld [vmem:[%s4868 + $0x28] sm:$0xf]
  %v4880 = vld [vmem:[%s4868 + $0x2c] sm:$0xf]
  %v4881 = vld [vmem:[%s4868 + $0x30] sm:$0xf]
  %v4882 = vld [vmem:[%s4868 + $0x34] sm:$0xf]
  %v4883 = vld [vmem:[%s4868 + $0x38] sm:$0xf]
  %v4884 = vld [vmem:[%s4868 + $0x3c] sm:$0xf]
  %v4901 = vunpack.c.l.b16 %v4869
  %v4902 = vunpack.c.l.b16 %v4870
  %v4903 = vunpack.c.l.b16 %v4871
  %v4904 = vunpack.c.l.b16 %v4872
  %v4905 = vunpack.c.l.b16 %v4873
  %v4906 = vunpack.c.l.b16 %v4874
  %v4907 = vunpack.c.l.b16 %v4875
  %v4908 = vunpack.c.l.b16 %v4876
  %v4909 = vunpack.c.l.b16 %v4877
  %v4910 = vunpack.c.l.b16 %v4878
  %v4911 = vunpack.c.l.b16 %v4879
  %v4912 = vunpack.c.l.b16 %v4880
  %v4913 = vunpack.c.l.b16 %v4881
  %v4914 = vunpack.c.l.b16 %v4882
  %v4915 = vunpack.c.l.b16 %v4883
  %v4916 = vunpack.c.l.b16 %v4884
  %v4917 = vpack.c.b16 %v4902, %v4901
  %v4918 = vpack.c.b16 %v4904, %v4903
  %v4919 = vpack.c.b16 %v4906, %v4905
  %v4920 = vpack.c.b16 %v4908, %v4907
  %v4921 = vpack.c.b16 %v4910, %v4909
  %v4922 = vpack.c.b16 %v4912, %v4911
  %v4923 = vpack.c.b16 %v4914, %v4913
  %v4924 = vpack.c.b16 %v4916, %v4915
  %4933 = vmatprep.subr.bf16.mxu0 0
  %4934 = vmatpush1.bf16.msra.mxu0 %v4917
  %4935 = vmatprep.subr.bf16.mxu0 0
  %4936 = vmatpush1.bf16.msra.mxu0 %v4918
  %4937 = vmatprep.subr.bf16.mxu0 0
  %4938 = vmatpush1.bf16.msra.mxu0 %v4919
  %4939 = vmatprep.subr.bf16.mxu0 0
  %4940 = vmatpush1.bf16.msra.mxu0 %v4920
  %4941 = vmatprep.subr.bf16.mxu0 0
  %4942 = vmatpush1.bf16.msra.mxu0 %v4921
  %4943 = vmatprep.subr.bf16.mxu0 0
  %4944 = vmatpush1.bf16.msra.mxu0 %v4922
  %4945 = vmatprep.subr.bf16.mxu0 0
  %4946 = vmatpush1.bf16.msra.mxu0 %v4923
  %4947 = vmatprep.subr.bf16.mxu0 0
  %4948 = vmatpush1.bf16.msra.mxu0 %v4924
  %4949 = vmatprep.subr.bf16.mxu0 0
  %4950 = vmatpush1.bf16.msra.mxu0 0
  %4951 = vmatprep.subr.bf16.mxu0 0
  %4952 = vmatpush1.bf16.msra.mxu0 0
  %4953 = vmatprep.subr.bf16.mxu0 0
  %4954 = vmatpush1.bf16.msra.mxu0 0
  %4955 = vmatprep.subr.bf16.mxu0 0
  %4956 = vmatpush1.bf16.msra.mxu0 0
  %4957 = vmatprep.subr.bf16.mxu0 0
  %4958 = vmatpush1.bf16.msra.mxu0 0
  %4959 = vmatprep.subr.bf16.mxu0 0
  %4960 = vmatpush1.bf16.msra.mxu0 0
  %4961 = vmatprep.subr.bf16.mxu0 0
  %4962 = vmatpush1.bf16.msra.mxu0 0
  %4963 = vmatprep.subr.bf16.mxu0 0
  %4964 = vmatpush1.bf16.msra.mxu0 0
  %4965 = vmatprep.mubr.bf16.mxu0 0
  %4966 = vmatmul.mubr.bf16.gmra.mrb[0].mxu0 %v4194
  %v4967 = vpop.f32.mrb[0].mxu0
  %v4968 = vadd.f32 0.0, %v4967
  %v4969 = vpop.f32.mrb[0].mxu0
  %v4970 = vpop.f32.mrb[0].mxu0
  %v4971 = vadd.f32 0.0, %v4970
  %v4972 = vpop.f32.mrb[0].mxu0
  %4973 = vdwg.mxu0
  %v4974 = vadd.f32 %v4866, %v4968
  %v4975 = vadd.f32 %v4867, %v4971
  %s4976 = scalar_lea.vmem %s3, 448
  %v4977 = vld [vmem:[%s4976] sm:$0xf]
  %v4978 = vld [vmem:[%s4976 + $0x4] sm:$0xf]
  %v4979 = vld [vmem:[%s4976 + $0x8] sm:$0xf]
  %v4980 = vld [vmem:[%s4976 + $0xc] sm:$0xf]
  %v4981 = vld [vmem:[%s4976 + $0x10] sm:$0xf]
  %v4982 = vld [vmem:[%s4976 + $0x14] sm:$0xf]
  %v4983 = vld [vmem:[%s4976 + $0x18] sm:$0xf]
  %v4984 = vld [vmem:[%s4976 + $0x1c] sm:$0xf]
  %v4985 = vld [vmem:[%s4976 + $0x20] sm:$0xf]
  %v4986 = vld [vmem:[%s4976 + $0x24] sm:$0xf]
  %v4987 = vld [vmem:[%s4976 + $0x28] sm:$0xf]
  %v4988 = vld [vmem:[%s4976 + $0x2c] sm:$0xf]
  %v4989 = vld [vmem:[%s4976 + $0x30] sm:$0xf]
  %v4990 = vld [vmem:[%s4976 + $0x34] sm:$0xf]
  %v4991 = vld [vmem:[%s4976 + $0x38] sm:$0xf]
  %v4992 = vld [vmem:[%s4976 + $0x3c] sm:$0xf]
  %v5009 = vunpack.c.l.b16 %v4977
  %v5010 = vunpack.c.l.b16 %v4978
  %v5011 = vunpack.c.l.b16 %v4979
  %v5012 = vunpack.c.l.b16 %v4980
  %v5013 = vunpack.c.l.b16 %v4981
  %v5014 = vunpack.c.l.b16 %v4982
  %v5015 = vunpack.c.l.b16 %v4983
  %v5016 = vunpack.c.l.b16 %v4984
  %v5017 = vunpack.c.l.b16 %v4985
  %v5018 = vunpack.c.l.b16 %v4986
  %v5019 = vunpack.c.l.b16 %v4987
  %v5020 = vunpack.c.l.b16 %v4988
  %v5021 = vunpack.c.l.b16 %v4989
  %v5022 = vunpack.c.l.b16 %v4990
  %v5023 = vunpack.c.l.b16 %v4991
  %v5024 = vunpack.c.l.b16 %v4992
  %v5025 = vpack.c.b16 %v5010, %v5009
  %v5026 = vpack.c.b16 %v5012, %v5011
  %v5027 = vpack.c.b16 %v5014, %v5013
  %v5028 = vpack.c.b16 %v5016, %v5015
  %v5029 = vpack.c.b16 %v5018, %v5017
  %v5030 = vpack.c.b16 %v5020, %v5019
  %v5031 = vpack.c.b16 %v5022, %v5021
  %v5032 = vpack.c.b16 %v5024, %v5023
  %5041 = vmatprep.subr.bf16.mxu0 0
  %5042 = vmatpush1.bf16.msra.mxu0 %v5025
  %5043 = vmatprep.subr.bf16.mxu0 0
  %5044 = vmatpush1.bf16.msra.mxu0 %v5026
  %5045 = vmatprep.subr.bf16.mxu0 0
  %5046 = vmatpush1.bf16.msra.mxu0 %v5027
  %5047 = vmatprep.subr.bf16.mxu0 0
  %5048 = vmatpush1.bf16.msra.mxu0 %v5028
  %5049 = vmatprep.subr.bf16.mxu0 0
  %5050 = vmatpush1.bf16.msra.mxu0 %v5029
  %5051 = vmatprep.subr.bf16.mxu0 0
  %5052 = vmatpush1.bf16.msra.mxu0 %v5030
  %5053 = vmatprep.subr.bf16.mxu0 0
  %5054 = vmatpush1.bf16.msra.mxu0 %v5031
  %5055 = vmatprep.subr.bf16.mxu0 0
  %5056 = vmatpush1.bf16.msra.mxu0 %v5032
  %5057 = vmatprep.subr.bf16.mxu0 0
  %5058 = vmatpush1.bf16.msra.mxu0 0
  %5059 = vmatprep.subr.bf16.mxu0 0
  %5060 = vmatpush1.bf16.msra.mxu0 0
  %5061 = vmatprep.subr.bf16.mxu0 0
  %5062 = vmatpush1.bf16.msra.mxu0 0
  %5063 = vmatprep.subr.bf16.mxu0 0
  %5064 = vmatpush1.bf16.msra.mxu0 0
  %5065 = vmatprep.subr.bf16.mxu0 0
  %5066 = vmatpush1.bf16.msra.mxu0 0
  %5067 = vmatprep.subr.bf16.mxu0 0
  %5068 = vmatpush1.bf16.msra.mxu0 0
  %5069 = vmatprep.subr.bf16.mxu0 0
  %5070 = vmatpush1.bf16.msra.mxu0 0
  %5071 = vmatprep.subr.bf16.mxu0 0
  %5072 = vmatpush1.bf16.msra.mxu0 0
  %5073 = vmatprep.mubr.bf16.mxu0 0
  %5074 = vmatmul.mubr.bf16.gmra.mrb[0].mxu0 %v4209
  %v5075 = vpop.f32.mrb[0].mxu0
  %v5076 = vadd.f32 0.0, %v5075
  %v5077 = vpop.f32.mrb[0].mxu0
  %v5078 = vpop.f32.mrb[0].mxu0
  %v5079 = vadd.f32 0.0, %v5078
  %v5080 = vpop.f32.mrb[0].mxu0
  %5081 = vdwg.mxu0
  %v5082 = vadd.f32 %v4974, %v5076
  %v5083 = vadd.f32 %v4975, %v5079
  %s5084 = scalar_lea.vmem %s3, 512
  %v5085 = vld [vmem:[%s5084] sm:$0xf]
  %v5086 = vld [vmem:[%s5084 + $0x4] sm:$0xf]
  %v5087 = vld [vmem:[%s5084 + $0x8] sm:$0xf]
  %v5088 = vld [vmem:[%s5084 + $0xc] sm:$0xf]
  %v5089 = vld [vmem:[%s5084 + $0x10] sm:$0xf]
  %v5090 = vld [vmem:[%s5084 + $0x14] sm:$0xf]
  %v5091 = vld [vmem:[%s5084 + $0x18] sm:$0xf]
  %v5092 = vld [vmem:[%s5084 + $0x1c] sm:$0xf]
  %v5093 = vld [vmem:[%s5084 + $0x20] sm:$0xf]
  %v5094 = vld [vmem:[%s5084 + $0x24] sm:$0xf]
  %v5095 = vld [vmem:[%s5084 + $0x28] sm:$0xf]
  %v5096 = vld [vmem:[%s5084 + $0x2c] sm:$0xf]
  %v5097 = vld [vmem:[%s5084 + $0x30] sm:$0xf]
  %v5098 = vld [vmem:[%s5084 + $0x34] sm:$0xf]
  %v5099 = vld [vmem:[%s5084 + $0x38] sm:$0xf]
  %v5100 = vld [vmem:[%s5084 + $0x3c] sm:$0xf]
  %v5117 = vunpack.c.l.b16 %v5085
  %v5118 = vunpack.c.l.b16 %v5086
  %v5119 = vunpack.c.l.b16 %v5087
  %v5120 = vunpack.c.l.b16 %v5088
  %v5121 = vunpack.c.l.b16 %v5089
  %v5122 = vunpack.c.l.b16 %v5090
  %v5123 = vunpack.c.l.b16 %v5091
  %v5124 = vunpack.c.l.b16 %v5092
  %v5125 = vunpack.c.l.b16 %v5093
  %v5126 = vunpack.c.l.b16 %v5094
  %v5127 = vunpack.c.l.b16 %v5095
  %v5128 = vunpack.c.l.b16 %v5096
  %v5129 = vunpack.c.l.b16 %v5097
  %v5130 = vunpack.c.l.b16 %v5098
  %v5131 = vunpack.c.l.b16 %v5099
  %v5132 = vunpack.c.l.b16 %v5100
  %v5133 = vpack.c.b16 %v5118, %v5117
  %v5134 = vpack.c.b16 %v5120, %v5119
  %v5135 = vpack.c.b16 %v5122, %v5121
  %v5136 = vpack.c.b16 %v5124, %v5123
  %v5137 = vpack.c.b16 %v5126, %v5125
  %v5138 = vpack.c.b16 %v5128, %v5127
  %v5139 = vpack.c.b16 %v5130, %v5129
  %v5140 = vpack.c.b16 %v5132, %v5131
  %5149 = vmatprep.subr.bf16.mxu0 0
  %5150 = vmatpush1.bf16.msra.mxu0 %v5133
  %5151 = vmatprep.subr.bf16.mxu0 0
  %5152 = vmatpush1.bf16.msra.mxu0 %v5134
  %5153 = vmatprep.subr.bf16.mxu0 0
  %5154 = vmatpush1.bf16.msra.mxu0 %v5135
  %5155 = vmatprep.subr.bf16.mxu0 0
  %5156 = vmatpush1.bf16.msra.mxu0 %v5136
  %5157 = vmatprep.subr.bf16.mxu0 0
  %5158 = vmatpush1.bf16.msra.mxu0 %v5137
  %5159 = vmatprep.subr.bf16.mxu0 0
  %5160 = vmatpush1.bf16.msra.mxu0 %v5138
  %5161 = vmatprep.subr.bf16.mxu0 0
  %5162 = vmatpush1.bf16.msra.mxu0 %v5139
  %5163 = vmatprep.subr.bf16.mxu0 0
  %5164 = vmatpush1.bf16.msra.mxu0 %v5140
  %5165 = vmatprep.subr.bf16.mxu0 0
  %5166 = vmatpush1.bf16.msra.mxu0 0
  %5167 = vmatprep.subr.bf16.mxu0 0
  %5168 = vmatpush1.bf16.msra.mxu0 0
  %5169 = vmatprep.subr.bf16.mxu0 0
  %5170 = vmatpush1.bf16.msra.mxu0 0
  %5171 = vmatprep.subr.bf16.mxu0 0
  %5172 = vmatpush1.bf16.msra.mxu0 0
  %5173 = vmatprep.subr.bf16.mxu0 0
  %5174 = vmatpush1.bf16.msra.mxu0 0
  %5175 = vmatprep.subr.bf16.mxu0 0
  %5176 = vmatpush1.bf16.msra.mxu0 0
  %5177 = vmatprep.subr.bf16.mxu0 0
  %5178 = vmatpush1.bf16.msra.mxu0 0
  %5179 = vmatprep.subr.bf16.mxu0 0
  %5180 = vmatpush1.bf16.msra.mxu0 0
  %5181 = vmatprep.mubr.bf16.mxu0 0
  %5182 = vmatmul.mubr.bf16.gmra.mrb[0].mxu0 %v4224
  %v5183 = vpop.f32.mrb[0].mxu0
  %v5184 = vadd.f32 0.0, %v5183
  %v5185 = vpop.f32.mrb[0].mxu0
  %v5186 = vpop.f32.mrb[0].mxu0
  %v5187 = vadd.f32 0.0, %v5186
  %v5188 = vpop.f32.mrb[0].mxu0
  %5189 = vdwg.mxu0
  %v5190 = vadd.f32 %v5082, %v5184
  %v5191 = vadd.f32 %v5083, %v5187
  %v5192 = vld [vmem:[%s4] sm:$0x1]
  %v5194 = vlaneseq
  %v5195 = vshrl.u32 %v5194, 7
  %v5196 = vsub.s32 0, %v5195
  %v5197 = vrot.slane %v5192, %v5196
  %v5199 = vadd.f32 %v5190, %v5197
  %v5200 = vadd.f32 %v5191, %v5197
  %v5201 = vmax.f32 %v5199, 0.0
  %v5202 = vmax.f32 %v5200, 0.0
  %v5203 = vpack.c.bf16 %v5202, %v5201
  %v5204 = vld [vmem:[%s5] sm:$0xf]
  %v5205 = vld [vmem:[%s5 + $0x4] sm:$0xf]
  %v5206 = vld [vmem:[%s5 + $0x8] sm:$0xf]
  %v5207 = vld [vmem:[%s5 + $0xc] sm:$0xf]
  %v5208 = vld [vmem:[%s5 + $0x10] sm:$0xf]
  %v5209 = vld [vmem:[%s5 + $0x14] sm:$0xf]
  %v5210 = vld [vmem:[%s5 + $0x18] sm:$0xf]
  %v5211 = vld [vmem:[%s5 + $0x1c] sm:$0xf]
  %v5212 = vld [vmem:[%s5 + $0x20] sm:$0xf]
  %v5213 = vld [vmem:[%s5 + $0x24] sm:$0xf]
  %v5214 = vld [vmem:[%s5 + $0x28] sm:$0xf]
  %v5215 = vld [vmem:[%s5 + $0x2c] sm:$0xf]
  %v5216 = vld [vmem:[%s5 + $0x30] sm:$0xf]
  %v5217 = vld [vmem:[%s5 + $0x34] sm:$0xf]
  %v5218 = vld [vmem:[%s5 + $0x38] sm:$0xf]
  %v5219 = vld [vmem:[%s5 + $0x3c] sm:$0xf]
  %v5220 = vld [vmem:[%s6] sm:$0x1]
  %v5222 = vlaneseq
  %v5223 = vshrl.u32 %v5222, 7
  %v5224 = vsub.s32 0, %v5223
  %v5225 = vrot.slane %v5220, %v5224
  %v5243 = vunpack.c.l.b16 %v5204
  %v5244 = vunpack.c.l.b16 %v5205
  %v5245 = vunpack.c.l.b16 %v5206
  %v5246 = vunpack.c.l.b16 %v5207
  %v5247 = vunpack.c.l.b16 %v5208
  %v5248 = vunpack.c.l.b16 %v5209
  %v5249 = vunpack.c.l.b16 %v5210
  %v5250 = vunpack.c.l.b16 %v5211
  %v5251 = vunpack.c.l.b16 %v5212
  %v5252 = vunpack.c.l.b16 %v5213
  %v5253 = vunpack.c.l.b16 %v5214
  %v5254 = vunpack.c.l.b16 %v5215
  %v5255 = vunpack.c.l.b16 %v5216
  %v5256 = vunpack.c.l.b16 %v5217
  %v5257 = vunpack.c.l.b16 %v5218
  %v5258 = vunpack.c.l.b16 %v5219
  %v5259 = vpack.c.b16 %v5244, %v5243
  %v5260 = vpack.c.b16 %v5246, %v5245
  %v5261 = vpack.c.b16 %v5248, %v5247
  %v5262 = vpack.c.b16 %v5250, %v5249
  %v5263 = vpack.c.b16 %v5252, %v5251
  %v5264 = vpack.c.b16 %v5254, %v5253
  %v5265 = vpack.c.b16 %v5256, %v5255
  %v5266 = vpack.c.b16 %v5258, %v5257
  %5275 = vmatprep.subr.bf16.mxu0 0
  %5276 = vmatpush1.bf16.msra.mxu0 %v5259
  %5277 = vmatprep.subr.bf16.mxu0 0
  %5278 = vmatpush1.bf16.msra.mxu0 %v5260
  %5279 = vmatprep.subr.bf16.mxu0 0
  %5280 = vmatpush1.bf16.msra.mxu0 %v5261
  %5281 = vmatprep.subr.bf16.mxu0 0
  %5282 = vmatpush1.bf16.msra.mxu0 %v5262
  %5283 = vmatprep.subr.bf16.mxu0 0
  %5284 = vmatpush1.bf16.msra.mxu0 %v5263
  %5285 = vmatprep.subr.bf16.mxu0 0
  %5286 = vmatpush1.bf16.msra.mxu0 %v5264
  %5287 = vmatprep.subr.bf16.mxu0 0
  %5288 = vmatpush1.bf16.msra.mxu0 %v5265
  %5289 = vmatprep.subr.bf16.mxu0 0
  %5290 = vmatpush1.bf16.msra.mxu0 %v5266
  %5291 = vmatprep.subr.bf16.mxu0 0
  %5292 = vmatpush1.bf16.msra.mxu0 0
  %5293 = vmatprep.subr.bf16.mxu0 0
  %5294 = vmatpush1.bf16.msra.mxu0 0
  %5295 = vmatprep.subr.bf16.mxu0 0
  %5296 = vmatpush1.bf16.msra.mxu0 0
  %5297 = vmatprep.subr.bf16.mxu0 0
  %5298 = vmatpush1.bf16.msra.mxu0 0
  %5299 = vmatprep.subr.bf16.mxu0 0
  %5300 = vmatpush1.bf16.msra.mxu0 0
  %5301 = vmatprep.subr.bf16.mxu0 0
  %5302 = vmatpush1.bf16.msra.mxu0 0
  %5303 = vmatprep.subr.bf16.mxu0 0
  %5304 = vmatpush1.bf16.msra.mxu0 0
  %5305 = vmatprep.subr.bf16.mxu0 0
  %5306 = vmatpush1.bf16.msra.mxu0 0
  %5307 = vmatprep.mubr.bf16.mxu0 0
  %5308 = vmatmul.mubr.bf16.gmra.mrb[0].mxu0 %v5203
  %v5309 = vpop.f32.mrb[0].mxu0
  %v5310 = vadd.f32 %v5225, %v5309
  %v5311 = vpop.f32.mrb[0].mxu0
  %v5312 = vpop.f32.mrb[0].mxu0
  %v5313 = vadd.f32 %v5225, %v5312
  %v5314 = vpop.f32.mrb[0].mxu0
  %5315 = vdwg.mxu0
  %5316 = vst [vmem:[%s7] sm:$0xff] %v5310
  %5317 = vst [vmem:[%s7 + $0x8] sm:$0xff] %v5313
  // Predicated region
  $region30: #{classifier_b_forward.3} parent=0 // pred_check
    _
  $region31: #{classifier_b_forward.3} parent=0 // pred_check_branch
    %5319 = sbr.rel (0) target = $region33
  $region32: #{classifier_b_forward.3} parent=0 // pred_region
    _
  $region33: #{classifier_b_forward.3} parent=0 // pred_fallthru
    _
  // Predicated region
  $region34: #{classifier_b_forward.3} parent=0 // pred_check
    _
  $region35: #{classifier_b_forward.3} parent=0 // pred_check_branch
    %5321 = sbr.rel (0) target = $region37
  $region36: #{classifier_b_forward.3} parent=0 // pred_region
    _
  $region37: #{classifier_b_forward.3} parent=0 // pred_fallthru
    _

</llo_original>
